<compile_context>
chip_gen: v6e
topology: v6e:2x2x1
jax: 0.10.0
libtpu: 0.0.40
codegen_flags: <defaults>
</compile_context>

<pallas_src>
import functools

import jax
import jax.numpy as jnp
from jax import lax
from jax.experimental import pallas as pl
from jax.experimental.pallas import tpu as pltpu

_P1 = 15                     # pooled conv1 spatial (30 -> 15)
_IMG = _P1 * _P1             # 225 flattened rows per image
_C1, _C2 = 6, 16
_F1, _F2, _F3 = 120, 84, 10
_LANES = 128                 # lane-padded logits width


def _round_up(x, m):
    return (x + m - 1) // m * m


# ----------------------------------------------------------------------------
# The single fused kernel.
# ----------------------------------------------------------------------------
def _net_kernel(p1_ref, w1_ref, b1_ref, w2_ref, b2_ref,
                wf1_ref, bf1_ref, wf2_ref, bf2_ref, wf3_ref, bf3_ref,
                o_ref,
                p1s_ref, im2_ref, c2s_ref, pm_ref, x2_ref,
                *, n_batch):
    f32 = jnp.float32
    n_c2 = c2s_ref.shape[0]        # conv2 rows computed (8-aligned)
    n_pm = pm_ref.shape[0]         # pool2 rows computed (8-aligned)

    # ---- conv1 + bias + ReLU + 2x2 maxpool: ONE MXU matmul ------------------
    # p1 packs the 4 pool-window offsets along lanes and w1 is block-diagonal,
    # so column block s of m is the conv1 output for offset s.
    # maxpool(relu(conv + b)) == relu(max_s(conv_s) + b).
    m = jnp.dot(p1_ref[...], w1_ref[...], preferred_element_type=f32)   # (NP, 24)
    cm = jnp.maximum(jnp.maximum(m[:, 0:_C1], m[:, _C1:2 * _C1]),
                     jnp.maximum(m[:, 2 * _C1:3 * _C1], m[:, 3 * _C1:4 * _C1]))
    p1s_ref[...] = jnp.maximum(cm + b1_ref[...], 0.0)     # (NP, 6), rows (n,ph,pw)

    # ---- conv2: stage im2col in VMEM scratch, then ONE K=54 matmul ----------
    # Tap (dy,dx) of output row r is pooled1 row r + dy*15 + dx, so each tap is
    # one row-shifted copy of pooled1 placed in lane block [6k, 6k+6).
    for dy in range(3):
        for dx in range(3):
            k = dy * 3 + dx
            off = dy * _P1 + dx
            im2_ref[:, k * _C1:(k + 1) * _C1] = p1s_ref[off:off + n_c2, :]
    c2s_ref[...] = jnp.maximum(
        jnp.dot(im2_ref[...], w2_ref[...], preferred_element_type=f32)
        + b2_ref[...], 0.0)                               # (n_c2, 16)

    # ---- 2x2 maxpool (floor) on conv2: max of 4 row-shifted slices ----------
    pm_ref[...] = jnp.maximum(
        jnp.maximum(c2s_ref[0:n_pm, :], c2s_ref[1:1 + n_pm, :]),
        jnp.maximum(c2s_ref[_P1:_P1 + n_pm, :],
                    c2s_ref[_P1 + 1:_P1 + 1 + n_pm, :]))
    # NOTE: rows whose 3x3 / 2x2 windows wrap across an image row or an image
    # boundary hold garbage; the fc1 gather below never touches those rows.
    # For 32x32 inputs the largest gathered row is (N-1)*225 + 160 and the pool
    # offsets are {0,1,15,16}, which stay inside the valid region.

    # ---- gather pooled2 -> (NB, 576) activations, batched MLP head ----------
    # torch flatten order (c, qh, qw) is folded into wf1's row order (qh,qw,c).
    x2_ref[...] = jnp.zeros_like(x2_ref)
    for n in range(n_batch):
        for qh in range(6):
            for qw in range(6):
                r = n * _IMG + 2 * qh * _P1 + 2 * qw
                col = (qh * 6 + qw) * _C2
                x2_ref[n:n + 1, col:col + _C2] = pm_ref[r:r + 1, :]

    h = jnp.maximum(jnp.dot(x2_ref[...], wf1_ref[...], preferred_element_type=f32)
                    + bf1_ref[...], 0.0)                  # (NB, 120)
    h = jnp.maximum(jnp.dot(h, wf2_ref[...], preferred_element_type=f32)
                    + bf2_ref[...], 0.0)                  # (NB, 84)
    o_ref[...] = (jnp.dot(h, wf3_ref[...], preferred_element_type=f32)
                  + bf3_ref[...])                         # dense (NB, 128) store


# ----------------------------------------------------------------------------
# Wrapper-side prep (cheap XLA): conv1 im2col + weight re-layouts.
# ----------------------------------------------------------------------------
def _build_conv1_patches(x_nchw, np_rows):
    """(N,1,32,32) -> (np_rows, 36); rows ordered (n,ph,pw); column s*9+(dy*3+dx)
    where s = 2*sh+sw is the 2x2 pool-window offset.  Rows beyond N*225 are 0."""
    n = x_nchw.shape[0]
    xs = x_nchw[:, 0]                                     # (N, 32, 32)
    cols = []
    for sh in range(2):
        for sw in range(2):
            for dy in range(3):
                for dx in range(3):
                    sub = lax.slice(xs, (0, sh + dy, sw + dx),
                                    (n, sh + dy + 29, sw + dx + 29), (1, 2, 2))
                    cols.append(sub.reshape(n * _IMG))    # (N*225,)
    p1 = jnp.stack(cols, axis=-1)                         # (N*225, 36)
    return jnp.pad(p1, ((0, np_rows - n * _IMG), (0, 0)))


def net_forward(x_nchw, p):
    n, cin, h, w = x_nchw.shape
    assert (cin, h, w) == (1, 32, 32), "Net requires (N, 1, 32, 32) input"
    x_nchw = x_nchw.astype(jnp.float32)

    np_rows = _round_up(n * _IMG, 8)                          # pooled1 rows
    n_pm = _round_up((n - 1) * _IMG + 10 * _P1 + 10 + 1, 8)   # pool2 rows
    n_c2 = n_pm + _P1 + 1                                     # conv2 rows (8-aligned)
    nb = _round_up(n, 8)                                      # MLP-head batch rows

    p1 = _build_conv1_patches(x_nchw, np_rows)                # (np_rows, 36)

    w1f = p["w1"].reshape(9, _C1)                             # HWIO -> (9, 6)
    w1bd = jnp.zeros((36, 4 * _C1), jnp.float32)              # block-diag (36, 24)
    for s in range(4):
        w1bd = w1bd.at[s * 9:(s + 1) * 9, s * _C1:(s + 1) * _C1].set(w1f)
    w2r = p["w2"].reshape(9 * _C1, _C2)                       # HWIO -> ((dy,dx,ci), co)
    # Fold torch's view(-1, 576) order (c*36 + qh*6 + qw) into fc1 row order
    # (qh*96 + qw*16 + c), matching the in-kernel x2 gather layout.
    wf1r = (p["wf1"].reshape(_C2, 6, 6, _F1)
            .transpose(1, 2, 0, 3).reshape(36 * _C2, _F1))    # (576, 120)
    wf3p = jnp.zeros((_F2, _LANES), jnp.float32).at[:, :_F3].set(p["wf3"])
    bf3p = jnp.zeros((1, _LANES), jnp.float32).at[:, :_F3].set(p["bf3"])

    kern = functools.partial(_net_kernel, n_batch=n)
    out = pl.pallas_call(
        kern,
        out_shape=jax.ShapeDtypeStruct((nb, _LANES), jnp.float32),
        in_specs=[pl.BlockSpec(memory_space=pltpu.MemorySpace.VMEM)] * 11,
        out_specs=pl.BlockSpec(memory_space=pltpu.MemorySpace.VMEM),
        scratch_shapes=[
            pltpu.VMEM((np_rows, _C1), jnp.float32),          # pooled1
            pltpu.VMEM((n_c2, 9 * _C1), jnp.float32),         # conv2 im2col (K=54)
            pltpu.VMEM((n_c2, _C2), jnp.float32),             # conv2 (post relu)
            pltpu.VMEM((n_pm, _C2), jnp.float32),             # pooled2
            pltpu.VMEM((nb, 36 * _C2), jnp.float32),          # flattened activations
        ],
        # TODO(synk): for batches beyond a handful, tile the batch with a grid
        # and dimension_semantics=("parallel",) to use v7x's second TensorCore.
    )(p1, w1bd, p["b1"].reshape(1, _C1), w2r, p["b2"].reshape(1, _C2),
      wf1r, p["bf1"].reshape(1, _F1), p["wf2"], p["bf2"].reshape(1, _F2),
      wf3p, bf3p)
    return out[:n, :_F3]


# Pure-JAX reference (same math, XLA ops) for the correctness check.
def net_forward_ref(x_nchw, p):
    def conv(x, w_hwio, b):
        w_oihw = jnp.transpose(w_hwio, (3, 2, 0, 1))
        y = lax.conv_general_dilated(x, w_oihw, (1, 1), "VALID",
                                     dimension_numbers=("NCHW", "OIHW", "NCHW"))
        return y + b.reshape(1, -1, 1, 1)

    def pool(x):
        return lax.reduce_window(x, -jnp.inf, lax.max,
                                 (1, 1, 2, 2), (1, 1, 2, 2), "VALID")

    x = pool(jax.nn.relu(conv(x_nchw, p["w1"], p["b1"])))
    x = pool(jax.nn.relu(conv(x, p["w2"], p["b2"])))
    x = x.reshape(x.shape[0], -1)
    x = jax.nn.relu(x @ p["wf1"] + p["bf1"])
    x = jax.nn.relu(x @ p["wf2"] + p["bf2"])
    return x @ p["wf3"] + p["bf3"]


if __name__ == "__main__":
    key = jax.random.PRNGKey(0)
    kx, kp = jax.random.split(key)
    N = 2
    x = jax.random.normal(kx, (N, 1, 32, 32), jnp.float32)   # LeNet-sized input

    def uinit(k, shape, fan_in):
        bound = 1.0 / float(fan_in) ** 0.5
        return jax.random.uniform(k, shape, jnp.float32, -bound, bound)

    ks = jax.random.split(kp, 10)
    params = {
        "w1": uinit(ks[0], (3, 3, 1, 6), 9),    "b1": uinit(ks[1], (6,), 9),
        "w2": uinit(ks[2], (3, 3, 6, 16), 54),  "b2": uinit(ks[3], (16,), 54),
        "wf1": uinit(ks[4], (576, 120), 576),   "bf1": uinit(ks[5], (120,), 576),
        "wf2": uinit(ks[6], (120, 84), 120),    "bf2": uinit(ks[7], (84,), 120),
        "wf3": uinit(ks[8], (84, 10), 84),      "bf3": uinit(ks[9], (10,), 84),
    }

    out = jax.block_until_ready(net_forward(x, params))
    ref = jax.block_until_ready(net_forward_ref(x, params))
    assert out.shape == (N, 10), out.shape
    assert bool(jnp.allclose(out, ref, atol=1e-3, rtol=1e-3)), (out, ref)
    print("KERNEL_OK")
</pallas_src>

<mosaic_0001>
module attributes {stable_mosaic.version = 11 : i64} {
  func.func @_net_kernel(%arg0: memref<456x36xf32, #tpu.memory_space<vmem>>, %arg1: memref<36x24xf32, #tpu.memory_space<vmem>>, %arg2: memref<1x6xf32, #tpu.memory_space<vmem>>, %arg3: memref<54x16xf32, #tpu.memory_space<vmem>>, %arg4: memref<1x16xf32, #tpu.memory_space<vmem>>, %arg5: memref<576x120xf32, #tpu.memory_space<vmem>>, %arg6: memref<1x120xf32, #tpu.memory_space<vmem>>, %arg7: memref<120x84xf32, #tpu.memory_space<vmem>>, %arg8: memref<1x84xf32, #tpu.memory_space<vmem>>, %arg9: memref<84x128xf32, #tpu.memory_space<vmem>>, %arg10: memref<1x128xf32, #tpu.memory_space<vmem>>, %arg11: memref<8x128xf32, #tpu.memory_space<vmem>>, %arg12: memref<456x6xf32, #tpu.memory_space<vmem>>, %arg13: memref<408x54xf32, #tpu.memory_space<vmem>>, %arg14: memref<408x16xf32, #tpu.memory_space<vmem>>, %arg15: memref<392x16xf32, #tpu.memory_space<vmem>>, %arg16: memref<8x576xf32, #tpu.memory_space<vmem>>) attributes {dimension_semantics = [], scalar_prefetch = 0 : i64, scratch_operands = 5 : i64, tpu.core_type = #tpu.core_type<tc>} {
    %c0 = arith.constant 0 : index
    %c0_0 = arith.constant 0 : index
    %0 = vector.load %arg0[%c0, %c0_0] : memref<456x36xf32, #tpu.memory_space<vmem>>, vector<456x36xf32>
    %c0_1 = arith.constant 0 : index
    %c0_2 = arith.constant 0 : index
    %1 = vector.load %arg1[%c0_1, %c0_2] : memref<36x24xf32, #tpu.memory_space<vmem>>, vector<36x24xf32>
    %cst = arith.constant dense<0.000000e+00> : vector<456x24xf32>
    %2 = tpu.matmul %0, %1, %cst {dimension_numbers = #tpu.dot_dimension_numbers<[1], [0], [0], [1], [0, 0, 1, 1], [], []>} : vector<456x36xf32>, vector<36x24xf32>, vector<456x24xf32> -> vector<456x24xf32>
    %3 = vector.extract_strided_slice %2 {offsets = [0, 0], sizes = [456, 6], strides = [1, 1]} : vector<456x24xf32> to vector<456x6xf32>
    %4 = vector.extract_strided_slice %2 {offsets = [0, 6], sizes = [456, 6], strides = [1, 1]} : vector<456x24xf32> to vector<456x6xf32>
    %5 = arith.maximumf %3, %4 : vector<456x6xf32>
    %6 = vector.extract_strided_slice %2 {offsets = [0, 12], sizes = [456, 6], strides = [1, 1]} : vector<456x24xf32> to vector<456x6xf32>
    %7 = vector.extract_strided_slice %2 {offsets = [0, 18], sizes = [456, 6], strides = [1, 1]} : vector<456x24xf32> to vector<456x6xf32>
    %8 = arith.maximumf %6, %7 : vector<456x6xf32>
    %9 = arith.maximumf %5, %8 : vector<456x6xf32>
    %c0_3 = arith.constant 0 : index
    %c0_4 = arith.constant 0 : index
    %10 = vector.load %arg2[%c0_3, %c0_4] : memref<1x6xf32, #tpu.memory_space<vmem>>, vector<1x6xf32>
    %11 = vector.broadcast %10 : vector<1x6xf32> to vector<456x6xf32>
    %12 = arith.addf %9, %11 : vector<456x6xf32>
    %cst_5 = arith.constant 0.000000e+00 : f32
    %13 = vector.broadcast %cst_5 : f32 to vector<456x6xf32>
    %14 = arith.maximumf %12, %13 : vector<456x6xf32>
    %c0_6 = arith.constant 0 : index
    %c0_7 = arith.constant 0 : index
    %15 = vector.load %arg12[%c0_6, %c0_7] : memref<456x6xf32, #tpu.memory_space<vmem>>, vector<456x6xf32>
    tpu.vector_store %arg12[%c0_6, %c0_7], %14 {strides = array<i32>} : memref<456x6xf32, #tpu.memory_space<vmem>>, vector<456x6xf32>,
    %c0_8 = arith.constant 0 : index
    %c0_9 = arith.constant 0 : index
    %16 = vector.load %arg12[%c0_8, %c0_9] : memref<456x6xf32, #tpu.memory_space<vmem>>, vector<408x6xf32>
    %c0_10 = arith.constant 0 : index
    %c0_11 = arith.constant 0 : index
    %17 = vector.load %arg13[%c0_10, %c0_11] : memref<408x54xf32, #tpu.memory_space<vmem>>, vector<408x6xf32>
    tpu.vector_store %arg13[%c0_10, %c0_11], %16 {strides = array<i32>} : memref<408x54xf32, #tpu.memory_space<vmem>>, vector<408x6xf32>,
    %c1 = arith.constant 1 : index
    %c0_12 = arith.constant 0 : index
    %18 = vector.load %arg12[%c1, %c0_12] : memref<456x6xf32, #tpu.memory_space<vmem>>, vector<408x6xf32>
    %c0_13 = arith.constant 0 : index
    %c6 = arith.constant 6 : index
    %19 = vector.load %arg13[%c0_13, %c6] : memref<408x54xf32, #tpu.memory_space<vmem>>, vector<408x6xf32>
    tpu.vector_store %arg13[%c0_13, %c6], %18 {strides = array<i32>} : memref<408x54xf32, #tpu.memory_space<vmem>>, vector<408x6xf32>,
    %c2 = arith.constant 2 : index
    %c0_14 = arith.constant 0 : index
    %20 = vector.load %arg12[%c2, %c0_14] : memref<456x6xf32, #tpu.memory_space<vmem>>, vector<408x6xf32>
    %c0_15 = arith.constant 0 : index
    %c12 = arith.constant 12 : index
    %21 = vector.load %arg13[%c0_15, %c12] : memref<408x54xf32, #tpu.memory_space<vmem>>, vector<408x6xf32>
    tpu.vector_store %arg13[%c0_15, %c12], %20 {strides = array<i32>} : memref<408x54xf32, #tpu.memory_space<vmem>>, vector<408x6xf32>,
    %c15 = arith.constant 15 : index
    %c0_16 = arith.constant 0 : index
    %22 = vector.load %arg12[%c15, %c0_16] : memref<456x6xf32, #tpu.memory_space<vmem>>, vector<408x6xf32>
    %c0_17 = arith.constant 0 : index
    %c18 = arith.constant 18 : index
    %23 = vector.load %arg13[%c0_17, %c18] : memref<408x54xf32, #tpu.memory_space<vmem>>, vector<408x6xf32>
    tpu.vector_store %arg13[%c0_17, %c18], %22 {strides = array<i32>} : memref<408x54xf32, #tpu.memory_space<vmem>>, vector<408x6xf32>,
    %c16 = arith.constant 16 : index
    %c0_18 = arith.constant 0 : index
    %24 = vector.load %arg12[%c16, %c0_18] : memref<456x6xf32, #tpu.memory_space<vmem>>, vector<408x6xf32>
    %c0_19 = arith.constant 0 : index
    %c24 = arith.constant 24 : index
    %25 = vector.load %arg13[%c0_19, %c24] : memref<408x54xf32, #tpu.memory_space<vmem>>, vector<408x6xf32>
    tpu.vector_store %arg13[%c0_19, %c24], %24 {strides = array<i32>} : memref<408x54xf32, #tpu.memory_space<vmem>>, vector<408x6xf32>,
    %c17 = arith.constant 17 : index
    %c0_20 = arith.constant 0 : index
    %26 = vector.load %arg12[%c17, %c0_20] : memref<456x6xf32, #tpu.memory_space<vmem>>, vector<408x6xf32>
    %c0_21 = arith.constant 0 : index
    %c30 = arith.constant 30 : index
    %27 = vector.load %arg13[%c0_21, %c30] : memref<408x54xf32, #tpu.memory_space<vmem>>, vector<408x6xf32>
    tpu.vector_store %arg13[%c0_21, %c30], %26 {strides = array<i32>} : memref<408x54xf32, #tpu.memory_space<vmem>>, vector<408x6xf32>,
    %c30_22 = arith.constant 30 : index
    %c0_23 = arith.constant 0 : index
    %28 = vector.load %arg12[%c30_22, %c0_23] : memref<456x6xf32, #tpu.memory_space<vmem>>, vector<408x6xf32>
    %c0_24 = arith.constant 0 : index
    %c36 = arith.constant 36 : index
    %29 = vector.load %arg13[%c0_24, %c36] : memref<408x54xf32, #tpu.memory_space<vmem>>, vector<408x6xf32>
    tpu.vector_store %arg13[%c0_24, %c36], %28 {strides = array<i32>} : memref<408x54xf32, #tpu.memory_space<vmem>>, vector<408x6xf32>,
    %c31 = arith.constant 31 : index
    %c0_25 = arith.constant 0 : index
    %30 = vector.load %arg12[%c31, %c0_25] : memref<456x6xf32, #tpu.memory_space<vmem>>, vector<408x6xf32>
    %c0_26 = arith.constant 0 : index
    %c42 = arith.constant 42 : index
    %31 = vector.load %arg13[%c0_26, %c42] : memref<408x54xf32, #tpu.memory_space<vmem>>, vector<408x6xf32>
    tpu.vector_store %arg13[%c0_26, %c42], %30 {strides = array<i32>} : memref<408x54xf32, #tpu.memory_space<vmem>>, vector<408x6xf32>,
    %c32 = arith.constant 32 : index
    %c0_27 = arith.constant 0 : index
    %32 = vector.load %arg12[%c32, %c0_27] : memref<456x6xf32, #tpu.memory_space<vmem>>, vector<408x6xf32>
    %c0_28 = arith.constant 0 : index
    %c48 = arith.constant 48 : index
    %33 = vector.load %arg13[%c0_28, %c48] : memref<408x54xf32, #tpu.memory_space<vmem>>, vector<408x6xf32>
    tpu.vector_store %arg13[%c0_28, %c48], %32 {strides = array<i32>} : memref<408x54xf32, #tpu.memory_space<vmem>>, vector<408x6xf32>,
    %c0_29 = arith.constant 0 : index
    %c0_30 = arith.constant 0 : index
    %34 = vector.load %arg13[%c0_29, %c0_30] : memref<408x54xf32, #tpu.memory_space<vmem>>, vector<408x54xf32>
    %c0_31 = arith.constant 0 : index
    %c0_32 = arith.constant 0 : index
    %35 = vector.load %arg3[%c0_31, %c0_32] : memref<54x16xf32, #tpu.memory_space<vmem>>, vector<54x16xf32>
    %cst_33 = arith.constant dense<0.000000e+00> : vector<408x16xf32>
    %36 = tpu.matmul %34, %35, %cst_33 {dimension_numbers = #tpu.dot_dimension_numbers<[1], [0], [0], [1], [0, 0, 1, 1], [], []>} : vector<408x54xf32>, vector<54x16xf32>, vector<408x16xf32> -> vector<408x16xf32>
    %c0_34 = arith.constant 0 : index
    %c0_35 = arith.constant 0 : index
    %37 = vector.load %arg4[%c0_34, %c0_35] : memref<1x16xf32, #tpu.memory_space<vmem>>, vector<1x16xf32>
    %38 = vector.broadcast %37 : vector<1x16xf32> to vector<408x16xf32>
    %39 = arith.addf %36, %38 : vector<408x16xf32>
    %cst_36 = arith.constant 0.000000e+00 : f32
    %40 = vector.broadcast %cst_36 : f32 to vector<408x16xf32>
    %41 = arith.maximumf %39, %40 : vector<408x16xf32>
    %c0_37 = arith.constant 0 : index
    %c0_38 = arith.constant 0 : index
    %42 = vector.load %arg14[%c0_37, %c0_38] : memref<408x16xf32, #tpu.memory_space<vmem>>, vector<408x16xf32>
    tpu.vector_store %arg14[%c0_37, %c0_38], %41 {strides = array<i32>} : memref<408x16xf32, #tpu.memory_space<vmem>>, vector<408x16xf32>,
    %c0_39 = arith.constant 0 : index
    %c0_40 = arith.constant 0 : index
    %43 = vector.load %arg14[%c0_39, %c0_40] : memref<408x16xf32, #tpu.memory_space<vmem>>, vector<392x16xf32>
    %c1_41 = arith.constant 1 : index
    %c0_42 = arith.constant 0 : index
    %44 = vector.load %arg14[%c1_41, %c0_42] : memref<408x16xf32, #tpu.memory_space<vmem>>, vector<392x16xf32>
    %45 = arith.maximumf %43, %44 : vector<392x16xf32>
    %c15_43 = arith.constant 15 : index
    %c0_44 = arith.constant 0 : index
    %46 = vector.load %arg14[%c15_43, %c0_44] : memref<408x16xf32, #tpu.memory_space<vmem>>, vector<392x16xf32>
    %c16_45 = arith.constant 16 : index
    %c0_46 = arith.constant 0 : index
    %47 = vector.load %arg14[%c16_45, %c0_46] : memref<408x16xf32, #tpu.memory_space<vmem>>, vector<392x16xf32>
    %48 = arith.maximumf %46, %47 : vector<392x16xf32>
    %49 = arith.maximumf %45, %48 : vector<392x16xf32>
    %c0_47 = arith.constant 0 : index
    %c0_48 = arith.constant 0 : index
    %50 = vector.load %arg15[%c0_47, %c0_48] : memref<392x16xf32, #tpu.memory_space<vmem>>, vector<392x16xf32>
    tpu.vector_store %arg15[%c0_47, %c0_48], %49 {strides = array<i32>} : memref<392x16xf32, #tpu.memory_space<vmem>>, vector<392x16xf32>,
    %cst_49 = arith.constant 0.000000e+00 : f32
    %51 = vector.broadcast %cst_49 : f32 to vector<8x576xf32>
    %c0_50 = arith.constant 0 : index
    %c0_51 = arith.constant 0 : index
    %52 = vector.load %arg16[%c0_50, %c0_51] : memref<8x576xf32, #tpu.memory_space<vmem>>, vector<8x576xf32>
    tpu.vector_store %arg16[%c0_50, %c0_51], %51 {strides = array<i32>} : memref<8x576xf32, #tpu.memory_space<vmem>>, vector<8x576xf32>,
    %c0_52 = arith.constant 0 : index
    %c0_53 = arith.constant 0 : index
    %53 = vector.load %arg15[%c0_52, %c0_53] : memref<392x16xf32, #tpu.memory_space<vmem>>, vector<1x16xf32>
    %c0_54 = arith.constant 0 : index
    %c0_55 = arith.constant 0 : index
    %54 = vector.load %arg16[%c0_54, %c0_55] : memref<8x576xf32, #tpu.memory_space<vmem>>, vector<1x16xf32>
    tpu.vector_store %arg16[%c0_54, %c0_55], %53 {strides = array<i32>} : memref<8x576xf32, #tpu.memory_space<vmem>>, vector<1x16xf32>,
    %c2_56 = arith.constant 2 : index
    %c0_57 = arith.constant 0 : index
    %55 = vector.load %arg15[%c2_56, %c0_57] : memref<392x16xf32, #tpu.memory_space<vmem>>, vector<1x16xf32>
    %c0_58 = arith.constant 0 : index
    %c16_59 = arith.constant 16 : index
    %56 = vector.load %arg16[%c0_58, %c16_59] : memref<8x576xf32, #tpu.memory_space<vmem>>, vector<1x16xf32>
    tpu.vector_store %arg16[%c0_58, %c16_59], %55 {strides = array<i32>} : memref<8x576xf32, #tpu.memory_space<vmem>>, vector<1x16xf32>,
    %c4 = arith.constant 4 : index
    %c0_60 = arith.constant 0 : index
    %57 = vector.load %arg15[%c4, %c0_60] : memref<392x16xf32, #tpu.memory_space<vmem>>, vector<1x16xf32>
    %c0_61 = arith.constant 0 : index
    %c32_62 = arith.constant 32 : index
    %58 = vector.load %arg16[%c0_61, %c32_62] : memref<8x576xf32, #tpu.memory_space<vmem>>, vector<1x16xf32>
    tpu.vector_store %arg16[%c0_61, %c32_62], %57 {strides = array<i32>} : memref<8x576xf32, #tpu.memory_space<vmem>>, vector<1x16xf32>,
    %c6_63 = arith.constant 6 : index
    %c0_64 = arith.constant 0 : index
    %59 = vector.load %arg15[%c6_63, %c0_64] : memref<392x16xf32, #tpu.memory_space<vmem>>, vector<1x16xf32>
    %c0_65 = arith.constant 0 : index
    %c48_66 = arith.constant 48 : index
    %60 = vector.load %arg16[%c0_65, %c48_66] : memref<8x576xf32, #tpu.memory_space<vmem>>, vector<1x16xf32>
    tpu.vector_store %arg16[%c0_65, %c48_66], %59 {strides = array<i32>} : memref<8x576xf32, #tpu.memory_space<vmem>>, vector<1x16xf32>,
    %c8 = arith.constant 8 : index
    %c0_67 = arith.constant 0 : index
    %61 = vector.load %arg15[%c8, %c0_67] : memref<392x16xf32, #tpu.memory_space<vmem>>, vector<1x16xf32>
    %c0_68 = arith.constant 0 : index
    %c64 = arith.constant 64 : index
    %62 = vector.load %arg16[%c0_68, %c64] : memref<8x576xf32, #tpu.memory_space<vmem>>, vector<1x16xf32>
    tpu.vector_store %arg16[%c0_68, %c64], %61 {strides = array<i32>} : memref<8x576xf32, #tpu.memory_space<vmem>>, vector<1x16xf32>,
    %c10 = arith.constant 10 : index
    %c0_69 = arith.constant 0 : index
    %63 = vector.load %arg15[%c10, %c0_69] : memref<392x16xf32, #tpu.memory_space<vmem>>, vector<1x16xf32>
    %c0_70 = arith.constant 0 : index
    %c80 = arith.constant 80 : index
    %64 = vector.load %arg16[%c0_70, %c80] : memref<8x576xf32, #tpu.memory_space<vmem>>, vector<1x16xf32>
    tpu.vector_store %arg16[%c0_70, %c80], %63 {strides = array<i32>} : memref<8x576xf32, #tpu.memory_space<vmem>>, vector<1x16xf32>,
    %c30_71 = arith.constant 30 : index
    %c0_72 = arith.constant 0 : index
    %65 = vector.load %arg15[%c30_71, %c0_72] : memref<392x16xf32, #tpu.memory_space<vmem>>, vector<1x16xf32>
    %c0_73 = arith.constant 0 : index
    %c96 = arith.constant 96 : index
    %66 = vector.load %arg16[%c0_73, %c96] : memref<8x576xf32, #tpu.memory_space<vmem>>, vector<1x16xf32>
    tpu.vector_store %arg16[%c0_73, %c96], %65 {strides = array<i32>} : memref<8x576xf32, #tpu.memory_space<vmem>>, vector<1x16xf32>,
    %c32_74 = arith.constant 32 : index
    %c0_75 = arith.constant 0 : index
    %67 = vector.load %arg15[%c32_74, %c0_75] : memref<392x16xf32, #tpu.memory_space<vmem>>, vector<1x16xf32>
    %c0_76 = arith.constant 0 : index
    %c112 = arith.constant 112 : index
    %68 = vector.load %arg16[%c0_76, %c112] : memref<8x576xf32, #tpu.memory_space<vmem>>, vector<1x16xf32>
    tpu.vector_store %arg16[%c0_76, %c112], %67 {strides = array<i32>} : memref<8x576xf32, #tpu.memory_space<vmem>>, vector<1x16xf32>,
    %c34 = arith.constant 34 : index
    %c0_77 = arith.constant 0 : index
    %69 = vector.load %arg15[%c34, %c0_77] : memref<392x16xf32, #tpu.memory_space<vmem>>, vector<1x16xf32>
    %c0_78 = arith.constant 0 : index
    %c128 = arith.constant 128 : index
    %70 = vector.load %arg16[%c0_78, %c128] : memref<8x576xf32, #tpu.memory_space<vmem>>, vector<1x16xf32>
    tpu.vector_store %arg16[%c0_78, %c128], %69 {strides = array<i32>} : memref<8x576xf32, #tpu.memory_space<vmem>>, vector<1x16xf32>,
    %c36_79 = arith.constant 36 : index
    %c0_80 = arith.constant 0 : index
    %71 = vector.load %arg15[%c36_79, %c0_80] : memref<392x16xf32, #tpu.memory_space<vmem>>, vector<1x16xf32>
    %c0_81 = arith.constant 0 : index
    %c144 = arith.constant 144 : index
    %72 = vector.load %arg16[%c0_81, %c144] : memref<8x576xf32, #tpu.memory_space<vmem>>, vector<1x16xf32>
    tpu.vector_store %arg16[%c0_81, %c144], %71 {strides = array<i32>} : memref<8x576xf32, #tpu.memory_space<vmem>>, vector<1x16xf32>,
    %c38 = arith.constant 38 : index
    %c0_82 = arith.constant 0 : index
    %73 = vector.load %arg15[%c38, %c0_82] : memref<392x16xf32, #tpu.memory_space<vmem>>, vector<1x16xf32>
    %c0_83 = arith.constant 0 : index
    %c160 = arith.constant 160 : index
    %74 = vector.load %arg16[%c0_83, %c160] : memref<8x576xf32, #tpu.memory_space<vmem>>, vector<1x16xf32>
    tpu.vector_store %arg16[%c0_83, %c160], %73 {strides = array<i32>} : memref<8x576xf32, #tpu.memory_space<vmem>>, vector<1x16xf32>,
    %c40 = arith.constant 40 : index
    %c0_84 = arith.constant 0 : index
    %75 = vector.load %arg15[%c40, %c0_84] : memref<392x16xf32, #tpu.memory_space<vmem>>, vector<1x16xf32>
    %c0_85 = arith.constant 0 : index
    %c176 = arith.constant 176 : index
    %76 = vector.load %arg16[%c0_85, %c176] : memref<8x576xf32, #tpu.memory_space<vmem>>, vector<1x16xf32>
    tpu.vector_store %arg16[%c0_85, %c176], %75 {strides = array<i32>} : memref<8x576xf32, #tpu.memory_space<vmem>>, vector<1x16xf32>,
    %c60 = arith.constant 60 : index
    %c0_86 = arith.constant 0 : index
    %77 = vector.load %arg15[%c60, %c0_86] : memref<392x16xf32, #tpu.memory_space<vmem>>, vector<1x16xf32>
    %c0_87 = arith.constant 0 : index
    %c192 = arith.constant 192 : index
    %78 = vector.load %arg16[%c0_87, %c192] : memref<8x576xf32, #tpu.memory_space<vmem>>, vector<1x16xf32>
    tpu.vector_store %arg16[%c0_87, %c192], %77 {strides = array<i32>} : memref<8x576xf32, #tpu.memory_space<vmem>>, vector<1x16xf32>,
    %c62 = arith.constant 62 : index
    %c0_88 = arith.constant 0 : index
    %79 = vector.load %arg15[%c62, %c0_88] : memref<392x16xf32, #tpu.memory_space<vmem>>, vector<1x16xf32>
    %c0_89 = arith.constant 0 : index
    %c208 = arith.constant 208 : index
    %80 = vector.load %arg16[%c0_89, %c208] : memref<8x576xf32, #tpu.memory_space<vmem>>, vector<1x16xf32>
    tpu.vector_store %arg16[%c0_89, %c208], %79 {strides = array<i32>} : memref<8x576xf32, #tpu.memory_space<vmem>>, vector<1x16xf32>,
    %c64_90 = arith.constant 64 : index
    %c0_91 = arith.constant 0 : index
    %81 = vector.load %arg15[%c64_90, %c0_91] : memref<392x16xf32, #tpu.memory_space<vmem>>, vector<1x16xf32>
    %c0_92 = arith.constant 0 : index
    %c224 = arith.constant 224 : index
    %82 = vector.load %arg16[%c0_92, %c224] : memref<8x576xf32, #tpu.memory_space<vmem>>, vector<1x16xf32>
    tpu.vector_store %arg16[%c0_92, %c224], %81 {strides = array<i32>} : memref<8x576xf32, #tpu.memory_space<vmem>>, vector<1x16xf32>,
    %c66 = arith.constant 66 : index
    %c0_93 = arith.constant 0 : index
    %83 = vector.load %arg15[%c66, %c0_93] : memref<392x16xf32, #tpu.memory_space<vmem>>, vector<1x16xf32>
    %c0_94 = arith.constant 0 : index
    %c240 = arith.constant 240 : index
    %84 = vector.load %arg16[%c0_94, %c240] : memref<8x576xf32, #tpu.memory_space<vmem>>, vector<1x16xf32>
    tpu.vector_store %arg16[%c0_94, %c240], %83 {strides = array<i32>} : memref<8x576xf32, #tpu.memory_space<vmem>>, vector<1x16xf32>,
    %c68 = arith.constant 68 : index
    %c0_95 = arith.constant 0 : index
    %85 = vector.load %arg15[%c68, %c0_95] : memref<392x16xf32, #tpu.memory_space<vmem>>, vector<1x16xf32>
    %c0_96 = arith.constant 0 : index
    %c256 = arith.constant 256 : index
    %86 = vector.load %arg16[%c0_96, %c256] : memref<8x576xf32, #tpu.memory_space<vmem>>, vector<1x16xf32>
    tpu.vector_store %arg16[%c0_96, %c256], %85 {strides = array<i32>} : memref<8x576xf32, #tpu.memory_space<vmem>>, vector<1x16xf32>,
    %c70 = arith.constant 70 : index
    %c0_97 = arith.constant 0 : index
    %87 = vector.load %arg15[%c70, %c0_97] : memref<392x16xf32, #tpu.memory_space<vmem>>, vector<1x16xf32>
    %c0_98 = arith.constant 0 : index
    %c272 = arith.constant 272 : index
    %88 = vector.load %arg16[%c0_98, %c272] : memref<8x576xf32, #tpu.memory_space<vmem>>, vector<1x16xf32>
    tpu.vector_store %arg16[%c0_98, %c272], %87 {strides = array<i32>} : memref<8x576xf32, #tpu.memory_space<vmem>>, vector<1x16xf32>,
    %c90 = arith.constant 90 : index
    %c0_99 = arith.constant 0 : index
    %89 = vector.load %arg15[%c90, %c0_99] : memref<392x16xf32, #tpu.memory_space<vmem>>, vector<1x16xf32>
    %c0_100 = arith.constant 0 : index
    %c288 = arith.constant 288 : index
    %90 = vector.load %arg16[%c0_100, %c288] : memref<8x576xf32, #tpu.memory_space<vmem>>, vector<1x16xf32>
    tpu.vector_store %arg16[%c0_100, %c288], %89 {strides = array<i32>} : memref<8x576xf32, #tpu.memory_space<vmem>>, vector<1x16xf32>,
    %c92 = arith.constant 92 : index
    %c0_101 = arith.constant 0 : index
    %91 = vector.load %arg15[%c92, %c0_101] : memref<392x16xf32, #tpu.memory_space<vmem>>, vector<1x16xf32>
    %c0_102 = arith.constant 0 : index
    %c304 = arith.constant 304 : index
    %92 = vector.load %arg16[%c0_102, %c304] : memref<8x576xf32, #tpu.memory_space<vmem>>, vector<1x16xf32>
    tpu.vector_store %arg16[%c0_102, %c304], %91 {strides = array<i32>} : memref<8x576xf32, #tpu.memory_space<vmem>>, vector<1x16xf32>,
    %c94 = arith.constant 94 : index
    %c0_103 = arith.constant 0 : index
    %93 = vector.load %arg15[%c94, %c0_103] : memref<392x16xf32, #tpu.memory_space<vmem>>, vector<1x16xf32>
    %c0_104 = arith.constant 0 : index
    %c320 = arith.constant 320 : index
    %94 = vector.load %arg16[%c0_104, %c320] : memref<8x576xf32, #tpu.memory_space<vmem>>, vector<1x16xf32>
    tpu.vector_store %arg16[%c0_104, %c320], %93 {strides = array<i32>} : memref<8x576xf32, #tpu.memory_space<vmem>>, vector<1x16xf32>,
    %c96_105 = arith.constant 96 : index
    %c0_106 = arith.constant 0 : index
    %95 = vector.load %arg15[%c96_105, %c0_106] : memref<392x16xf32, #tpu.memory_space<vmem>>, vector<1x16xf32>
    %c0_107 = arith.constant 0 : index
    %c336 = arith.constant 336 : index
    %96 = vector.load %arg16[%c0_107, %c336] : memref<8x576xf32, #tpu.memory_space<vmem>>, vector<1x16xf32>
    tpu.vector_store %arg16[%c0_107, %c336], %95 {strides = array<i32>} : memref<8x576xf32, #tpu.memory_space<vmem>>, vector<1x16xf32>,
    %c98 = arith.constant 98 : index
    %c0_108 = arith.constant 0 : index
    %97 = vector.load %arg15[%c98, %c0_108] : memref<392x16xf32, #tpu.memory_space<vmem>>, vector<1x16xf32>
    %c0_109 = arith.constant 0 : index
    %c352 = arith.constant 352 : index
    %98 = vector.load %arg16[%c0_109, %c352] : memref<8x576xf32, #tpu.memory_space<vmem>>, vector<1x16xf32>
    tpu.vector_store %arg16[%c0_109, %c352], %97 {strides = array<i32>} : memref<8x576xf32, #tpu.memory_space<vmem>>, vector<1x16xf32>,
    %c100 = arith.constant 100 : index
    %c0_110 = arith.constant 0 : index
    %99 = vector.load %arg15[%c100, %c0_110] : memref<392x16xf32, #tpu.memory_space<vmem>>, vector<1x16xf32>
    %c0_111 = arith.constant 0 : index
    %c368 = arith.constant 368 : index
    %100 = vector.load %arg16[%c0_111, %c368] : memref<8x576xf32, #tpu.memory_space<vmem>>, vector<1x16xf32>
    tpu.vector_store %arg16[%c0_111, %c368], %99 {strides = array<i32>} : memref<8x576xf32, #tpu.memory_space<vmem>>, vector<1x16xf32>,
    %c120 = arith.constant 120 : index
    %c0_112 = arith.constant 0 : index
    %101 = vector.load %arg15[%c120, %c0_112] : memref<392x16xf32, #tpu.memory_space<vmem>>, vector<1x16xf32>
    %c0_113 = arith.constant 0 : index
    %c384 = arith.constant 384 : index
    %102 = vector.load %arg16[%c0_113, %c384] : memref<8x576xf32, #tpu.memory_space<vmem>>, vector<1x16xf32>
    tpu.vector_store %arg16[%c0_113, %c384], %101 {strides = array<i32>} : memref<8x576xf32, #tpu.memory_space<vmem>>, vector<1x16xf32>,
    %c122 = arith.constant 122 : index
    %c0_114 = arith.constant 0 : index
    %103 = vector.load %arg15[%c122, %c0_114] : memref<392x16xf32, #tpu.memory_space<vmem>>, vector<1x16xf32>
    %c0_115 = arith.constant 0 : index
    %c400 = arith.constant 400 : index
    %104 = vector.load %arg16[%c0_115, %c400] : memref<8x576xf32, #tpu.memory_space<vmem>>, vector<1x16xf32>
    tpu.vector_store %arg16[%c0_115, %c400], %103 {strides = array<i32>} : memref<8x576xf32, #tpu.memory_space<vmem>>, vector<1x16xf32>,
    %c124 = arith.constant 124 : index
    %c0_116 = arith.constant 0 : index
    %105 = vector.load %arg15[%c124, %c0_116] : memref<392x16xf32, #tpu.memory_space<vmem>>, vector<1x16xf32>
    %c0_117 = arith.constant 0 : index
    %c416 = arith.constant 416 : index
    %106 = vector.load %arg16[%c0_117, %c416] : memref<8x576xf32, #tpu.memory_space<vmem>>, vector<1x16xf32>
    tpu.vector_store %arg16[%c0_117, %c416], %105 {strides = array<i32>} : memref<8x576xf32, #tpu.memory_space<vmem>>, vector<1x16xf32>,
    %c126 = arith.constant 126 : index
    %c0_118 = arith.constant 0 : index
    %107 = vector.load %arg15[%c126, %c0_118] : memref<392x16xf32, #tpu.memory_space<vmem>>, vector<1x16xf32>
    %c0_119 = arith.constant 0 : index
    %c432 = arith.constant 432 : index
    %108 = vector.load %arg16[%c0_119, %c432] : memref<8x576xf32, #tpu.memory_space<vmem>>, vector<1x16xf32>
    tpu.vector_store %arg16[%c0_119, %c432], %107 {strides = array<i32>} : memref<8x576xf32, #tpu.memory_space<vmem>>, vector<1x16xf32>,
    %c128_120 = arith.constant 128 : index
    %c0_121 = arith.constant 0 : index
    %109 = vector.load %arg15[%c128_120, %c0_121] : memref<392x16xf32, #tpu.memory_space<vmem>>, vector<1x16xf32>
    %c0_122 = arith.constant 0 : index
    %c448 = arith.constant 448 : index
    %110 = vector.load %arg16[%c0_122, %c448] : memref<8x576xf32, #tpu.memory_space<vmem>>, vector<1x16xf32>
    tpu.vector_store %arg16[%c0_122, %c448], %109 {strides = array<i32>} : memref<8x576xf32, #tpu.memory_space<vmem>>, vector<1x16xf32>,
    %c130 = arith.constant 130 : index
    %c0_123 = arith.constant 0 : index
    %111 = vector.load %arg15[%c130, %c0_123] : memref<392x16xf32, #tpu.memory_space<vmem>>, vector<1x16xf32>
    %c0_124 = arith.constant 0 : index
    %c464 = arith.constant 464 : index
    %112 = vector.load %arg16[%c0_124, %c464] : memref<8x576xf32, #tpu.memory_space<vmem>>, vector<1x16xf32>
    tpu.vector_store %arg16[%c0_124, %c464], %111 {strides = array<i32>} : memref<8x576xf32, #tpu.memory_space<vmem>>, vector<1x16xf32>,
    %c150 = arith.constant 150 : index
    %c0_125 = arith.constant 0 : index
    %113 = vector.load %arg15[%c150, %c0_125] : memref<392x16xf32, #tpu.memory_space<vmem>>, vector<1x16xf32>
    %c0_126 = arith.constant 0 : index
    %c480 = arith.constant 480 : index
    %114 = vector.load %arg16[%c0_126, %c480] : memref<8x576xf32, #tpu.memory_space<vmem>>, vector<1x16xf32>
    tpu.vector_store %arg16[%c0_126, %c480], %113 {strides = array<i32>} : memref<8x576xf32, #tpu.memory_space<vmem>>, vector<1x16xf32>,
    %c152 = arith.constant 152 : index
    %c0_127 = arith.constant 0 : index
    %115 = vector.load %arg15[%c152, %c0_127] : memref<392x16xf32, #tpu.memory_space<vmem>>, vector<1x16xf32>
    %c0_128 = arith.constant 0 : index
    %c496 = arith.constant 496 : index
    %116 = vector.load %arg16[%c0_128, %c496] : memref<8x576xf32, #tpu.memory_space<vmem>>, vector<1x16xf32>
    tpu.vector_store %arg16[%c0_128, %c496], %115 {strides = array<i32>} : memref<8x576xf32, #tpu.memory_space<vmem>>, vector<1x16xf32>,
    %c154 = arith.constant 154 : index
    %c0_129 = arith.constant 0 : index
    %117 = vector.load %arg15[%c154, %c0_129] : memref<392x16xf32, #tpu.memory_space<vmem>>, vector<1x16xf32>
    %c0_130 = arith.constant 0 : index
    %c512 = arith.constant 512 : index
    %118 = vector.load %arg16[%c0_130, %c512] : memref<8x576xf32, #tpu.memory_space<vmem>>, vector<1x16xf32>
    tpu.vector_store %arg16[%c0_130, %c512], %117 {strides = array<i32>} : memref<8x576xf32, #tpu.memory_space<vmem>>, vector<1x16xf32>,
    %c156 = arith.constant 156 : index
    %c0_131 = arith.constant 0 : index
    %119 = vector.load %arg15[%c156, %c0_131] : memref<392x16xf32, #tpu.memory_space<vmem>>, vector<1x16xf32>
    %c0_132 = arith.constant 0 : index
    %c528 = arith.constant 528 : index
    %120 = vector.load %arg16[%c0_132, %c528] : memref<8x576xf32, #tpu.memory_space<vmem>>, vector<1x16xf32>
    tpu.vector_store %arg16[%c0_132, %c528], %119 {strides = array<i32>} : memref<8x576xf32, #tpu.memory_space<vmem>>, vector<1x16xf32>,
    %c158 = arith.constant 158 : index
    %c0_133 = arith.constant 0 : index
    %121 = vector.load %arg15[%c158, %c0_133] : memref<392x16xf32, #tpu.memory_space<vmem>>, vector<1x16xf32>
    %c0_134 = arith.constant 0 : index
    %c544 = arith.constant 544 : index
    %122 = vector.load %arg16[%c0_134, %c544] : memref<8x576xf32, #tpu.memory_space<vmem>>, vector<1x16xf32>
    tpu.vector_store %arg16[%c0_134, %c544], %121 {strides = array<i32>} : memref<8x576xf32, #tpu.memory_space<vmem>>, vector<1x16xf32>,
    %c160_135 = arith.constant 160 : index
    %c0_136 = arith.constant 0 : index
    %123 = vector.load %arg15[%c160_135, %c0_136] : memref<392x16xf32, #tpu.memory_space<vmem>>, vector<1x16xf32>
    %c0_137 = arith.constant 0 : index
    %c560 = arith.constant 560 : index
    %124 = vector.load %arg16[%c0_137, %c560] : memref<8x576xf32, #tpu.memory_space<vmem>>, vector<1x16xf32>
    tpu.vector_store %arg16[%c0_137, %c560], %123 {strides = array<i32>} : memref<8x576xf32, #tpu.memory_space<vmem>>, vector<1x16xf32>,
    %c225 = arith.constant 225 : index
    %c0_138 = arith.constant 0 : index
    %125 = vector.load %arg15[%c225, %c0_138] : memref<392x16xf32, #tpu.memory_space<vmem>>, vector<1x16xf32>
    %c1_139 = arith.constant 1 : index
    %c0_140 = arith.constant 0 : index
    %126 = vector.load %arg16[%c1_139, %c0_140] : memref<8x576xf32, #tpu.memory_space<vmem>>, vector<1x16xf32>
    tpu.vector_store %arg16[%c1_139, %c0_140], %125 {strides = array<i32>} : memref<8x576xf32, #tpu.memory_space<vmem>>, vector<1x16xf32>,
    %c227 = arith.constant 227 : index
    %c0_141 = arith.constant 0 : index
    %127 = vector.load %arg15[%c227, %c0_141] : memref<392x16xf32, #tpu.memory_space<vmem>>, vector<1x16xf32>
    %c1_142 = arith.constant 1 : index
    %c16_143 = arith.constant 16 : index
    %128 = vector.load %arg16[%c1_142, %c16_143] : memref<8x576xf32, #tpu.memory_space<vmem>>, vector<1x16xf32>
    tpu.vector_store %arg16[%c1_142, %c16_143], %127 {strides = array<i32>} : memref<8x576xf32, #tpu.memory_space<vmem>>, vector<1x16xf32>,
    %c229 = arith.constant 229 : index
    %c0_144 = arith.constant 0 : index
    %129 = vector.load %arg15[%c229, %c0_144] : memref<392x16xf32, #tpu.memory_space<vmem>>, vector<1x16xf32>
    %c1_145 = arith.constant 1 : index
    %c32_146 = arith.constant 32 : index
    %130 = vector.load %arg16[%c1_145, %c32_146] : memref<8x576xf32, #tpu.memory_space<vmem>>, vector<1x16xf32>
    tpu.vector_store %arg16[%c1_145, %c32_146], %129 {strides = array<i32>} : memref<8x576xf32, #tpu.memory_space<vmem>>, vector<1x16xf32>,
    %c231 = arith.constant 231 : index
    %c0_147 = arith.constant 0 : index
    %131 = vector.load %arg15[%c231, %c0_147] : memref<392x16xf32, #tpu.memory_space<vmem>>, vector<1x16xf32>
    %c1_148 = arith.constant 1 : index
    %c48_149 = arith.constant 48 : index
    %132 = vector.load %arg16[%c1_148, %c48_149] : memref<8x576xf32, #tpu.memory_space<vmem>>, vector<1x16xf32>
    tpu.vector_store %arg16[%c1_148, %c48_149], %131 {strides = array<i32>} : memref<8x576xf32, #tpu.memory_space<vmem>>, vector<1x16xf32>,
    %c233 = arith.constant 233 : index
    %c0_150 = arith.constant 0 : index
    %133 = vector.load %arg15[%c233, %c0_150] : memref<392x16xf32, #tpu.memory_space<vmem>>, vector<1x16xf32>
    %c1_151 = arith.constant 1 : index
    %c64_152 = arith.constant 64 : index
    %134 = vector.load %arg16[%c1_151, %c64_152] : memref<8x576xf32, #tpu.memory_space<vmem>>, vector<1x16xf32>
    tpu.vector_store %arg16[%c1_151, %c64_152], %133 {strides = array<i32>} : memref<8x576xf32, #tpu.memory_space<vmem>>, vector<1x16xf32>,
    %c235 = arith.constant 235 : index
    %c0_153 = arith.constant 0 : index
    %135 = vector.load %arg15[%c235, %c0_153] : memref<392x16xf32, #tpu.memory_space<vmem>>, vector<1x16xf32>
    %c1_154 = arith.constant 1 : index
    %c80_155 = arith.constant 80 : index
    %136 = vector.load %arg16[%c1_154, %c80_155] : memref<8x576xf32, #tpu.memory_space<vmem>>, vector<1x16xf32>
    tpu.vector_store %arg16[%c1_154, %c80_155], %135 {strides = array<i32>} : memref<8x576xf32, #tpu.memory_space<vmem>>, vector<1x16xf32>,
    %c255 = arith.constant 255 : index
    %c0_156 = arith.constant 0 : index
    %137 = vector.load %arg15[%c255, %c0_156] : memref<392x16xf32, #tpu.memory_space<vmem>>, vector<1x16xf32>
    %c1_157 = arith.constant 1 : index
    %c96_158 = arith.constant 96 : index
    %138 = vector.load %arg16[%c1_157, %c96_158] : memref<8x576xf32, #tpu.memory_space<vmem>>, vector<1x16xf32>
    tpu.vector_store %arg16[%c1_157, %c96_158], %137 {strides = array<i32>} : memref<8x576xf32, #tpu.memory_space<vmem>>, vector<1x16xf32>,
    %c257 = arith.constant 257 : index
    %c0_159 = arith.constant 0 : index
    %139 = vector.load %arg15[%c257, %c0_159] : memref<392x16xf32, #tpu.memory_space<vmem>>, vector<1x16xf32>
    %c1_160 = arith.constant 1 : index
    %c112_161 = arith.constant 112 : index
    %140 = vector.load %arg16[%c1_160, %c112_161] : memref<8x576xf32, #tpu.memory_space<vmem>>, vector<1x16xf32>
    tpu.vector_store %arg16[%c1_160, %c112_161], %139 {strides = array<i32>} : memref<8x576xf32, #tpu.memory_space<vmem>>, vector<1x16xf32>,
    %c259 = arith.constant 259 : index
    %c0_162 = arith.constant 0 : index
    %141 = vector.load %arg15[%c259, %c0_162] : memref<392x16xf32, #tpu.memory_space<vmem>>, vector<1x16xf32>
    %c1_163 = arith.constant 1 : index
    %c128_164 = arith.constant 128 : index
    %142 = vector.load %arg16[%c1_163, %c128_164] : memref<8x576xf32, #tpu.memory_space<vmem>>, vector<1x16xf32>
    tpu.vector_store %arg16[%c1_163, %c128_164], %141 {strides = array<i32>} : memref<8x576xf32, #tpu.memory_space<vmem>>, vector<1x16xf32>,
    %c261 = arith.constant 261 : index
    %c0_165 = arith.constant 0 : index
    %143 = vector.load %arg15[%c261, %c0_165] : memref<392x16xf32, #tpu.memory_space<vmem>>, vector<1x16xf32>
    %c1_166 = arith.constant 1 : index
    %c144_167 = arith.constant 144 : index
    %144 = vector.load %arg16[%c1_166, %c144_167] : memref<8x576xf32, #tpu.memory_space<vmem>>, vector<1x16xf32>
    tpu.vector_store %arg16[%c1_166, %c144_167], %143 {strides = array<i32>} : memref<8x576xf32, #tpu.memory_space<vmem>>, vector<1x16xf32>,
    %c263 = arith.constant 263 : index
    %c0_168 = arith.constant 0 : index
    %145 = vector.load %arg15[%c263, %c0_168] : memref<392x16xf32, #tpu.memory_space<vmem>>, vector<1x16xf32>
    %c1_169 = arith.constant 1 : index
    %c160_170 = arith.constant 160 : index
    %146 = vector.load %arg16[%c1_169, %c160_170] : memref<8x576xf32, #tpu.memory_space<vmem>>, vector<1x16xf32>
    tpu.vector_store %arg16[%c1_169, %c160_170], %145 {strides = array<i32>} : memref<8x576xf32, #tpu.memory_space<vmem>>, vector<1x16xf32>,
    %c265 = arith.constant 265 : index
    %c0_171 = arith.constant 0 : index
    %147 = vector.load %arg15[%c265, %c0_171] : memref<392x16xf32, #tpu.memory_space<vmem>>, vector<1x16xf32>
    %c1_172 = arith.constant 1 : index
    %c176_173 = arith.constant 176 : index
    %148 = vector.load %arg16[%c1_172, %c176_173] : memref<8x576xf32, #tpu.memory_space<vmem>>, vector<1x16xf32>
    tpu.vector_store %arg16[%c1_172, %c176_173], %147 {strides = array<i32>} : memref<8x576xf32, #tpu.memory_space<vmem>>, vector<1x16xf32>,
    %c285 = arith.constant 285 : index
    %c0_174 = arith.constant 0 : index
    %149 = vector.load %arg15[%c285, %c0_174] : memref<392x16xf32, #tpu.memory_space<vmem>>, vector<1x16xf32>
    %c1_175 = arith.constant 1 : index
    %c192_176 = arith.constant 192 : index
    %150 = vector.load %arg16[%c1_175, %c192_176] : memref<8x576xf32, #tpu.memory_space<vmem>>, vector<1x16xf32>
    tpu.vector_store %arg16[%c1_175, %c192_176], %149 {strides = array<i32>} : memref<8x576xf32, #tpu.memory_space<vmem>>, vector<1x16xf32>,
    %c287 = arith.constant 287 : index
    %c0_177 = arith.constant 0 : index
    %151 = vector.load %arg15[%c287, %c0_177] : memref<392x16xf32, #tpu.memory_space<vmem>>, vector<1x16xf32>
    %c1_178 = arith.constant 1 : index
    %c208_179 = arith.constant 208 : index
    %152 = vector.load %arg16[%c1_178, %c208_179] : memref<8x576xf32, #tpu.memory_space<vmem>>, vector<1x16xf32>
    tpu.vector_store %arg16[%c1_178, %c208_179], %151 {strides = array<i32>} : memref<8x576xf32, #tpu.memory_space<vmem>>, vector<1x16xf32>,
    %c289 = arith.constant 289 : index
    %c0_180 = arith.constant 0 : index
    %153 = vector.load %arg15[%c289, %c0_180] : memref<392x16xf32, #tpu.memory_space<vmem>>, vector<1x16xf32>
    %c1_181 = arith.constant 1 : index
    %c224_182 = arith.constant 224 : index
    %154 = vector.load %arg16[%c1_181, %c224_182] : memref<8x576xf32, #tpu.memory_space<vmem>>, vector<1x16xf32>
    tpu.vector_store %arg16[%c1_181, %c224_182], %153 {strides = array<i32>} : memref<8x576xf32, #tpu.memory_space<vmem>>, vector<1x16xf32>,
    %c291 = arith.constant 291 : index
    %c0_183 = arith.constant 0 : index
    %155 = vector.load %arg15[%c291, %c0_183] : memref<392x16xf32, #tpu.memory_space<vmem>>, vector<1x16xf32>
    %c1_184 = arith.constant 1 : index
    %c240_185 = arith.constant 240 : index
    %156 = vector.load %arg16[%c1_184, %c240_185] : memref<8x576xf32, #tpu.memory_space<vmem>>, vector<1x16xf32>
    tpu.vector_store %arg16[%c1_184, %c240_185], %155 {strides = array<i32>} : memref<8x576xf32, #tpu.memory_space<vmem>>, vector<1x16xf32>,
    %c293 = arith.constant 293 : index
    %c0_186 = arith.constant 0 : index
    %157 = vector.load %arg15[%c293, %c0_186] : memref<392x16xf32, #tpu.memory_space<vmem>>, vector<1x16xf32>
    %c1_187 = arith.constant 1 : index
    %c256_188 = arith.constant 256 : index
    %158 = vector.load %arg16[%c1_187, %c256_188] : memref<8x576xf32, #tpu.memory_space<vmem>>, vector<1x16xf32>
    tpu.vector_store %arg16[%c1_187, %c256_188], %157 {strides = array<i32>} : memref<8x576xf32, #tpu.memory_space<vmem>>, vector<1x16xf32>,
    %c295 = arith.constant 295 : index
    %c0_189 = arith.constant 0 : index
    %159 = vector.load %arg15[%c295, %c0_189] : memref<392x16xf32, #tpu.memory_space<vmem>>, vector<1x16xf32>
    %c1_190 = arith.constant 1 : index
    %c272_191 = arith.constant 272 : index
    %160 = vector.load %arg16[%c1_190, %c272_191] : memref<8x576xf32, #tpu.memory_space<vmem>>, vector<1x16xf32>
    tpu.vector_store %arg16[%c1_190, %c272_191], %159 {strides = array<i32>} : memref<8x576xf32, #tpu.memory_space<vmem>>, vector<1x16xf32>,
    %c315 = arith.constant 315 : index
    %c0_192 = arith.constant 0 : index
    %161 = vector.load %arg15[%c315, %c0_192] : memref<392x16xf32, #tpu.memory_space<vmem>>, vector<1x16xf32>
    %c1_193 = arith.constant 1 : index
    %c288_194 = arith.constant 288 : index
    %162 = vector.load %arg16[%c1_193, %c288_194] : memref<8x576xf32, #tpu.memory_space<vmem>>, vector<1x16xf32>
    tpu.vector_store %arg16[%c1_193, %c288_194], %161 {strides = array<i32>} : memref<8x576xf32, #tpu.memory_space<vmem>>, vector<1x16xf32>,
    %c317 = arith.constant 317 : index
    %c0_195 = arith.constant 0 : index
    %163 = vector.load %arg15[%c317, %c0_195] : memref<392x16xf32, #tpu.memory_space<vmem>>, vector<1x16xf32>
    %c1_196 = arith.constant 1 : index
    %c304_197 = arith.constant 304 : index
    %164 = vector.load %arg16[%c1_196, %c304_197] : memref<8x576xf32, #tpu.memory_space<vmem>>, vector<1x16xf32>
    tpu.vector_store %arg16[%c1_196, %c304_197], %163 {strides = array<i32>} : memref<8x576xf32, #tpu.memory_space<vmem>>, vector<1x16xf32>,
    %c319 = arith.constant 319 : index
    %c0_198 = arith.constant 0 : index
    %165 = vector.load %arg15[%c319, %c0_198] : memref<392x16xf32, #tpu.memory_space<vmem>>, vector<1x16xf32>
    %c1_199 = arith.constant 1 : index
    %c320_200 = arith.constant 320 : index
    %166 = vector.load %arg16[%c1_199, %c320_200] : memref<8x576xf32, #tpu.memory_space<vmem>>, vector<1x16xf32>
    tpu.vector_store %arg16[%c1_199, %c320_200], %165 {strides = array<i32>} : memref<8x576xf32, #tpu.memory_space<vmem>>, vector<1x16xf32>,
    %c321 = arith.constant 321 : index
    %c0_201 = arith.constant 0 : index
    %167 = vector.load %arg15[%c321, %c0_201] : memref<392x16xf32, #tpu.memory_space<vmem>>, vector<1x16xf32>
    %c1_202 = arith.constant 1 : index
    %c336_203 = arith.constant 336 : index
    %168 = vector.load %arg16[%c1_202, %c336_203] : memref<8x576xf32, #tpu.memory_space<vmem>>, vector<1x16xf32>
    tpu.vector_store %arg16[%c1_202, %c336_203], %167 {strides = array<i32>} : memref<8x576xf32, #tpu.memory_space<vmem>>, vector<1x16xf32>,
    %c323 = arith.constant 323 : index
    %c0_204 = arith.constant 0 : index
    %169 = vector.load %arg15[%c323, %c0_204] : memref<392x16xf32, #tpu.memory_space<vmem>>, vector<1x16xf32>
    %c1_205 = arith.constant 1 : index
    %c352_206 = arith.constant 352 : index
    %170 = vector.load %arg16[%c1_205, %c352_206] : memref<8x576xf32, #tpu.memory_space<vmem>>, vector<1x16xf32>
    tpu.vector_store %arg16[%c1_205, %c352_206], %169 {strides = array<i32>} : memref<8x576xf32, #tpu.memory_space<vmem>>, vector<1x16xf32>,
    %c325 = arith.constant 325 : index
    %c0_207 = arith.constant 0 : index
    %171 = vector.load %arg15[%c325, %c0_207] : memref<392x16xf32, #tpu.memory_space<vmem>>, vector<1x16xf32>
    %c1_208 = arith.constant 1 : index
    %c368_209 = arith.constant 368 : index
    %172 = vector.load %arg16[%c1_208, %c368_209] : memref<8x576xf32, #tpu.memory_space<vmem>>, vector<1x16xf32>
    tpu.vector_store %arg16[%c1_208, %c368_209], %171 {strides = array<i32>} : memref<8x576xf32, #tpu.memory_space<vmem>>, vector<1x16xf32>,
    %c345 = arith.constant 345 : index
    %c0_210 = arith.constant 0 : index
    %173 = vector.load %arg15[%c345, %c0_210] : memref<392x16xf32, #tpu.memory_space<vmem>>, vector<1x16xf32>
    %c1_211 = arith.constant 1 : index
    %c384_212 = arith.constant 384 : index
    %174 = vector.load %arg16[%c1_211, %c384_212] : memref<8x576xf32, #tpu.memory_space<vmem>>, vector<1x16xf32>
    tpu.vector_store %arg16[%c1_211, %c384_212], %173 {strides = array<i32>} : memref<8x576xf32, #tpu.memory_space<vmem>>, vector<1x16xf32>,
    %c347 = arith.constant 347 : index
    %c0_213 = arith.constant 0 : index
    %175 = vector.load %arg15[%c347, %c0_213] : memref<392x16xf32, #tpu.memory_space<vmem>>, vector<1x16xf32>
    %c1_214 = arith.constant 1 : index
    %c400_215 = arith.constant 400 : index
    %176 = vector.load %arg16[%c1_214, %c400_215] : memref<8x576xf32, #tpu.memory_space<vmem>>, vector<1x16xf32>
    tpu.vector_store %arg16[%c1_214, %c400_215], %175 {strides = array<i32>} : memref<8x576xf32, #tpu.memory_space<vmem>>, vector<1x16xf32>,
    %c349 = arith.constant 349 : index
    %c0_216 = arith.constant 0 : index
    %177 = vector.load %arg15[%c349, %c0_216] : memref<392x16xf32, #tpu.memory_space<vmem>>, vector<1x16xf32>
    %c1_217 = arith.constant 1 : index
    %c416_218 = arith.constant 416 : index
    %178 = vector.load %arg16[%c1_217, %c416_218] : memref<8x576xf32, #tpu.memory_space<vmem>>, vector<1x16xf32>
    tpu.vector_store %arg16[%c1_217, %c416_218], %177 {strides = array<i32>} : memref<8x576xf32, #tpu.memory_space<vmem>>, vector<1x16xf32>,
    %c351 = arith.constant 351 : index
    %c0_219 = arith.constant 0 : index
    %179 = vector.load %arg15[%c351, %c0_219] : memref<392x16xf32, #tpu.memory_space<vmem>>, vector<1x16xf32>
    %c1_220 = arith.constant 1 : index
    %c432_221 = arith.constant 432 : index
    %180 = vector.load %arg16[%c1_220, %c432_221] : memref<8x576xf32, #tpu.memory_space<vmem>>, vector<1x16xf32>
    tpu.vector_store %arg16[%c1_220, %c432_221], %179 {strides = array<i32>} : memref<8x576xf32, #tpu.memory_space<vmem>>, vector<1x16xf32>,
    %c353 = arith.constant 353 : index
    %c0_222 = arith.constant 0 : index
    %181 = vector.load %arg15[%c353, %c0_222] : memref<392x16xf32, #tpu.memory_space<vmem>>, vector<1x16xf32>
    %c1_223 = arith.constant 1 : index
    %c448_224 = arith.constant 448 : index
    %182 = vector.load %arg16[%c1_223, %c448_224] : memref<8x576xf32, #tpu.memory_space<vmem>>, vector<1x16xf32>
    tpu.vector_store %arg16[%c1_223, %c448_224], %181 {strides = array<i32>} : memref<8x576xf32, #tpu.memory_space<vmem>>, vector<1x16xf32>,
    %c355 = arith.constant 355 : index
    %c0_225 = arith.constant 0 : index
    %183 = vector.load %arg15[%c355, %c0_225] : memref<392x16xf32, #tpu.memory_space<vmem>>, vector<1x16xf32>
    %c1_226 = arith.constant 1 : index
    %c464_227 = arith.constant 464 : index
    %184 = vector.load %arg16[%c1_226, %c464_227] : memref<8x576xf32, #tpu.memory_space<vmem>>, vector<1x16xf32>
    tpu.vector_store %arg16[%c1_226, %c464_227], %183 {strides = array<i32>} : memref<8x576xf32, #tpu.memory_space<vmem>>, vector<1x16xf32>,
    %c375 = arith.constant 375 : index
    %c0_228 = arith.constant 0 : index
    %185 = vector.load %arg15[%c375, %c0_228] : memref<392x16xf32, #tpu.memory_space<vmem>>, vector<1x16xf32>
    %c1_229 = arith.constant 1 : index
    %c480_230 = arith.constant 480 : index
    %186 = vector.load %arg16[%c1_229, %c480_230] : memref<8x576xf32, #tpu.memory_space<vmem>>, vector<1x16xf32>
    tpu.vector_store %arg16[%c1_229, %c480_230], %185 {strides = array<i32>} : memref<8x576xf32, #tpu.memory_space<vmem>>, vector<1x16xf32>,
    %c377 = arith.constant 377 : index
    %c0_231 = arith.constant 0 : index
    %187 = vector.load %arg15[%c377, %c0_231] : memref<392x16xf32, #tpu.memory_space<vmem>>, vector<1x16xf32>
    %c1_232 = arith.constant 1 : index
    %c496_233 = arith.constant 496 : index
    %188 = vector.load %arg16[%c1_232, %c496_233] : memref<8x576xf32, #tpu.memory_space<vmem>>, vector<1x16xf32>
    tpu.vector_store %arg16[%c1_232, %c496_233], %187 {strides = array<i32>} : memref<8x576xf32, #tpu.memory_space<vmem>>, vector<1x16xf32>,
    %c379 = arith.constant 379 : index
    %c0_234 = arith.constant 0 : index
    %189 = vector.load %arg15[%c379, %c0_234] : memref<392x16xf32, #tpu.memory_space<vmem>>, vector<1x16xf32>
    %c1_235 = arith.constant 1 : index
    %c512_236 = arith.constant 512 : index
    %190 = vector.load %arg16[%c1_235, %c512_236] : memref<8x576xf32, #tpu.memory_space<vmem>>, vector<1x16xf32>
    tpu.vector_store %arg16[%c1_235, %c512_236], %189 {strides = array<i32>} : memref<8x576xf32, #tpu.memory_space<vmem>>, vector<1x16xf32>,
    %c381 = arith.constant 381 : index
    %c0_237 = arith.constant 0 : index
    %191 = vector.load %arg15[%c381, %c0_237] : memref<392x16xf32, #tpu.memory_space<vmem>>, vector<1x16xf32>
    %c1_238 = arith.constant 1 : index
    %c528_239 = arith.constant 528 : index
    %192 = vector.load %arg16[%c1_238, %c528_239] : memref<8x576xf32, #tpu.memory_space<vmem>>, vector<1x16xf32>
    tpu.vector_store %arg16[%c1_238, %c528_239], %191 {strides = array<i32>} : memref<8x576xf32, #tpu.memory_space<vmem>>, vector<1x16xf32>,
    %c383 = arith.constant 383 : index
    %c0_240 = arith.constant 0 : index
    %193 = vector.load %arg15[%c383, %c0_240] : memref<392x16xf32, #tpu.memory_space<vmem>>, vector<1x16xf32>
    %c1_241 = arith.constant 1 : index
    %c544_242 = arith.constant 544 : index
    %194 = vector.load %arg16[%c1_241, %c544_242] : memref<8x576xf32, #tpu.memory_space<vmem>>, vector<1x16xf32>
    tpu.vector_store %arg16[%c1_241, %c544_242], %193 {strides = array<i32>} : memref<8x576xf32, #tpu.memory_space<vmem>>, vector<1x16xf32>,
    %c385 = arith.constant 385 : index
    %c0_243 = arith.constant 0 : index
    %195 = vector.load %arg15[%c385, %c0_243] : memref<392x16xf32, #tpu.memory_space<vmem>>, vector<1x16xf32>
    %c1_244 = arith.constant 1 : index
    %c560_245 = arith.constant 560 : index
    %196 = vector.load %arg16[%c1_244, %c560_245] : memref<8x576xf32, #tpu.memory_space<vmem>>, vector<1x16xf32>
    tpu.vector_store %arg16[%c1_244, %c560_245], %195 {strides = array<i32>} : memref<8x576xf32, #tpu.memory_space<vmem>>, vector<1x16xf32>,
    %c0_246 = arith.constant 0 : index
    %c0_247 = arith.constant 0 : index
    %197 = vector.load %arg16[%c0_246, %c0_247] : memref<8x576xf32, #tpu.memory_space<vmem>>, vector<8x576xf32>
    %c0_248 = arith.constant 0 : index
    %c0_249 = arith.constant 0 : index
    %198 = vector.load %arg5[%c0_248, %c0_249] : memref<576x120xf32, #tpu.memory_space<vmem>>, vector<576x120xf32>
    %cst_250 = arith.constant dense<0.000000e+00> : vector<8x120xf32>
    %199 = tpu.matmul %197, %198, %cst_250 {dimension_numbers = #tpu.dot_dimension_numbers<[1], [0], [0], [1], [0, 0, 1, 1], [], []>} : vector<8x576xf32>, vector<576x120xf32>, vector<8x120xf32> -> vector<8x120xf32>
    %c0_251 = arith.constant 0 : index
    %c0_252 = arith.constant 0 : index
    %200 = vector.load %arg6[%c0_251, %c0_252] : memref<1x120xf32, #tpu.memory_space<vmem>>, vector<1x120xf32>
    %201 = vector.broadcast %200 : vector<1x120xf32> to vector<8x120xf32>
    %202 = arith.addf %199, %201 : vector<8x120xf32>
    %cst_253 = arith.constant 0.000000e+00 : f32
    %203 = vector.broadcast %cst_253 : f32 to vector<8x120xf32>
    %204 = arith.maximumf %202, %203 : vector<8x120xf32>
    %c0_254 = arith.constant 0 : index
    %c0_255 = arith.constant 0 : index
    %205 = vector.load %arg7[%c0_254, %c0_255] : memref<120x84xf32, #tpu.memory_space<vmem>>, vector<120x84xf32>
    %cst_256 = arith.constant dense<0.000000e+00> : vector<8x84xf32>
    %206 = tpu.matmul %204, %205, %cst_256 {dimension_numbers = #tpu.dot_dimension_numbers<[1], [0], [0], [1], [0, 0, 1, 1], [], []>} : vector<8x120xf32>, vector<120x84xf32>, vector<8x84xf32> -> vector<8x84xf32>
    %c0_257 = arith.constant 0 : index
    %c0_258 = arith.constant 0 : index
    %207 = vector.load %arg8[%c0_257, %c0_258] : memref<1x84xf32, #tpu.memory_space<vmem>>, vector<1x84xf32>
    %208 = vector.broadcast %207 : vector<1x84xf32> to vector<8x84xf32>
    %209 = arith.addf %206, %208 : vector<8x84xf32>
    %cst_259 = arith.constant 0.000000e+00 : f32
    %210 = vector.broadcast %cst_259 : f32 to vector<8x84xf32>
    %211 = arith.maximumf %209, %210 : vector<8x84xf32>
    %c0_260 = arith.constant 0 : index
    %c0_261 = arith.constant 0 : index
    %212 = vector.load %arg9[%c0_260, %c0_261] : memref<84x128xf32, #tpu.memory_space<vmem>>, vector<84x128xf32>
    %cst_262 = arith.constant dense<0.000000e+00> : vector<8x128xf32>
    %213 = tpu.matmul %211, %212, %cst_262 {dimension_numbers = #tpu.dot_dimension_numbers<[1], [0], [0], [1], [0, 0, 1, 1], [], []>} : vector<8x84xf32>, vector<84x128xf32>, vector<8x128xf32> -> vector<8x128xf32>
    %c0_263 = arith.constant 0 : index
    %c0_264 = arith.constant 0 : index
    %214 = vector.load %arg10[%c0_263, %c0_264] : memref<1x128xf32, #tpu.memory_space<vmem>>, vector<1x128xf32>
    %215 = vector.broadcast %214 : vector<1x128xf32> to vector<8x128xf32>
    %216 = arith.addf %213, %215 : vector<8x128xf32>
    %c0_265 = arith.constant 0 : index
    %c0_266 = arith.constant 0 : index
    %217 = vector.load %arg11[%c0_265, %c0_266] : memref<8x128xf32, #tpu.memory_space<vmem>>, vector<8x128xf32>
    tpu.vector_store %arg11[%c0_265, %c0_266], %216 {strides = array<i32>} : memref<8x128xf32, #tpu.memory_space<vmem>>, vector<8x128xf32>,
    return
  }
}

</mosaic_0001>

<llo_original>
// kernel: tpu_custom_call.1
$region0: #{tpu_custom_call.1}
  #allocation0 [shape = 'u32[]', space=smem, size = 0x4, offset = 0x4, fixed_abs, tag = 'smem constant byte address 0x4 - core index']
  #allocation1 [shape = 'u32[144,128]{1,0:T(1,128)}', space=vmem, size = 0x12000, scoped, tag = 'internal scratch']
  #allocation2 [shape = 'f32[456,6]{1,0:T(8,128)}', space=vmem, size = 0x39000, scoped, tag = 'scratch operand']
  #allocation3 [shape = 'f32[408,54]{1,0:T(8,128)}', space=vmem, size = 0x33000, scoped, tag = 'scratch operand']
  #allocation4 [shape = 'f32[408,16]{1,0:T(8,128)}', space=vmem, size = 0x33000, scoped, tag = 'scratch operand']
  #allocation5 [shape = 'f32[392,16]{1,0:T(8,128)}', space=vmem, size = 0x31000, scoped, tag = 'scratch operand']
  #allocation6 [shape = 'f32[8,576]{1,0:T(8,128)}', space=vmem, size = 0x5000, scoped, tag = 'scratch operand']
  %s0 = inlined_call_operand.vmem [shape: f32[456,36], index: 0, kind: input, shape index: {}]
  %s1 = inlined_call_operand.vmem [shape: f32[36,24], index: 1, kind: input, shape index: {}]
  %s2 = inlined_call_operand.vmem [shape: f32[1,6], index: 2, kind: input, shape index: {}]
  %s3 = inlined_call_operand.vmem [shape: f32[54,16], index: 3, kind: input, shape index: {}]
  %s4 = inlined_call_operand.vmem [shape: f32[1,16], index: 4, kind: input, shape index: {}]
  %s5 = inlined_call_operand.vmem [shape: f32[576,120], index: 5, kind: input, shape index: {}]
  %s6 = inlined_call_operand.vmem [shape: f32[1,120], index: 6, kind: input, shape index: {}]
  %s7 = inlined_call_operand.vmem [shape: f32[120,84], index: 7, kind: input, shape index: {}]
  %s8 = inlined_call_operand.vmem [shape: f32[1,84], index: 8, kind: input, shape index: {}]
  %s9 = inlined_call_operand.vmem [shape: f32[84,128], index: 9, kind: input, shape index: {}]
  %s10 = inlined_call_operand.vmem [shape: f32[1,128], index: 10, kind: input, shape index: {}]
  %s11 = inlined_call_operand.hbm [shape: f32[8,128], index: 11, kind: output, shape index: {}]
  %s12 = sld [smem:[#allocation0]]
  $region54: #{tpu_custom_call.1} parent=0
    _
  %s14 = ssub.s32 1, %s12
  %s15 = scalar_select 0, %s14, %s12
  $region1: #{tpu_custom_call.1} parent=0
    #allocation7 [shape = 'u8[4096]{0}', space=vmem, size = 0x1000, scoped, tag = 'output window, operand 0, single buffered']
    #allocation8 [shape = 's32[1]{0}', space=sflag, size = 0x4, scoped, tag = 'scoped memory for tpu_custom_call.1']
    %16 = vsyncpa [#allocation8], 0
    // Predicated region
    $region2: #{tpu_custom_call.1} parent=1 // pred_check
      _
    $region3: #{tpu_custom_call.1} parent=1 // pred_check_branch
      %18 = sbr.rel (0) target = $region5
    $region4: #{tpu_custom_call.1} parent=1 // pred_region
      _
    $region5: #{tpu_custom_call.1} parent=1 // pred_fallthru
      _
    // Predicated region
    $region6: #{tpu_custom_call.1} parent=1 // pred_check
      _
    $region7: #{tpu_custom_call.1} parent=1 // pred_check_branch
      %20 = sbr.rel (0) target = $region9
    $region8: #{tpu_custom_call.1} parent=1 // pred_region
      _
    $region9: #{tpu_custom_call.1} parent=1 // pred_fallthru
      _
    // Predicated region
    $region10: #{tpu_custom_call.1} parent=1 // pred_check
      _
    $region11: #{tpu_custom_call.1} parent=1 // pred_check_branch
      %22 = sbr.rel (0) target = $region13
    $region12: #{tpu_custom_call.1} parent=1 // pred_region
      _
    $region13: #{tpu_custom_call.1} parent=1 // pred_fallthru
      _
    // Predicated region
    $region14: #{tpu_custom_call.1} parent=1 // pred_check
      _
    $region15: #{tpu_custom_call.1} parent=1 // pred_check_branch
      %24 = sbr.rel (0) target = $region17
    $region16: #{tpu_custom_call.1} parent=1 // pred_region
      _
    $region17: #{tpu_custom_call.1} parent=1 // pred_fallthru
      _
    // Predicated region
    $region18: #{tpu_custom_call.1} parent=1 // pred_check
      _
    $region19: #{tpu_custom_call.1} parent=1 // pred_check_branch
      %26 = sbr.rel (0) target = $region21
    $region20: #{tpu_custom_call.1} parent=1 // pred_region
      _
    $region21: #{tpu_custom_call.1} parent=1 // pred_fallthru
      _
    // Predicated region
    $region22: #{tpu_custom_call.1} parent=1 // pred_check
      _
    $region23: #{tpu_custom_call.1} parent=1 // pred_check_branch
      %28 = sbr.rel (0) target = $region25
    $region24: #{tpu_custom_call.1} parent=1 // pred_region
      _
    $region25: #{tpu_custom_call.1} parent=1 // pred_fallthru
      _
    // Predicated region
    $region26: #{tpu_custom_call.1} parent=1 // pred_check
      _
    $region27: #{tpu_custom_call.1} parent=1 // pred_check_branch
      %30 = sbr.rel (0) target = $region29
    $region28: #{tpu_custom_call.1} parent=1 // pred_region
      _
    $region29: #{tpu_custom_call.1} parent=1 // pred_fallthru
      _
    // Predicated region
    $region30: #{tpu_custom_call.1} parent=1 // pred_check
      _
    $region31: #{tpu_custom_call.1} parent=1 // pred_check_branch
      %32 = sbr.rel (0) target = $region33
    $region32: #{tpu_custom_call.1} parent=1 // pred_region
      _
    $region33: #{tpu_custom_call.1} parent=1 // pred_fallthru
      _
    // Predicated region
    $region34: #{tpu_custom_call.1} parent=1 // pred_check
      _
    $region35: #{tpu_custom_call.1} parent=1 // pred_check_branch
      %34 = sbr.rel (0) target = $region37
    $region36: #{tpu_custom_call.1} parent=1 // pred_region
      _
    $region37: #{tpu_custom_call.1} parent=1 // pred_fallthru
      _
    // Predicated region
    $region38: #{tpu_custom_call.1} parent=1 // pred_check
      _
    $region39: #{tpu_custom_call.1} parent=1 // pred_check_branch
      %36 = sbr.rel (0) target = $region41
    $region40: #{tpu_custom_call.1} parent=1 // pred_region
      _
    $region41: #{tpu_custom_call.1} parent=1 // pred_fallthru
      _
    // Predicated region
    $region42: #{tpu_custom_call.1} parent=1 // pred_check
      _
    $region43: #{tpu_custom_call.1} parent=1 // pred_check_branch
      %38 = sbr.rel (0) target = $region45
    $region44: #{tpu_custom_call.1} parent=1 // pred_region
      _
    $region45: #{tpu_custom_call.1} parent=1 // pred_fallthru
      _
    %v39 = vld [vmem:[%s0] sm:$0xff]
    %v40 = vld [vmem:[%s0 + $0x8] sm:$0xff]
    %v41 = vld [vmem:[%s0 + $0x10] sm:$0xff]
    %v42 = vld [vmem:[%s0 + $0x18] sm:$0xff]
    %v43 = vld [vmem:[%s0 + $0x20] sm:$0xff]
    %v44 = vld [vmem:[%s0 + $0x28] sm:$0xff]
    %v45 = vld [vmem:[%s0 + $0x30] sm:$0xff]
    %v46 = vld [vmem:[%s0 + $0x38] sm:$0xff]
    %v47 = vld [vmem:[%s0 + $0x40] sm:$0xff]
    %v48 = vld [vmem:[%s0 + $0x48] sm:$0xff]
    %v49 = vld [vmem:[%s0 + $0x50] sm:$0xff]
    %v50 = vld [vmem:[%s0 + $0x58] sm:$0xff]
    %v51 = vld [vmem:[%s0 + $0x60] sm:$0xff]
    %v52 = vld [vmem:[%s0 + $0x68] sm:$0xff]
    %v53 = vld [vmem:[%s0 + $0x70] sm:$0xff]
    %v54 = vld [vmem:[%s0 + $0x78] sm:$0xff]
    %v55 = vld [vmem:[%s0 + $0x80] sm:$0xff]
    %v56 = vld [vmem:[%s0 + $0x88] sm:$0xff]
    %v57 = vld [vmem:[%s0 + $0x90] sm:$0xff]
    %v58 = vld [vmem:[%s0 + $0x98] sm:$0xff]
    %v59 = vld [vmem:[%s0 + $0xa0] sm:$0xff]
    %v60 = vld [vmem:[%s0 + $0xa8] sm:$0xff]
    %v61 = vld [vmem:[%s0 + $0xb0] sm:$0xff]
    %v62 = vld [vmem:[%s0 + $0xb8] sm:$0xff]
    %v63 = vld [vmem:[%s0 + $0xc0] sm:$0xff]
    %v64 = vld [vmem:[%s0 + $0xc8] sm:$0xff]
    %v65 = vld [vmem:[%s0 + $0xd0] sm:$0xff]
    %v66 = vld [vmem:[%s0 + $0xd8] sm:$0xff]
    %v67 = vld [vmem:[%s0 + $0xe0] sm:$0xff]
    %v68 = vld [vmem:[%s0 + $0xe8] sm:$0xff]
    %v69 = vld [vmem:[%s0 + $0xf0] sm:$0xff]
    %v70 = vld [vmem:[%s0 + $0xf8] sm:$0xff]
    %v71 = vld [vmem:[%s0 + $0x100] sm:$0xff]
    %v72 = vld [vmem:[%s0 + $0x108] sm:$0xff]
    %v73 = vld [vmem:[%s0 + $0x110] sm:$0xff]
    %v74 = vld [vmem:[%s0 + $0x118] sm:$0xff]
    %v75 = vld [vmem:[%s0 + $0x120] sm:$0xff]
    %v76 = vld [vmem:[%s0 + $0x128] sm:$0xff]
    %v77 = vld [vmem:[%s0 + $0x130] sm:$0xff]
    %v78 = vld [vmem:[%s0 + $0x138] sm:$0xff]
    %v79 = vld [vmem:[%s0 + $0x140] sm:$0xff]
    %v80 = vld [vmem:[%s0 + $0x148] sm:$0xff]
    %v81 = vld [vmem:[%s0 + $0x150] sm:$0xff]
    %v82 = vld [vmem:[%s0 + $0x158] sm:$0xff]
    %v83 = vld [vmem:[%s0 + $0x160] sm:$0xff]
    %v84 = vld [vmem:[%s0 + $0x168] sm:$0xff]
    %v85 = vld [vmem:[%s0 + $0x170] sm:$0xff]
    %v86 = vld [vmem:[%s0 + $0x178] sm:$0xff]
    %v87 = vld [vmem:[%s0 + $0x180] sm:$0xff]
    %v88 = vld [vmem:[%s0 + $0x188] sm:$0xff]
    %v89 = vld [vmem:[%s0 + $0x190] sm:$0xff]
    %v90 = vld [vmem:[%s0 + $0x198] sm:$0xff]
    %v91 = vld [vmem:[%s0 + $0x1a0] sm:$0xff]
    %v92 = vld [vmem:[%s0 + $0x1a8] sm:$0xff]
    %v93 = vld [vmem:[%s0 + $0x1b0] sm:$0xff]
    %v94 = vld [vmem:[%s0 + $0x1b8] sm:$0xff]
    %v95 = vld [vmem:[%s0 + $0x1c0] sm:$0xff]
    %v96 = vld [vmem:[%s1] sm:$0xff]
    %v97 = vld [vmem:[%s1 + $0x8] sm:$0xff]
    %v98 = vld [vmem:[%s1 + $0x10] sm:$0xff]
    %v99 = vld [vmem:[%s1 + $0x18] sm:$0xff]
    %v100 = vld [vmem:[%s1 + $0x20] sm:$0xf]
    %vm101 = vcmask 293888
    %v103 = vsel %vm101, %v39, 0
    %v106 = vsel %vm101, %v40, 0
    %v109 = vsel %vm101, %v41, 0
    %v112 = vsel %vm101, %v42, 0
    %v115 = vsel %vm101, %v43, 0
    %v118 = vsel %vm101, %v44, 0
    %v121 = vsel %vm101, %v45, 0
    %v124 = vsel %vm101, %v46, 0
    %v127 = vsel %vm101, %v47, 0
    %v130 = vsel %vm101, %v48, 0
    %v133 = vsel %vm101, %v49, 0
    %v136 = vsel %vm101, %v50, 0
    %v139 = vsel %vm101, %v51, 0
    %v142 = vsel %vm101, %v52, 0
    %v145 = vsel %vm101, %v53, 0
    %v148 = vsel %vm101, %v54, 0
    %v151 = vsel %vm101, %v55, 0
    %v154 = vsel %vm101, %v56, 0
    %v157 = vsel %vm101, %v57, 0
    %v160 = vsel %vm101, %v58, 0
    %v163 = vsel %vm101, %v59, 0
    %v166 = vsel %vm101, %v60, 0
    %v169 = vsel %vm101, %v61, 0
    %v172 = vsel %vm101, %v62, 0
    %v175 = vsel %vm101, %v63, 0
    %v178 = vsel %vm101, %v64, 0
    %v181 = vsel %vm101, %v65, 0
    %v184 = vsel %vm101, %v66, 0
    %v187 = vsel %vm101, %v67, 0
    %v190 = vsel %vm101, %v68, 0
    %v193 = vsel %vm101, %v69, 0
    %v196 = vsel %vm101, %v70, 0
    %v199 = vsel %vm101, %v71, 0
    %v202 = vsel %vm101, %v72, 0
    %v205 = vsel %vm101, %v73, 0
    %v208 = vsel %vm101, %v74, 0
    %v211 = vsel %vm101, %v75, 0
    %v214 = vsel %vm101, %v76, 0
    %v217 = vsel %vm101, %v77, 0
    %v220 = vsel %vm101, %v78, 0
    %v223 = vsel %vm101, %v79, 0
    %v226 = vsel %vm101, %v80, 0
    %v229 = vsel %vm101, %v81, 0
    %v232 = vsel %vm101, %v82, 0
    %v235 = vsel %vm101, %v83, 0
    %v238 = vsel %vm101, %v84, 0
    %v241 = vsel %vm101, %v85, 0
    %v244 = vsel %vm101, %v86, 0
    %v247 = vsel %vm101, %v87, 0
    %v250 = vsel %vm101, %v88, 0
    %v253 = vsel %vm101, %v89, 0
    %v256 = vsel %vm101, %v90, 0
    %v259 = vsel %vm101, %v91, 0
    %v262 = vsel %vm101, %v92, 0
    %v265 = vsel %vm101, %v93, 0
    %v268 = vsel %vm101, %v94, 0
    %v271 = vsel %vm101, %v95, 0
    %vm273 = vcmask 1043456
    %v275 = vsel %vm273, %v100, 0
    %277 = vmatprep.subr.mxu0 0.0
    %278 = vmatpush1.msra.mxu0 0.0
    %279 = vmatprep.subr.mxu0 0.0
    %280 = vmatpush1.msra.mxu0 0.0
    %281 = vmatprep.subr.mxu0 0.0
    %282 = vmatpush1.msra.mxu0 0.0
    %283 = vmatprep.subr.mxu0 0.0
    %284 = vmatpush1.msra.mxu0 0.0
    %285 = vmatprep.subr.mxu0 0.0
    %286 = vmatpush1.msra.mxu0 0.0
    %287 = vmatprep.subr.mxu0 0.0
    %288 = vmatpush1.msra.mxu0 0.0
    %289 = vmatprep.subr.mxu0 0.0
    %290 = vmatpush1.msra.mxu0 0.0
    %291 = vmatprep.subr.mxu0 0.0
    %292 = vmatpush1.msra.mxu0 0.0
    %293 = vmatprep.subr.mxu0 0.0
    %294 = vmatpush1.msra.mxu0 0.0
    %295 = vmatprep.subr.mxu0 0.0
    %296 = vmatpush1.msra.mxu0 0.0
    %297 = vmatprep.subr.mxu0 0.0
    %298 = vmatpush1.msra.mxu0 0.0
    %299 = vmatprep.subr.mxu0 0.0
    %300 = vmatpush1.msra.mxu0 %v275
    %301 = vmatprep.subr.mxu0 0.0
    %302 = vmatpush1.msra.mxu0 %v99
    %303 = vmatprep.subr.mxu0 0.0
    %304 = vmatpush1.msra.mxu0 %v98
    %305 = vmatprep.subr.mxu0 0.0
    %306 = vmatpush1.msra.mxu0 %v97
    %307 = vmatprep.subr.mxu0 0.0
    %308 = vmatpush1.msra.mxu0 %v96
    %309 = vmatprep.subr.mxu0 0.0
    %310 = vmatpush2.msra.mxu0 0.0
    %311 = vmatprep.subr.mxu0 0.0
    %312 = vmatpush2.msra.mxu0 0.0
    %313 = vmatprep.subr.mxu0 0.0
    %314 = vmatpush2.msra.mxu0 0.0
    %315 = vmatprep.subr.mxu0 0.0
    %316 = vmatpush2.msra.mxu0 0.0
    %317 = vmatprep.subr.mxu0 0.0
    %318 = vmatpush2.msra.mxu0 0.0
    %319 = vmatprep.subr.mxu0 0.0
    %320 = vmatpush2.msra.mxu0 0.0
    %321 = vmatprep.subr.mxu0 0.0
    %322 = vmatpush2.msra.mxu0 0.0
    %323 = vmatprep.subr.mxu0 0.0
    %324 = vmatpush2.msra.mxu0 0.0
    %325 = vmatprep.subr.mxu0 0.0
    %326 = vmatpush2.msra.mxu0 0.0
    %327 = vmatprep.subr.mxu0 0.0
    %328 = vmatpush2.msra.mxu0 0.0
    %329 = vmatprep.subr.mxu0 0.0
    %330 = vmatpush2.msra.mxu0 0.0
    %331 = vmatprep.subr.mxu0 0.0
    %332 = vmatpush2.msra.mxu0 0.0
    %333 = vmatprep.subr.mxu0 0.0
    %334 = vmatpush2.msra.mxu0 0.0
    %335 = vmatprep.subr.mxu0 0.0
    %336 = vmatpush2.msra.mxu0 0.0
    %337 = vmatprep.subr.mxu0 0.0
    %338 = vmatpush2.msra.mxu0 0.0
    %339 = vmatprep.subr.mxu0 0.0
    %340 = vmatpush2.msra.mxu0 0.0
    %341 = vmatprep.mubr.f32.mxu0 0.0
    %342 = vmatmul.mubr.f32.gmra.mxu0 %v103
    %v343 = vpop.f32.mrf.mxu0
    %v344 = vadd.f32 0.0, %v343
    %v345 = vpop.f32.mrf.mxu0
    %346 = vmatprep.mubr.f32.mxu0 0.0
    %347 = vmatmul.mubr.f32.gmra.mxu0 %v106
    %v348 = vpop.f32.mrf.mxu0
    %v349 = vadd.f32 0.0, %v348
    %v350 = vpop.f32.mrf.mxu0
    %351 = vmatprep.mubr.f32.mxu0 0.0
    %352 = vmatmul.mubr.f32.gmra.mxu0 %v109
    %v353 = vpop.f32.mrf.mxu0
    %v354 = vadd.f32 0.0, %v353
    %v355 = vpop.f32.mrf.mxu0
    %356 = vmatprep.mubr.f32.mxu0 0.0
    %357 = vmatmul.mubr.f32.gmra.mxu0 %v112
    %v358 = vpop.f32.mrf.mxu0
    %v359 = vadd.f32 0.0, %v358
    %v360 = vpop.f32.mrf.mxu0
    %361 = vmatprep.mubr.f32.mxu0 0.0
    %362 = vmatmul.mubr.f32.gmra.mxu0 %v115
    %v363 = vpop.f32.mrf.mxu0
    %v364 = vadd.f32 0.0, %v363
    %v365 = vpop.f32.mrf.mxu0
    %366 = vmatprep.mubr.f32.mxu0 0.0
    %367 = vmatmul.mubr.f32.gmra.mxu0 %v118
    %v368 = vpop.f32.mrf.mxu0
    %v369 = vadd.f32 0.0, %v368
    %v370 = vpop.f32.mrf.mxu0
    %371 = vmatprep.mubr.f32.mxu0 0.0
    %372 = vmatmul.mubr.f32.gmra.mxu0 %v121
    %v373 = vpop.f32.mrf.mxu0
    %v374 = vadd.f32 0.0, %v373
    %v375 = vpop.f32.mrf.mxu0
    %376 = vmatprep.mubr.f32.mxu0 0.0
    %377 = vmatmul.mubr.f32.gmra.mxu0 %v124
    %v378 = vpop.f32.mrf.mxu0
    %v379 = vadd.f32 0.0, %v378
    %v380 = vpop.f32.mrf.mxu0
    %381 = vmatprep.mubr.f32.mxu0 0.0
    %382 = vmatmul.mubr.f32.gmra.mxu0 %v127
    %v383 = vpop.f32.mrf.mxu0
    %v384 = vadd.f32 0.0, %v383
    %v385 = vpop.f32.mrf.mxu0
    %386 = vmatprep.mubr.f32.mxu0 0.0
    %387 = vmatmul.mubr.f32.gmra.mxu0 %v130
    %v388 = vpop.f32.mrf.mxu0
    %v389 = vadd.f32 0.0, %v388
    %v390 = vpop.f32.mrf.mxu0
    %391 = vmatprep.mubr.f32.mxu0 0.0
    %392 = vmatmul.mubr.f32.gmra.mxu0 %v133
    %v393 = vpop.f32.mrf.mxu0
    %v394 = vadd.f32 0.0, %v393
    %v395 = vpop.f32.mrf.mxu0
    %396 = vmatprep.mubr.f32.mxu0 0.0
    %397 = vmatmul.mubr.f32.gmra.mxu0 %v136
    %v398 = vpop.f32.mrf.mxu0
    %v399 = vadd.f32 0.0, %v398
    %v400 = vpop.f32.mrf.mxu0
    %401 = vmatprep.mubr.f32.mxu0 0.0
    %402 = vmatmul.mubr.f32.gmra.mxu0 %v139
    %v403 = vpop.f32.mrf.mxu0
    %v404 = vadd.f32 0.0, %v403
    %v405 = vpop.f32.mrf.mxu0
    %406 = vmatprep.mubr.f32.mxu0 0.0
    %407 = vmatmul.mubr.f32.gmra.mxu0 %v142
    %v408 = vpop.f32.mrf.mxu0
    %v409 = vadd.f32 0.0, %v408
    %v410 = vpop.f32.mrf.mxu0
    %411 = vmatprep.mubr.f32.mxu0 0.0
    %412 = vmatmul.mubr.f32.gmra.mxu0 %v145
    %v413 = vpop.f32.mrf.mxu0
    %v414 = vadd.f32 0.0, %v413
    %v415 = vpop.f32.mrf.mxu0
    %416 = vmatprep.mubr.f32.mxu0 0.0
    %417 = vmatmul.mubr.f32.gmra.mxu0 %v148
    %v418 = vpop.f32.mrf.mxu0
    %v419 = vadd.f32 0.0, %v418
    %v420 = vpop.f32.mrf.mxu0
    %421 = vmatprep.mubr.f32.mxu0 0.0
    %422 = vmatmul.mubr.f32.gmra.mxu0 %v151
    %v423 = vpop.f32.mrf.mxu0
    %v424 = vadd.f32 0.0, %v423
    %v425 = vpop.f32.mrf.mxu0
    %426 = vmatprep.mubr.f32.mxu0 0.0
    %427 = vmatmul.mubr.f32.gmra.mxu0 %v154
    %v428 = vpop.f32.mrf.mxu0
    %v429 = vadd.f32 0.0, %v428
    %v430 = vpop.f32.mrf.mxu0
    %431 = vmatprep.mubr.f32.mxu0 0.0
    %432 = vmatmul.mubr.f32.gmra.mxu0 %v157
    %v433 = vpop.f32.mrf.mxu0
    %v434 = vadd.f32 0.0, %v433
    %v435 = vpop.f32.mrf.mxu0
    %436 = vmatprep.mubr.f32.mxu0 0.0
    %437 = vmatmul.mubr.f32.gmra.mxu0 %v160
    %v438 = vpop.f32.mrf.mxu0
    %v439 = vadd.f32 0.0, %v438
    %v440 = vpop.f32.mrf.mxu0
    %441 = vmatprep.mubr.f32.mxu0 0.0
    %442 = vmatmul.mubr.f32.gmra.mxu0 %v163
    %v443 = vpop.f32.mrf.mxu0
    %v444 = vadd.f32 0.0, %v443
    %v445 = vpop.f32.mrf.mxu0
    %446 = vmatprep.mubr.f32.mxu0 0.0
    %447 = vmatmul.mubr.f32.gmra.mxu0 %v166
    %v448 = vpop.f32.mrf.mxu0
    %v449 = vadd.f32 0.0, %v448
    %v450 = vpop.f32.mrf.mxu0
    %451 = vmatprep.mubr.f32.mxu0 0.0
    %452 = vmatmul.mubr.f32.gmra.mxu0 %v169
    %v453 = vpop.f32.mrf.mxu0
    %v454 = vadd.f32 0.0, %v453
    %v455 = vpop.f32.mrf.mxu0
    %456 = vmatprep.mubr.f32.mxu0 0.0
    %457 = vmatmul.mubr.f32.gmra.mxu0 %v172
    %v458 = vpop.f32.mrf.mxu0
    %v459 = vadd.f32 0.0, %v458
    %v460 = vpop.f32.mrf.mxu0
    %461 = vmatprep.mubr.f32.mxu0 0.0
    %462 = vmatmul.mubr.f32.gmra.mxu0 %v175
    %v463 = vpop.f32.mrf.mxu0
    %v464 = vadd.f32 0.0, %v463
    %v465 = vpop.f32.mrf.mxu0
    %466 = vmatprep.mubr.f32.mxu0 0.0
    %467 = vmatmul.mubr.f32.gmra.mxu0 %v178
    %v468 = vpop.f32.mrf.mxu0
    %v469 = vadd.f32 0.0, %v468
    %v470 = vpop.f32.mrf.mxu0
    %471 = vmatprep.mubr.f32.mxu0 0.0
    %472 = vmatmul.mubr.f32.gmra.mxu0 %v181
    %v473 = vpop.f32.mrf.mxu0
    %v474 = vadd.f32 0.0, %v473
    %v475 = vpop.f32.mrf.mxu0
    %476 = vmatprep.mubr.f32.mxu0 0.0
    %477 = vmatmul.mubr.f32.gmra.mxu0 %v184
    %v478 = vpop.f32.mrf.mxu0
    %v479 = vadd.f32 0.0, %v478
    %v480 = vpop.f32.mrf.mxu0
    %481 = vmatprep.mubr.f32.mxu0 0.0
    %482 = vmatmul.mubr.f32.gmra.mxu0 %v187
    %v483 = vpop.f32.mrf.mxu0
    %v484 = vadd.f32 0.0, %v483
    %v485 = vpop.f32.mrf.mxu0
    %486 = vmatprep.mubr.f32.mxu0 0.0
    %487 = vmatmul.mubr.f32.gmra.mxu0 %v190
    %v488 = vpop.f32.mrf.mxu0
    %v489 = vadd.f32 0.0, %v488
    %v490 = vpop.f32.mrf.mxu0
    %491 = vmatprep.mubr.f32.mxu0 0.0
    %492 = vmatmul.mubr.f32.gmra.mxu0 %v193
    %v493 = vpop.f32.mrf.mxu0
    %v494 = vadd.f32 0.0, %v493
    %v495 = vpop.f32.mrf.mxu0
    %496 = vmatprep.mubr.f32.mxu0 0.0
    %497 = vmatmul.mubr.f32.gmra.mxu0 %v196
    %v498 = vpop.f32.mrf.mxu0
    %v499 = vadd.f32 0.0, %v498
    %v500 = vpop.f32.mrf.mxu0
    %501 = vmatprep.mubr.f32.mxu0 0.0
    %502 = vmatmul.mubr.f32.gmra.mxu0 %v199
    %v503 = vpop.f32.mrf.mxu0
    %v504 = vadd.f32 0.0, %v503
    %v505 = vpop.f32.mrf.mxu0
    %506 = vmatprep.mubr.f32.mxu0 0.0
    %507 = vmatmul.mubr.f32.gmra.mxu0 %v202
    %v508 = vpop.f32.mrf.mxu0
    %v509 = vadd.f32 0.0, %v508
    %v510 = vpop.f32.mrf.mxu0
    %511 = vmatprep.mubr.f32.mxu0 0.0
    %512 = vmatmul.mubr.f32.gmra.mxu0 %v205
    %v513 = vpop.f32.mrf.mxu0
    %v514 = vadd.f32 0.0, %v513
    %v515 = vpop.f32.mrf.mxu0
    %516 = vmatprep.mubr.f32.mxu0 0.0
    %517 = vmatmul.mubr.f32.gmra.mxu0 %v208
    %v518 = vpop.f32.mrf.mxu0
    %v519 = vadd.f32 0.0, %v518
    %v520 = vpop.f32.mrf.mxu0
    %521 = vmatprep.mubr.f32.mxu0 0.0
    %522 = vmatmul.mubr.f32.gmra.mxu0 %v211
    %v523 = vpop.f32.mrf.mxu0
    %v524 = vadd.f32 0.0, %v523
    %v525 = vpop.f32.mrf.mxu0
    %526 = vmatprep.mubr.f32.mxu0 0.0
    %527 = vmatmul.mubr.f32.gmra.mxu0 %v214
    %v528 = vpop.f32.mrf.mxu0
    %v529 = vadd.f32 0.0, %v528
    %v530 = vpop.f32.mrf.mxu0
    %531 = vmatprep.mubr.f32.mxu0 0.0
    %532 = vmatmul.mubr.f32.gmra.mxu0 %v217
    %v533 = vpop.f32.mrf.mxu0
    %v534 = vadd.f32 0.0, %v533
    %v535 = vpop.f32.mrf.mxu0
    %536 = vmatprep.mubr.f32.mxu0 0.0
    %537 = vmatmul.mubr.f32.gmra.mxu0 %v220
    %v538 = vpop.f32.mrf.mxu0
    %v539 = vadd.f32 0.0, %v538
    %v540 = vpop.f32.mrf.mxu0
    %541 = vmatprep.mubr.f32.mxu0 0.0
    %542 = vmatmul.mubr.f32.gmra.mxu0 %v223
    %v543 = vpop.f32.mrf.mxu0
    %v544 = vadd.f32 0.0, %v543
    %v545 = vpop.f32.mrf.mxu0
    %546 = vmatprep.mubr.f32.mxu0 0.0
    %547 = vmatmul.mubr.f32.gmra.mxu0 %v226
    %v548 = vpop.f32.mrf.mxu0
    %v549 = vadd.f32 0.0, %v548
    %v550 = vpop.f32.mrf.mxu0
    %551 = vmatprep.mubr.f32.mxu0 0.0
    %552 = vmatmul.mubr.f32.gmra.mxu0 %v229
    %v553 = vpop.f32.mrf.mxu0
    %v554 = vadd.f32 0.0, %v553
    %v555 = vpop.f32.mrf.mxu0
    %556 = vmatprep.mubr.f32.mxu0 0.0
    %557 = vmatmul.mubr.f32.gmra.mxu0 %v232
    %v558 = vpop.f32.mrf.mxu0
    %v559 = vadd.f32 0.0, %v558
    %v560 = vpop.f32.mrf.mxu0
    %561 = vmatprep.mubr.f32.mxu0 0.0
    %562 = vmatmul.mubr.f32.gmra.mxu0 %v235
    %v563 = vpop.f32.mrf.mxu0
    %v564 = vadd.f32 0.0, %v563
    %v565 = vpop.f32.mrf.mxu0
    %566 = vmatprep.mubr.f32.mxu0 0.0
    %567 = vmatmul.mubr.f32.gmra.mxu0 %v238
    %v568 = vpop.f32.mrf.mxu0
    %v569 = vadd.f32 0.0, %v568
    %v570 = vpop.f32.mrf.mxu0
    %571 = vmatprep.mubr.f32.mxu0 0.0
    %572 = vmatmul.mubr.f32.gmra.mxu0 %v241
    %v573 = vpop.f32.mrf.mxu0
    %v574 = vadd.f32 0.0, %v573
    %v575 = vpop.f32.mrf.mxu0
    %576 = vmatprep.mubr.f32.mxu0 0.0
    %577 = vmatmul.mubr.f32.gmra.mxu0 %v244
    %v578 = vpop.f32.mrf.mxu0
    %v579 = vadd.f32 0.0, %v578
    %v580 = vpop.f32.mrf.mxu0
    %581 = vmatprep.mubr.f32.mxu0 0.0
    %582 = vmatmul.mubr.f32.gmra.mxu0 %v247
    %v583 = vpop.f32.mrf.mxu0
    %v584 = vadd.f32 0.0, %v583
    %v585 = vpop.f32.mrf.mxu0
    %586 = vmatprep.mubr.f32.mxu0 0.0
    %587 = vmatmul.mubr.f32.gmra.mxu0 %v250
    %v588 = vpop.f32.mrf.mxu0
    %v589 = vadd.f32 0.0, %v588
    %v590 = vpop.f32.mrf.mxu0
    %591 = vmatprep.mubr.f32.mxu0 0.0
    %592 = vmatmul.mubr.f32.gmra.mxu0 %v253
    %v593 = vpop.f32.mrf.mxu0
    %v594 = vadd.f32 0.0, %v593
    %v595 = vpop.f32.mrf.mxu0
    %596 = vmatprep.mubr.f32.mxu0 0.0
    %597 = vmatmul.mubr.f32.gmra.mxu0 %v256
    %v598 = vpop.f32.mrf.mxu0
    %v599 = vadd.f32 0.0, %v598
    %v600 = vpop.f32.mrf.mxu0
    %601 = vmatprep.mubr.f32.mxu0 0.0
    %602 = vmatmul.mubr.f32.gmra.mxu0 %v259
    %v603 = vpop.f32.mrf.mxu0
    %v604 = vadd.f32 0.0, %v603
    %v605 = vpop.f32.mrf.mxu0
    %606 = vmatprep.mubr.f32.mxu0 0.0
    %607 = vmatmul.mubr.f32.gmra.mxu0 %v262
    %v608 = vpop.f32.mrf.mxu0
    %v609 = vadd.f32 0.0, %v608
    %v610 = vpop.f32.mrf.mxu0
    %611 = vmatprep.mubr.f32.mxu0 0.0
    %612 = vmatmul.mubr.f32.gmra.mxu0 %v265
    %v613 = vpop.f32.mrf.mxu0
    %v614 = vadd.f32 0.0, %v613
    %v615 = vpop.f32.mrf.mxu0
    %616 = vmatprep.mubr.f32.mxu0 0.0
    %617 = vmatmul.mubr.f32.gmra.mxu0 %v268
    %v618 = vpop.f32.mrf.mxu0
    %v619 = vadd.f32 0.0, %v618
    %v620 = vpop.f32.mrf.mxu0
    %621 = vmatprep.mubr.f32.mxu0 0.0
    %622 = vmatmul.mubr.f32.gmra.mxu0 %v271
    %v623 = vpop.f32.mrf.mxu0
    %v624 = vadd.f32 0.0, %v623
    %v625 = vpop.f32.mrf.mxu0
    %626 = vdwg.mxu0
    %684 = vrot.lane.b32.xlu0 %v344, 122
    %v685 = vpop.permute.xlu0 %684
    %686 = vrot.lane.b32.xlu0 %v349, 122
    %v687 = vpop.permute.xlu0 %686
    %688 = vrot.lane.b32.xlu0 %v354, 122
    %v689 = vpop.permute.xlu0 %688
    %690 = vrot.lane.b32.xlu0 %v359, 122
    %v691 = vpop.permute.xlu0 %690
    %692 = vrot.lane.b32.xlu0 %v364, 122
    %v693 = vpop.permute.xlu0 %692
    %694 = vrot.lane.b32.xlu0 %v369, 122
    %v695 = vpop.permute.xlu0 %694
    %696 = vrot.lane.b32.xlu0 %v374, 122
    %v697 = vpop.permute.xlu0 %696
    %698 = vrot.lane.b32.xlu0 %v379, 122
    %v699 = vpop.permute.xlu0 %698
    %700 = vrot.lane.b32.xlu0 %v384, 122
    %v701 = vpop.permute.xlu0 %700
    %702 = vrot.lane.b32.xlu0 %v389, 122
    %v703 = vpop.permute.xlu0 %702
    %704 = vrot.lane.b32.xlu0 %v394, 122
    %v705 = vpop.permute.xlu0 %704
    %706 = vrot.lane.b32.xlu0 %v399, 122
    %v707 = vpop.permute.xlu0 %706
    %708 = vrot.lane.b32.xlu0 %v404, 122
    %v709 = vpop.permute.xlu0 %708
    %710 = vrot.lane.b32.xlu0 %v409, 122
    %v711 = vpop.permute.xlu0 %710
    %712 = vrot.lane.b32.xlu0 %v414, 122
    %v713 = vpop.permute.xlu0 %712
    %714 = vrot.lane.b32.xlu0 %v419, 122
    %v715 = vpop.permute.xlu0 %714
    %716 = vrot.lane.b32.xlu0 %v424, 122
    %v717 = vpop.permute.xlu0 %716
    %718 = vrot.lane.b32.xlu0 %v429, 122
    %v719 = vpop.permute.xlu0 %718
    %720 = vrot.lane.b32.xlu0 %v434, 122
    %v721 = vpop.permute.xlu0 %720
    %722 = vrot.lane.b32.xlu0 %v439, 122
    %v723 = vpop.permute.xlu0 %722
    %724 = vrot.lane.b32.xlu0 %v444, 122
    %v725 = vpop.permute.xlu0 %724
    %726 = vrot.lane.b32.xlu0 %v449, 122
    %v727 = vpop.permute.xlu0 %726
    %728 = vrot.lane.b32.xlu0 %v454, 122
    %v729 = vpop.permute.xlu0 %728
    %730 = vrot.lane.b32.xlu0 %v459, 122
    %v731 = vpop.permute.xlu0 %730
    %732 = vrot.lane.b32.xlu0 %v464, 122
    %v733 = vpop.permute.xlu0 %732
    %734 = vrot.lane.b32.xlu0 %v469, 122
    %v735 = vpop.permute.xlu0 %734
    %736 = vrot.lane.b32.xlu0 %v474, 122
    %v737 = vpop.permute.xlu0 %736
    %738 = vrot.lane.b32.xlu0 %v479, 122
    %v739 = vpop.permute.xlu0 %738
    %740 = vrot.lane.b32.xlu0 %v484, 122
    %v741 = vpop.permute.xlu0 %740
    %742 = vrot.lane.b32.xlu0 %v489, 122
    %v743 = vpop.permute.xlu0 %742
    %744 = vrot.lane.b32.xlu0 %v494, 122
    %v745 = vpop.permute.xlu0 %744
    %746 = vrot.lane.b32.xlu0 %v499, 122
    %v747 = vpop.permute.xlu0 %746
    %748 = vrot.lane.b32.xlu0 %v504, 122
    %v749 = vpop.permute.xlu0 %748
    %750 = vrot.lane.b32.xlu0 %v509, 122
    %v751 = vpop.permute.xlu0 %750
    %752 = vrot.lane.b32.xlu0 %v514, 122
    %v753 = vpop.permute.xlu0 %752
    %754 = vrot.lane.b32.xlu0 %v519, 122
    %v755 = vpop.permute.xlu0 %754
    %756 = vrot.lane.b32.xlu0 %v524, 122
    %v757 = vpop.permute.xlu0 %756
    %758 = vrot.lane.b32.xlu0 %v529, 122
    %v759 = vpop.permute.xlu0 %758
    %760 = vrot.lane.b32.xlu0 %v534, 122
    %v761 = vpop.permute.xlu0 %760
    %762 = vrot.lane.b32.xlu0 %v539, 122
    %v763 = vpop.permute.xlu0 %762
    %764 = vrot.lane.b32.xlu0 %v544, 122
    %v765 = vpop.permute.xlu0 %764
    %766 = vrot.lane.b32.xlu0 %v549, 122
    %v767 = vpop.permute.xlu0 %766
    %768 = vrot.lane.b32.xlu0 %v554, 122
    %v769 = vpop.permute.xlu0 %768
    %770 = vrot.lane.b32.xlu0 %v559, 122
    %v771 = vpop.permute.xlu0 %770
    %772 = vrot.lane.b32.xlu0 %v564, 122
    %v773 = vpop.permute.xlu0 %772
    %774 = vrot.lane.b32.xlu0 %v569, 122
    %v775 = vpop.permute.xlu0 %774
    %776 = vrot.lane.b32.xlu0 %v574, 122
    %v777 = vpop.permute.xlu0 %776
    %778 = vrot.lane.b32.xlu0 %v579, 122
    %v779 = vpop.permute.xlu0 %778
    %780 = vrot.lane.b32.xlu0 %v584, 122
    %v781 = vpop.permute.xlu0 %780
    %782 = vrot.lane.b32.xlu0 %v589, 122
    %v783 = vpop.permute.xlu0 %782
    %784 = vrot.lane.b32.xlu0 %v594, 122
    %v785 = vpop.permute.xlu0 %784
    %786 = vrot.lane.b32.xlu0 %v599, 122
    %v787 = vpop.permute.xlu0 %786
    %788 = vrot.lane.b32.xlu0 %v604, 122
    %v789 = vpop.permute.xlu0 %788
    %790 = vrot.lane.b32.xlu0 %v609, 122
    %v791 = vpop.permute.xlu0 %790
    %792 = vrot.lane.b32.xlu0 %v614, 122
    %v793 = vpop.permute.xlu0 %792
    %794 = vrot.lane.b32.xlu0 %v619, 122
    %v795 = vpop.permute.xlu0 %794
    %796 = vrot.lane.b32.xlu0 %v624, 122
    %v797 = vpop.permute.xlu0 %796
    %v855 = vmax.f32 %v344, %v685
    %v856 = vmax.f32 %v349, %v687
    %v857 = vmax.f32 %v354, %v689
    %v858 = vmax.f32 %v359, %v691
    %v859 = vmax.f32 %v364, %v693
    %v860 = vmax.f32 %v369, %v695
    %v861 = vmax.f32 %v374, %v697
    %v862 = vmax.f32 %v379, %v699
    %v863 = vmax.f32 %v384, %v701
    %v864 = vmax.f32 %v389, %v703
    %v865 = vmax.f32 %v394, %v705
    %v866 = vmax.f32 %v399, %v707
    %v867 = vmax.f32 %v404, %v709
    %v868 = vmax.f32 %v409, %v711
    %v869 = vmax.f32 %v414, %v713
    %v870 = vmax.f32 %v419, %v715
    %v871 = vmax.f32 %v424, %v717
    %v872 = vmax.f32 %v429, %v719
    %v873 = vmax.f32 %v434, %v721
    %v874 = vmax.f32 %v439, %v723
    %v875 = vmax.f32 %v444, %v725
    %v876 = vmax.f32 %v449, %v727
    %v877 = vmax.f32 %v454, %v729
    %v878 = vmax.f32 %v459, %v731
    %v879 = vmax.f32 %v464, %v733
    %v880 = vmax.f32 %v469, %v735
    %v881 = vmax.f32 %v474, %v737
    %v882 = vmax.f32 %v479, %v739
    %v883 = vmax.f32 %v484, %v741
    %v884 = vmax.f32 %v489, %v743
    %v885 = vmax.f32 %v494, %v745
    %v886 = vmax.f32 %v499, %v747
    %v887 = vmax.f32 %v504, %v749
    %v888 = vmax.f32 %v509, %v751
    %v889 = vmax.f32 %v514, %v753
    %v890 = vmax.f32 %v519, %v755
    %v891 = vmax.f32 %v524, %v757
    %v892 = vmax.f32 %v529, %v759
    %v893 = vmax.f32 %v534, %v761
    %v894 = vmax.f32 %v539, %v763
    %v895 = vmax.f32 %v544, %v765
    %v896 = vmax.f32 %v549, %v767
    %v897 = vmax.f32 %v554, %v769
    %v898 = vmax.f32 %v559, %v771
    %v899 = vmax.f32 %v564, %v773
    %v900 = vmax.f32 %v569, %v775
    %v901 = vmax.f32 %v574, %v777
    %v902 = vmax.f32 %v579, %v779
    %v903 = vmax.f32 %v584, %v781
    %v904 = vmax.f32 %v589, %v783
    %v905 = vmax.f32 %v594, %v785
    %v906 = vmax.f32 %v599, %v787
    %v907 = vmax.f32 %v604, %v789
    %v908 = vmax.f32 %v609, %v791
    %v909 = vmax.f32 %v614, %v793
    %v910 = vmax.f32 %v619, %v795
    %v911 = vmax.f32 %v624, %v797
    %969 = vrot.lane.b32.xlu0 %v855, 116
    %v970 = vpop.permute.xlu0 %969
    %971 = vrot.lane.b32.xlu0 %v856, 116
    %v972 = vpop.permute.xlu0 %971
    %973 = vrot.lane.b32.xlu0 %v857, 116
    %v974 = vpop.permute.xlu0 %973
    %975 = vrot.lane.b32.xlu0 %v858, 116
    %v976 = vpop.permute.xlu0 %975
    %977 = vrot.lane.b32.xlu0 %v859, 116
    %v978 = vpop.permute.xlu0 %977
    %979 = vrot.lane.b32.xlu0 %v860, 116
    %v980 = vpop.permute.xlu0 %979
    %981 = vrot.lane.b32.xlu0 %v861, 116
    %v982 = vpop.permute.xlu0 %981
    %983 = vrot.lane.b32.xlu0 %v862, 116
    %v984 = vpop.permute.xlu0 %983
    %985 = vrot.lane.b32.xlu0 %v863, 116
    %v986 = vpop.permute.xlu0 %985
    %987 = vrot.lane.b32.xlu0 %v864, 116
    %v988 = vpop.permute.xlu0 %987
    %989 = vrot.lane.b32.xlu0 %v865, 116
    %v990 = vpop.permute.xlu0 %989
    %991 = vrot.lane.b32.xlu0 %v866, 116
    %v992 = vpop.permute.xlu0 %991
    %993 = vrot.lane.b32.xlu0 %v867, 116
    %v994 = vpop.permute.xlu0 %993
    %995 = vrot.lane.b32.xlu0 %v868, 116
    %v996 = vpop.permute.xlu0 %995
    %997 = vrot.lane.b32.xlu0 %v869, 116
    %v998 = vpop.permute.xlu0 %997
    %999 = vrot.lane.b32.xlu0 %v870, 116
    %v1000 = vpop.permute.xlu0 %999
    %1001 = vrot.lane.b32.xlu0 %v871, 116
    %v1002 = vpop.permute.xlu0 %1001
    %1003 = vrot.lane.b32.xlu0 %v872, 116
    %v1004 = vpop.permute.xlu0 %1003
    %1005 = vrot.lane.b32.xlu0 %v873, 116
    %v1006 = vpop.permute.xlu0 %1005
    %1007 = vrot.lane.b32.xlu0 %v874, 116
    %v1008 = vpop.permute.xlu0 %1007
    %1009 = vrot.lane.b32.xlu0 %v875, 116
    %v1010 = vpop.permute.xlu0 %1009
    %1011 = vrot.lane.b32.xlu0 %v876, 116
    %v1012 = vpop.permute.xlu0 %1011
    %1013 = vrot.lane.b32.xlu0 %v877, 116
    %v1014 = vpop.permute.xlu0 %1013
    %1015 = vrot.lane.b32.xlu0 %v878, 116
    %v1016 = vpop.permute.xlu0 %1015
    %1017 = vrot.lane.b32.xlu0 %v879, 116
    %v1018 = vpop.permute.xlu0 %1017
    %1019 = vrot.lane.b32.xlu0 %v880, 116
    %v1020 = vpop.permute.xlu0 %1019
    %1021 = vrot.lane.b32.xlu0 %v881, 116
    %v1022 = vpop.permute.xlu0 %1021
    %1023 = vrot.lane.b32.xlu0 %v882, 116
    %v1024 = vpop.permute.xlu0 %1023
    %1025 = vrot.lane.b32.xlu0 %v883, 116
    %v1026 = vpop.permute.xlu0 %1025
    %1027 = vrot.lane.b32.xlu0 %v884, 116
    %v1028 = vpop.permute.xlu0 %1027
    %1029 = vrot.lane.b32.xlu0 %v885, 116
    %v1030 = vpop.permute.xlu0 %1029
    %1031 = vrot.lane.b32.xlu0 %v886, 116
    %v1032 = vpop.permute.xlu0 %1031
    %1033 = vrot.lane.b32.xlu0 %v887, 116
    %v1034 = vpop.permute.xlu0 %1033
    %1035 = vrot.lane.b32.xlu0 %v888, 116
    %v1036 = vpop.permute.xlu0 %1035
    %1037 = vrot.lane.b32.xlu0 %v889, 116
    %v1038 = vpop.permute.xlu0 %1037
    %1039 = vrot.lane.b32.xlu0 %v890, 116
    %v1040 = vpop.permute.xlu0 %1039
    %1041 = vrot.lane.b32.xlu0 %v891, 116
    %v1042 = vpop.permute.xlu0 %1041
    %1043 = vrot.lane.b32.xlu0 %v892, 116
    %v1044 = vpop.permute.xlu0 %1043
    %1045 = vrot.lane.b32.xlu0 %v893, 116
    %v1046 = vpop.permute.xlu0 %1045
    %1047 = vrot.lane.b32.xlu0 %v894, 116
    %v1048 = vpop.permute.xlu0 %1047
    %1049 = vrot.lane.b32.xlu0 %v895, 116
    %v1050 = vpop.permute.xlu0 %1049
    %1051 = vrot.lane.b32.xlu0 %v896, 116
    %v1052 = vpop.permute.xlu0 %1051
    %1053 = vrot.lane.b32.xlu0 %v897, 116
    %v1054 = vpop.permute.xlu0 %1053
    %1055 = vrot.lane.b32.xlu0 %v898, 116
    %v1056 = vpop.permute.xlu0 %1055
    %1057 = vrot.lane.b32.xlu0 %v899, 116
    %v1058 = vpop.permute.xlu0 %1057
    %1059 = vrot.lane.b32.xlu0 %v900, 116
    %v1060 = vpop.permute.xlu0 %1059
    %1061 = vrot.lane.b32.xlu0 %v901, 116
    %v1062 = vpop.permute.xlu0 %1061
    %1063 = vrot.lane.b32.xlu0 %v902, 116
    %v1064 = vpop.permute.xlu0 %1063
    %1065 = vrot.lane.b32.xlu0 %v903, 116
    %v1066 = vpop.permute.xlu0 %1065
    %1067 = vrot.lane.b32.xlu0 %v904, 116
    %v1068 = vpop.permute.xlu0 %1067
    %1069 = vrot.lane.b32.xlu0 %v905, 116
    %v1070 = vpop.permute.xlu0 %1069
    %1071 = vrot.lane.b32.xlu0 %v906, 116
    %v1072 = vpop.permute.xlu0 %1071
    %1073 = vrot.lane.b32.xlu0 %v907, 116
    %v1074 = vpop.permute.xlu0 %1073
    %1075 = vrot.lane.b32.xlu0 %v908, 116
    %v1076 = vpop.permute.xlu0 %1075
    %1077 = vrot.lane.b32.xlu0 %v909, 116
    %v1078 = vpop.permute.xlu0 %1077
    %1079 = vrot.lane.b32.xlu0 %v910, 116
    %v1080 = vpop.permute.xlu0 %1079
    %1081 = vrot.lane.b32.xlu0 %v911, 116
    %v1082 = vpop.permute.xlu0 %1081
    %v1140 = vmax.f32 %v855, %v970
    %v1141 = vmax.f32 %v856, %v972
    %v1142 = vmax.f32 %v857, %v974
    %v1143 = vmax.f32 %v858, %v976
    %v1144 = vmax.f32 %v859, %v978
    %v1145 = vmax.f32 %v860, %v980
    %v1146 = vmax.f32 %v861, %v982
    %v1147 = vmax.f32 %v862, %v984
    %v1148 = vmax.f32 %v863, %v986
    %v1149 = vmax.f32 %v864, %v988
    %v1150 = vmax.f32 %v865, %v990
    %v1151 = vmax.f32 %v866, %v992
    %v1152 = vmax.f32 %v867, %v994
    %v1153 = vmax.f32 %v868, %v996
    %v1154 = vmax.f32 %v869, %v998
    %v1155 = vmax.f32 %v870, %v1000
    %v1156 = vmax.f32 %v871, %v1002
    %v1157 = vmax.f32 %v872, %v1004
    %v1158 = vmax.f32 %v873, %v1006
    %v1159 = vmax.f32 %v874, %v1008
    %v1160 = vmax.f32 %v875, %v1010
    %v1161 = vmax.f32 %v876, %v1012
    %v1162 = vmax.f32 %v877, %v1014
    %v1163 = vmax.f32 %v878, %v1016
    %v1164 = vmax.f32 %v879, %v1018
    %v1165 = vmax.f32 %v880, %v1020
    %v1166 = vmax.f32 %v881, %v1022
    %v1167 = vmax.f32 %v882, %v1024
    %v1168 = vmax.f32 %v883, %v1026
    %v1169 = vmax.f32 %v884, %v1028
    %v1170 = vmax.f32 %v885, %v1030
    %v1171 = vmax.f32 %v886, %v1032
    %v1172 = vmax.f32 %v887, %v1034
    %v1173 = vmax.f32 %v888, %v1036
    %v1174 = vmax.f32 %v889, %v1038
    %v1175 = vmax.f32 %v890, %v1040
    %v1176 = vmax.f32 %v891, %v1042
    %v1177 = vmax.f32 %v892, %v1044
    %v1178 = vmax.f32 %v893, %v1046
    %v1179 = vmax.f32 %v894, %v1048
    %v1180 = vmax.f32 %v895, %v1050
    %v1181 = vmax.f32 %v896, %v1052
    %v1182 = vmax.f32 %v897, %v1054
    %v1183 = vmax.f32 %v898, %v1056
    %v1184 = vmax.f32 %v899, %v1058
    %v1185 = vmax.f32 %v900, %v1060
    %v1186 = vmax.f32 %v901, %v1062
    %v1187 = vmax.f32 %v902, %v1064
    %v1188 = vmax.f32 %v903, %v1066
    %v1189 = vmax.f32 %v904, %v1068
    %v1190 = vmax.f32 %v905, %v1070
    %v1191 = vmax.f32 %v906, %v1072
    %v1192 = vmax.f32 %v907, %v1074
    %v1193 = vmax.f32 %v908, %v1076
    %v1194 = vmax.f32 %v909, %v1078
    %v1195 = vmax.f32 %v910, %v1080
    %v1196 = vmax.f32 %v911, %v1082
    %v1197 = vld [vmem:[%s2] sm:$0x1]
    %v1199 = vlaneseq
    %v1200 = vshrl.u32 %v1199, 7
    %v1201 = vsub.s32 0, %v1200
    %v1202 = vrot.slane %v1197, %v1201
    %v1204 = vadd.f32 %v1140, %v1202
    %v1205 = vadd.f32 %v1141, %v1202
    %v1206 = vadd.f32 %v1142, %v1202
    %v1207 = vadd.f32 %v1143, %v1202
    %v1208 = vadd.f32 %v1144, %v1202
    %v1209 = vadd.f32 %v1145, %v1202
    %v1210 = vadd.f32 %v1146, %v1202
    %v1211 = vadd.f32 %v1147, %v1202
    %v1212 = vadd.f32 %v1148, %v1202
    %v1213 = vadd.f32 %v1149, %v1202
    %v1214 = vadd.f32 %v1150, %v1202
    %v1215 = vadd.f32 %v1151, %v1202
    %v1216 = vadd.f32 %v1152, %v1202
    %v1217 = vadd.f32 %v1153, %v1202
    %v1218 = vadd.f32 %v1154, %v1202
    %v1219 = vadd.f32 %v1155, %v1202
    %v1220 = vadd.f32 %v1156, %v1202
    %v1221 = vadd.f32 %v1157, %v1202
    %v1222 = vadd.f32 %v1158, %v1202
    %v1223 = vadd.f32 %v1159, %v1202
    %v1224 = vadd.f32 %v1160, %v1202
    %v1225 = vadd.f32 %v1161, %v1202
    %v1226 = vadd.f32 %v1162, %v1202
    %v1227 = vadd.f32 %v1163, %v1202
    %v1228 = vadd.f32 %v1164, %v1202
    %v1229 = vadd.f32 %v1165, %v1202
    %v1230 = vadd.f32 %v1166, %v1202
    %v1231 = vadd.f32 %v1167, %v1202
    %v1232 = vadd.f32 %v1168, %v1202
    %v1233 = vadd.f32 %v1169, %v1202
    %v1234 = vadd.f32 %v1170, %v1202
    %v1235 = vadd.f32 %v1171, %v1202
    %v1236 = vadd.f32 %v1172, %v1202
    %v1237 = vadd.f32 %v1173, %v1202
    %v1238 = vadd.f32 %v1174, %v1202
    %v1239 = vadd.f32 %v1175, %v1202
    %v1240 = vadd.f32 %v1176, %v1202
    %v1241 = vadd.f32 %v1177, %v1202
    %v1242 = vadd.f32 %v1178, %v1202
    %v1243 = vadd.f32 %v1179, %v1202
    %v1244 = vadd.f32 %v1180, %v1202
    %v1245 = vadd.f32 %v1181, %v1202
    %v1246 = vadd.f32 %v1182, %v1202
    %v1247 = vadd.f32 %v1183, %v1202
    %v1248 = vadd.f32 %v1184, %v1202
    %v1249 = vadd.f32 %v1185, %v1202
    %v1250 = vadd.f32 %v1186, %v1202
    %v1251 = vadd.f32 %v1187, %v1202
    %v1252 = vadd.f32 %v1188, %v1202
    %v1253 = vadd.f32 %v1189, %v1202
    %v1254 = vadd.f32 %v1190, %v1202
    %v1255 = vadd.f32 %v1191, %v1202
    %v1256 = vadd.f32 %v1192, %v1202
    %v1257 = vadd.f32 %v1193, %v1202
    %v1258 = vadd.f32 %v1194, %v1202
    %v1259 = vadd.f32 %v1195, %v1202
    %v1260 = vadd.f32 %v1196, %v1202
    %v1261 = vmax.f32 %v1204, 0.0
    %v1262 = vmax.f32 %v1205, 0.0
    %v1263 = vmax.f32 %v1206, 0.0
    %v1264 = vmax.f32 %v1207, 0.0
    %v1265 = vmax.f32 %v1208, 0.0
    %v1266 = vmax.f32 %v1209, 0.0
    %v1267 = vmax.f32 %v1210, 0.0
    %v1268 = vmax.f32 %v1211, 0.0
    %v1269 = vmax.f32 %v1212, 0.0
    %v1270 = vmax.f32 %v1213, 0.0
    %v1271 = vmax.f32 %v1214, 0.0
    %v1272 = vmax.f32 %v1215, 0.0
    %v1273 = vmax.f32 %v1216, 0.0
    %v1274 = vmax.f32 %v1217, 0.0
    %v1275 = vmax.f32 %v1218, 0.0
    %v1276 = vmax.f32 %v1219, 0.0
    %v1277 = vmax.f32 %v1220, 0.0
    %v1278 = vmax.f32 %v1221, 0.0
    %v1279 = vmax.f32 %v1222, 0.0
    %v1280 = vmax.f32 %v1223, 0.0
    %v1281 = vmax.f32 %v1224, 0.0
    %v1282 = vmax.f32 %v1225, 0.0
    %v1283 = vmax.f32 %v1226, 0.0
    %v1284 = vmax.f32 %v1227, 0.0
    %v1285 = vmax.f32 %v1228, 0.0
    %v1286 = vmax.f32 %v1229, 0.0
    %v1287 = vmax.f32 %v1230, 0.0
    %v1288 = vmax.f32 %v1231, 0.0
    %v1289 = vmax.f32 %v1232, 0.0
    %v1290 = vmax.f32 %v1233, 0.0
    %v1291 = vmax.f32 %v1234, 0.0
    %v1292 = vmax.f32 %v1235, 0.0
    %v1293 = vmax.f32 %v1236, 0.0
    %v1294 = vmax.f32 %v1237, 0.0
    %v1295 = vmax.f32 %v1238, 0.0
    %v1296 = vmax.f32 %v1239, 0.0
    %v1297 = vmax.f32 %v1240, 0.0
    %v1298 = vmax.f32 %v1241, 0.0
    %v1299 = vmax.f32 %v1242, 0.0
    %v1300 = vmax.f32 %v1243, 0.0
    %v1301 = vmax.f32 %v1244, 0.0
    %v1302 = vmax.f32 %v1245, 0.0
    %v1303 = vmax.f32 %v1246, 0.0
    %v1304 = vmax.f32 %v1247, 0.0
    %v1305 = vmax.f32 %v1248, 0.0
    %v1306 = vmax.f32 %v1249, 0.0
    %v1307 = vmax.f32 %v1250, 0.0
    %v1308 = vmax.f32 %v1251, 0.0
    %v1309 = vmax.f32 %v1252, 0.0
    %v1310 = vmax.f32 %v1253, 0.0
    %v1311 = vmax.f32 %v1254, 0.0
    %v1312 = vmax.f32 %v1255, 0.0
    %v1313 = vmax.f32 %v1256, 0.0
    %v1314 = vmax.f32 %v1257, 0.0
    %v1315 = vmax.f32 %v1258, 0.0
    %v1316 = vmax.f32 %v1259, 0.0
    %v1317 = vmax.f32 %v1260, 0.0
    %vm1318 = vcmask 48128
    %1319 = vst.msk [vmem:[#allocation2] sm:$0xff] %vm1318, %v1261
    %1320 = vst.msk [vmem:[#allocation2 + $0x8] sm:$0xff] %vm1318, %v1262
    %1321 = vst.msk [vmem:[#allocation2 + $0x10] sm:$0xff] %vm1318, %v1263
    %1322 = vst.msk [vmem:[#allocation2 + $0x18] sm:$0xff] %vm1318, %v1264
    %1323 = vst.msk [vmem:[#allocation2 + $0x20] sm:$0xff] %vm1318, %v1265
    %1324 = vst.msk [vmem:[#allocation2 + $0x28] sm:$0xff] %vm1318, %v1266
    %1325 = vst.msk [vmem:[#allocation2 + $0x30] sm:$0xff] %vm1318, %v1267
    %1326 = vst.msk [vmem:[#allocation2 + $0x38] sm:$0xff] %vm1318, %v1268
    %1327 = vst.msk [vmem:[#allocation2 + $0x40] sm:$0xff] %vm1318, %v1269
    %1328 = vst.msk [vmem:[#allocation2 + $0x48] sm:$0xff] %vm1318, %v1270
    %1329 = vst.msk [vmem:[#allocation2 + $0x50] sm:$0xff] %vm1318, %v1271
    %1330 = vst.msk [vmem:[#allocation2 + $0x58] sm:$0xff] %vm1318, %v1272
    %1331 = vst.msk [vmem:[#allocation2 + $0x60] sm:$0xff] %vm1318, %v1273
    %1332 = vst.msk [vmem:[#allocation2 + $0x68] sm:$0xff] %vm1318, %v1274
    %1333 = vst.msk [vmem:[#allocation2 + $0x70] sm:$0xff] %vm1318, %v1275
    %1334 = vst.msk [vmem:[#allocation2 + $0x78] sm:$0xff] %vm1318, %v1276
    %1335 = vst.msk [vmem:[#allocation2 + $0x80] sm:$0xff] %vm1318, %v1277
    %1336 = vst.msk [vmem:[#allocation2 + $0x88] sm:$0xff] %vm1318, %v1278
    %1337 = vst.msk [vmem:[#allocation2 + $0x90] sm:$0xff] %vm1318, %v1279
    %1338 = vst.msk [vmem:[#allocation2 + $0x98] sm:$0xff] %vm1318, %v1280
    %1339 = vst.msk [vmem:[#allocation2 + $0xa0] sm:$0xff] %vm1318, %v1281
    %1340 = vst.msk [vmem:[#allocation2 + $0xa8] sm:$0xff] %vm1318, %v1282
    %1341 = vst.msk [vmem:[#allocation2 + $0xb0] sm:$0xff] %vm1318, %v1283
    %1342 = vst.msk [vmem:[#allocation2 + $0xb8] sm:$0xff] %vm1318, %v1284
    %1343 = vst.msk [vmem:[#allocation2 + $0xc0] sm:$0xff] %vm1318, %v1285
    %1344 = vst.msk [vmem:[#allocation2 + $0xc8] sm:$0xff] %vm1318, %v1286
    %1345 = vst.msk [vmem:[#allocation2 + $0xd0] sm:$0xff] %vm1318, %v1287
    %1346 = vst.msk [vmem:[#allocation2 + $0xd8] sm:$0xff] %vm1318, %v1288
    %1347 = vst.msk [vmem:[#allocation2 + $0xe0] sm:$0xff] %vm1318, %v1289
    %1348 = vst.msk [vmem:[#allocation2 + $0xe8] sm:$0xff] %vm1318, %v1290
    %1349 = vst.msk [vmem:[#allocation2 + $0xf0] sm:$0xff] %vm1318, %v1291
    %1350 = vst.msk [vmem:[#allocation2 + $0xf8] sm:$0xff] %vm1318, %v1292
    %1351 = vst.msk [vmem:[#allocation2 + $0x100] sm:$0xff] %vm1318, %v1293
    %1352 = vst.msk [vmem:[#allocation2 + $0x108] sm:$0xff] %vm1318, %v1294
    %1353 = vst.msk [vmem:[#allocation2 + $0x110] sm:$0xff] %vm1318, %v1295
    %1354 = vst.msk [vmem:[#allocation2 + $0x118] sm:$0xff] %vm1318, %v1296
    %1355 = vst.msk [vmem:[#allocation2 + $0x120] sm:$0xff] %vm1318, %v1297
    %1356 = vst.msk [vmem:[#allocation2 + $0x128] sm:$0xff] %vm1318, %v1298
    %1357 = vst.msk [vmem:[#allocation2 + $0x130] sm:$0xff] %vm1318, %v1299
    %1358 = vst.msk [vmem:[#allocation2 + $0x138] sm:$0xff] %vm1318, %v1300
    %1359 = vst.msk [vmem:[#allocation2 + $0x140] sm:$0xff] %vm1318, %v1301
    %1360 = vst.msk [vmem:[#allocation2 + $0x148] sm:$0xff] %vm1318, %v1302
    %1361 = vst.msk [vmem:[#allocation2 + $0x150] sm:$0xff] %vm1318, %v1303
    %1362 = vst.msk [vmem:[#allocation2 + $0x158] sm:$0xff] %vm1318, %v1304
    %1363 = vst.msk [vmem:[#allocation2 + $0x160] sm:$0xff] %vm1318, %v1305
    %1364 = vst.msk [vmem:[#allocation2 + $0x168] sm:$0xff] %vm1318, %v1306
    %1365 = vst.msk [vmem:[#allocation2 + $0x170] sm:$0xff] %vm1318, %v1307
    %1366 = vst.msk [vmem:[#allocation2 + $0x178] sm:$0xff] %vm1318, %v1308
    %1367 = vst.msk [vmem:[#allocation2 + $0x180] sm:$0xff] %vm1318, %v1309
    %1368 = vst.msk [vmem:[#allocation2 + $0x188] sm:$0xff] %vm1318, %v1310
    %1369 = vst.msk [vmem:[#allocation2 + $0x190] sm:$0xff] %vm1318, %v1311
    %1370 = vst.msk [vmem:[#allocation2 + $0x198] sm:$0xff] %vm1318, %v1312
    %1371 = vst.msk [vmem:[#allocation2 + $0x1a0] sm:$0xff] %vm1318, %v1313
    %1372 = vst.msk [vmem:[#allocation2 + $0x1a8] sm:$0xff] %vm1318, %v1314
    %1373 = vst.msk [vmem:[#allocation2 + $0x1b0] sm:$0xff] %vm1318, %v1315
    %1374 = vst.msk [vmem:[#allocation2 + $0x1b8] sm:$0xff] %vm1318, %v1316
    %1375 = vst.msk [vmem:[#allocation2 + $0x1c0] sm:$0xff] %vm1318, %v1317
    %v1376 = vld [vmem:[#allocation2] sm:$0xff]
    %v1377 = vld [vmem:[#allocation2 + $0x8] sm:$0xff]
    %v1378 = vld [vmem:[#allocation2 + $0x10] sm:$0xff]
    %v1379 = vld [vmem:[#allocation2 + $0x18] sm:$0xff]
    %v1380 = vld [vmem:[#allocation2 + $0x20] sm:$0xff]
    %v1381 = vld [vmem:[#allocation2 + $0x28] sm:$0xff]
    %v1382 = vld [vmem:[#allocation2 + $0x30] sm:$0xff]
    %v1383 = vld [vmem:[#allocation2 + $0x38] sm:$0xff]
    %v1384 = vld [vmem:[#allocation2 + $0x40] sm:$0xff]
    %v1385 = vld [vmem:[#allocation2 + $0x48] sm:$0xff]
    %v1386 = vld [vmem:[#allocation2 + $0x50] sm:$0xff]
    %v1387 = vld [vmem:[#allocation2 + $0x58] sm:$0xff]
    %v1388 = vld [vmem:[#allocation2 + $0x60] sm:$0xff]
    %v1389 = vld [vmem:[#allocation2 + $0x68] sm:$0xff]
    %v1390 = vld [vmem:[#allocation2 + $0x70] sm:$0xff]
    %v1391 = vld [vmem:[#allocation2 + $0x78] sm:$0xff]
    %v1392 = vld [vmem:[#allocation2 + $0x80] sm:$0xff]
    %v1393 = vld [vmem:[#allocation2 + $0x88] sm:$0xff]
    %v1394 = vld [vmem:[#allocation2 + $0x90] sm:$0xff]
    %v1395 = vld [vmem:[#allocation2 + $0x98] sm:$0xff]
    %v1396 = vld [vmem:[#allocation2 + $0xa0] sm:$0xff]
    %v1397 = vld [vmem:[#allocation2 + $0xa8] sm:$0xff]
    %v1398 = vld [vmem:[#allocation2 + $0xb0] sm:$0xff]
    %v1399 = vld [vmem:[#allocation2 + $0xb8] sm:$0xff]
    %v1400 = vld [vmem:[#allocation2 + $0xc0] sm:$0xff]
    %v1401 = vld [vmem:[#allocation2 + $0xc8] sm:$0xff]
    %v1402 = vld [vmem:[#allocation2 + $0xd0] sm:$0xff]
    %v1403 = vld [vmem:[#allocation2 + $0xd8] sm:$0xff]
    %v1404 = vld [vmem:[#allocation2 + $0xe0] sm:$0xff]
    %v1405 = vld [vmem:[#allocation2 + $0xe8] sm:$0xff]
    %v1406 = vld [vmem:[#allocation2 + $0xf0] sm:$0xff]
    %v1407 = vld [vmem:[#allocation2 + $0xf8] sm:$0xff]
    %v1408 = vld [vmem:[#allocation2 + $0x100] sm:$0xff]
    %v1409 = vld [vmem:[#allocation2 + $0x108] sm:$0xff]
    %v1410 = vld [vmem:[#allocation2 + $0x110] sm:$0xff]
    %v1411 = vld [vmem:[#allocation2 + $0x118] sm:$0xff]
    %v1412 = vld [vmem:[#allocation2 + $0x120] sm:$0xff]
    %v1413 = vld [vmem:[#allocation2 + $0x128] sm:$0xff]
    %v1414 = vld [vmem:[#allocation2 + $0x130] sm:$0xff]
    %v1415 = vld [vmem:[#allocation2 + $0x138] sm:$0xff]
    %v1416 = vld [vmem:[#allocation2 + $0x140] sm:$0xff]
    %v1417 = vld [vmem:[#allocation2 + $0x148] sm:$0xff]
    %v1418 = vld [vmem:[#allocation2 + $0x150] sm:$0xff]
    %v1419 = vld [vmem:[#allocation2 + $0x158] sm:$0xff]
    %v1420 = vld [vmem:[#allocation2 + $0x160] sm:$0xff]
    %v1421 = vld [vmem:[#allocation2 + $0x168] sm:$0xff]
    %v1422 = vld [vmem:[#allocation2 + $0x170] sm:$0xff]
    %v1423 = vld [vmem:[#allocation2 + $0x178] sm:$0xff]
    %v1424 = vld [vmem:[#allocation2 + $0x180] sm:$0xff]
    %v1425 = vld [vmem:[#allocation2 + $0x188] sm:$0xff]
    %v1426 = vld [vmem:[#allocation2 + $0x190] sm:$0xff]
    %1427 = vst.msk [vmem:[#allocation3] sm:$0xff] %vm1318, %v1376
    %1428 = vst.msk [vmem:[#allocation3 + $0x8] sm:$0xff] %vm1318, %v1377
    %1429 = vst.msk [vmem:[#allocation3 + $0x10] sm:$0xff] %vm1318, %v1378
    %1430 = vst.msk [vmem:[#allocation3 + $0x18] sm:$0xff] %vm1318, %v1379
    %1431 = vst.msk [vmem:[#allocation3 + $0x20] sm:$0xff] %vm1318, %v1380
    %1432 = vst.msk [vmem:[#allocation3 + $0x28] sm:$0xff] %vm1318, %v1381
    %1433 = vst.msk [vmem:[#allocation3 + $0x30] sm:$0xff] %vm1318, %v1382
    %1434 = vst.msk [vmem:[#allocation3 + $0x38] sm:$0xff] %vm1318, %v1383
    %1435 = vst.msk [vmem:[#allocation3 + $0x40] sm:$0xff] %vm1318, %v1384
    %1436 = vst.msk [vmem:[#allocation3 + $0x48] sm:$0xff] %vm1318, %v1385
    %1437 = vst.msk [vmem:[#allocation3 + $0x50] sm:$0xff] %vm1318, %v1386
    %1438 = vst.msk [vmem:[#allocation3 + $0x58] sm:$0xff] %vm1318, %v1387
    %1439 = vst.msk [vmem:[#allocation3 + $0x60] sm:$0xff] %vm1318, %v1388
    %1440 = vst.msk [vmem:[#allocation3 + $0x68] sm:$0xff] %vm1318, %v1389
    %1441 = vst.msk [vmem:[#allocation3 + $0x70] sm:$0xff] %vm1318, %v1390
    %1442 = vst.msk [vmem:[#allocation3 + $0x78] sm:$0xff] %vm1318, %v1391
    %1443 = vst.msk [vmem:[#allocation3 + $0x80] sm:$0xff] %vm1318, %v1392
    %1444 = vst.msk [vmem:[#allocation3 + $0x88] sm:$0xff] %vm1318, %v1393
    %1445 = vst.msk [vmem:[#allocation3 + $0x90] sm:$0xff] %vm1318, %v1394
    %1446 = vst.msk [vmem:[#allocation3 + $0x98] sm:$0xff] %vm1318, %v1395
    %1447 = vst.msk [vmem:[#allocation3 + $0xa0] sm:$0xff] %vm1318, %v1396
    %1448 = vst.msk [vmem:[#allocation3 + $0xa8] sm:$0xff] %vm1318, %v1397
    %1449 = vst.msk [vmem:[#allocation3 + $0xb0] sm:$0xff] %vm1318, %v1398
    %1450 = vst.msk [vmem:[#allocation3 + $0xb8] sm:$0xff] %vm1318, %v1399
    %1451 = vst.msk [vmem:[#allocation3 + $0xc0] sm:$0xff] %vm1318, %v1400
    %1452 = vst.msk [vmem:[#allocation3 + $0xc8] sm:$0xff] %vm1318, %v1401
    %1453 = vst.msk [vmem:[#allocation3 + $0xd0] sm:$0xff] %vm1318, %v1402
    %1454 = vst.msk [vmem:[#allocation3 + $0xd8] sm:$0xff] %vm1318, %v1403
    %1455 = vst.msk [vmem:[#allocation3 + $0xe0] sm:$0xff] %vm1318, %v1404
    %1456 = vst.msk [vmem:[#allocation3 + $0xe8] sm:$0xff] %vm1318, %v1405
    %1457 = vst.msk [vmem:[#allocation3 + $0xf0] sm:$0xff] %vm1318, %v1406
    %1458 = vst.msk [vmem:[#allocation3 + $0xf8] sm:$0xff] %vm1318, %v1407
    %1459 = vst.msk [vmem:[#allocation3 + $0x100] sm:$0xff] %vm1318, %v1408
    %1460 = vst.msk [vmem:[#allocation3 + $0x108] sm:$0xff] %vm1318, %v1409
    %1461 = vst.msk [vmem:[#allocation3 + $0x110] sm:$0xff] %vm1318, %v1410
    %1462 = vst.msk [vmem:[#allocation3 + $0x118] sm:$0xff] %vm1318, %v1411
    %1463 = vst.msk [vmem:[#allocation3 + $0x120] sm:$0xff] %vm1318, %v1412
    %1464 = vst.msk [vmem:[#allocation3 + $0x128] sm:$0xff] %vm1318, %v1413
    %1465 = vst.msk [vmem:[#allocation3 + $0x130] sm:$0xff] %vm1318, %v1414
    %1466 = vst.msk [vmem:[#allocation3 + $0x138] sm:$0xff] %vm1318, %v1415
    %1467 = vst.msk [vmem:[#allocation3 + $0x140] sm:$0xff] %vm1318, %v1416
    %1468 = vst.msk [vmem:[#allocation3 + $0x148] sm:$0xff] %vm1318, %v1417
    %1469 = vst.msk [vmem:[#allocation3 + $0x150] sm:$0xff] %vm1318, %v1418
    %1470 = vst.msk [vmem:[#allocation3 + $0x158] sm:$0xff] %vm1318, %v1419
    %1471 = vst.msk [vmem:[#allocation3 + $0x160] sm:$0xff] %vm1318, %v1420
    %1472 = vst.msk [vmem:[#allocation3 + $0x168] sm:$0xff] %vm1318, %v1421
    %1473 = vst.msk [vmem:[#allocation3 + $0x170] sm:$0xff] %vm1318, %v1422
    %1474 = vst.msk [vmem:[#allocation3 + $0x178] sm:$0xff] %vm1318, %v1423
    %1475 = vst.msk [vmem:[#allocation3 + $0x180] sm:$0xff] %vm1318, %v1424
    %1476 = vst.msk [vmem:[#allocation3 + $0x188] sm:$0xff] %vm1318, %v1425
    %1477 = vst.msk [vmem:[#allocation3 + $0x190] sm:$0xff] %vm1318, %v1426
    %v1478 = vld [vmem:[#allocation2 + $0x1] sm:$0xff]
    %v1479 = vld [vmem:[#allocation2 + $0x9] sm:$0xff]
    %v1480 = vld [vmem:[#allocation2 + $0x11] sm:$0xff]
    %v1481 = vld [vmem:[#allocation2 + $0x19] sm:$0xff]
    %v1482 = vld [vmem:[#allocation2 + $0x21] sm:$0xff]
    %v1483 = vld [vmem:[#allocation2 + $0x29] sm:$0xff]
    %v1484 = vld [vmem:[#allocation2 + $0x31] sm:$0xff]
    %v1485 = vld [vmem:[#allocation2 + $0x39] sm:$0xff]
    %v1486 = vld [vmem:[#allocation2 + $0x41] sm:$0xff]
    %v1487 = vld [vmem:[#allocation2 + $0x49] sm:$0xff]
    %v1488 = vld [vmem:[#allocation2 + $0x51] sm:$0xff]
    %v1489 = vld [vmem:[#allocation2 + $0x59] sm:$0xff]
    %v1490 = vld [vmem:[#allocation2 + $0x61] sm:$0xff]
    %v1491 = vld [vmem:[#allocation2 + $0x69] sm:$0xff]
    %v1492 = vld [vmem:[#allocation2 + $0x71] sm:$0xff]
    %v1493 = vld [vmem:[#allocation2 + $0x79] sm:$0xff]
    %v1494 = vld [vmem:[#allocation2 + $0x81] sm:$0xff]
    %v1495 = vld [vmem:[#allocation2 + $0x89] sm:$0xff]
    %v1496 = vld [vmem:[#allocation2 + $0x91] sm:$0xff]
    %v1497 = vld [vmem:[#allocation2 + $0x99] sm:$0xff]
    %v1498 = vld [vmem:[#allocation2 + $0xa1] sm:$0xff]
    %v1499 = vld [vmem:[#allocation2 + $0xa9] sm:$0xff]
    %v1500 = vld [vmem:[#allocation2 + $0xb1] sm:$0xff]
    %v1501 = vld [vmem:[#allocation2 + $0xb9] sm:$0xff]
    %v1502 = vld [vmem:[#allocation2 + $0xc1] sm:$0xff]
    %v1503 = vld [vmem:[#allocation2 + $0xc9] sm:$0xff]
    %v1504 = vld [vmem:[#allocation2 + $0xd1] sm:$0xff]
    %v1505 = vld [vmem:[#allocation2 + $0xd9] sm:$0xff]
    %v1506 = vld [vmem:[#allocation2 + $0xe1] sm:$0xff]
    %v1507 = vld [vmem:[#allocation2 + $0xe9] sm:$0xff]
    %v1508 = vld [vmem:[#allocation2 + $0xf1] sm:$0xff]
    %v1509 = vld [vmem:[#allocation2 + $0xf9] sm:$0xff]
    %v1510 = vld [vmem:[#allocation2 + $0x101] sm:$0xff]
    %v1511 = vld [vmem:[#allocation2 + $0x109] sm:$0xff]
    %v1512 = vld [vmem:[#allocation2 + $0x111] sm:$0xff]
    %v1513 = vld [vmem:[#allocation2 + $0x119] sm:$0xff]
    %v1514 = vld [vmem:[#allocation2 + $0x121] sm:$0xff]
    %v1515 = vld [vmem:[#allocation2 + $0x129] sm:$0xff]
    %v1516 = vld [vmem:[#allocation2 + $0x131] sm:$0xff]
    %v1517 = vld [vmem:[#allocation2 + $0x139] sm:$0xff]
    %v1518 = vld [vmem:[#allocation2 + $0x141] sm:$0xff]
    %v1519 = vld [vmem:[#allocation2 + $0x149] sm:$0xff]
    %v1520 = vld [vmem:[#allocation2 + $0x151] sm:$0xff]
    %v1521 = vld [vmem:[#allocation2 + $0x159] sm:$0xff]
    %v1522 = vld [vmem:[#allocation2 + $0x161] sm:$0xff]
    %v1523 = vld [vmem:[#allocation2 + $0x169] sm:$0xff]
    %v1524 = vld [vmem:[#allocation2 + $0x171] sm:$0xff]
    %v1525 = vld [vmem:[#allocation2 + $0x179] sm:$0xff]
    %v1526 = vld [vmem:[#allocation2 + $0x181] sm:$0xff]
    %v1527 = vld [vmem:[#allocation2 + $0x189] sm:$0xff]
    %v1528 = vld [vmem:[#allocation2 + $0x191] sm:$0xff]
    %1580 = vrot.lane.b32.xlu0 %v1478, 6
    %v1581 = vpop.permute.xlu0 %1580
    %1582 = vrot.lane.b32.xlu0 %v1479, 6
    %v1583 = vpop.permute.xlu0 %1582
    %1584 = vrot.lane.b32.xlu0 %v1480, 6
    %v1585 = vpop.permute.xlu0 %1584
    %1586 = vrot.lane.b32.xlu0 %v1481, 6
    %v1587 = vpop.permute.xlu0 %1586
    %1588 = vrot.lane.b32.xlu0 %v1482, 6
    %v1589 = vpop.permute.xlu0 %1588
    %1590 = vrot.lane.b32.xlu0 %v1483, 6
    %v1591 = vpop.permute.xlu0 %1590
    %1592 = vrot.lane.b32.xlu0 %v1484, 6
    %v1593 = vpop.permute.xlu0 %1592
    %1594 = vrot.lane.b32.xlu0 %v1485, 6
    %v1595 = vpop.permute.xlu0 %1594
    %1596 = vrot.lane.b32.xlu0 %v1486, 6
    %v1597 = vpop.permute.xlu0 %1596
    %1598 = vrot.lane.b32.xlu0 %v1487, 6
    %v1599 = vpop.permute.xlu0 %1598
    %1600 = vrot.lane.b32.xlu0 %v1488, 6
    %v1601 = vpop.permute.xlu0 %1600
    %1602 = vrot.lane.b32.xlu0 %v1489, 6
    %v1603 = vpop.permute.xlu0 %1602
    %1604 = vrot.lane.b32.xlu0 %v1490, 6
    %v1605 = vpop.permute.xlu0 %1604
    %1606 = vrot.lane.b32.xlu0 %v1491, 6
    %v1607 = vpop.permute.xlu0 %1606
    %1608 = vrot.lane.b32.xlu0 %v1492, 6
    %v1609 = vpop.permute.xlu0 %1608
    %1610 = vrot.lane.b32.xlu0 %v1493, 6
    %v1611 = vpop.permute.xlu0 %1610
    %1612 = vrot.lane.b32.xlu0 %v1494, 6
    %v1613 = vpop.permute.xlu0 %1612
    %1614 = vrot.lane.b32.xlu0 %v1495, 6
    %v1615 = vpop.permute.xlu0 %1614
    %1616 = vrot.lane.b32.xlu0 %v1496, 6
    %v1617 = vpop.permute.xlu0 %1616
    %1618 = vrot.lane.b32.xlu0 %v1497, 6
    %v1619 = vpop.permute.xlu0 %1618
    %1620 = vrot.lane.b32.xlu0 %v1498, 6
    %v1621 = vpop.permute.xlu0 %1620
    %1622 = vrot.lane.b32.xlu0 %v1499, 6
    %v1623 = vpop.permute.xlu0 %1622
    %1624 = vrot.lane.b32.xlu0 %v1500, 6
    %v1625 = vpop.permute.xlu0 %1624
    %1626 = vrot.lane.b32.xlu0 %v1501, 6
    %v1627 = vpop.permute.xlu0 %1626
    %1628 = vrot.lane.b32.xlu0 %v1502, 6
    %v1629 = vpop.permute.xlu0 %1628
    %1630 = vrot.lane.b32.xlu0 %v1503, 6
    %v1631 = vpop.permute.xlu0 %1630
    %1632 = vrot.lane.b32.xlu0 %v1504, 6
    %v1633 = vpop.permute.xlu0 %1632
    %1634 = vrot.lane.b32.xlu0 %v1505, 6
    %v1635 = vpop.permute.xlu0 %1634
    %1636 = vrot.lane.b32.xlu0 %v1506, 6
    %v1637 = vpop.permute.xlu0 %1636
    %1638 = vrot.lane.b32.xlu0 %v1507, 6
    %v1639 = vpop.permute.xlu0 %1638
    %1640 = vrot.lane.b32.xlu0 %v1508, 6
    %v1641 = vpop.permute.xlu0 %1640
    %1642 = vrot.lane.b32.xlu0 %v1509, 6
    %v1643 = vpop.permute.xlu0 %1642
    %1644 = vrot.lane.b32.xlu0 %v1510, 6
    %v1645 = vpop.permute.xlu0 %1644
    %1646 = vrot.lane.b32.xlu0 %v1511, 6
    %v1647 = vpop.permute.xlu0 %1646
    %1648 = vrot.lane.b32.xlu0 %v1512, 6
    %v1649 = vpop.permute.xlu0 %1648
    %1650 = vrot.lane.b32.xlu0 %v1513, 6
    %v1651 = vpop.permute.xlu0 %1650
    %1652 = vrot.lane.b32.xlu0 %v1514, 6
    %v1653 = vpop.permute.xlu0 %1652
    %1654 = vrot.lane.b32.xlu0 %v1515, 6
    %v1655 = vpop.permute.xlu0 %1654
    %1656 = vrot.lane.b32.xlu0 %v1516, 6
    %v1657 = vpop.permute.xlu0 %1656
    %1658 = vrot.lane.b32.xlu0 %v1517, 6
    %v1659 = vpop.permute.xlu0 %1658
    %1660 = vrot.lane.b32.xlu0 %v1518, 6
    %v1661 = vpop.permute.xlu0 %1660
    %1662 = vrot.lane.b32.xlu0 %v1519, 6
    %v1663 = vpop.permute.xlu0 %1662
    %1664 = vrot.lane.b32.xlu0 %v1520, 6
    %v1665 = vpop.permute.xlu0 %1664
    %1666 = vrot.lane.b32.xlu0 %v1521, 6
    %v1667 = vpop.permute.xlu0 %1666
    %1668 = vrot.lane.b32.xlu0 %v1522, 6
    %v1669 = vpop.permute.xlu0 %1668
    %1670 = vrot.lane.b32.xlu0 %v1523, 6
    %v1671 = vpop.permute.xlu0 %1670
    %1672 = vrot.lane.b32.xlu0 %v1524, 6
    %v1673 = vpop.permute.xlu0 %1672
    %1674 = vrot.lane.b32.xlu0 %v1525, 6
    %v1675 = vpop.permute.xlu0 %1674
    %1676 = vrot.lane.b32.xlu0 %v1526, 6
    %v1677 = vpop.permute.xlu0 %1676
    %1678 = vrot.lane.b32.xlu0 %v1527, 6
    %v1679 = vpop.permute.xlu0 %1678
    %1680 = vrot.lane.b32.xlu0 %v1528, 6
    %v1681 = vpop.permute.xlu0 %1680
    %vm1733 = vcmask 97328
    %1734 = vst.msk [vmem:[#allocation3] sm:$0xff] %vm1733, %v1581
    %1735 = vst.msk [vmem:[#allocation3 + $0x8] sm:$0xff] %vm1733, %v1583
    %1736 = vst.msk [vmem:[#allocation3 + $0x10] sm:$0xff] %vm1733, %v1585
    %1737 = vst.msk [vmem:[#allocation3 + $0x18] sm:$0xff] %vm1733, %v1587
    %1738 = vst.msk [vmem:[#allocation3 + $0x20] sm:$0xff] %vm1733, %v1589
    %1739 = vst.msk [vmem:[#allocation3 + $0x28] sm:$0xff] %vm1733, %v1591
    %1740 = vst.msk [vmem:[#allocation3 + $0x30] sm:$0xff] %vm1733, %v1593
    %1741 = vst.msk [vmem:[#allocation3 + $0x38] sm:$0xff] %vm1733, %v1595
    %1742 = vst.msk [vmem:[#allocation3 + $0x40] sm:$0xff] %vm1733, %v1597
    %1743 = vst.msk [vmem:[#allocation3 + $0x48] sm:$0xff] %vm1733, %v1599
    %1744 = vst.msk [vmem:[#allocation3 + $0x50] sm:$0xff] %vm1733, %v1601
    %1745 = vst.msk [vmem:[#allocation3 + $0x58] sm:$0xff] %vm1733, %v1603
    %1746 = vst.msk [vmem:[#allocation3 + $0x60] sm:$0xff] %vm1733, %v1605
    %1747 = vst.msk [vmem:[#allocation3 + $0x68] sm:$0xff] %vm1733, %v1607
    %1748 = vst.msk [vmem:[#allocation3 + $0x70] sm:$0xff] %vm1733, %v1609
    %1749 = vst.msk [vmem:[#allocation3 + $0x78] sm:$0xff] %vm1733, %v1611
    %1750 = vst.msk [vmem:[#allocation3 + $0x80] sm:$0xff] %vm1733, %v1613
    %1751 = vst.msk [vmem:[#allocation3 + $0x88] sm:$0xff] %vm1733, %v1615
    %1752 = vst.msk [vmem:[#allocation3 + $0x90] sm:$0xff] %vm1733, %v1617
    %1753 = vst.msk [vmem:[#allocation3 + $0x98] sm:$0xff] %vm1733, %v1619
    %1754 = vst.msk [vmem:[#allocation3 + $0xa0] sm:$0xff] %vm1733, %v1621
    %1755 = vst.msk [vmem:[#allocation3 + $0xa8] sm:$0xff] %vm1733, %v1623
    %1756 = vst.msk [vmem:[#allocation3 + $0xb0] sm:$0xff] %vm1733, %v1625
    %1757 = vst.msk [vmem:[#allocation3 + $0xb8] sm:$0xff] %vm1733, %v1627
    %1758 = vst.msk [vmem:[#allocation3 + $0xc0] sm:$0xff] %vm1733, %v1629
    %1759 = vst.msk [vmem:[#allocation3 + $0xc8] sm:$0xff] %vm1733, %v1631
    %1760 = vst.msk [vmem:[#allocation3 + $0xd0] sm:$0xff] %vm1733, %v1633
    %1761 = vst.msk [vmem:[#allocation3 + $0xd8] sm:$0xff] %vm1733, %v1635
    %1762 = vst.msk [vmem:[#allocation3 + $0xe0] sm:$0xff] %vm1733, %v1637
    %1763 = vst.msk [vmem:[#allocation3 + $0xe8] sm:$0xff] %vm1733, %v1639
    %1764 = vst.msk [vmem:[#allocation3 + $0xf0] sm:$0xff] %vm1733, %v1641
    %1765 = vst.msk [vmem:[#allocation3 + $0xf8] sm:$0xff] %vm1733, %v1643
    %1766 = vst.msk [vmem:[#allocation3 + $0x100] sm:$0xff] %vm1733, %v1645
    %1767 = vst.msk [vmem:[#allocation3 + $0x108] sm:$0xff] %vm1733, %v1647
    %1768 = vst.msk [vmem:[#allocation3 + $0x110] sm:$0xff] %vm1733, %v1649
    %1769 = vst.msk [vmem:[#allocation3 + $0x118] sm:$0xff] %vm1733, %v1651
    %1770 = vst.msk [vmem:[#allocation3 + $0x120] sm:$0xff] %vm1733, %v1653
    %1771 = vst.msk [vmem:[#allocation3 + $0x128] sm:$0xff] %vm1733, %v1655
    %1772 = vst.msk [vmem:[#allocation3 + $0x130] sm:$0xff] %vm1733, %v1657
    %1773 = vst.msk [vmem:[#allocation3 + $0x138] sm:$0xff] %vm1733, %v1659
    %1774 = vst.msk [vmem:[#allocation3 + $0x140] sm:$0xff] %vm1733, %v1661
    %1775 = vst.msk [vmem:[#allocation3 + $0x148] sm:$0xff] %vm1733, %v1663
    %1776 = vst.msk [vmem:[#allocation3 + $0x150] sm:$0xff] %vm1733, %v1665
    %1777 = vst.msk [vmem:[#allocation3 + $0x158] sm:$0xff] %vm1733, %v1667
    %1778 = vst.msk [vmem:[#allocation3 + $0x160] sm:$0xff] %vm1733, %v1669
    %1779 = vst.msk [vmem:[#allocation3 + $0x168] sm:$0xff] %vm1733, %v1671
    %1780 = vst.msk [vmem:[#allocation3 + $0x170] sm:$0xff] %vm1733, %v1673
    %1781 = vst.msk [vmem:[#allocation3 + $0x178] sm:$0xff] %vm1733, %v1675
    %1782 = vst.msk [vmem:[#allocation3 + $0x180] sm:$0xff] %vm1733, %v1677
    %1783 = vst.msk [vmem:[#allocation3 + $0x188] sm:$0xff] %vm1733, %v1679
    %1784 = vst.msk [vmem:[#allocation3 + $0x190] sm:$0xff] %vm1733, %v1681
    %v1785 = vld [vmem:[#allocation2 + $0x2] sm:$0xff]
    %v1786 = vld [vmem:[#allocation2 + $0xa] sm:$0xff]
    %v1787 = vld [vmem:[#allocation2 + $0x12] sm:$0xff]
    %v1788 = vld [vmem:[#allocation2 + $0x1a] sm:$0xff]
    %v1789 = vld [vmem:[#allocation2 + $0x22] sm:$0xff]
    %v1790 = vld [vmem:[#allocation2 + $0x2a] sm:$0xff]
    %v1791 = vld [vmem:[#allocation2 + $0x32] sm:$0xff]
    %v1792 = vld [vmem:[#allocation2 + $0x3a] sm:$0xff]
    %v1793 = vld [vmem:[#allocation2 + $0x42] sm:$0xff]
    %v1794 = vld [vmem:[#allocation2 + $0x4a] sm:$0xff]
    %v1795 = vld [vmem:[#allocation2 + $0x52] sm:$0xff]
    %v1796 = vld [vmem:[#allocation2 + $0x5a] sm:$0xff]
    %v1797 = vld [vmem:[#allocation2 + $0x62] sm:$0xff]
    %v1798 = vld [vmem:[#allocation2 + $0x6a] sm:$0xff]
    %v1799 = vld [vmem:[#allocation2 + $0x72] sm:$0xff]
    %v1800 = vld [vmem:[#allocation2 + $0x7a] sm:$0xff]
    %v1801 = vld [vmem:[#allocation2 + $0x82] sm:$0xff]
    %v1802 = vld [vmem:[#allocation2 + $0x8a] sm:$0xff]
    %v1803 = vld [vmem:[#allocation2 + $0x92] sm:$0xff]
    %v1804 = vld [vmem:[#allocation2 + $0x9a] sm:$0xff]
    %v1805 = vld [vmem:[#allocation2 + $0xa2] sm:$0xff]
    %v1806 = vld [vmem:[#allocation2 + $0xaa] sm:$0xff]
    %v1807 = vld [vmem:[#allocation2 + $0xb2] sm:$0xff]
    %v1808 = vld [vmem:[#allocation2 + $0xba] sm:$0xff]
    %v1809 = vld [vmem:[#allocation2 + $0xc2] sm:$0xff]
    %v1810 = vld [vmem:[#allocation2 + $0xca] sm:$0xff]
    %v1811 = vld [vmem:[#allocation2 + $0xd2] sm:$0xff]
    %v1812 = vld [vmem:[#allocation2 + $0xda] sm:$0xff]
    %v1813 = vld [vmem:[#allocation2 + $0xe2] sm:$0xff]
    %v1814 = vld [vmem:[#allocation2 + $0xea] sm:$0xff]
    %v1815 = vld [vmem:[#allocation2 + $0xf2] sm:$0xff]
    %v1816 = vld [vmem:[#allocation2 + $0xfa] sm:$0xff]
    %v1817 = vld [vmem:[#allocation2 + $0x102] sm:$0xff]
    %v1818 = vld [vmem:[#allocation2 + $0x10a] sm:$0xff]
    %v1819 = vld [vmem:[#allocation2 + $0x112] sm:$0xff]
    %v1820 = vld [vmem:[#allocation2 + $0x11a] sm:$0xff]
    %v1821 = vld [vmem:[#allocation2 + $0x122] sm:$0xff]
    %v1822 = vld [vmem:[#allocation2 + $0x12a] sm:$0xff]
    %v1823 = vld [vmem:[#allocation2 + $0x132] sm:$0xff]
    %v1824 = vld [vmem:[#allocation2 + $0x13a] sm:$0xff]
    %v1825 = vld [vmem:[#allocation2 + $0x142] sm:$0xff]
    %v1826 = vld [vmem:[#allocation2 + $0x14a] sm:$0xff]
    %v1827 = vld [vmem:[#allocation2 + $0x152] sm:$0xff]
    %v1828 = vld [vmem:[#allocation2 + $0x15a] sm:$0xff]
    %v1829 = vld [vmem:[#allocation2 + $0x162] sm:$0xff]
    %v1830 = vld [vmem:[#allocation2 + $0x16a] sm:$0xff]
    %v1831 = vld [vmem:[#allocation2 + $0x172] sm:$0xff]
    %v1832 = vld [vmem:[#allocation2 + $0x17a] sm:$0xff]
    %v1833 = vld [vmem:[#allocation2 + $0x182] sm:$0xff]
    %v1834 = vld [vmem:[#allocation2 + $0x18a] sm:$0xff]
    %v1835 = vld [vmem:[#allocation2 + $0x192] sm:$0xff]
    %1887 = vrot.lane.b32.xlu0 %v1785, 12
    %v1888 = vpop.permute.xlu0 %1887
    %1889 = vrot.lane.b32.xlu0 %v1786, 12
    %v1890 = vpop.permute.xlu0 %1889
    %1891 = vrot.lane.b32.xlu0 %v1787, 12
    %v1892 = vpop.permute.xlu0 %1891
    %1893 = vrot.lane.b32.xlu0 %v1788, 12
    %v1894 = vpop.permute.xlu0 %1893
    %1895 = vrot.lane.b32.xlu0 %v1789, 12
    %v1896 = vpop.permute.xlu0 %1895
    %1897 = vrot.lane.b32.xlu0 %v1790, 12
    %v1898 = vpop.permute.xlu0 %1897
    %1899 = vrot.lane.b32.xlu0 %v1791, 12
    %v1900 = vpop.permute.xlu0 %1899
    %1901 = vrot.lane.b32.xlu0 %v1792, 12
    %v1902 = vpop.permute.xlu0 %1901
    %1903 = vrot.lane.b32.xlu0 %v1793, 12
    %v1904 = vpop.permute.xlu0 %1903
    %1905 = vrot.lane.b32.xlu0 %v1794, 12
    %v1906 = vpop.permute.xlu0 %1905
    %1907 = vrot.lane.b32.xlu0 %v1795, 12
    %v1908 = vpop.permute.xlu0 %1907
    %1909 = vrot.lane.b32.xlu0 %v1796, 12
    %v1910 = vpop.permute.xlu0 %1909
    %1911 = vrot.lane.b32.xlu0 %v1797, 12
    %v1912 = vpop.permute.xlu0 %1911
    %1913 = vrot.lane.b32.xlu0 %v1798, 12
    %v1914 = vpop.permute.xlu0 %1913
    %1915 = vrot.lane.b32.xlu0 %v1799, 12
    %v1916 = vpop.permute.xlu0 %1915
    %1917 = vrot.lane.b32.xlu0 %v1800, 12
    %v1918 = vpop.permute.xlu0 %1917
    %1919 = vrot.lane.b32.xlu0 %v1801, 12
    %v1920 = vpop.permute.xlu0 %1919
    %1921 = vrot.lane.b32.xlu0 %v1802, 12
    %v1922 = vpop.permute.xlu0 %1921
    %1923 = vrot.lane.b32.xlu0 %v1803, 12
    %v1924 = vpop.permute.xlu0 %1923
    %1925 = vrot.lane.b32.xlu0 %v1804, 12
    %v1926 = vpop.permute.xlu0 %1925
    %1927 = vrot.lane.b32.xlu0 %v1805, 12
    %v1928 = vpop.permute.xlu0 %1927
    %1929 = vrot.lane.b32.xlu0 %v1806, 12
    %v1930 = vpop.permute.xlu0 %1929
    %1931 = vrot.lane.b32.xlu0 %v1807, 12
    %v1932 = vpop.permute.xlu0 %1931
    %1933 = vrot.lane.b32.xlu0 %v1808, 12
    %v1934 = vpop.permute.xlu0 %1933
    %1935 = vrot.lane.b32.xlu0 %v1809, 12
    %v1936 = vpop.permute.xlu0 %1935
    %1937 = vrot.lane.b32.xlu0 %v1810, 12
    %v1938 = vpop.permute.xlu0 %1937
    %1939 = vrot.lane.b32.xlu0 %v1811, 12
    %v1940 = vpop.permute.xlu0 %1939
    %1941 = vrot.lane.b32.xlu0 %v1812, 12
    %v1942 = vpop.permute.xlu0 %1941
    %1943 = vrot.lane.b32.xlu0 %v1813, 12
    %v1944 = vpop.permute.xlu0 %1943
    %1945 = vrot.lane.b32.xlu0 %v1814, 12
    %v1946 = vpop.permute.xlu0 %1945
    %1947 = vrot.lane.b32.xlu0 %v1815, 12
    %v1948 = vpop.permute.xlu0 %1947
    %1949 = vrot.lane.b32.xlu0 %v1816, 12
    %v1950 = vpop.permute.xlu0 %1949
    %1951 = vrot.lane.b32.xlu0 %v1817, 12
    %v1952 = vpop.permute.xlu0 %1951
    %1953 = vrot.lane.b32.xlu0 %v1818, 12
    %v1954 = vpop.permute.xlu0 %1953
    %1955 = vrot.lane.b32.xlu0 %v1819, 12
    %v1956 = vpop.permute.xlu0 %1955
    %1957 = vrot.lane.b32.xlu0 %v1820, 12
    %v1958 = vpop.permute.xlu0 %1957
    %1959 = vrot.lane.b32.xlu0 %v1821, 12
    %v1960 = vpop.permute.xlu0 %1959
    %1961 = vrot.lane.b32.xlu0 %v1822, 12
    %v1962 = vpop.permute.xlu0 %1961
    %1963 = vrot.lane.b32.xlu0 %v1823, 12
    %v1964 = vpop.permute.xlu0 %1963
    %1965 = vrot.lane.b32.xlu0 %v1824, 12
    %v1966 = vpop.permute.xlu0 %1965
    %1967 = vrot.lane.b32.xlu0 %v1825, 12
    %v1968 = vpop.permute.xlu0 %1967
    %1969 = vrot.lane.b32.xlu0 %v1826, 12
    %v1970 = vpop.permute.xlu0 %1969
    %1971 = vrot.lane.b32.xlu0 %v1827, 12
    %v1972 = vpop.permute.xlu0 %1971
    %1973 = vrot.lane.b32.xlu0 %v1828, 12
    %v1974 = vpop.permute.xlu0 %1973
    %1975 = vrot.lane.b32.xlu0 %v1829, 12
    %v1976 = vpop.permute.xlu0 %1975
    %1977 = vrot.lane.b32.xlu0 %v1830, 12
    %v1978 = vpop.permute.xlu0 %1977
    %1979 = vrot.lane.b32.xlu0 %v1831, 12
    %v1980 = vpop.permute.xlu0 %1979
    %1981 = vrot.lane.b32.xlu0 %v1832, 12
    %v1982 = vpop.permute.xlu0 %1981
    %1983 = vrot.lane.b32.xlu0 %v1833, 12
    %v1984 = vpop.permute.xlu0 %1983
    %1985 = vrot.lane.b32.xlu0 %v1834, 12
    %v1986 = vpop.permute.xlu0 %1985
    %1987 = vrot.lane.b32.xlu0 %v1835, 12
    %v1988 = vpop.permute.xlu0 %1987
    %vm2040 = vcmask 146528
    %2041 = vst.msk [vmem:[#allocation3] sm:$0xff] %vm2040, %v1888
    %2042 = vst.msk [vmem:[#allocation3 + $0x8] sm:$0xff] %vm2040, %v1890
    %2043 = vst.msk [vmem:[#allocation3 + $0x10] sm:$0xff] %vm2040, %v1892
    %2044 = vst.msk [vmem:[#allocation3 + $0x18] sm:$0xff] %vm2040, %v1894
    %2045 = vst.msk [vmem:[#allocation3 + $0x20] sm:$0xff] %vm2040, %v1896
    %2046 = vst.msk [vmem:[#allocation3 + $0x28] sm:$0xff] %vm2040, %v1898
    %2047 = vst.msk [vmem:[#allocation3 + $0x30] sm:$0xff] %vm2040, %v1900
    %2048 = vst.msk [vmem:[#allocation3 + $0x38] sm:$0xff] %vm2040, %v1902
    %2049 = vst.msk [vmem:[#allocation3 + $0x40] sm:$0xff] %vm2040, %v1904
    %2050 = vst.msk [vmem:[#allocation3 + $0x48] sm:$0xff] %vm2040, %v1906
    %2051 = vst.msk [vmem:[#allocation3 + $0x50] sm:$0xff] %vm2040, %v1908
    %2052 = vst.msk [vmem:[#allocation3 + $0x58] sm:$0xff] %vm2040, %v1910
    %2053 = vst.msk [vmem:[#allocation3 + $0x60] sm:$0xff] %vm2040, %v1912
    %2054 = vst.msk [vmem:[#allocation3 + $0x68] sm:$0xff] %vm2040, %v1914
    %2055 = vst.msk [vmem:[#allocation3 + $0x70] sm:$0xff] %vm2040, %v1916
    %2056 = vst.msk [vmem:[#allocation3 + $0x78] sm:$0xff] %vm2040, %v1918
    %2057 = vst.msk [vmem:[#allocation3 + $0x80] sm:$0xff] %vm2040, %v1920
    %2058 = vst.msk [vmem:[#allocation3 + $0x88] sm:$0xff] %vm2040, %v1922
    %2059 = vst.msk [vmem:[#allocation3 + $0x90] sm:$0xff] %vm2040, %v1924
    %2060 = vst.msk [vmem:[#allocation3 + $0x98] sm:$0xff] %vm2040, %v1926
    %2061 = vst.msk [vmem:[#allocation3 + $0xa0] sm:$0xff] %vm2040, %v1928
    %2062 = vst.msk [vmem:[#allocation3 + $0xa8] sm:$0xff] %vm2040, %v1930
    %2063 = vst.msk [vmem:[#allocation3 + $0xb0] sm:$0xff] %vm2040, %v1932
    %2064 = vst.msk [vmem:[#allocation3 + $0xb8] sm:$0xff] %vm2040, %v1934
    %2065 = vst.msk [vmem:[#allocation3 + $0xc0] sm:$0xff] %vm2040, %v1936
    %2066 = vst.msk [vmem:[#allocation3 + $0xc8] sm:$0xff] %vm2040, %v1938
    %2067 = vst.msk [vmem:[#allocation3 + $0xd0] sm:$0xff] %vm2040, %v1940
    %2068 = vst.msk [vmem:[#allocation3 + $0xd8] sm:$0xff] %vm2040, %v1942
    %2069 = vst.msk [vmem:[#allocation3 + $0xe0] sm:$0xff] %vm2040, %v1944
    %2070 = vst.msk [vmem:[#allocation3 + $0xe8] sm:$0xff] %vm2040, %v1946
    %2071 = vst.msk [vmem:[#allocation3 + $0xf0] sm:$0xff] %vm2040, %v1948
    %2072 = vst.msk [vmem:[#allocation3 + $0xf8] sm:$0xff] %vm2040, %v1950
    %2073 = vst.msk [vmem:[#allocation3 + $0x100] sm:$0xff] %vm2040, %v1952
    %2074 = vst.msk [vmem:[#allocation3 + $0x108] sm:$0xff] %vm2040, %v1954
    %2075 = vst.msk [vmem:[#allocation3 + $0x110] sm:$0xff] %vm2040, %v1956
    %2076 = vst.msk [vmem:[#allocation3 + $0x118] sm:$0xff] %vm2040, %v1958
    %2077 = vst.msk [vmem:[#allocation3 + $0x120] sm:$0xff] %vm2040, %v1960
    %2078 = vst.msk [vmem:[#allocation3 + $0x128] sm:$0xff] %vm2040, %v1962
    %2079 = vst.msk [vmem:[#allocation3 + $0x130] sm:$0xff] %vm2040, %v1964
    %2080 = vst.msk [vmem:[#allocation3 + $0x138] sm:$0xff] %vm2040, %v1966
    %2081 = vst.msk [vmem:[#allocation3 + $0x140] sm:$0xff] %vm2040, %v1968
    %2082 = vst.msk [vmem:[#allocation3 + $0x148] sm:$0xff] %vm2040, %v1970
    %2083 = vst.msk [vmem:[#allocation3 + $0x150] sm:$0xff] %vm2040, %v1972
    %2084 = vst.msk [vmem:[#allocation3 + $0x158] sm:$0xff] %vm2040, %v1974
    %2085 = vst.msk [vmem:[#allocation3 + $0x160] sm:$0xff] %vm2040, %v1976
    %2086 = vst.msk [vmem:[#allocation3 + $0x168] sm:$0xff] %vm2040, %v1978
    %2087 = vst.msk [vmem:[#allocation3 + $0x170] sm:$0xff] %vm2040, %v1980
    %2088 = vst.msk [vmem:[#allocation3 + $0x178] sm:$0xff] %vm2040, %v1982
    %2089 = vst.msk [vmem:[#allocation3 + $0x180] sm:$0xff] %vm2040, %v1984
    %2090 = vst.msk [vmem:[#allocation3 + $0x188] sm:$0xff] %vm2040, %v1986
    %2091 = vst.msk [vmem:[#allocation3 + $0x190] sm:$0xff] %vm2040, %v1988
    %v2092 = vld [vmem:[#allocation2 + $0xf] sm:$0xff]
    %v2093 = vld [vmem:[#allocation2 + $0x17] sm:$0xff]
    %v2094 = vld [vmem:[#allocation2 + $0x1f] sm:$0xff]
    %v2095 = vld [vmem:[#allocation2 + $0x27] sm:$0xff]
    %v2096 = vld [vmem:[#allocation2 + $0x2f] sm:$0xff]
    %v2097 = vld [vmem:[#allocation2 + $0x37] sm:$0xff]
    %v2098 = vld [vmem:[#allocation2 + $0x3f] sm:$0xff]
    %v2099 = vld [vmem:[#allocation2 + $0x47] sm:$0xff]
    %v2100 = vld [vmem:[#allocation2 + $0x4f] sm:$0xff]
    %v2101 = vld [vmem:[#allocation2 + $0x57] sm:$0xff]
    %v2102 = vld [vmem:[#allocation2 + $0x5f] sm:$0xff]
    %v2103 = vld [vmem:[#allocation2 + $0x67] sm:$0xff]
    %v2104 = vld [vmem:[#allocation2 + $0x6f] sm:$0xff]
    %v2105 = vld [vmem:[#allocation2 + $0x77] sm:$0xff]
    %v2106 = vld [vmem:[#allocation2 + $0x7f] sm:$0xff]
    %v2107 = vld [vmem:[#allocation2 + $0x87] sm:$0xff]
    %v2108 = vld [vmem:[#allocation2 + $0x8f] sm:$0xff]
    %v2109 = vld [vmem:[#allocation2 + $0x97] sm:$0xff]
    %v2110 = vld [vmem:[#allocation2 + $0x9f] sm:$0xff]
    %v2111 = vld [vmem:[#allocation2 + $0xa7] sm:$0xff]
    %v2112 = vld [vmem:[#allocation2 + $0xaf] sm:$0xff]
    %v2113 = vld [vmem:[#allocation2 + $0xb7] sm:$0xff]
    %v2114 = vld [vmem:[#allocation2 + $0xbf] sm:$0xff]
    %v2115 = vld [vmem:[#allocation2 + $0xc7] sm:$0xff]
    %v2116 = vld [vmem:[#allocation2 + $0xcf] sm:$0xff]
    %v2117 = vld [vmem:[#allocation2 + $0xd7] sm:$0xff]
    %v2118 = vld [vmem:[#allocation2 + $0xdf] sm:$0xff]
    %v2119 = vld [vmem:[#allocation2 + $0xe7] sm:$0xff]
    %v2120 = vld [vmem:[#allocation2 + $0xef] sm:$0xff]
    %v2121 = vld [vmem:[#allocation2 + $0xf7] sm:$0xff]
    %v2122 = vld [vmem:[#allocation2 + $0xff] sm:$0xff]
    %v2123 = vld [vmem:[#allocation2 + $0x107] sm:$0xff]
    %v2124 = vld [vmem:[#allocation2 + $0x10f] sm:$0xff]
    %v2125 = vld [vmem:[#allocation2 + $0x117] sm:$0xff]
    %v2126 = vld [vmem:[#allocation2 + $0x11f] sm:$0xff]
    %v2127 = vld [vmem:[#allocation2 + $0x127] sm:$0xff]
    %v2128 = vld [vmem:[#allocation2 + $0x12f] sm:$0xff]
    %v2129 = vld [vmem:[#allocation2 + $0x137] sm:$0xff]
    %v2130 = vld [vmem:[#allocation2 + $0x13f] sm:$0xff]
    %v2131 = vld [vmem:[#allocation2 + $0x147] sm:$0xff]
    %v2132 = vld [vmem:[#allocation2 + $0x14f] sm:$0xff]
    %v2133 = vld [vmem:[#allocation2 + $0x157] sm:$0xff]
    %v2134 = vld [vmem:[#allocation2 + $0x15f] sm:$0xff]
    %v2135 = vld [vmem:[#allocation2 + $0x167] sm:$0xff]
    %v2136 = vld [vmem:[#allocation2 + $0x16f] sm:$0xff]
    %v2137 = vld [vmem:[#allocation2 + $0x177] sm:$0xff]
    %v2138 = vld [vmem:[#allocation2 + $0x17f] sm:$0xff]
    %v2139 = vld [vmem:[#allocation2 + $0x187] sm:$0xff]
    %v2140 = vld [vmem:[#allocation2 + $0x18f] sm:$0xff]
    %v2141 = vld [vmem:[#allocation2 + $0x197] sm:$0xff]
    %v2142 = vld [vmem:[#allocation2 + $0x19f] sm:$0xff]
    %2194 = vrot.lane.b32.xlu0 %v2092, 18
    %v2195 = vpop.permute.xlu0 %2194
    %2196 = vrot.lane.b32.xlu0 %v2093, 18
    %v2197 = vpop.permute.xlu0 %2196
    %2198 = vrot.lane.b32.xlu0 %v2094, 18
    %v2199 = vpop.permute.xlu0 %2198
    %2200 = vrot.lane.b32.xlu0 %v2095, 18
    %v2201 = vpop.permute.xlu0 %2200
    %2202 = vrot.lane.b32.xlu0 %v2096, 18
    %v2203 = vpop.permute.xlu0 %2202
    %2204 = vrot.lane.b32.xlu0 %v2097, 18
    %v2205 = vpop.permute.xlu0 %2204
    %2206 = vrot.lane.b32.xlu0 %v2098, 18
    %v2207 = vpop.permute.xlu0 %2206
    %2208 = vrot.lane.b32.xlu0 %v2099, 18
    %v2209 = vpop.permute.xlu0 %2208
    %2210 = vrot.lane.b32.xlu0 %v2100, 18
    %v2211 = vpop.permute.xlu0 %2210
    %2212 = vrot.lane.b32.xlu0 %v2101, 18
    %v2213 = vpop.permute.xlu0 %2212
    %2214 = vrot.lane.b32.xlu0 %v2102, 18
    %v2215 = vpop.permute.xlu0 %2214
    %2216 = vrot.lane.b32.xlu0 %v2103, 18
    %v2217 = vpop.permute.xlu0 %2216
    %2218 = vrot.lane.b32.xlu0 %v2104, 18
    %v2219 = vpop.permute.xlu0 %2218
    %2220 = vrot.lane.b32.xlu0 %v2105, 18
    %v2221 = vpop.permute.xlu0 %2220
    %2222 = vrot.lane.b32.xlu0 %v2106, 18
    %v2223 = vpop.permute.xlu0 %2222
    %2224 = vrot.lane.b32.xlu0 %v2107, 18
    %v2225 = vpop.permute.xlu0 %2224
    %2226 = vrot.lane.b32.xlu0 %v2108, 18
    %v2227 = vpop.permute.xlu0 %2226
    %2228 = vrot.lane.b32.xlu0 %v2109, 18
    %v2229 = vpop.permute.xlu0 %2228
    %2230 = vrot.lane.b32.xlu0 %v2110, 18
    %v2231 = vpop.permute.xlu0 %2230
    %2232 = vrot.lane.b32.xlu0 %v2111, 18
    %v2233 = vpop.permute.xlu0 %2232
    %2234 = vrot.lane.b32.xlu0 %v2112, 18
    %v2235 = vpop.permute.xlu0 %2234
    %2236 = vrot.lane.b32.xlu0 %v2113, 18
    %v2237 = vpop.permute.xlu0 %2236
    %2238 = vrot.lane.b32.xlu0 %v2114, 18
    %v2239 = vpop.permute.xlu0 %2238
    %2240 = vrot.lane.b32.xlu0 %v2115, 18
    %v2241 = vpop.permute.xlu0 %2240
    %2242 = vrot.lane.b32.xlu0 %v2116, 18
    %v2243 = vpop.permute.xlu0 %2242
    %2244 = vrot.lane.b32.xlu0 %v2117, 18
    %v2245 = vpop.permute.xlu0 %2244
    %2246 = vrot.lane.b32.xlu0 %v2118, 18
    %v2247 = vpop.permute.xlu0 %2246
    %2248 = vrot.lane.b32.xlu0 %v2119, 18
    %v2249 = vpop.permute.xlu0 %2248
    %2250 = vrot.lane.b32.xlu0 %v2120, 18
    %v2251 = vpop.permute.xlu0 %2250
    %2252 = vrot.lane.b32.xlu0 %v2121, 18
    %v2253 = vpop.permute.xlu0 %2252
    %2254 = vrot.lane.b32.xlu0 %v2122, 18
    %v2255 = vpop.permute.xlu0 %2254
    %2256 = vrot.lane.b32.xlu0 %v2123, 18
    %v2257 = vpop.permute.xlu0 %2256
    %2258 = vrot.lane.b32.xlu0 %v2124, 18
    %v2259 = vpop.permute.xlu0 %2258
    %2260 = vrot.lane.b32.xlu0 %v2125, 18
    %v2261 = vpop.permute.xlu0 %2260
    %2262 = vrot.lane.b32.xlu0 %v2126, 18
    %v2263 = vpop.permute.xlu0 %2262
    %2264 = vrot.lane.b32.xlu0 %v2127, 18
    %v2265 = vpop.permute.xlu0 %2264
    %2266 = vrot.lane.b32.xlu0 %v2128, 18
    %v2267 = vpop.permute.xlu0 %2266
    %2268 = vrot.lane.b32.xlu0 %v2129, 18
    %v2269 = vpop.permute.xlu0 %2268
    %2270 = vrot.lane.b32.xlu0 %v2130, 18
    %v2271 = vpop.permute.xlu0 %2270
    %2272 = vrot.lane.b32.xlu0 %v2131, 18
    %v2273 = vpop.permute.xlu0 %2272
    %2274 = vrot.lane.b32.xlu0 %v2132, 18
    %v2275 = vpop.permute.xlu0 %2274
    %2276 = vrot.lane.b32.xlu0 %v2133, 18
    %v2277 = vpop.permute.xlu0 %2276
    %2278 = vrot.lane.b32.xlu0 %v2134, 18
    %v2279 = vpop.permute.xlu0 %2278
    %2280 = vrot.lane.b32.xlu0 %v2135, 18
    %v2281 = vpop.permute.xlu0 %2280
    %2282 = vrot.lane.b32.xlu0 %v2136, 18
    %v2283 = vpop.permute.xlu0 %2282
    %2284 = vrot.lane.b32.xlu0 %v2137, 18
    %v2285 = vpop.permute.xlu0 %2284
    %2286 = vrot.lane.b32.xlu0 %v2138, 18
    %v2287 = vpop.permute.xlu0 %2286
    %2288 = vrot.lane.b32.xlu0 %v2139, 18
    %v2289 = vpop.permute.xlu0 %2288
    %2290 = vrot.lane.b32.xlu0 %v2140, 18
    %v2291 = vpop.permute.xlu0 %2290
    %2292 = vrot.lane.b32.xlu0 %v2141, 18
    %v2293 = vpop.permute.xlu0 %2292
    %2294 = vrot.lane.b32.xlu0 %v2142, 18
    %v2295 = vpop.permute.xlu0 %2294
    %vm2347 = vcmask 195728
    %2348 = vst.msk [vmem:[#allocation3] sm:$0xff] %vm2347, %v2195
    %2349 = vst.msk [vmem:[#allocation3 + $0x8] sm:$0xff] %vm2347, %v2197
    %2350 = vst.msk [vmem:[#allocation3 + $0x10] sm:$0xff] %vm2347, %v2199
    %2351 = vst.msk [vmem:[#allocation3 + $0x18] sm:$0xff] %vm2347, %v2201
    %2352 = vst.msk [vmem:[#allocation3 + $0x20] sm:$0xff] %vm2347, %v2203
    %2353 = vst.msk [vmem:[#allocation3 + $0x28] sm:$0xff] %vm2347, %v2205
    %2354 = vst.msk [vmem:[#allocation3 + $0x30] sm:$0xff] %vm2347, %v2207
    %2355 = vst.msk [vmem:[#allocation3 + $0x38] sm:$0xff] %vm2347, %v2209
    %2356 = vst.msk [vmem:[#allocation3 + $0x40] sm:$0xff] %vm2347, %v2211
    %2357 = vst.msk [vmem:[#allocation3 + $0x48] sm:$0xff] %vm2347, %v2213
    %2358 = vst.msk [vmem:[#allocation3 + $0x50] sm:$0xff] %vm2347, %v2215
    %2359 = vst.msk [vmem:[#allocation3 + $0x58] sm:$0xff] %vm2347, %v2217
    %2360 = vst.msk [vmem:[#allocation3 + $0x60] sm:$0xff] %vm2347, %v2219
    %2361 = vst.msk [vmem:[#allocation3 + $0x68] sm:$0xff] %vm2347, %v2221
    %2362 = vst.msk [vmem:[#allocation3 + $0x70] sm:$0xff] %vm2347, %v2223
    %2363 = vst.msk [vmem:[#allocation3 + $0x78] sm:$0xff] %vm2347, %v2225
    %2364 = vst.msk [vmem:[#allocation3 + $0x80] sm:$0xff] %vm2347, %v2227
    %2365 = vst.msk [vmem:[#allocation3 + $0x88] sm:$0xff] %vm2347, %v2229
    %2366 = vst.msk [vmem:[#allocation3 + $0x90] sm:$0xff] %vm2347, %v2231
    %2367 = vst.msk [vmem:[#allocation3 + $0x98] sm:$0xff] %vm2347, %v2233
    %2368 = vst.msk [vmem:[#allocation3 + $0xa0] sm:$0xff] %vm2347, %v2235
    %2369 = vst.msk [vmem:[#allocation3 + $0xa8] sm:$0xff] %vm2347, %v2237
    %2370 = vst.msk [vmem:[#allocation3 + $0xb0] sm:$0xff] %vm2347, %v2239
    %2371 = vst.msk [vmem:[#allocation3 + $0xb8] sm:$0xff] %vm2347, %v2241
    %2372 = vst.msk [vmem:[#allocation3 + $0xc0] sm:$0xff] %vm2347, %v2243
    %2373 = vst.msk [vmem:[#allocation3 + $0xc8] sm:$0xff] %vm2347, %v2245
    %2374 = vst.msk [vmem:[#allocation3 + $0xd0] sm:$0xff] %vm2347, %v2247
    %2375 = vst.msk [vmem:[#allocation3 + $0xd8] sm:$0xff] %vm2347, %v2249
    %2376 = vst.msk [vmem:[#allocation3 + $0xe0] sm:$0xff] %vm2347, %v2251
    %2377 = vst.msk [vmem:[#allocation3 + $0xe8] sm:$0xff] %vm2347, %v2253
    %2378 = vst.msk [vmem:[#allocation3 + $0xf0] sm:$0xff] %vm2347, %v2255
    %2379 = vst.msk [vmem:[#allocation3 + $0xf8] sm:$0xff] %vm2347, %v2257
    %2380 = vst.msk [vmem:[#allocation3 + $0x100] sm:$0xff] %vm2347, %v2259
    %2381 = vst.msk [vmem:[#allocation3 + $0x108] sm:$0xff] %vm2347, %v2261
    %2382 = vst.msk [vmem:[#allocation3 + $0x110] sm:$0xff] %vm2347, %v2263
    %2383 = vst.msk [vmem:[#allocation3 + $0x118] sm:$0xff] %vm2347, %v2265
    %2384 = vst.msk [vmem:[#allocation3 + $0x120] sm:$0xff] %vm2347, %v2267
    %2385 = vst.msk [vmem:[#allocation3 + $0x128] sm:$0xff] %vm2347, %v2269
    %2386 = vst.msk [vmem:[#allocation3 + $0x130] sm:$0xff] %vm2347, %v2271
    %2387 = vst.msk [vmem:[#allocation3 + $0x138] sm:$0xff] %vm2347, %v2273
    %2388 = vst.msk [vmem:[#allocation3 + $0x140] sm:$0xff] %vm2347, %v2275
    %2389 = vst.msk [vmem:[#allocation3 + $0x148] sm:$0xff] %vm2347, %v2277
    %2390 = vst.msk [vmem:[#allocation3 + $0x150] sm:$0xff] %vm2347, %v2279
    %2391 = vst.msk [vmem:[#allocation3 + $0x158] sm:$0xff] %vm2347, %v2281
    %2392 = vst.msk [vmem:[#allocation3 + $0x160] sm:$0xff] %vm2347, %v2283
    %2393 = vst.msk [vmem:[#allocation3 + $0x168] sm:$0xff] %vm2347, %v2285
    %2394 = vst.msk [vmem:[#allocation3 + $0x170] sm:$0xff] %vm2347, %v2287
    %2395 = vst.msk [vmem:[#allocation3 + $0x178] sm:$0xff] %vm2347, %v2289
    %2396 = vst.msk [vmem:[#allocation3 + $0x180] sm:$0xff] %vm2347, %v2291
    %2397 = vst.msk [vmem:[#allocation3 + $0x188] sm:$0xff] %vm2347, %v2293
    %2398 = vst.msk [vmem:[#allocation3 + $0x190] sm:$0xff] %vm2347, %v2295
    %v2399 = vld [vmem:[#allocation2 + $0x10] sm:$0xff]
    %v2400 = vld [vmem:[#allocation2 + $0x18] sm:$0xff]
    %v2401 = vld [vmem:[#allocation2 + $0x20] sm:$0xff]
    %v2402 = vld [vmem:[#allocation2 + $0x28] sm:$0xff]
    %v2403 = vld [vmem:[#allocation2 + $0x30] sm:$0xff]
    %v2404 = vld [vmem:[#allocation2 + $0x38] sm:$0xff]
    %v2405 = vld [vmem:[#allocation2 + $0x40] sm:$0xff]
    %v2406 = vld [vmem:[#allocation2 + $0x48] sm:$0xff]
    %v2407 = vld [vmem:[#allocation2 + $0x50] sm:$0xff]
    %v2408 = vld [vmem:[#allocation2 + $0x58] sm:$0xff]
    %v2409 = vld [vmem:[#allocation2 + $0x60] sm:$0xff]
    %v2410 = vld [vmem:[#allocation2 + $0x68] sm:$0xff]
    %v2411 = vld [vmem:[#allocation2 + $0x70] sm:$0xff]
    %v2412 = vld [vmem:[#allocation2 + $0x78] sm:$0xff]
    %v2413 = vld [vmem:[#allocation2 + $0x80] sm:$0xff]
    %v2414 = vld [vmem:[#allocation2 + $0x88] sm:$0xff]
    %v2415 = vld [vmem:[#allocation2 + $0x90] sm:$0xff]
    %v2416 = vld [vmem:[#allocation2 + $0x98] sm:$0xff]
    %v2417 = vld [vmem:[#allocation2 + $0xa0] sm:$0xff]
    %v2418 = vld [vmem:[#allocation2 + $0xa8] sm:$0xff]
    %v2419 = vld [vmem:[#allocation2 + $0xb0] sm:$0xff]
    %v2420 = vld [vmem:[#allocation2 + $0xb8] sm:$0xff]
    %v2421 = vld [vmem:[#allocation2 + $0xc0] sm:$0xff]
    %v2422 = vld [vmem:[#allocation2 + $0xc8] sm:$0xff]
    %v2423 = vld [vmem:[#allocation2 + $0xd0] sm:$0xff]
    %v2424 = vld [vmem:[#allocation2 + $0xd8] sm:$0xff]
    %v2425 = vld [vmem:[#allocation2 + $0xe0] sm:$0xff]
    %v2426 = vld [vmem:[#allocation2 + $0xe8] sm:$0xff]
    %v2427 = vld [vmem:[#allocation2 + $0xf0] sm:$0xff]
    %v2428 = vld [vmem:[#allocation2 + $0xf8] sm:$0xff]
    %v2429 = vld [vmem:[#allocation2 + $0x100] sm:$0xff]
    %v2430 = vld [vmem:[#allocation2 + $0x108] sm:$0xff]
    %v2431 = vld [vmem:[#allocation2 + $0x110] sm:$0xff]
    %v2432 = vld [vmem:[#allocation2 + $0x118] sm:$0xff]
    %v2433 = vld [vmem:[#allocation2 + $0x120] sm:$0xff]
    %v2434 = vld [vmem:[#allocation2 + $0x128] sm:$0xff]
    %v2435 = vld [vmem:[#allocation2 + $0x130] sm:$0xff]
    %v2436 = vld [vmem:[#allocation2 + $0x138] sm:$0xff]
    %v2437 = vld [vmem:[#allocation2 + $0x140] sm:$0xff]
    %v2438 = vld [vmem:[#allocation2 + $0x148] sm:$0xff]
    %v2439 = vld [vmem:[#allocation2 + $0x150] sm:$0xff]
    %v2440 = vld [vmem:[#allocation2 + $0x158] sm:$0xff]
    %v2441 = vld [vmem:[#allocation2 + $0x160] sm:$0xff]
    %v2442 = vld [vmem:[#allocation2 + $0x168] sm:$0xff]
    %v2443 = vld [vmem:[#allocation2 + $0x170] sm:$0xff]
    %v2444 = vld [vmem:[#allocation2 + $0x178] sm:$0xff]
    %v2445 = vld [vmem:[#allocation2 + $0x180] sm:$0xff]
    %v2446 = vld [vmem:[#allocation2 + $0x188] sm:$0xff]
    %v2447 = vld [vmem:[#allocation2 + $0x190] sm:$0xff]
    %v2448 = vld [vmem:[#allocation2 + $0x198] sm:$0xff]
    %v2449 = vld [vmem:[#allocation2 + $0x1a0] sm:$0xff]
    %2501 = vrot.lane.b32.xlu0 %v2399, 24
    %v2502 = vpop.permute.xlu0 %2501
    %2503 = vrot.lane.b32.xlu0 %v2400, 24
    %v2504 = vpop.permute.xlu0 %2503
    %2505 = vrot.lane.b32.xlu0 %v2401, 24
    %v2506 = vpop.permute.xlu0 %2505
    %2507 = vrot.lane.b32.xlu0 %v2402, 24
    %v2508 = vpop.permute.xlu0 %2507
    %2509 = vrot.lane.b32.xlu0 %v2403, 24
    %v2510 = vpop.permute.xlu0 %2509
    %2511 = vrot.lane.b32.xlu0 %v2404, 24
    %v2512 = vpop.permute.xlu0 %2511
    %2513 = vrot.lane.b32.xlu0 %v2405, 24
    %v2514 = vpop.permute.xlu0 %2513
    %2515 = vrot.lane.b32.xlu0 %v2406, 24
    %v2516 = vpop.permute.xlu0 %2515
    %2517 = vrot.lane.b32.xlu0 %v2407, 24
    %v2518 = vpop.permute.xlu0 %2517
    %2519 = vrot.lane.b32.xlu0 %v2408, 24
    %v2520 = vpop.permute.xlu0 %2519
    %2521 = vrot.lane.b32.xlu0 %v2409, 24
    %v2522 = vpop.permute.xlu0 %2521
    %2523 = vrot.lane.b32.xlu0 %v2410, 24
    %v2524 = vpop.permute.xlu0 %2523
    %2525 = vrot.lane.b32.xlu0 %v2411, 24
    %v2526 = vpop.permute.xlu0 %2525
    %2527 = vrot.lane.b32.xlu0 %v2412, 24
    %v2528 = vpop.permute.xlu0 %2527
    %2529 = vrot.lane.b32.xlu0 %v2413, 24
    %v2530 = vpop.permute.xlu0 %2529
    %2531 = vrot.lane.b32.xlu0 %v2414, 24
    %v2532 = vpop.permute.xlu0 %2531
    %2533 = vrot.lane.b32.xlu0 %v2415, 24
    %v2534 = vpop.permute.xlu0 %2533
    %2535 = vrot.lane.b32.xlu0 %v2416, 24
    %v2536 = vpop.permute.xlu0 %2535
    %2537 = vrot.lane.b32.xlu0 %v2417, 24
    %v2538 = vpop.permute.xlu0 %2537
    %2539 = vrot.lane.b32.xlu0 %v2418, 24
    %v2540 = vpop.permute.xlu0 %2539
    %2541 = vrot.lane.b32.xlu0 %v2419, 24
    %v2542 = vpop.permute.xlu0 %2541
    %2543 = vrot.lane.b32.xlu0 %v2420, 24
    %v2544 = vpop.permute.xlu0 %2543
    %2545 = vrot.lane.b32.xlu0 %v2421, 24
    %v2546 = vpop.permute.xlu0 %2545
    %2547 = vrot.lane.b32.xlu0 %v2422, 24
    %v2548 = vpop.permute.xlu0 %2547
    %2549 = vrot.lane.b32.xlu0 %v2423, 24
    %v2550 = vpop.permute.xlu0 %2549
    %2551 = vrot.lane.b32.xlu0 %v2424, 24
    %v2552 = vpop.permute.xlu0 %2551
    %2553 = vrot.lane.b32.xlu0 %v2425, 24
    %v2554 = vpop.permute.xlu0 %2553
    %2555 = vrot.lane.b32.xlu0 %v2426, 24
    %v2556 = vpop.permute.xlu0 %2555
    %2557 = vrot.lane.b32.xlu0 %v2427, 24
    %v2558 = vpop.permute.xlu0 %2557
    %2559 = vrot.lane.b32.xlu0 %v2428, 24
    %v2560 = vpop.permute.xlu0 %2559
    %2561 = vrot.lane.b32.xlu0 %v2429, 24
    %v2562 = vpop.permute.xlu0 %2561
    %2563 = vrot.lane.b32.xlu0 %v2430, 24
    %v2564 = vpop.permute.xlu0 %2563
    %2565 = vrot.lane.b32.xlu0 %v2431, 24
    %v2566 = vpop.permute.xlu0 %2565
    %2567 = vrot.lane.b32.xlu0 %v2432, 24
    %v2568 = vpop.permute.xlu0 %2567
    %2569 = vrot.lane.b32.xlu0 %v2433, 24
    %v2570 = vpop.permute.xlu0 %2569
    %2571 = vrot.lane.b32.xlu0 %v2434, 24
    %v2572 = vpop.permute.xlu0 %2571
    %2573 = vrot.lane.b32.xlu0 %v2435, 24
    %v2574 = vpop.permute.xlu0 %2573
    %2575 = vrot.lane.b32.xlu0 %v2436, 24
    %v2576 = vpop.permute.xlu0 %2575
    %2577 = vrot.lane.b32.xlu0 %v2437, 24
    %v2578 = vpop.permute.xlu0 %2577
    %2579 = vrot.lane.b32.xlu0 %v2438, 24
    %v2580 = vpop.permute.xlu0 %2579
    %2581 = vrot.lane.b32.xlu0 %v2439, 24
    %v2582 = vpop.permute.xlu0 %2581
    %2583 = vrot.lane.b32.xlu0 %v2440, 24
    %v2584 = vpop.permute.xlu0 %2583
    %2585 = vrot.lane.b32.xlu0 %v2441, 24
    %v2586 = vpop.permute.xlu0 %2585
    %2587 = vrot.lane.b32.xlu0 %v2442, 24
    %v2588 = vpop.permute.xlu0 %2587
    %2589 = vrot.lane.b32.xlu0 %v2443, 24
    %v2590 = vpop.permute.xlu0 %2589
    %2591 = vrot.lane.b32.xlu0 %v2444, 24
    %v2592 = vpop.permute.xlu0 %2591
    %2593 = vrot.lane.b32.xlu0 %v2445, 24
    %v2594 = vpop.permute.xlu0 %2593
    %2595 = vrot.lane.b32.xlu0 %v2446, 24
    %v2596 = vpop.permute.xlu0 %2595
    %2597 = vrot.lane.b32.xlu0 %v2447, 24
    %v2598 = vpop.permute.xlu0 %2597
    %2599 = vrot.lane.b32.xlu0 %v2448, 24
    %v2600 = vpop.permute.xlu0 %2599
    %2601 = vrot.lane.b32.xlu0 %v2449, 24
    %v2602 = vpop.permute.xlu0 %2601
    %vm2654 = vcmask 244928
    %2655 = vst.msk [vmem:[#allocation3] sm:$0xff] %vm2654, %v2502
    %2656 = vst.msk [vmem:[#allocation3 + $0x8] sm:$0xff] %vm2654, %v2504
    %2657 = vst.msk [vmem:[#allocation3 + $0x10] sm:$0xff] %vm2654, %v2506
    %2658 = vst.msk [vmem:[#allocation3 + $0x18] sm:$0xff] %vm2654, %v2508
    %2659 = vst.msk [vmem:[#allocation3 + $0x20] sm:$0xff] %vm2654, %v2510
    %2660 = vst.msk [vmem:[#allocation3 + $0x28] sm:$0xff] %vm2654, %v2512
    %2661 = vst.msk [vmem:[#allocation3 + $0x30] sm:$0xff] %vm2654, %v2514
    %2662 = vst.msk [vmem:[#allocation3 + $0x38] sm:$0xff] %vm2654, %v2516
    %2663 = vst.msk [vmem:[#allocation3 + $0x40] sm:$0xff] %vm2654, %v2518
    %2664 = vst.msk [vmem:[#allocation3 + $0x48] sm:$0xff] %vm2654, %v2520
    %2665 = vst.msk [vmem:[#allocation3 + $0x50] sm:$0xff] %vm2654, %v2522
    %2666 = vst.msk [vmem:[#allocation3 + $0x58] sm:$0xff] %vm2654, %v2524
    %2667 = vst.msk [vmem:[#allocation3 + $0x60] sm:$0xff] %vm2654, %v2526
    %2668 = vst.msk [vmem:[#allocation3 + $0x68] sm:$0xff] %vm2654, %v2528
    %2669 = vst.msk [vmem:[#allocation3 + $0x70] sm:$0xff] %vm2654, %v2530
    %2670 = vst.msk [vmem:[#allocation3 + $0x78] sm:$0xff] %vm2654, %v2532
    %2671 = vst.msk [vmem:[#allocation3 + $0x80] sm:$0xff] %vm2654, %v2534
    %2672 = vst.msk [vmem:[#allocation3 + $0x88] sm:$0xff] %vm2654, %v2536
    %2673 = vst.msk [vmem:[#allocation3 + $0x90] sm:$0xff] %vm2654, %v2538
    %2674 = vst.msk [vmem:[#allocation3 + $0x98] sm:$0xff] %vm2654, %v2540
    %2675 = vst.msk [vmem:[#allocation3 + $0xa0] sm:$0xff] %vm2654, %v2542
    %2676 = vst.msk [vmem:[#allocation3 + $0xa8] sm:$0xff] %vm2654, %v2544
    %2677 = vst.msk [vmem:[#allocation3 + $0xb0] sm:$0xff] %vm2654, %v2546
    %2678 = vst.msk [vmem:[#allocation3 + $0xb8] sm:$0xff] %vm2654, %v2548
    %2679 = vst.msk [vmem:[#allocation3 + $0xc0] sm:$0xff] %vm2654, %v2550
    %2680 = vst.msk [vmem:[#allocation3 + $0xc8] sm:$0xff] %vm2654, %v2552
    %2681 = vst.msk [vmem:[#allocation3 + $0xd0] sm:$0xff] %vm2654, %v2554
    %2682 = vst.msk [vmem:[#allocation3 + $0xd8] sm:$0xff] %vm2654, %v2556
    %2683 = vst.msk [vmem:[#allocation3 + $0xe0] sm:$0xff] %vm2654, %v2558
    %2684 = vst.msk [vmem:[#allocation3 + $0xe8] sm:$0xff] %vm2654, %v2560
    %2685 = vst.msk [vmem:[#allocation3 + $0xf0] sm:$0xff] %vm2654, %v2562
    %2686 = vst.msk [vmem:[#allocation3 + $0xf8] sm:$0xff] %vm2654, %v2564
    %2687 = vst.msk [vmem:[#allocation3 + $0x100] sm:$0xff] %vm2654, %v2566
    %2688 = vst.msk [vmem:[#allocation3 + $0x108] sm:$0xff] %vm2654, %v2568
    %2689 = vst.msk [vmem:[#allocation3 + $0x110] sm:$0xff] %vm2654, %v2570
    %2690 = vst.msk [vmem:[#allocation3 + $0x118] sm:$0xff] %vm2654, %v2572
    %2691 = vst.msk [vmem:[#allocation3 + $0x120] sm:$0xff] %vm2654, %v2574
    %2692 = vst.msk [vmem:[#allocation3 + $0x128] sm:$0xff] %vm2654, %v2576
    %2693 = vst.msk [vmem:[#allocation3 + $0x130] sm:$0xff] %vm2654, %v2578
    %2694 = vst.msk [vmem:[#allocation3 + $0x138] sm:$0xff] %vm2654, %v2580
    %2695 = vst.msk [vmem:[#allocation3 + $0x140] sm:$0xff] %vm2654, %v2582
    %2696 = vst.msk [vmem:[#allocation3 + $0x148] sm:$0xff] %vm2654, %v2584
    %2697 = vst.msk [vmem:[#allocation3 + $0x150] sm:$0xff] %vm2654, %v2586
    %2698 = vst.msk [vmem:[#allocation3 + $0x158] sm:$0xff] %vm2654, %v2588
    %2699 = vst.msk [vmem:[#allocation3 + $0x160] sm:$0xff] %vm2654, %v2590
    %2700 = vst.msk [vmem:[#allocation3 + $0x168] sm:$0xff] %vm2654, %v2592
    %2701 = vst.msk [vmem:[#allocation3 + $0x170] sm:$0xff] %vm2654, %v2594
    %2702 = vst.msk [vmem:[#allocation3 + $0x178] sm:$0xff] %vm2654, %v2596
    %2703 = vst.msk [vmem:[#allocation3 + $0x180] sm:$0xff] %vm2654, %v2598
    %2704 = vst.msk [vmem:[#allocation3 + $0x188] sm:$0xff] %vm2654, %v2600
    %2705 = vst.msk [vmem:[#allocation3 + $0x190] sm:$0xff] %vm2654, %v2602
    %v2706 = vld [vmem:[#allocation2 + $0x11] sm:$0xff]
    %v2707 = vld [vmem:[#allocation2 + $0x19] sm:$0xff]
    %v2708 = vld [vmem:[#allocation2 + $0x21] sm:$0xff]
    %v2709 = vld [vmem:[#allocation2 + $0x29] sm:$0xff]
    %v2710 = vld [vmem:[#allocation2 + $0x31] sm:$0xff]
    %v2711 = vld [vmem:[#allocation2 + $0x39] sm:$0xff]
    %v2712 = vld [vmem:[#allocation2 + $0x41] sm:$0xff]
    %v2713 = vld [vmem:[#allocation2 + $0x49] sm:$0xff]
    %v2714 = vld [vmem:[#allocation2 + $0x51] sm:$0xff]
    %v2715 = vld [vmem:[#allocation2 + $0x59] sm:$0xff]
    %v2716 = vld [vmem:[#allocation2 + $0x61] sm:$0xff]
    %v2717 = vld [vmem:[#allocation2 + $0x69] sm:$0xff]
    %v2718 = vld [vmem:[#allocation2 + $0x71] sm:$0xff]
    %v2719 = vld [vmem:[#allocation2 + $0x79] sm:$0xff]
    %v2720 = vld [vmem:[#allocation2 + $0x81] sm:$0xff]
    %v2721 = vld [vmem:[#allocation2 + $0x89] sm:$0xff]
    %v2722 = vld [vmem:[#allocation2 + $0x91] sm:$0xff]
    %v2723 = vld [vmem:[#allocation2 + $0x99] sm:$0xff]
    %v2724 = vld [vmem:[#allocation2 + $0xa1] sm:$0xff]
    %v2725 = vld [vmem:[#allocation2 + $0xa9] sm:$0xff]
    %v2726 = vld [vmem:[#allocation2 + $0xb1] sm:$0xff]
    %v2727 = vld [vmem:[#allocation2 + $0xb9] sm:$0xff]
    %v2728 = vld [vmem:[#allocation2 + $0xc1] sm:$0xff]
    %v2729 = vld [vmem:[#allocation2 + $0xc9] sm:$0xff]
    %v2730 = vld [vmem:[#allocation2 + $0xd1] sm:$0xff]
    %v2731 = vld [vmem:[#allocation2 + $0xd9] sm:$0xff]
    %v2732 = vld [vmem:[#allocation2 + $0xe1] sm:$0xff]
    %v2733 = vld [vmem:[#allocation2 + $0xe9] sm:$0xff]
    %v2734 = vld [vmem:[#allocation2 + $0xf1] sm:$0xff]
    %v2735 = vld [vmem:[#allocation2 + $0xf9] sm:$0xff]
    %v2736 = vld [vmem:[#allocation2 + $0x101] sm:$0xff]
    %v2737 = vld [vmem:[#allocation2 + $0x109] sm:$0xff]
    %v2738 = vld [vmem:[#allocation2 + $0x111] sm:$0xff]
    %v2739 = vld [vmem:[#allocation2 + $0x119] sm:$0xff]
    %v2740 = vld [vmem:[#allocation2 + $0x121] sm:$0xff]
    %v2741 = vld [vmem:[#allocation2 + $0x129] sm:$0xff]
    %v2742 = vld [vmem:[#allocation2 + $0x131] sm:$0xff]
    %v2743 = vld [vmem:[#allocation2 + $0x139] sm:$0xff]
    %v2744 = vld [vmem:[#allocation2 + $0x141] sm:$0xff]
    %v2745 = vld [vmem:[#allocation2 + $0x149] sm:$0xff]
    %v2746 = vld [vmem:[#allocation2 + $0x151] sm:$0xff]
    %v2747 = vld [vmem:[#allocation2 + $0x159] sm:$0xff]
    %v2748 = vld [vmem:[#allocation2 + $0x161] sm:$0xff]
    %v2749 = vld [vmem:[#allocation2 + $0x169] sm:$0xff]
    %v2750 = vld [vmem:[#allocation2 + $0x171] sm:$0xff]
    %v2751 = vld [vmem:[#allocation2 + $0x179] sm:$0xff]
    %v2752 = vld [vmem:[#allocation2 + $0x181] sm:$0xff]
    %v2753 = vld [vmem:[#allocation2 + $0x189] sm:$0xff]
    %v2754 = vld [vmem:[#allocation2 + $0x191] sm:$0xff]
    %v2755 = vld [vmem:[#allocation2 + $0x199] sm:$0xff]
    %v2756 = vld [vmem:[#allocation2 + $0x1a1] sm:$0xff]
    %2808 = vrot.lane.b32.xlu0 %v2706, 30
    %v2809 = vpop.permute.xlu0 %2808
    %2810 = vrot.lane.b32.xlu0 %v2707, 30
    %v2811 = vpop.permute.xlu0 %2810
    %2812 = vrot.lane.b32.xlu0 %v2708, 30
    %v2813 = vpop.permute.xlu0 %2812
    %2814 = vrot.lane.b32.xlu0 %v2709, 30
    %v2815 = vpop.permute.xlu0 %2814
    %2816 = vrot.lane.b32.xlu0 %v2710, 30
    %v2817 = vpop.permute.xlu0 %2816
    %2818 = vrot.lane.b32.xlu0 %v2711, 30
    %v2819 = vpop.permute.xlu0 %2818
    %2820 = vrot.lane.b32.xlu0 %v2712, 30
    %v2821 = vpop.permute.xlu0 %2820
    %2822 = vrot.lane.b32.xlu0 %v2713, 30
    %v2823 = vpop.permute.xlu0 %2822
    %2824 = vrot.lane.b32.xlu0 %v2714, 30
    %v2825 = vpop.permute.xlu0 %2824
    %2826 = vrot.lane.b32.xlu0 %v2715, 30
    %v2827 = vpop.permute.xlu0 %2826
    %2828 = vrot.lane.b32.xlu0 %v2716, 30
    %v2829 = vpop.permute.xlu0 %2828
    %2830 = vrot.lane.b32.xlu0 %v2717, 30
    %v2831 = vpop.permute.xlu0 %2830
    %2832 = vrot.lane.b32.xlu0 %v2718, 30
    %v2833 = vpop.permute.xlu0 %2832
    %2834 = vrot.lane.b32.xlu0 %v2719, 30
    %v2835 = vpop.permute.xlu0 %2834
    %2836 = vrot.lane.b32.xlu0 %v2720, 30
    %v2837 = vpop.permute.xlu0 %2836
    %2838 = vrot.lane.b32.xlu0 %v2721, 30
    %v2839 = vpop.permute.xlu0 %2838
    %2840 = vrot.lane.b32.xlu0 %v2722, 30
    %v2841 = vpop.permute.xlu0 %2840
    %2842 = vrot.lane.b32.xlu0 %v2723, 30
    %v2843 = vpop.permute.xlu0 %2842
    %2844 = vrot.lane.b32.xlu0 %v2724, 30
    %v2845 = vpop.permute.xlu0 %2844
    %2846 = vrot.lane.b32.xlu0 %v2725, 30
    %v2847 = vpop.permute.xlu0 %2846
    %2848 = vrot.lane.b32.xlu0 %v2726, 30
    %v2849 = vpop.permute.xlu0 %2848
    %2850 = vrot.lane.b32.xlu0 %v2727, 30
    %v2851 = vpop.permute.xlu0 %2850
    %2852 = vrot.lane.b32.xlu0 %v2728, 30
    %v2853 = vpop.permute.xlu0 %2852
    %2854 = vrot.lane.b32.xlu0 %v2729, 30
    %v2855 = vpop.permute.xlu0 %2854
    %2856 = vrot.lane.b32.xlu0 %v2730, 30
    %v2857 = vpop.permute.xlu0 %2856
    %2858 = vrot.lane.b32.xlu0 %v2731, 30
    %v2859 = vpop.permute.xlu0 %2858
    %2860 = vrot.lane.b32.xlu0 %v2732, 30
    %v2861 = vpop.permute.xlu0 %2860
    %2862 = vrot.lane.b32.xlu0 %v2733, 30
    %v2863 = vpop.permute.xlu0 %2862
    %2864 = vrot.lane.b32.xlu0 %v2734, 30
    %v2865 = vpop.permute.xlu0 %2864
    %2866 = vrot.lane.b32.xlu0 %v2735, 30
    %v2867 = vpop.permute.xlu0 %2866
    %2868 = vrot.lane.b32.xlu0 %v2736, 30
    %v2869 = vpop.permute.xlu0 %2868
    %2870 = vrot.lane.b32.xlu0 %v2737, 30
    %v2871 = vpop.permute.xlu0 %2870
    %2872 = vrot.lane.b32.xlu0 %v2738, 30
    %v2873 = vpop.permute.xlu0 %2872
    %2874 = vrot.lane.b32.xlu0 %v2739, 30
    %v2875 = vpop.permute.xlu0 %2874
    %2876 = vrot.lane.b32.xlu0 %v2740, 30
    %v2877 = vpop.permute.xlu0 %2876
    %2878 = vrot.lane.b32.xlu0 %v2741, 30
    %v2879 = vpop.permute.xlu0 %2878
    %2880 = vrot.lane.b32.xlu0 %v2742, 30
    %v2881 = vpop.permute.xlu0 %2880
    %2882 = vrot.lane.b32.xlu0 %v2743, 30
    %v2883 = vpop.permute.xlu0 %2882
    %2884 = vrot.lane.b32.xlu0 %v2744, 30
    %v2885 = vpop.permute.xlu0 %2884
    %2886 = vrot.lane.b32.xlu0 %v2745, 30
    %v2887 = vpop.permute.xlu0 %2886
    %2888 = vrot.lane.b32.xlu0 %v2746, 30
    %v2889 = vpop.permute.xlu0 %2888
    %2890 = vrot.lane.b32.xlu0 %v2747, 30
    %v2891 = vpop.permute.xlu0 %2890
    %2892 = vrot.lane.b32.xlu0 %v2748, 30
    %v2893 = vpop.permute.xlu0 %2892
    %2894 = vrot.lane.b32.xlu0 %v2749, 30
    %v2895 = vpop.permute.xlu0 %2894
    %2896 = vrot.lane.b32.xlu0 %v2750, 30
    %v2897 = vpop.permute.xlu0 %2896
    %2898 = vrot.lane.b32.xlu0 %v2751, 30
    %v2899 = vpop.permute.xlu0 %2898
    %2900 = vrot.lane.b32.xlu0 %v2752, 30
    %v2901 = vpop.permute.xlu0 %2900
    %2902 = vrot.lane.b32.xlu0 %v2753, 30
    %v2903 = vpop.permute.xlu0 %2902
    %2904 = vrot.lane.b32.xlu0 %v2754, 30
    %v2905 = vpop.permute.xlu0 %2904
    %2906 = vrot.lane.b32.xlu0 %v2755, 30
    %v2907 = vpop.permute.xlu0 %2906
    %2908 = vrot.lane.b32.xlu0 %v2756, 30
    %v2909 = vpop.permute.xlu0 %2908
    %vm2961 = vcmask 294128
    %2962 = vst.msk [vmem:[#allocation3] sm:$0xff] %vm2961, %v2809
    %2963 = vst.msk [vmem:[#allocation3 + $0x8] sm:$0xff] %vm2961, %v2811
    %2964 = vst.msk [vmem:[#allocation3 + $0x10] sm:$0xff] %vm2961, %v2813
    %2965 = vst.msk [vmem:[#allocation3 + $0x18] sm:$0xff] %vm2961, %v2815
    %2966 = vst.msk [vmem:[#allocation3 + $0x20] sm:$0xff] %vm2961, %v2817
    %2967 = vst.msk [vmem:[#allocation3 + $0x28] sm:$0xff] %vm2961, %v2819
    %2968 = vst.msk [vmem:[#allocation3 + $0x30] sm:$0xff] %vm2961, %v2821
    %2969 = vst.msk [vmem:[#allocation3 + $0x38] sm:$0xff] %vm2961, %v2823
    %2970 = vst.msk [vmem:[#allocation3 + $0x40] sm:$0xff] %vm2961, %v2825
    %2971 = vst.msk [vmem:[#allocation3 + $0x48] sm:$0xff] %vm2961, %v2827
    %2972 = vst.msk [vmem:[#allocation3 + $0x50] sm:$0xff] %vm2961, %v2829
    %2973 = vst.msk [vmem:[#allocation3 + $0x58] sm:$0xff] %vm2961, %v2831
    %2974 = vst.msk [vmem:[#allocation3 + $0x60] sm:$0xff] %vm2961, %v2833
    %2975 = vst.msk [vmem:[#allocation3 + $0x68] sm:$0xff] %vm2961, %v2835
    %2976 = vst.msk [vmem:[#allocation3 + $0x70] sm:$0xff] %vm2961, %v2837
    %2977 = vst.msk [vmem:[#allocation3 + $0x78] sm:$0xff] %vm2961, %v2839
    %2978 = vst.msk [vmem:[#allocation3 + $0x80] sm:$0xff] %vm2961, %v2841
    %2979 = vst.msk [vmem:[#allocation3 + $0x88] sm:$0xff] %vm2961, %v2843
    %2980 = vst.msk [vmem:[#allocation3 + $0x90] sm:$0xff] %vm2961, %v2845
    %2981 = vst.msk [vmem:[#allocation3 + $0x98] sm:$0xff] %vm2961, %v2847
    %2982 = vst.msk [vmem:[#allocation3 + $0xa0] sm:$0xff] %vm2961, %v2849
    %2983 = vst.msk [vmem:[#allocation3 + $0xa8] sm:$0xff] %vm2961, %v2851
    %2984 = vst.msk [vmem:[#allocation3 + $0xb0] sm:$0xff] %vm2961, %v2853
    %2985 = vst.msk [vmem:[#allocation3 + $0xb8] sm:$0xff] %vm2961, %v2855
    %2986 = vst.msk [vmem:[#allocation3 + $0xc0] sm:$0xff] %vm2961, %v2857
    %2987 = vst.msk [vmem:[#allocation3 + $0xc8] sm:$0xff] %vm2961, %v2859
    %2988 = vst.msk [vmem:[#allocation3 + $0xd0] sm:$0xff] %vm2961, %v2861
    %2989 = vst.msk [vmem:[#allocation3 + $0xd8] sm:$0xff] %vm2961, %v2863
    %2990 = vst.msk [vmem:[#allocation3 + $0xe0] sm:$0xff] %vm2961, %v2865
    %2991 = vst.msk [vmem:[#allocation3 + $0xe8] sm:$0xff] %vm2961, %v2867
    %2992 = vst.msk [vmem:[#allocation3 + $0xf0] sm:$0xff] %vm2961, %v2869
    %2993 = vst.msk [vmem:[#allocation3 + $0xf8] sm:$0xff] %vm2961, %v2871
    %2994 = vst.msk [vmem:[#allocation3 + $0x100] sm:$0xff] %vm2961, %v2873
    %2995 = vst.msk [vmem:[#allocation3 + $0x108] sm:$0xff] %vm2961, %v2875
    %2996 = vst.msk [vmem:[#allocation3 + $0x110] sm:$0xff] %vm2961, %v2877
    %2997 = vst.msk [vmem:[#allocation3 + $0x118] sm:$0xff] %vm2961, %v2879
    %2998 = vst.msk [vmem:[#allocation3 + $0x120] sm:$0xff] %vm2961, %v2881
    %2999 = vst.msk [vmem:[#allocation3 + $0x128] sm:$0xff] %vm2961, %v2883
    %3000 = vst.msk [vmem:[#allocation3 + $0x130] sm:$0xff] %vm2961, %v2885
    %3001 = vst.msk [vmem:[#allocation3 + $0x138] sm:$0xff] %vm2961, %v2887
    %3002 = vst.msk [vmem:[#allocation3 + $0x140] sm:$0xff] %vm2961, %v2889
    %3003 = vst.msk [vmem:[#allocation3 + $0x148] sm:$0xff] %vm2961, %v2891
    %3004 = vst.msk [vmem:[#allocation3 + $0x150] sm:$0xff] %vm2961, %v2893
    %3005 = vst.msk [vmem:[#allocation3 + $0x158] sm:$0xff] %vm2961, %v2895
    %3006 = vst.msk [vmem:[#allocation3 + $0x160] sm:$0xff] %vm2961, %v2897
    %3007 = vst.msk [vmem:[#allocation3 + $0x168] sm:$0xff] %vm2961, %v2899
    %3008 = vst.msk [vmem:[#allocation3 + $0x170] sm:$0xff] %vm2961, %v2901
    %3009 = vst.msk [vmem:[#allocation3 + $0x178] sm:$0xff] %vm2961, %v2903
    %3010 = vst.msk [vmem:[#allocation3 + $0x180] sm:$0xff] %vm2961, %v2905
    %3011 = vst.msk [vmem:[#allocation3 + $0x188] sm:$0xff] %vm2961, %v2907
    %3012 = vst.msk [vmem:[#allocation3 + $0x190] sm:$0xff] %vm2961, %v2909
    %v3013 = vld [vmem:[#allocation2 + $0x1e] sm:$0xff]
    %v3014 = vld [vmem:[#allocation2 + $0x26] sm:$0xff]
    %v3015 = vld [vmem:[#allocation2 + $0x2e] sm:$0xff]
    %v3016 = vld [vmem:[#allocation2 + $0x36] sm:$0xff]
    %v3017 = vld [vmem:[#allocation2 + $0x3e] sm:$0xff]
    %v3018 = vld [vmem:[#allocation2 + $0x46] sm:$0xff]
    %v3019 = vld [vmem:[#allocation2 + $0x4e] sm:$0xff]
    %v3020 = vld [vmem:[#allocation2 + $0x56] sm:$0xff]
    %v3021 = vld [vmem:[#allocation2 + $0x5e] sm:$0xff]
    %v3022 = vld [vmem:[#allocation2 + $0x66] sm:$0xff]
    %v3023 = vld [vmem:[#allocation2 + $0x6e] sm:$0xff]
    %v3024 = vld [vmem:[#allocation2 + $0x76] sm:$0xff]
    %v3025 = vld [vmem:[#allocation2 + $0x7e] sm:$0xff]
    %v3026 = vld [vmem:[#allocation2 + $0x86] sm:$0xff]
    %v3027 = vld [vmem:[#allocation2 + $0x8e] sm:$0xff]
    %v3028 = vld [vmem:[#allocation2 + $0x96] sm:$0xff]
    %v3029 = vld [vmem:[#allocation2 + $0x9e] sm:$0xff]
    %v3030 = vld [vmem:[#allocation2 + $0xa6] sm:$0xff]
    %v3031 = vld [vmem:[#allocation2 + $0xae] sm:$0xff]
    %v3032 = vld [vmem:[#allocation2 + $0xb6] sm:$0xff]
    %v3033 = vld [vmem:[#allocation2 + $0xbe] sm:$0xff]
    %v3034 = vld [vmem:[#allocation2 + $0xc6] sm:$0xff]
    %v3035 = vld [vmem:[#allocation2 + $0xce] sm:$0xff]
    %v3036 = vld [vmem:[#allocation2 + $0xd6] sm:$0xff]
    %v3037 = vld [vmem:[#allocation2 + $0xde] sm:$0xff]
    %v3038 = vld [vmem:[#allocation2 + $0xe6] sm:$0xff]
    %v3039 = vld [vmem:[#allocation2 + $0xee] sm:$0xff]
    %v3040 = vld [vmem:[#allocation2 + $0xf6] sm:$0xff]
    %v3041 = vld [vmem:[#allocation2 + $0xfe] sm:$0xff]
    %v3042 = vld [vmem:[#allocation2 + $0x106] sm:$0xff]
    %v3043 = vld [vmem:[#allocation2 + $0x10e] sm:$0xff]
    %v3044 = vld [vmem:[#allocation2 + $0x116] sm:$0xff]
    %v3045 = vld [vmem:[#allocation2 + $0x11e] sm:$0xff]
    %v3046 = vld [vmem:[#allocation2 + $0x126] sm:$0xff]
    %v3047 = vld [vmem:[#allocation2 + $0x12e] sm:$0xff]
    %v3048 = vld [vmem:[#allocation2 + $0x136] sm:$0xff]
    %v3049 = vld [vmem:[#allocation2 + $0x13e] sm:$0xff]
    %v3050 = vld [vmem:[#allocation2 + $0x146] sm:$0xff]
    %v3051 = vld [vmem:[#allocation2 + $0x14e] sm:$0xff]
    %v3052 = vld [vmem:[#allocation2 + $0x156] sm:$0xff]
    %v3053 = vld [vmem:[#allocation2 + $0x15e] sm:$0xff]
    %v3054 = vld [vmem:[#allocation2 + $0x166] sm:$0xff]
    %v3055 = vld [vmem:[#allocation2 + $0x16e] sm:$0xff]
    %v3056 = vld [vmem:[#allocation2 + $0x176] sm:$0xff]
    %v3057 = vld [vmem:[#allocation2 + $0x17e] sm:$0xff]
    %v3058 = vld [vmem:[#allocation2 + $0x186] sm:$0xff]
    %v3059 = vld [vmem:[#allocation2 + $0x18e] sm:$0xff]
    %v3060 = vld [vmem:[#allocation2 + $0x196] sm:$0xff]
    %v3061 = vld [vmem:[#allocation2 + $0x19e] sm:$0xff]
    %v3062 = vld [vmem:[#allocation2 + $0x1a6] sm:$0xff]
    %v3063 = vld [vmem:[#allocation2 + $0x1ae] sm:$0xff]
    %3115 = vrot.lane.b32.xlu0 %v3013, 36
    %v3116 = vpop.permute.xlu0 %3115
    %3117 = vrot.lane.b32.xlu0 %v3014, 36
    %v3118 = vpop.permute.xlu0 %3117
    %3119 = vrot.lane.b32.xlu0 %v3015, 36
    %v3120 = vpop.permute.xlu0 %3119
    %3121 = vrot.lane.b32.xlu0 %v3016, 36
    %v3122 = vpop.permute.xlu0 %3121
    %3123 = vrot.lane.b32.xlu0 %v3017, 36
    %v3124 = vpop.permute.xlu0 %3123
    %3125 = vrot.lane.b32.xlu0 %v3018, 36
    %v3126 = vpop.permute.xlu0 %3125
    %3127 = vrot.lane.b32.xlu0 %v3019, 36
    %v3128 = vpop.permute.xlu0 %3127
    %3129 = vrot.lane.b32.xlu0 %v3020, 36
    %v3130 = vpop.permute.xlu0 %3129
    %3131 = vrot.lane.b32.xlu0 %v3021, 36
    %v3132 = vpop.permute.xlu0 %3131
    %3133 = vrot.lane.b32.xlu0 %v3022, 36
    %v3134 = vpop.permute.xlu0 %3133
    %3135 = vrot.lane.b32.xlu0 %v3023, 36
    %v3136 = vpop.permute.xlu0 %3135
    %3137 = vrot.lane.b32.xlu0 %v3024, 36
    %v3138 = vpop.permute.xlu0 %3137
    %3139 = vrot.lane.b32.xlu0 %v3025, 36
    %v3140 = vpop.permute.xlu0 %3139
    %3141 = vrot.lane.b32.xlu0 %v3026, 36
    %v3142 = vpop.permute.xlu0 %3141
    %3143 = vrot.lane.b32.xlu0 %v3027, 36
    %v3144 = vpop.permute.xlu0 %3143
    %3145 = vrot.lane.b32.xlu0 %v3028, 36
    %v3146 = vpop.permute.xlu0 %3145
    %3147 = vrot.lane.b32.xlu0 %v3029, 36
    %v3148 = vpop.permute.xlu0 %3147
    %3149 = vrot.lane.b32.xlu0 %v3030, 36
    %v3150 = vpop.permute.xlu0 %3149
    %3151 = vrot.lane.b32.xlu0 %v3031, 36
    %v3152 = vpop.permute.xlu0 %3151
    %3153 = vrot.lane.b32.xlu0 %v3032, 36
    %v3154 = vpop.permute.xlu0 %3153
    %3155 = vrot.lane.b32.xlu0 %v3033, 36
    %v3156 = vpop.permute.xlu0 %3155
    %3157 = vrot.lane.b32.xlu0 %v3034, 36
    %v3158 = vpop.permute.xlu0 %3157
    %3159 = vrot.lane.b32.xlu0 %v3035, 36
    %v3160 = vpop.permute.xlu0 %3159
    %3161 = vrot.lane.b32.xlu0 %v3036, 36
    %v3162 = vpop.permute.xlu0 %3161
    %3163 = vrot.lane.b32.xlu0 %v3037, 36
    %v3164 = vpop.permute.xlu0 %3163
    %3165 = vrot.lane.b32.xlu0 %v3038, 36
    %v3166 = vpop.permute.xlu0 %3165
    %3167 = vrot.lane.b32.xlu0 %v3039, 36
    %v3168 = vpop.permute.xlu0 %3167
    %3169 = vrot.lane.b32.xlu0 %v3040, 36
    %v3170 = vpop.permute.xlu0 %3169
    %3171 = vrot.lane.b32.xlu0 %v3041, 36
    %v3172 = vpop.permute.xlu0 %3171
    %3173 = vrot.lane.b32.xlu0 %v3042, 36
    %v3174 = vpop.permute.xlu0 %3173
    %3175 = vrot.lane.b32.xlu0 %v3043, 36
    %v3176 = vpop.permute.xlu0 %3175
    %3177 = vrot.lane.b32.xlu0 %v3044, 36
    %v3178 = vpop.permute.xlu0 %3177
    %3179 = vrot.lane.b32.xlu0 %v3045, 36
    %v3180 = vpop.permute.xlu0 %3179
    %3181 = vrot.lane.b32.xlu0 %v3046, 36
    %v3182 = vpop.permute.xlu0 %3181
    %3183 = vrot.lane.b32.xlu0 %v3047, 36
    %v3184 = vpop.permute.xlu0 %3183
    %3185 = vrot.lane.b32.xlu0 %v3048, 36
    %v3186 = vpop.permute.xlu0 %3185
    %3187 = vrot.lane.b32.xlu0 %v3049, 36
    %v3188 = vpop.permute.xlu0 %3187
    %3189 = vrot.lane.b32.xlu0 %v3050, 36
    %v3190 = vpop.permute.xlu0 %3189
    %3191 = vrot.lane.b32.xlu0 %v3051, 36
    %v3192 = vpop.permute.xlu0 %3191
    %3193 = vrot.lane.b32.xlu0 %v3052, 36
    %v3194 = vpop.permute.xlu0 %3193
    %3195 = vrot.lane.b32.xlu0 %v3053, 36
    %v3196 = vpop.permute.xlu0 %3195
    %3197 = vrot.lane.b32.xlu0 %v3054, 36
    %v3198 = vpop.permute.xlu0 %3197
    %3199 = vrot.lane.b32.xlu0 %v3055, 36
    %v3200 = vpop.permute.xlu0 %3199
    %3201 = vrot.lane.b32.xlu0 %v3056, 36
    %v3202 = vpop.permute.xlu0 %3201
    %3203 = vrot.lane.b32.xlu0 %v3057, 36
    %v3204 = vpop.permute.xlu0 %3203
    %3205 = vrot.lane.b32.xlu0 %v3058, 36
    %v3206 = vpop.permute.xlu0 %3205
    %3207 = vrot.lane.b32.xlu0 %v3059, 36
    %v3208 = vpop.permute.xlu0 %3207
    %3209 = vrot.lane.b32.xlu0 %v3060, 36
    %v3210 = vpop.permute.xlu0 %3209
    %3211 = vrot.lane.b32.xlu0 %v3061, 36
    %v3212 = vpop.permute.xlu0 %3211
    %3213 = vrot.lane.b32.xlu0 %v3062, 36
    %v3214 = vpop.permute.xlu0 %3213
    %3215 = vrot.lane.b32.xlu0 %v3063, 36
    %v3216 = vpop.permute.xlu0 %3215
    %vm3268 = vcmask 343328
    %3269 = vst.msk [vmem:[#allocation3] sm:$0xff] %vm3268, %v3116
    %3270 = vst.msk [vmem:[#allocation3 + $0x8] sm:$0xff] %vm3268, %v3118
    %3271 = vst.msk [vmem:[#allocation3 + $0x10] sm:$0xff] %vm3268, %v3120
    %3272 = vst.msk [vmem:[#allocation3 + $0x18] sm:$0xff] %vm3268, %v3122
    %3273 = vst.msk [vmem:[#allocation3 + $0x20] sm:$0xff] %vm3268, %v3124
    %3274 = vst.msk [vmem:[#allocation3 + $0x28] sm:$0xff] %vm3268, %v3126
    %3275 = vst.msk [vmem:[#allocation3 + $0x30] sm:$0xff] %vm3268, %v3128
    %3276 = vst.msk [vmem:[#allocation3 + $0x38] sm:$0xff] %vm3268, %v3130
    %3277 = vst.msk [vmem:[#allocation3 + $0x40] sm:$0xff] %vm3268, %v3132
    %3278 = vst.msk [vmem:[#allocation3 + $0x48] sm:$0xff] %vm3268, %v3134
    %3279 = vst.msk [vmem:[#allocation3 + $0x50] sm:$0xff] %vm3268, %v3136
    %3280 = vst.msk [vmem:[#allocation3 + $0x58] sm:$0xff] %vm3268, %v3138
    %3281 = vst.msk [vmem:[#allocation3 + $0x60] sm:$0xff] %vm3268, %v3140
    %3282 = vst.msk [vmem:[#allocation3 + $0x68] sm:$0xff] %vm3268, %v3142
    %3283 = vst.msk [vmem:[#allocation3 + $0x70] sm:$0xff] %vm3268, %v3144
    %3284 = vst.msk [vmem:[#allocation3 + $0x78] sm:$0xff] %vm3268, %v3146
    %3285 = vst.msk [vmem:[#allocation3 + $0x80] sm:$0xff] %vm3268, %v3148
    %3286 = vst.msk [vmem:[#allocation3 + $0x88] sm:$0xff] %vm3268, %v3150
    %3287 = vst.msk [vmem:[#allocation3 + $0x90] sm:$0xff] %vm3268, %v3152
    %3288 = vst.msk [vmem:[#allocation3 + $0x98] sm:$0xff] %vm3268, %v3154
    %3289 = vst.msk [vmem:[#allocation3 + $0xa0] sm:$0xff] %vm3268, %v3156
    %3290 = vst.msk [vmem:[#allocation3 + $0xa8] sm:$0xff] %vm3268, %v3158
    %3291 = vst.msk [vmem:[#allocation3 + $0xb0] sm:$0xff] %vm3268, %v3160
    %3292 = vst.msk [vmem:[#allocation3 + $0xb8] sm:$0xff] %vm3268, %v3162
    %3293 = vst.msk [vmem:[#allocation3 + $0xc0] sm:$0xff] %vm3268, %v3164
    %3294 = vst.msk [vmem:[#allocation3 + $0xc8] sm:$0xff] %vm3268, %v3166
    %3295 = vst.msk [vmem:[#allocation3 + $0xd0] sm:$0xff] %vm3268, %v3168
    %3296 = vst.msk [vmem:[#allocation3 + $0xd8] sm:$0xff] %vm3268, %v3170
    %3297 = vst.msk [vmem:[#allocation3 + $0xe0] sm:$0xff] %vm3268, %v3172
    %3298 = vst.msk [vmem:[#allocation3 + $0xe8] sm:$0xff] %vm3268, %v3174
    %3299 = vst.msk [vmem:[#allocation3 + $0xf0] sm:$0xff] %vm3268, %v3176
    %3300 = vst.msk [vmem:[#allocation3 + $0xf8] sm:$0xff] %vm3268, %v3178
    %3301 = vst.msk [vmem:[#allocation3 + $0x100] sm:$0xff] %vm3268, %v3180
    %3302 = vst.msk [vmem:[#allocation3 + $0x108] sm:$0xff] %vm3268, %v3182
    %3303 = vst.msk [vmem:[#allocation3 + $0x110] sm:$0xff] %vm3268, %v3184
    %3304 = vst.msk [vmem:[#allocation3 + $0x118] sm:$0xff] %vm3268, %v3186
    %3305 = vst.msk [vmem:[#allocation3 + $0x120] sm:$0xff] %vm3268, %v3188
    %3306 = vst.msk [vmem:[#allocation3 + $0x128] sm:$0xff] %vm3268, %v3190
    %3307 = vst.msk [vmem:[#allocation3 + $0x130] sm:$0xff] %vm3268, %v3192
    %3308 = vst.msk [vmem:[#allocation3 + $0x138] sm:$0xff] %vm3268, %v3194
    %3309 = vst.msk [vmem:[#allocation3 + $0x140] sm:$0xff] %vm3268, %v3196
    %3310 = vst.msk [vmem:[#allocation3 + $0x148] sm:$0xff] %vm3268, %v3198
    %3311 = vst.msk [vmem:[#allocation3 + $0x150] sm:$0xff] %vm3268, %v3200
    %3312 = vst.msk [vmem:[#allocation3 + $0x158] sm:$0xff] %vm3268, %v3202
    %3313 = vst.msk [vmem:[#allocation3 + $0x160] sm:$0xff] %vm3268, %v3204
    %3314 = vst.msk [vmem:[#allocation3 + $0x168] sm:$0xff] %vm3268, %v3206
    %3315 = vst.msk [vmem:[#allocation3 + $0x170] sm:$0xff] %vm3268, %v3208
    %3316 = vst.msk [vmem:[#allocation3 + $0x178] sm:$0xff] %vm3268, %v3210
    %3317 = vst.msk [vmem:[#allocation3 + $0x180] sm:$0xff] %vm3268, %v3212
    %3318 = vst.msk [vmem:[#allocation3 + $0x188] sm:$0xff] %vm3268, %v3214
    %3319 = vst.msk [vmem:[#allocation3 + $0x190] sm:$0xff] %vm3268, %v3216
    %v3320 = vld [vmem:[#allocation2 + $0x1f] sm:$0xff]
    %v3321 = vld [vmem:[#allocation2 + $0x27] sm:$0xff]
    %v3322 = vld [vmem:[#allocation2 + $0x2f] sm:$0xff]
    %v3323 = vld [vmem:[#allocation2 + $0x37] sm:$0xff]
    %v3324 = vld [vmem:[#allocation2 + $0x3f] sm:$0xff]
    %v3325 = vld [vmem:[#allocation2 + $0x47] sm:$0xff]
    %v3326 = vld [vmem:[#allocation2 + $0x4f] sm:$0xff]
    %v3327 = vld [vmem:[#allocation2 + $0x57] sm:$0xff]
    %v3328 = vld [vmem:[#allocation2 + $0x5f] sm:$0xff]
    %v3329 = vld [vmem:[#allocation2 + $0x67] sm:$0xff]
    %v3330 = vld [vmem:[#allocation2 + $0x6f] sm:$0xff]
    %v3331 = vld [vmem:[#allocation2 + $0x77] sm:$0xff]
    %v3332 = vld [vmem:[#allocation2 + $0x7f] sm:$0xff]
    %v3333 = vld [vmem:[#allocation2 + $0x87] sm:$0xff]
    %v3334 = vld [vmem:[#allocation2 + $0x8f] sm:$0xff]
    %v3335 = vld [vmem:[#allocation2 + $0x97] sm:$0xff]
    %v3336 = vld [vmem:[#allocation2 + $0x9f] sm:$0xff]
    %v3337 = vld [vmem:[#allocation2 + $0xa7] sm:$0xff]
    %v3338 = vld [vmem:[#allocation2 + $0xaf] sm:$0xff]
    %v3339 = vld [vmem:[#allocation2 + $0xb7] sm:$0xff]
    %v3340 = vld [vmem:[#allocation2 + $0xbf] sm:$0xff]
    %v3341 = vld [vmem:[#allocation2 + $0xc7] sm:$0xff]
    %v3342 = vld [vmem:[#allocation2 + $0xcf] sm:$0xff]
    %v3343 = vld [vmem:[#allocation2 + $0xd7] sm:$0xff]
    %v3344 = vld [vmem:[#allocation2 + $0xdf] sm:$0xff]
    %v3345 = vld [vmem:[#allocation2 + $0xe7] sm:$0xff]
    %v3346 = vld [vmem:[#allocation2 + $0xef] sm:$0xff]
    %v3347 = vld [vmem:[#allocation2 + $0xf7] sm:$0xff]
    %v3348 = vld [vmem:[#allocation2 + $0xff] sm:$0xff]
    %v3349 = vld [vmem:[#allocation2 + $0x107] sm:$0xff]
    %v3350 = vld [vmem:[#allocation2 + $0x10f] sm:$0xff]
    %v3351 = vld [vmem:[#allocation2 + $0x117] sm:$0xff]
    %v3352 = vld [vmem:[#allocation2 + $0x11f] sm:$0xff]
    %v3353 = vld [vmem:[#allocation2 + $0x127] sm:$0xff]
    %v3354 = vld [vmem:[#allocation2 + $0x12f] sm:$0xff]
    %v3355 = vld [vmem:[#allocation2 + $0x137] sm:$0xff]
    %v3356 = vld [vmem:[#allocation2 + $0x13f] sm:$0xff]
    %v3357 = vld [vmem:[#allocation2 + $0x147] sm:$0xff]
    %v3358 = vld [vmem:[#allocation2 + $0x14f] sm:$0xff]
    %v3359 = vld [vmem:[#allocation2 + $0x157] sm:$0xff]
    %v3360 = vld [vmem:[#allocation2 + $0x15f] sm:$0xff]
    %v3361 = vld [vmem:[#allocation2 + $0x167] sm:$0xff]
    %v3362 = vld [vmem:[#allocation2 + $0x16f] sm:$0xff]
    %v3363 = vld [vmem:[#allocation2 + $0x177] sm:$0xff]
    %v3364 = vld [vmem:[#allocation2 + $0x17f] sm:$0xff]
    %v3365 = vld [vmem:[#allocation2 + $0x187] sm:$0xff]
    %v3366 = vld [vmem:[#allocation2 + $0x18f] sm:$0xff]
    %v3367 = vld [vmem:[#allocation2 + $0x197] sm:$0xff]
    %v3368 = vld [vmem:[#allocation2 + $0x19f] sm:$0xff]
    %v3369 = vld [vmem:[#allocation2 + $0x1a7] sm:$0xff]
    %v3370 = vld [vmem:[#allocation2 + $0x1af] sm:$0xff]
    %3422 = vrot.lane.b32.xlu0 %v3320, 42
    %v3423 = vpop.permute.xlu0 %3422
    %3424 = vrot.lane.b32.xlu0 %v3321, 42
    %v3425 = vpop.permute.xlu0 %3424
    %3426 = vrot.lane.b32.xlu0 %v3322, 42
    %v3427 = vpop.permute.xlu0 %3426
    %3428 = vrot.lane.b32.xlu0 %v3323, 42
    %v3429 = vpop.permute.xlu0 %3428
    %3430 = vrot.lane.b32.xlu0 %v3324, 42
    %v3431 = vpop.permute.xlu0 %3430
    %3432 = vrot.lane.b32.xlu0 %v3325, 42
    %v3433 = vpop.permute.xlu0 %3432
    %3434 = vrot.lane.b32.xlu0 %v3326, 42
    %v3435 = vpop.permute.xlu0 %3434
    %3436 = vrot.lane.b32.xlu0 %v3327, 42
    %v3437 = vpop.permute.xlu0 %3436
    %3438 = vrot.lane.b32.xlu0 %v3328, 42
    %v3439 = vpop.permute.xlu0 %3438
    %3440 = vrot.lane.b32.xlu0 %v3329, 42
    %v3441 = vpop.permute.xlu0 %3440
    %3442 = vrot.lane.b32.xlu0 %v3330, 42
    %v3443 = vpop.permute.xlu0 %3442
    %3444 = vrot.lane.b32.xlu0 %v3331, 42
    %v3445 = vpop.permute.xlu0 %3444
    %3446 = vrot.lane.b32.xlu0 %v3332, 42
    %v3447 = vpop.permute.xlu0 %3446
    %3448 = vrot.lane.b32.xlu0 %v3333, 42
    %v3449 = vpop.permute.xlu0 %3448
    %3450 = vrot.lane.b32.xlu0 %v3334, 42
    %v3451 = vpop.permute.xlu0 %3450
    %3452 = vrot.lane.b32.xlu0 %v3335, 42
    %v3453 = vpop.permute.xlu0 %3452
    %3454 = vrot.lane.b32.xlu0 %v3336, 42
    %v3455 = vpop.permute.xlu0 %3454
    %3456 = vrot.lane.b32.xlu0 %v3337, 42
    %v3457 = vpop.permute.xlu0 %3456
    %3458 = vrot.lane.b32.xlu0 %v3338, 42
    %v3459 = vpop.permute.xlu0 %3458
    %3460 = vrot.lane.b32.xlu0 %v3339, 42
    %v3461 = vpop.permute.xlu0 %3460
    %3462 = vrot.lane.b32.xlu0 %v3340, 42
    %v3463 = vpop.permute.xlu0 %3462
    %3464 = vrot.lane.b32.xlu0 %v3341, 42
    %v3465 = vpop.permute.xlu0 %3464
    %3466 = vrot.lane.b32.xlu0 %v3342, 42
    %v3467 = vpop.permute.xlu0 %3466
    %3468 = vrot.lane.b32.xlu0 %v3343, 42
    %v3469 = vpop.permute.xlu0 %3468
    %3470 = vrot.lane.b32.xlu0 %v3344, 42
    %v3471 = vpop.permute.xlu0 %3470
    %3472 = vrot.lane.b32.xlu0 %v3345, 42
    %v3473 = vpop.permute.xlu0 %3472
    %3474 = vrot.lane.b32.xlu0 %v3346, 42
    %v3475 = vpop.permute.xlu0 %3474
    %3476 = vrot.lane.b32.xlu0 %v3347, 42
    %v3477 = vpop.permute.xlu0 %3476
    %3478 = vrot.lane.b32.xlu0 %v3348, 42
    %v3479 = vpop.permute.xlu0 %3478
    %3480 = vrot.lane.b32.xlu0 %v3349, 42
    %v3481 = vpop.permute.xlu0 %3480
    %3482 = vrot.lane.b32.xlu0 %v3350, 42
    %v3483 = vpop.permute.xlu0 %3482
    %3484 = vrot.lane.b32.xlu0 %v3351, 42
    %v3485 = vpop.permute.xlu0 %3484
    %3486 = vrot.lane.b32.xlu0 %v3352, 42
    %v3487 = vpop.permute.xlu0 %3486
    %3488 = vrot.lane.b32.xlu0 %v3353, 42
    %v3489 = vpop.permute.xlu0 %3488
    %3490 = vrot.lane.b32.xlu0 %v3354, 42
    %v3491 = vpop.permute.xlu0 %3490
    %3492 = vrot.lane.b32.xlu0 %v3355, 42
    %v3493 = vpop.permute.xlu0 %3492
    %3494 = vrot.lane.b32.xlu0 %v3356, 42
    %v3495 = vpop.permute.xlu0 %3494
    %3496 = vrot.lane.b32.xlu0 %v3357, 42
    %v3497 = vpop.permute.xlu0 %3496
    %3498 = vrot.lane.b32.xlu0 %v3358, 42
    %v3499 = vpop.permute.xlu0 %3498
    %3500 = vrot.lane.b32.xlu0 %v3359, 42
    %v3501 = vpop.permute.xlu0 %3500
    %3502 = vrot.lane.b32.xlu0 %v3360, 42
    %v3503 = vpop.permute.xlu0 %3502
    %3504 = vrot.lane.b32.xlu0 %v3361, 42
    %v3505 = vpop.permute.xlu0 %3504
    %3506 = vrot.lane.b32.xlu0 %v3362, 42
    %v3507 = vpop.permute.xlu0 %3506
    %3508 = vrot.lane.b32.xlu0 %v3363, 42
    %v3509 = vpop.permute.xlu0 %3508
    %3510 = vrot.lane.b32.xlu0 %v3364, 42
    %v3511 = vpop.permute.xlu0 %3510
    %3512 = vrot.lane.b32.xlu0 %v3365, 42
    %v3513 = vpop.permute.xlu0 %3512
    %3514 = vrot.lane.b32.xlu0 %v3366, 42
    %v3515 = vpop.permute.xlu0 %3514
    %3516 = vrot.lane.b32.xlu0 %v3367, 42
    %v3517 = vpop.permute.xlu0 %3516
    %3518 = vrot.lane.b32.xlu0 %v3368, 42
    %v3519 = vpop.permute.xlu0 %3518
    %3520 = vrot.lane.b32.xlu0 %v3369, 42
    %v3521 = vpop.permute.xlu0 %3520
    %3522 = vrot.lane.b32.xlu0 %v3370, 42
    %v3523 = vpop.permute.xlu0 %3522
    %vm3575 = vcmask 392528
    %3576 = vst.msk [vmem:[#allocation3] sm:$0xff] %vm3575, %v3423
    %3577 = vst.msk [vmem:[#allocation3 + $0x8] sm:$0xff] %vm3575, %v3425
    %3578 = vst.msk [vmem:[#allocation3 + $0x10] sm:$0xff] %vm3575, %v3427
    %3579 = vst.msk [vmem:[#allocation3 + $0x18] sm:$0xff] %vm3575, %v3429
    %3580 = vst.msk [vmem:[#allocation3 + $0x20] sm:$0xff] %vm3575, %v3431
    %3581 = vst.msk [vmem:[#allocation3 + $0x28] sm:$0xff] %vm3575, %v3433
    %3582 = vst.msk [vmem:[#allocation3 + $0x30] sm:$0xff] %vm3575, %v3435
    %3583 = vst.msk [vmem:[#allocation3 + $0x38] sm:$0xff] %vm3575, %v3437
    %3584 = vst.msk [vmem:[#allocation3 + $0x40] sm:$0xff] %vm3575, %v3439
    %3585 = vst.msk [vmem:[#allocation3 + $0x48] sm:$0xff] %vm3575, %v3441
    %3586 = vst.msk [vmem:[#allocation3 + $0x50] sm:$0xff] %vm3575, %v3443
    %3587 = vst.msk [vmem:[#allocation3 + $0x58] sm:$0xff] %vm3575, %v3445
    %3588 = vst.msk [vmem:[#allocation3 + $0x60] sm:$0xff] %vm3575, %v3447
    %3589 = vst.msk [vmem:[#allocation3 + $0x68] sm:$0xff] %vm3575, %v3449
    %3590 = vst.msk [vmem:[#allocation3 + $0x70] sm:$0xff] %vm3575, %v3451
    %3591 = vst.msk [vmem:[#allocation3 + $0x78] sm:$0xff] %vm3575, %v3453
    %3592 = vst.msk [vmem:[#allocation3 + $0x80] sm:$0xff] %vm3575, %v3455
    %3593 = vst.msk [vmem:[#allocation3 + $0x88] sm:$0xff] %vm3575, %v3457
    %3594 = vst.msk [vmem:[#allocation3 + $0x90] sm:$0xff] %vm3575, %v3459
    %3595 = vst.msk [vmem:[#allocation3 + $0x98] sm:$0xff] %vm3575, %v3461
    %3596 = vst.msk [vmem:[#allocation3 + $0xa0] sm:$0xff] %vm3575, %v3463
    %3597 = vst.msk [vmem:[#allocation3 + $0xa8] sm:$0xff] %vm3575, %v3465
    %3598 = vst.msk [vmem:[#allocation3 + $0xb0] sm:$0xff] %vm3575, %v3467
    %3599 = vst.msk [vmem:[#allocation3 + $0xb8] sm:$0xff] %vm3575, %v3469
    %3600 = vst.msk [vmem:[#allocation3 + $0xc0] sm:$0xff] %vm3575, %v3471
    %3601 = vst.msk [vmem:[#allocation3 + $0xc8] sm:$0xff] %vm3575, %v3473
    %3602 = vst.msk [vmem:[#allocation3 + $0xd0] sm:$0xff] %vm3575, %v3475
    %3603 = vst.msk [vmem:[#allocation3 + $0xd8] sm:$0xff] %vm3575, %v3477
    %3604 = vst.msk [vmem:[#allocation3 + $0xe0] sm:$0xff] %vm3575, %v3479
    %3605 = vst.msk [vmem:[#allocation3 + $0xe8] sm:$0xff] %vm3575, %v3481
    %3606 = vst.msk [vmem:[#allocation3 + $0xf0] sm:$0xff] %vm3575, %v3483
    %3607 = vst.msk [vmem:[#allocation3 + $0xf8] sm:$0xff] %vm3575, %v3485
    %3608 = vst.msk [vmem:[#allocation3 + $0x100] sm:$0xff] %vm3575, %v3487
    %3609 = vst.msk [vmem:[#allocation3 + $0x108] sm:$0xff] %vm3575, %v3489
    %3610 = vst.msk [vmem:[#allocation3 + $0x110] sm:$0xff] %vm3575, %v3491
    %3611 = vst.msk [vmem:[#allocation3 + $0x118] sm:$0xff] %vm3575, %v3493
    %3612 = vst.msk [vmem:[#allocation3 + $0x120] sm:$0xff] %vm3575, %v3495
    %3613 = vst.msk [vmem:[#allocation3 + $0x128] sm:$0xff] %vm3575, %v3497
    %3614 = vst.msk [vmem:[#allocation3 + $0x130] sm:$0xff] %vm3575, %v3499
    %3615 = vst.msk [vmem:[#allocation3 + $0x138] sm:$0xff] %vm3575, %v3501
    %3616 = vst.msk [vmem:[#allocation3 + $0x140] sm:$0xff] %vm3575, %v3503
    %3617 = vst.msk [vmem:[#allocation3 + $0x148] sm:$0xff] %vm3575, %v3505
    %3618 = vst.msk [vmem:[#allocation3 + $0x150] sm:$0xff] %vm3575, %v3507
    %3619 = vst.msk [vmem:[#allocation3 + $0x158] sm:$0xff] %vm3575, %v3509
    %3620 = vst.msk [vmem:[#allocation3 + $0x160] sm:$0xff] %vm3575, %v3511
    %3621 = vst.msk [vmem:[#allocation3 + $0x168] sm:$0xff] %vm3575, %v3513
    %3622 = vst.msk [vmem:[#allocation3 + $0x170] sm:$0xff] %vm3575, %v3515
    %3623 = vst.msk [vmem:[#allocation3 + $0x178] sm:$0xff] %vm3575, %v3517
    %3624 = vst.msk [vmem:[#allocation3 + $0x180] sm:$0xff] %vm3575, %v3519
    %3625 = vst.msk [vmem:[#allocation3 + $0x188] sm:$0xff] %vm3575, %v3521
    %3626 = vst.msk [vmem:[#allocation3 + $0x190] sm:$0xff] %vm3575, %v3523
    %v3627 = vld [vmem:[#allocation2 + $0x20] sm:$0xff]
    %v3628 = vld [vmem:[#allocation2 + $0x28] sm:$0xff]
    %v3629 = vld [vmem:[#allocation2 + $0x30] sm:$0xff]
    %v3630 = vld [vmem:[#allocation2 + $0x38] sm:$0xff]
    %v3631 = vld [vmem:[#allocation2 + $0x40] sm:$0xff]
    %v3632 = vld [vmem:[#allocation2 + $0x48] sm:$0xff]
    %v3633 = vld [vmem:[#allocation2 + $0x50] sm:$0xff]
    %v3634 = vld [vmem:[#allocation2 + $0x58] sm:$0xff]
    %v3635 = vld [vmem:[#allocation2 + $0x60] sm:$0xff]
    %v3636 = vld [vmem:[#allocation2 + $0x68] sm:$0xff]
    %v3637 = vld [vmem:[#allocation2 + $0x70] sm:$0xff]
    %v3638 = vld [vmem:[#allocation2 + $0x78] sm:$0xff]
    %v3639 = vld [vmem:[#allocation2 + $0x80] sm:$0xff]
    %v3640 = vld [vmem:[#allocation2 + $0x88] sm:$0xff]
    %v3641 = vld [vmem:[#allocation2 + $0x90] sm:$0xff]
    %v3642 = vld [vmem:[#allocation2 + $0x98] sm:$0xff]
    %v3643 = vld [vmem:[#allocation2 + $0xa0] sm:$0xff]
    %v3644 = vld [vmem:[#allocation2 + $0xa8] sm:$0xff]
    %v3645 = vld [vmem:[#allocation2 + $0xb0] sm:$0xff]
    %v3646 = vld [vmem:[#allocation2 + $0xb8] sm:$0xff]
    %v3647 = vld [vmem:[#allocation2 + $0xc0] sm:$0xff]
    %v3648 = vld [vmem:[#allocation2 + $0xc8] sm:$0xff]
    %v3649 = vld [vmem:[#allocation2 + $0xd0] sm:$0xff]
    %v3650 = vld [vmem:[#allocation2 + $0xd8] sm:$0xff]
    %v3651 = vld [vmem:[#allocation2 + $0xe0] sm:$0xff]
    %v3652 = vld [vmem:[#allocation2 + $0xe8] sm:$0xff]
    %v3653 = vld [vmem:[#allocation2 + $0xf0] sm:$0xff]
    %v3654 = vld [vmem:[#allocation2 + $0xf8] sm:$0xff]
    %v3655 = vld [vmem:[#allocation2 + $0x100] sm:$0xff]
    %v3656 = vld [vmem:[#allocation2 + $0x108] sm:$0xff]
    %v3657 = vld [vmem:[#allocation2 + $0x110] sm:$0xff]
    %v3658 = vld [vmem:[#allocation2 + $0x118] sm:$0xff]
    %v3659 = vld [vmem:[#allocation2 + $0x120] sm:$0xff]
    %v3660 = vld [vmem:[#allocation2 + $0x128] sm:$0xff]
    %v3661 = vld [vmem:[#allocation2 + $0x130] sm:$0xff]
    %v3662 = vld [vmem:[#allocation2 + $0x138] sm:$0xff]
    %v3663 = vld [vmem:[#allocation2 + $0x140] sm:$0xff]
    %v3664 = vld [vmem:[#allocation2 + $0x148] sm:$0xff]
    %v3665 = vld [vmem:[#allocation2 + $0x150] sm:$0xff]
    %v3666 = vld [vmem:[#allocation2 + $0x158] sm:$0xff]
    %v3667 = vld [vmem:[#allocation2 + $0x160] sm:$0xff]
    %v3668 = vld [vmem:[#allocation2 + $0x168] sm:$0xff]
    %v3669 = vld [vmem:[#allocation2 + $0x170] sm:$0xff]
    %v3670 = vld [vmem:[#allocation2 + $0x178] sm:$0xff]
    %v3671 = vld [vmem:[#allocation2 + $0x180] sm:$0xff]
    %v3672 = vld [vmem:[#allocation2 + $0x188] sm:$0xff]
    %v3673 = vld [vmem:[#allocation2 + $0x190] sm:$0xff]
    %v3674 = vld [vmem:[#allocation2 + $0x198] sm:$0xff]
    %v3675 = vld [vmem:[#allocation2 + $0x1a0] sm:$0xff]
    %v3676 = vld [vmem:[#allocation2 + $0x1a8] sm:$0xff]
    %v3677 = vld [vmem:[#allocation2 + $0x1b0] sm:$0xff]
    %3729 = vrot.lane.b32.xlu0 %v3627, 48
    %v3730 = vpop.permute.xlu0 %3729
    %3731 = vrot.lane.b32.xlu0 %v3628, 48
    %v3732 = vpop.permute.xlu0 %3731
    %3733 = vrot.lane.b32.xlu0 %v3629, 48
    %v3734 = vpop.permute.xlu0 %3733
    %3735 = vrot.lane.b32.xlu0 %v3630, 48
    %v3736 = vpop.permute.xlu0 %3735
    %3737 = vrot.lane.b32.xlu0 %v3631, 48
    %v3738 = vpop.permute.xlu0 %3737
    %3739 = vrot.lane.b32.xlu0 %v3632, 48
    %v3740 = vpop.permute.xlu0 %3739
    %3741 = vrot.lane.b32.xlu0 %v3633, 48
    %v3742 = vpop.permute.xlu0 %3741
    %3743 = vrot.lane.b32.xlu0 %v3634, 48
    %v3744 = vpop.permute.xlu0 %3743
    %3745 = vrot.lane.b32.xlu0 %v3635, 48
    %v3746 = vpop.permute.xlu0 %3745
    %3747 = vrot.lane.b32.xlu0 %v3636, 48
    %v3748 = vpop.permute.xlu0 %3747
    %3749 = vrot.lane.b32.xlu0 %v3637, 48
    %v3750 = vpop.permute.xlu0 %3749
    %3751 = vrot.lane.b32.xlu0 %v3638, 48
    %v3752 = vpop.permute.xlu0 %3751
    %3753 = vrot.lane.b32.xlu0 %v3639, 48
    %v3754 = vpop.permute.xlu0 %3753
    %3755 = vrot.lane.b32.xlu0 %v3640, 48
    %v3756 = vpop.permute.xlu0 %3755
    %3757 = vrot.lane.b32.xlu0 %v3641, 48
    %v3758 = vpop.permute.xlu0 %3757
    %3759 = vrot.lane.b32.xlu0 %v3642, 48
    %v3760 = vpop.permute.xlu0 %3759
    %3761 = vrot.lane.b32.xlu0 %v3643, 48
    %v3762 = vpop.permute.xlu0 %3761
    %3763 = vrot.lane.b32.xlu0 %v3644, 48
    %v3764 = vpop.permute.xlu0 %3763
    %3765 = vrot.lane.b32.xlu0 %v3645, 48
    %v3766 = vpop.permute.xlu0 %3765
    %3767 = vrot.lane.b32.xlu0 %v3646, 48
    %v3768 = vpop.permute.xlu0 %3767
    %3769 = vrot.lane.b32.xlu0 %v3647, 48
    %v3770 = vpop.permute.xlu0 %3769
    %3771 = vrot.lane.b32.xlu0 %v3648, 48
    %v3772 = vpop.permute.xlu0 %3771
    %3773 = vrot.lane.b32.xlu0 %v3649, 48
    %v3774 = vpop.permute.xlu0 %3773
    %3775 = vrot.lane.b32.xlu0 %v3650, 48
    %v3776 = vpop.permute.xlu0 %3775
    %3777 = vrot.lane.b32.xlu0 %v3651, 48
    %v3778 = vpop.permute.xlu0 %3777
    %3779 = vrot.lane.b32.xlu0 %v3652, 48
    %v3780 = vpop.permute.xlu0 %3779
    %3781 = vrot.lane.b32.xlu0 %v3653, 48
    %v3782 = vpop.permute.xlu0 %3781
    %3783 = vrot.lane.b32.xlu0 %v3654, 48
    %v3784 = vpop.permute.xlu0 %3783
    %3785 = vrot.lane.b32.xlu0 %v3655, 48
    %v3786 = vpop.permute.xlu0 %3785
    %3787 = vrot.lane.b32.xlu0 %v3656, 48
    %v3788 = vpop.permute.xlu0 %3787
    %3789 = vrot.lane.b32.xlu0 %v3657, 48
    %v3790 = vpop.permute.xlu0 %3789
    %3791 = vrot.lane.b32.xlu0 %v3658, 48
    %v3792 = vpop.permute.xlu0 %3791
    %3793 = vrot.lane.b32.xlu0 %v3659, 48
    %v3794 = vpop.permute.xlu0 %3793
    %3795 = vrot.lane.b32.xlu0 %v3660, 48
    %v3796 = vpop.permute.xlu0 %3795
    %3797 = vrot.lane.b32.xlu0 %v3661, 48
    %v3798 = vpop.permute.xlu0 %3797
    %3799 = vrot.lane.b32.xlu0 %v3662, 48
    %v3800 = vpop.permute.xlu0 %3799
    %3801 = vrot.lane.b32.xlu0 %v3663, 48
    %v3802 = vpop.permute.xlu0 %3801
    %3803 = vrot.lane.b32.xlu0 %v3664, 48
    %v3804 = vpop.permute.xlu0 %3803
    %3805 = vrot.lane.b32.xlu0 %v3665, 48
    %v3806 = vpop.permute.xlu0 %3805
    %3807 = vrot.lane.b32.xlu0 %v3666, 48
    %v3808 = vpop.permute.xlu0 %3807
    %3809 = vrot.lane.b32.xlu0 %v3667, 48
    %v3810 = vpop.permute.xlu0 %3809
    %3811 = vrot.lane.b32.xlu0 %v3668, 48
    %v3812 = vpop.permute.xlu0 %3811
    %3813 = vrot.lane.b32.xlu0 %v3669, 48
    %v3814 = vpop.permute.xlu0 %3813
    %3815 = vrot.lane.b32.xlu0 %v3670, 48
    %v3816 = vpop.permute.xlu0 %3815
    %3817 = vrot.lane.b32.xlu0 %v3671, 48
    %v3818 = vpop.permute.xlu0 %3817
    %3819 = vrot.lane.b32.xlu0 %v3672, 48
    %v3820 = vpop.permute.xlu0 %3819
    %3821 = vrot.lane.b32.xlu0 %v3673, 48
    %v3822 = vpop.permute.xlu0 %3821
    %3823 = vrot.lane.b32.xlu0 %v3674, 48
    %v3824 = vpop.permute.xlu0 %3823
    %3825 = vrot.lane.b32.xlu0 %v3675, 48
    %v3826 = vpop.permute.xlu0 %3825
    %3827 = vrot.lane.b32.xlu0 %v3676, 48
    %v3828 = vpop.permute.xlu0 %3827
    %3829 = vrot.lane.b32.xlu0 %v3677, 48
    %v3830 = vpop.permute.xlu0 %3829
    %vm3882 = vcmask 441728
    %3883 = vst.msk [vmem:[#allocation3] sm:$0xff] %vm3882, %v3730
    %3884 = vst.msk [vmem:[#allocation3 + $0x8] sm:$0xff] %vm3882, %v3732
    %3885 = vst.msk [vmem:[#allocation3 + $0x10] sm:$0xff] %vm3882, %v3734
    %3886 = vst.msk [vmem:[#allocation3 + $0x18] sm:$0xff] %vm3882, %v3736
    %3887 = vst.msk [vmem:[#allocation3 + $0x20] sm:$0xff] %vm3882, %v3738
    %3888 = vst.msk [vmem:[#allocation3 + $0x28] sm:$0xff] %vm3882, %v3740
    %3889 = vst.msk [vmem:[#allocation3 + $0x30] sm:$0xff] %vm3882, %v3742
    %3890 = vst.msk [vmem:[#allocation3 + $0x38] sm:$0xff] %vm3882, %v3744
    %3891 = vst.msk [vmem:[#allocation3 + $0x40] sm:$0xff] %vm3882, %v3746
    %3892 = vst.msk [vmem:[#allocation3 + $0x48] sm:$0xff] %vm3882, %v3748
    %3893 = vst.msk [vmem:[#allocation3 + $0x50] sm:$0xff] %vm3882, %v3750
    %3894 = vst.msk [vmem:[#allocation3 + $0x58] sm:$0xff] %vm3882, %v3752
    %3895 = vst.msk [vmem:[#allocation3 + $0x60] sm:$0xff] %vm3882, %v3754
    %3896 = vst.msk [vmem:[#allocation3 + $0x68] sm:$0xff] %vm3882, %v3756
    %3897 = vst.msk [vmem:[#allocation3 + $0x70] sm:$0xff] %vm3882, %v3758
    %3898 = vst.msk [vmem:[#allocation3 + $0x78] sm:$0xff] %vm3882, %v3760
    %3899 = vst.msk [vmem:[#allocation3 + $0x80] sm:$0xff] %vm3882, %v3762
    %3900 = vst.msk [vmem:[#allocation3 + $0x88] sm:$0xff] %vm3882, %v3764
    %3901 = vst.msk [vmem:[#allocation3 + $0x90] sm:$0xff] %vm3882, %v3766
    %3902 = vst.msk [vmem:[#allocation3 + $0x98] sm:$0xff] %vm3882, %v3768
    %3903 = vst.msk [vmem:[#allocation3 + $0xa0] sm:$0xff] %vm3882, %v3770
    %3904 = vst.msk [vmem:[#allocation3 + $0xa8] sm:$0xff] %vm3882, %v3772
    %3905 = vst.msk [vmem:[#allocation3 + $0xb0] sm:$0xff] %vm3882, %v3774
    %3906 = vst.msk [vmem:[#allocation3 + $0xb8] sm:$0xff] %vm3882, %v3776
    %3907 = vst.msk [vmem:[#allocation3 + $0xc0] sm:$0xff] %vm3882, %v3778
    %3908 = vst.msk [vmem:[#allocation3 + $0xc8] sm:$0xff] %vm3882, %v3780
    %3909 = vst.msk [vmem:[#allocation3 + $0xd0] sm:$0xff] %vm3882, %v3782
    %3910 = vst.msk [vmem:[#allocation3 + $0xd8] sm:$0xff] %vm3882, %v3784
    %3911 = vst.msk [vmem:[#allocation3 + $0xe0] sm:$0xff] %vm3882, %v3786
    %3912 = vst.msk [vmem:[#allocation3 + $0xe8] sm:$0xff] %vm3882, %v3788
    %3913 = vst.msk [vmem:[#allocation3 + $0xf0] sm:$0xff] %vm3882, %v3790
    %3914 = vst.msk [vmem:[#allocation3 + $0xf8] sm:$0xff] %vm3882, %v3792
    %3915 = vst.msk [vmem:[#allocation3 + $0x100] sm:$0xff] %vm3882, %v3794
    %3916 = vst.msk [vmem:[#allocation3 + $0x108] sm:$0xff] %vm3882, %v3796
    %3917 = vst.msk [vmem:[#allocation3 + $0x110] sm:$0xff] %vm3882, %v3798
    %3918 = vst.msk [vmem:[#allocation3 + $0x118] sm:$0xff] %vm3882, %v3800
    %3919 = vst.msk [vmem:[#allocation3 + $0x120] sm:$0xff] %vm3882, %v3802
    %3920 = vst.msk [vmem:[#allocation3 + $0x128] sm:$0xff] %vm3882, %v3804
    %3921 = vst.msk [vmem:[#allocation3 + $0x130] sm:$0xff] %vm3882, %v3806
    %3922 = vst.msk [vmem:[#allocation3 + $0x138] sm:$0xff] %vm3882, %v3808
    %3923 = vst.msk [vmem:[#allocation3 + $0x140] sm:$0xff] %vm3882, %v3810
    %3924 = vst.msk [vmem:[#allocation3 + $0x148] sm:$0xff] %vm3882, %v3812
    %3925 = vst.msk [vmem:[#allocation3 + $0x150] sm:$0xff] %vm3882, %v3814
    %3926 = vst.msk [vmem:[#allocation3 + $0x158] sm:$0xff] %vm3882, %v3816
    %3927 = vst.msk [vmem:[#allocation3 + $0x160] sm:$0xff] %vm3882, %v3818
    %3928 = vst.msk [vmem:[#allocation3 + $0x168] sm:$0xff] %vm3882, %v3820
    %3929 = vst.msk [vmem:[#allocation3 + $0x170] sm:$0xff] %vm3882, %v3822
    %3930 = vst.msk [vmem:[#allocation3 + $0x178] sm:$0xff] %vm3882, %v3824
    %3931 = vst.msk [vmem:[#allocation3 + $0x180] sm:$0xff] %vm3882, %v3826
    %3932 = vst.msk [vmem:[#allocation3 + $0x188] sm:$0xff] %vm3882, %v3828
    %3933 = vst.msk [vmem:[#allocation3 + $0x190] sm:$0xff] %vm3882, %v3830
    %v3934 = vld [vmem:[#allocation3] sm:$0xff]
    %v3935 = vld [vmem:[#allocation3 + $0x8] sm:$0xff]
    %v3936 = vld [vmem:[#allocation3 + $0x10] sm:$0xff]
    %v3937 = vld [vmem:[#allocation3 + $0x18] sm:$0xff]
    %v3938 = vld [vmem:[#allocation3 + $0x20] sm:$0xff]
    %v3939 = vld [vmem:[#allocation3 + $0x28] sm:$0xff]
    %v3940 = vld [vmem:[#allocation3 + $0x30] sm:$0xff]
    %v3941 = vld [vmem:[#allocation3 + $0x38] sm:$0xff]
    %v3942 = vld [vmem:[#allocation3 + $0x40] sm:$0xff]
    %v3943 = vld [vmem:[#allocation3 + $0x48] sm:$0xff]
    %v3944 = vld [vmem:[#allocation3 + $0x50] sm:$0xff]
    %v3945 = vld [vmem:[#allocation3 + $0x58] sm:$0xff]
    %v3946 = vld [vmem:[#allocation3 + $0x60] sm:$0xff]
    %v3947 = vld [vmem:[#allocation3 + $0x68] sm:$0xff]
    %v3948 = vld [vmem:[#allocation3 + $0x70] sm:$0xff]
    %v3949 = vld [vmem:[#allocation3 + $0x78] sm:$0xff]
    %v3950 = vld [vmem:[#allocation3 + $0x80] sm:$0xff]
    %v3951 = vld [vmem:[#allocation3 + $0x88] sm:$0xff]
    %v3952 = vld [vmem:[#allocation3 + $0x90] sm:$0xff]
    %v3953 = vld [vmem:[#allocation3 + $0x98] sm:$0xff]
    %v3954 = vld [vmem:[#allocation3 + $0xa0] sm:$0xff]
    %v3955 = vld [vmem:[#allocation3 + $0xa8] sm:$0xff]
    %v3956 = vld [vmem:[#allocation3 + $0xb0] sm:$0xff]
    %v3957 = vld [vmem:[#allocation3 + $0xb8] sm:$0xff]
    %v3958 = vld [vmem:[#allocation3 + $0xc0] sm:$0xff]
    %v3959 = vld [vmem:[#allocation3 + $0xc8] sm:$0xff]
    %v3960 = vld [vmem:[#allocation3 + $0xd0] sm:$0xff]
    %v3961 = vld [vmem:[#allocation3 + $0xd8] sm:$0xff]
    %v3962 = vld [vmem:[#allocation3 + $0xe0] sm:$0xff]
    %v3963 = vld [vmem:[#allocation3 + $0xe8] sm:$0xff]
    %v3964 = vld [vmem:[#allocation3 + $0xf0] sm:$0xff]
    %v3965 = vld [vmem:[#allocation3 + $0xf8] sm:$0xff]
    %v3966 = vld [vmem:[#allocation3 + $0x100] sm:$0xff]
    %v3967 = vld [vmem:[#allocation3 + $0x108] sm:$0xff]
    %v3968 = vld [vmem:[#allocation3 + $0x110] sm:$0xff]
    %v3969 = vld [vmem:[#allocation3 + $0x118] sm:$0xff]
    %v3970 = vld [vmem:[#allocation3 + $0x120] sm:$0xff]
    %v3971 = vld [vmem:[#allocation3 + $0x128] sm:$0xff]
    %v3972 = vld [vmem:[#allocation3 + $0x130] sm:$0xff]
    %v3973 = vld [vmem:[#allocation3 + $0x138] sm:$0xff]
    %v3974 = vld [vmem:[#allocation3 + $0x140] sm:$0xff]
    %v3975 = vld [vmem:[#allocation3 + $0x148] sm:$0xff]
    %v3976 = vld [vmem:[#allocation3 + $0x150] sm:$0xff]
    %v3977 = vld [vmem:[#allocation3 + $0x158] sm:$0xff]
    %v3978 = vld [vmem:[#allocation3 + $0x160] sm:$0xff]
    %v3979 = vld [vmem:[#allocation3 + $0x168] sm:$0xff]
    %v3980 = vld [vmem:[#allocation3 + $0x170] sm:$0xff]
    %v3981 = vld [vmem:[#allocation3 + $0x178] sm:$0xff]
    %v3982 = vld [vmem:[#allocation3 + $0x180] sm:$0xff]
    %v3983 = vld [vmem:[#allocation3 + $0x188] sm:$0xff]
    %v3984 = vld [vmem:[#allocation3 + $0x190] sm:$0xff]
    %v3985 = vld [vmem:[%s3] sm:$0xff]
    %v3986 = vld [vmem:[%s3 + $0x8] sm:$0xff]
    %v3987 = vld [vmem:[%s3 + $0x10] sm:$0xff]
    %v3988 = vld [vmem:[%s3 + $0x18] sm:$0xff]
    %v3989 = vld [vmem:[%s3 + $0x20] sm:$0xff]
    %v3990 = vld [vmem:[%s3 + $0x28] sm:$0xff]
    %v3991 = vld [vmem:[%s3 + $0x30] sm:$0x3f]
    %v3992 = vld [vmem:[%s4] sm:$0x1]
    %v3994 = vlaneseq
    %v3995 = vshrl.u32 %v3994, 7
    %v3996 = vsub.s32 0, %v3995
    %v3997 = vrot.slane %v3992, %v3996
    %vm3999 = vcmask 441344
    %v4001 = vsel %vm3999, %v3934, 0
    %v4004 = vsel %vm3999, %v3935, 0
    %v4007 = vsel %vm3999, %v3936, 0
    %v4010 = vsel %vm3999, %v3937, 0
    %v4013 = vsel %vm3999, %v3938, 0
    %v4016 = vsel %vm3999, %v3939, 0
    %v4019 = vsel %vm3999, %v3940, 0
    %v4022 = vsel %vm3999, %v3941, 0
    %v4025 = vsel %vm3999, %v3942, 0
    %v4028 = vsel %vm3999, %v3943, 0
    %v4031 = vsel %vm3999, %v3944, 0
    %v4034 = vsel %vm3999, %v3945, 0
    %v4037 = vsel %vm3999, %v3946, 0
    %v4040 = vsel %vm3999, %v3947, 0
    %v4043 = vsel %vm3999, %v3948, 0
    %v4046 = vsel %vm3999, %v3949, 0
    %v4049 = vsel %vm3999, %v3950, 0
    %v4052 = vsel %vm3999, %v3951, 0
    %v4055 = vsel %vm3999, %v3952, 0
    %v4058 = vsel %vm3999, %v3953, 0
    %v4061 = vsel %vm3999, %v3954, 0
    %v4064 = vsel %vm3999, %v3955, 0
    %v4067 = vsel %vm3999, %v3956, 0
    %v4070 = vsel %vm3999, %v3957, 0
    %v4073 = vsel %vm3999, %v3958, 0
    %v4076 = vsel %vm3999, %v3959, 0
    %v4079 = vsel %vm3999, %v3960, 0
    %v4082 = vsel %vm3999, %v3961, 0
    %v4085 = vsel %vm3999, %v3962, 0
    %v4088 = vsel %vm3999, %v3963, 0
    %v4091 = vsel %vm3999, %v3964, 0
    %v4094 = vsel %vm3999, %v3965, 0
    %v4097 = vsel %vm3999, %v3966, 0
    %v4100 = vsel %vm3999, %v3967, 0
    %v4103 = vsel %vm3999, %v3968, 0
    %v4106 = vsel %vm3999, %v3969, 0
    %v4109 = vsel %vm3999, %v3970, 0
    %v4112 = vsel %vm3999, %v3971, 0
    %v4115 = vsel %vm3999, %v3972, 0
    %v4118 = vsel %vm3999, %v3973, 0
    %v4121 = vsel %vm3999, %v3974, 0
    %v4124 = vsel %vm3999, %v3975, 0
    %v4127 = vsel %vm3999, %v3976, 0
    %v4130 = vsel %vm3999, %v3977, 0
    %v4133 = vsel %vm3999, %v3978, 0
    %v4136 = vsel %vm3999, %v3979, 0
    %v4139 = vsel %vm3999, %v3980, 0
    %v4142 = vsel %vm3999, %v3981, 0
    %v4145 = vsel %vm3999, %v3982, 0
    %v4148 = vsel %vm3999, %v3983, 0
    %v4151 = vsel %vm3999, %v3984, 0
    %vm4153 = vcmask 1045504
    %v4155 = vsel %vm4153, %v3991, 0
    %4157 = vmatprep.subr.mxu0 0.0
    %4158 = vmatpush1.msra.mxu0 0.0
    %4159 = vmatprep.subr.mxu0 0.0
    %4160 = vmatpush1.msra.mxu0 0.0
    %4161 = vmatprep.subr.mxu0 0.0
    %4162 = vmatpush1.msra.mxu0 0.0
    %4163 = vmatprep.subr.mxu0 0.0
    %4164 = vmatpush1.msra.mxu0 0.0
    %4165 = vmatprep.subr.mxu0 0.0
    %4166 = vmatpush1.msra.mxu0 0.0
    %4167 = vmatprep.subr.mxu0 0.0
    %4168 = vmatpush1.msra.mxu0 0.0
    %4169 = vmatprep.subr.mxu0 0.0
    %4170 = vmatpush1.msra.mxu0 0.0
    %4171 = vmatprep.subr.mxu0 0.0
    %4172 = vmatpush1.msra.mxu0 0.0
    %4173 = vmatprep.subr.mxu0 0.0
    %4174 = vmatpush1.msra.mxu0 0.0
    %4175 = vmatprep.subr.mxu0 0.0
    %4176 = vmatpush1.msra.mxu0 %v4155
    %4177 = vmatprep.subr.mxu0 0.0
    %4178 = vmatpush1.msra.mxu0 %v3990
    %4179 = vmatprep.subr.mxu0 0.0
    %4180 = vmatpush1.msra.mxu0 %v3989
    %4181 = vmatprep.subr.mxu0 0.0
    %4182 = vmatpush1.msra.mxu0 %v3988
    %4183 = vmatprep.subr.mxu0 0.0
    %4184 = vmatpush1.msra.mxu0 %v3987
    %4185 = vmatprep.subr.mxu0 0.0
    %4186 = vmatpush1.msra.mxu0 %v3986
    %4187 = vmatprep.subr.mxu0 0.0
    %4188 = vmatpush1.msra.mxu0 %v3985
    %4189 = vmatprep.subr.mxu0 0.0
    %4190 = vmatpush2.msra.mxu0 0.0
    %4191 = vmatprep.subr.mxu0 0.0
    %4192 = vmatpush2.msra.mxu0 0.0
    %4193 = vmatprep.subr.mxu0 0.0
    %4194 = vmatpush2.msra.mxu0 0.0
    %4195 = vmatprep.subr.mxu0 0.0
    %4196 = vmatpush2.msra.mxu0 0.0
    %4197 = vmatprep.subr.mxu0 0.0
    %4198 = vmatpush2.msra.mxu0 0.0
    %4199 = vmatprep.subr.mxu0 0.0
    %4200 = vmatpush2.msra.mxu0 0.0
    %4201 = vmatprep.subr.mxu0 0.0
    %4202 = vmatpush2.msra.mxu0 0.0
    %4203 = vmatprep.subr.mxu0 0.0
    %4204 = vmatpush2.msra.mxu0 0.0
    %4205 = vmatprep.subr.mxu0 0.0
    %4206 = vmatpush2.msra.mxu0 0.0
    %4207 = vmatprep.subr.mxu0 0.0
    %4208 = vmatpush2.msra.mxu0 0.0
    %4209 = vmatprep.subr.mxu0 0.0
    %4210 = vmatpush2.msra.mxu0 0.0
    %4211 = vmatprep.subr.mxu0 0.0
    %4212 = vmatpush2.msra.mxu0 0.0
    %4213 = vmatprep.subr.mxu0 0.0
    %4214 = vmatpush2.msra.mxu0 0.0
    %4215 = vmatprep.subr.mxu0 0.0
    %4216 = vmatpush2.msra.mxu0 0.0
    %4217 = vmatprep.subr.mxu0 0.0
    %4218 = vmatpush2.msra.mxu0 0.0
    %4219 = vmatprep.subr.mxu0 0.0
    %4220 = vmatpush2.msra.mxu0 0.0
    %4221 = vmatprep.mubr.f32.mxu0 0.0
    %4222 = vmatmul.mubr.f32.gmra.mxu0 %v4001
    %v4223 = vpop.f32.mrf.mxu0
    %v4224 = vadd.f32 %v3997, %v4223
    %v4225 = vpop.f32.mrf.mxu0
    %4226 = vmatprep.mubr.f32.mxu0 0.0
    %4227 = vmatmul.mubr.f32.gmra.mxu0 %v4004
    %v4228 = vpop.f32.mrf.mxu0
    %v4229 = vadd.f32 %v3997, %v4228
    %v4230 = vpop.f32.mrf.mxu0
    %4231 = vmatprep.mubr.f32.mxu0 0.0
    %4232 = vmatmul.mubr.f32.gmra.mxu0 %v4007
    %v4233 = vpop.f32.mrf.mxu0
    %v4234 = vadd.f32 %v3997, %v4233
    %v4235 = vpop.f32.mrf.mxu0
    %4236 = vmatprep.mubr.f32.mxu0 0.0
    %4237 = vmatmul.mubr.f32.gmra.mxu0 %v4010
    %v4238 = vpop.f32.mrf.mxu0
    %v4239 = vadd.f32 %v3997, %v4238
    %v4240 = vpop.f32.mrf.mxu0
    %4241 = vmatprep.mubr.f32.mxu0 0.0
    %4242 = vmatmul.mubr.f32.gmra.mxu0 %v4013
    %v4243 = vpop.f32.mrf.mxu0
    %v4244 = vadd.f32 %v3997, %v4243
    %v4245 = vpop.f32.mrf.mxu0
    %4246 = vmatprep.mubr.f32.mxu0 0.0
    %4247 = vmatmul.mubr.f32.gmra.mxu0 %v4016
    %v4248 = vpop.f32.mrf.mxu0
    %v4249 = vadd.f32 %v3997, %v4248
    %v4250 = vpop.f32.mrf.mxu0
    %4251 = vmatprep.mubr.f32.mxu0 0.0
    %4252 = vmatmul.mubr.f32.gmra.mxu0 %v4019
    %v4253 = vpop.f32.mrf.mxu0
    %v4254 = vadd.f32 %v3997, %v4253
    %v4255 = vpop.f32.mrf.mxu0
    %4256 = vmatprep.mubr.f32.mxu0 0.0
    %4257 = vmatmul.mubr.f32.gmra.mxu0 %v4022
    %v4258 = vpop.f32.mrf.mxu0
    %v4259 = vadd.f32 %v3997, %v4258
    %v4260 = vpop.f32.mrf.mxu0
    %4261 = vmatprep.mubr.f32.mxu0 0.0
    %4262 = vmatmul.mubr.f32.gmra.mxu0 %v4025
    %v4263 = vpop.f32.mrf.mxu0
    %v4264 = vadd.f32 %v3997, %v4263
    %v4265 = vpop.f32.mrf.mxu0
    %4266 = vmatprep.mubr.f32.mxu0 0.0
    %4267 = vmatmul.mubr.f32.gmra.mxu0 %v4028
    %v4268 = vpop.f32.mrf.mxu0
    %v4269 = vadd.f32 %v3997, %v4268
    %v4270 = vpop.f32.mrf.mxu0
    %4271 = vmatprep.mubr.f32.mxu0 0.0
    %4272 = vmatmul.mubr.f32.gmra.mxu0 %v4031
    %v4273 = vpop.f32.mrf.mxu0
    %v4274 = vadd.f32 %v3997, %v4273
    %v4275 = vpop.f32.mrf.mxu0
    %4276 = vmatprep.mubr.f32.mxu0 0.0
    %4277 = vmatmul.mubr.f32.gmra.mxu0 %v4034
    %v4278 = vpop.f32.mrf.mxu0
    %v4279 = vadd.f32 %v3997, %v4278
    %v4280 = vpop.f32.mrf.mxu0
    %4281 = vmatprep.mubr.f32.mxu0 0.0
    %4282 = vmatmul.mubr.f32.gmra.mxu0 %v4037
    %v4283 = vpop.f32.mrf.mxu0
    %v4284 = vadd.f32 %v3997, %v4283
    %v4285 = vpop.f32.mrf.mxu0
    %4286 = vmatprep.mubr.f32.mxu0 0.0
    %4287 = vmatmul.mubr.f32.gmra.mxu0 %v4040
    %v4288 = vpop.f32.mrf.mxu0
    %v4289 = vadd.f32 %v3997, %v4288
    %v4290 = vpop.f32.mrf.mxu0
    %4291 = vmatprep.mubr.f32.mxu0 0.0
    %4292 = vmatmul.mubr.f32.gmra.mxu0 %v4043
    %v4293 = vpop.f32.mrf.mxu0
    %v4294 = vadd.f32 %v3997, %v4293
    %v4295 = vpop.f32.mrf.mxu0
    %4296 = vmatprep.mubr.f32.mxu0 0.0
    %4297 = vmatmul.mubr.f32.gmra.mxu0 %v4046
    %v4298 = vpop.f32.mrf.mxu0
    %v4299 = vadd.f32 %v3997, %v4298
    %v4300 = vpop.f32.mrf.mxu0
    %4301 = vmatprep.mubr.f32.mxu0 0.0
    %4302 = vmatmul.mubr.f32.gmra.mxu0 %v4049
    %v4303 = vpop.f32.mrf.mxu0
    %v4304 = vadd.f32 %v3997, %v4303
    %v4305 = vpop.f32.mrf.mxu0
    %4306 = vmatprep.mubr.f32.mxu0 0.0
    %4307 = vmatmul.mubr.f32.gmra.mxu0 %v4052
    %v4308 = vpop.f32.mrf.mxu0
    %v4309 = vadd.f32 %v3997, %v4308
    %v4310 = vpop.f32.mrf.mxu0
    %4311 = vmatprep.mubr.f32.mxu0 0.0
    %4312 = vmatmul.mubr.f32.gmra.mxu0 %v4055
    %v4313 = vpop.f32.mrf.mxu0
    %v4314 = vadd.f32 %v3997, %v4313
    %v4315 = vpop.f32.mrf.mxu0
    %4316 = vmatprep.mubr.f32.mxu0 0.0
    %4317 = vmatmul.mubr.f32.gmra.mxu0 %v4058
    %v4318 = vpop.f32.mrf.mxu0
    %v4319 = vadd.f32 %v3997, %v4318
    %v4320 = vpop.f32.mrf.mxu0
    %4321 = vmatprep.mubr.f32.mxu0 0.0
    %4322 = vmatmul.mubr.f32.gmra.mxu0 %v4061
    %v4323 = vpop.f32.mrf.mxu0
    %v4324 = vadd.f32 %v3997, %v4323
    %v4325 = vpop.f32.mrf.mxu0
    %4326 = vmatprep.mubr.f32.mxu0 0.0
    %4327 = vmatmul.mubr.f32.gmra.mxu0 %v4064
    %v4328 = vpop.f32.mrf.mxu0
    %v4329 = vadd.f32 %v3997, %v4328
    %v4330 = vpop.f32.mrf.mxu0
    %4331 = vmatprep.mubr.f32.mxu0 0.0
    %4332 = vmatmul.mubr.f32.gmra.mxu0 %v4067
    %v4333 = vpop.f32.mrf.mxu0
    %v4334 = vadd.f32 %v3997, %v4333
    %v4335 = vpop.f32.mrf.mxu0
    %4336 = vmatprep.mubr.f32.mxu0 0.0
    %4337 = vmatmul.mubr.f32.gmra.mxu0 %v4070
    %v4338 = vpop.f32.mrf.mxu0
    %v4339 = vadd.f32 %v3997, %v4338
    %v4340 = vpop.f32.mrf.mxu0
    %4341 = vmatprep.mubr.f32.mxu0 0.0
    %4342 = vmatmul.mubr.f32.gmra.mxu0 %v4073
    %v4343 = vpop.f32.mrf.mxu0
    %v4344 = vadd.f32 %v3997, %v4343
    %v4345 = vpop.f32.mrf.mxu0
    %4346 = vmatprep.mubr.f32.mxu0 0.0
    %4347 = vmatmul.mubr.f32.gmra.mxu0 %v4076
    %v4348 = vpop.f32.mrf.mxu0
    %v4349 = vadd.f32 %v3997, %v4348
    %v4350 = vpop.f32.mrf.mxu0
    %4351 = vmatprep.mubr.f32.mxu0 0.0
    %4352 = vmatmul.mubr.f32.gmra.mxu0 %v4079
    %v4353 = vpop.f32.mrf.mxu0
    %v4354 = vadd.f32 %v3997, %v4353
    %v4355 = vpop.f32.mrf.mxu0
    %4356 = vmatprep.mubr.f32.mxu0 0.0
    %4357 = vmatmul.mubr.f32.gmra.mxu0 %v4082
    %v4358 = vpop.f32.mrf.mxu0
    %v4359 = vadd.f32 %v3997, %v4358
    %v4360 = vpop.f32.mrf.mxu0
    %4361 = vmatprep.mubr.f32.mxu0 0.0
    %4362 = vmatmul.mubr.f32.gmra.mxu0 %v4085
    %v4363 = vpop.f32.mrf.mxu0
    %v4364 = vadd.f32 %v3997, %v4363
    %v4365 = vpop.f32.mrf.mxu0
    %4366 = vmatprep.mubr.f32.mxu0 0.0
    %4367 = vmatmul.mubr.f32.gmra.mxu0 %v4088
    %v4368 = vpop.f32.mrf.mxu0
    %v4369 = vadd.f32 %v3997, %v4368
    %v4370 = vpop.f32.mrf.mxu0
    %4371 = vmatprep.mubr.f32.mxu0 0.0
    %4372 = vmatmul.mubr.f32.gmra.mxu0 %v4091
    %v4373 = vpop.f32.mrf.mxu0
    %v4374 = vadd.f32 %v3997, %v4373
    %v4375 = vpop.f32.mrf.mxu0
    %4376 = vmatprep.mubr.f32.mxu0 0.0
    %4377 = vmatmul.mubr.f32.gmra.mxu0 %v4094
    %v4378 = vpop.f32.mrf.mxu0
    %v4379 = vadd.f32 %v3997, %v4378
    %v4380 = vpop.f32.mrf.mxu0
    %4381 = vmatprep.mubr.f32.mxu0 0.0
    %4382 = vmatmul.mubr.f32.gmra.mxu0 %v4097
    %v4383 = vpop.f32.mrf.mxu0
    %v4384 = vadd.f32 %v3997, %v4383
    %v4385 = vpop.f32.mrf.mxu0
    %4386 = vmatprep.mubr.f32.mxu0 0.0
    %4387 = vmatmul.mubr.f32.gmra.mxu0 %v4100
    %v4388 = vpop.f32.mrf.mxu0
    %v4389 = vadd.f32 %v3997, %v4388
    %v4390 = vpop.f32.mrf.mxu0
    %4391 = vmatprep.mubr.f32.mxu0 0.0
    %4392 = vmatmul.mubr.f32.gmra.mxu0 %v4103
    %v4393 = vpop.f32.mrf.mxu0
    %v4394 = vadd.f32 %v3997, %v4393
    %v4395 = vpop.f32.mrf.mxu0
    %4396 = vmatprep.mubr.f32.mxu0 0.0
    %4397 = vmatmul.mubr.f32.gmra.mxu0 %v4106
    %v4398 = vpop.f32.mrf.mxu0
    %v4399 = vadd.f32 %v3997, %v4398
    %v4400 = vpop.f32.mrf.mxu0
    %4401 = vmatprep.mubr.f32.mxu0 0.0
    %4402 = vmatmul.mubr.f32.gmra.mxu0 %v4109
    %v4403 = vpop.f32.mrf.mxu0
    %v4404 = vadd.f32 %v3997, %v4403
    %v4405 = vpop.f32.mrf.mxu0
    %4406 = vmatprep.mubr.f32.mxu0 0.0
    %4407 = vmatmul.mubr.f32.gmra.mxu0 %v4112
    %v4408 = vpop.f32.mrf.mxu0
    %v4409 = vadd.f32 %v3997, %v4408
    %v4410 = vpop.f32.mrf.mxu0
    %4411 = vmatprep.mubr.f32.mxu0 0.0
    %4412 = vmatmul.mubr.f32.gmra.mxu0 %v4115
    %v4413 = vpop.f32.mrf.mxu0
    %v4414 = vadd.f32 %v3997, %v4413
    %v4415 = vpop.f32.mrf.mxu0
    %4416 = vmatprep.mubr.f32.mxu0 0.0
    %4417 = vmatmul.mubr.f32.gmra.mxu0 %v4118
    %v4418 = vpop.f32.mrf.mxu0
    %v4419 = vadd.f32 %v3997, %v4418
    %v4420 = vpop.f32.mrf.mxu0
    %4421 = vmatprep.mubr.f32.mxu0 0.0
    %4422 = vmatmul.mubr.f32.gmra.mxu0 %v4121
    %v4423 = vpop.f32.mrf.mxu0
    %v4424 = vadd.f32 %v3997, %v4423
    %v4425 = vpop.f32.mrf.mxu0
    %4426 = vmatprep.mubr.f32.mxu0 0.0
    %4427 = vmatmul.mubr.f32.gmra.mxu0 %v4124
    %v4428 = vpop.f32.mrf.mxu0
    %v4429 = vadd.f32 %v3997, %v4428
    %v4430 = vpop.f32.mrf.mxu0
    %4431 = vmatprep.mubr.f32.mxu0 0.0
    %4432 = vmatmul.mubr.f32.gmra.mxu0 %v4127
    %v4433 = vpop.f32.mrf.mxu0
    %v4434 = vadd.f32 %v3997, %v4433
    %v4435 = vpop.f32.mrf.mxu0
    %4436 = vmatprep.mubr.f32.mxu0 0.0
    %4437 = vmatmul.mubr.f32.gmra.mxu0 %v4130
    %v4438 = vpop.f32.mrf.mxu0
    %v4439 = vadd.f32 %v3997, %v4438
    %v4440 = vpop.f32.mrf.mxu0
    %4441 = vmatprep.mubr.f32.mxu0 0.0
    %4442 = vmatmul.mubr.f32.gmra.mxu0 %v4133
    %v4443 = vpop.f32.mrf.mxu0
    %v4444 = vadd.f32 %v3997, %v4443
    %v4445 = vpop.f32.mrf.mxu0
    %4446 = vmatprep.mubr.f32.mxu0 0.0
    %4447 = vmatmul.mubr.f32.gmra.mxu0 %v4136
    %v4448 = vpop.f32.mrf.mxu0
    %v4449 = vadd.f32 %v3997, %v4448
    %v4450 = vpop.f32.mrf.mxu0
    %4451 = vmatprep.mubr.f32.mxu0 0.0
    %4452 = vmatmul.mubr.f32.gmra.mxu0 %v4139
    %v4453 = vpop.f32.mrf.mxu0
    %v4454 = vadd.f32 %v3997, %v4453
    %v4455 = vpop.f32.mrf.mxu0
    %4456 = vmatprep.mubr.f32.mxu0 0.0
    %4457 = vmatmul.mubr.f32.gmra.mxu0 %v4142
    %v4458 = vpop.f32.mrf.mxu0
    %v4459 = vadd.f32 %v3997, %v4458
    %v4460 = vpop.f32.mrf.mxu0
    %4461 = vmatprep.mubr.f32.mxu0 0.0
    %4462 = vmatmul.mubr.f32.gmra.mxu0 %v4145
    %v4463 = vpop.f32.mrf.mxu0
    %v4464 = vadd.f32 %v3997, %v4463
    %v4465 = vpop.f32.mrf.mxu0
    %4466 = vmatprep.mubr.f32.mxu0 0.0
    %4467 = vmatmul.mubr.f32.gmra.mxu0 %v4148
    %v4468 = vpop.f32.mrf.mxu0
    %v4469 = vadd.f32 %v3997, %v4468
    %v4470 = vpop.f32.mrf.mxu0
    %4471 = vmatprep.mubr.f32.mxu0 0.0
    %4472 = vmatmul.mubr.f32.gmra.mxu0 %v4151
    %v4473 = vpop.f32.mrf.mxu0
    %v4474 = vadd.f32 %v3997, %v4473
    %v4475 = vpop.f32.mrf.mxu0
    %4476 = vdwg.mxu0
    %v4477 = vmax.f32 %v4224, 0.0
    %v4478 = vmax.f32 %v4229, 0.0
    %v4479 = vmax.f32 %v4234, 0.0
    %v4480 = vmax.f32 %v4239, 0.0
    %v4481 = vmax.f32 %v4244, 0.0
    %v4482 = vmax.f32 %v4249, 0.0
    %v4483 = vmax.f32 %v4254, 0.0
    %v4484 = vmax.f32 %v4259, 0.0
    %v4485 = vmax.f32 %v4264, 0.0
    %v4486 = vmax.f32 %v4269, 0.0
    %v4487 = vmax.f32 %v4274, 0.0
    %v4488 = vmax.f32 %v4279, 0.0
    %v4489 = vmax.f32 %v4284, 0.0
    %v4490 = vmax.f32 %v4289, 0.0
    %v4491 = vmax.f32 %v4294, 0.0
    %v4492 = vmax.f32 %v4299, 0.0
    %v4493 = vmax.f32 %v4304, 0.0
    %v4494 = vmax.f32 %v4309, 0.0
    %v4495 = vmax.f32 %v4314, 0.0
    %v4496 = vmax.f32 %v4319, 0.0
    %v4497 = vmax.f32 %v4324, 0.0
    %v4498 = vmax.f32 %v4329, 0.0
    %v4499 = vmax.f32 %v4334, 0.0
    %v4500 = vmax.f32 %v4339, 0.0
    %v4501 = vmax.f32 %v4344, 0.0
    %v4502 = vmax.f32 %v4349, 0.0
    %v4503 = vmax.f32 %v4354, 0.0
    %v4504 = vmax.f32 %v4359, 0.0
    %v4505 = vmax.f32 %v4364, 0.0
    %v4506 = vmax.f32 %v4369, 0.0
    %v4507 = vmax.f32 %v4374, 0.0
    %v4508 = vmax.f32 %v4379, 0.0
    %v4509 = vmax.f32 %v4384, 0.0
    %v4510 = vmax.f32 %v4389, 0.0
    %v4511 = vmax.f32 %v4394, 0.0
    %v4512 = vmax.f32 %v4399, 0.0
    %v4513 = vmax.f32 %v4404, 0.0
    %v4514 = vmax.f32 %v4409, 0.0
    %v4515 = vmax.f32 %v4414, 0.0
    %v4516 = vmax.f32 %v4419, 0.0
    %v4517 = vmax.f32 %v4424, 0.0
    %v4518 = vmax.f32 %v4429, 0.0
    %v4519 = vmax.f32 %v4434, 0.0
    %v4520 = vmax.f32 %v4439, 0.0
    %v4521 = vmax.f32 %v4444, 0.0
    %v4522 = vmax.f32 %v4449, 0.0
    %v4523 = vmax.f32 %v4454, 0.0
    %v4524 = vmax.f32 %v4459, 0.0
    %v4525 = vmax.f32 %v4464, 0.0
    %v4526 = vmax.f32 %v4469, 0.0
    %v4527 = vmax.f32 %v4474, 0.0
    %vm4528 = vcmask 130048
    %4529 = vst.msk [vmem:[#allocation4] sm:$0xff] %vm4528, %v4477
    %4530 = vst.msk [vmem:[#allocation4 + $0x8] sm:$0xff] %vm4528, %v4478
    %4531 = vst.msk [vmem:[#allocation4 + $0x10] sm:$0xff] %vm4528, %v4479
    %4532 = vst.msk [vmem:[#allocation4 + $0x18] sm:$0xff] %vm4528, %v4480
    %4533 = vst.msk [vmem:[#allocation4 + $0x20] sm:$0xff] %vm4528, %v4481
    %4534 = vst.msk [vmem:[#allocation4 + $0x28] sm:$0xff] %vm4528, %v4482
    %4535 = vst.msk [vmem:[#allocation4 + $0x30] sm:$0xff] %vm4528, %v4483
    %4536 = vst.msk [vmem:[#allocation4 + $0x38] sm:$0xff] %vm4528, %v4484
    %4537 = vst.msk [vmem:[#allocation4 + $0x40] sm:$0xff] %vm4528, %v4485
    %4538 = vst.msk [vmem:[#allocation4 + $0x48] sm:$0xff] %vm4528, %v4486
    %4539 = vst.msk [vmem:[#allocation4 + $0x50] sm:$0xff] %vm4528, %v4487
    %4540 = vst.msk [vmem:[#allocation4 + $0x58] sm:$0xff] %vm4528, %v4488
    %4541 = vst.msk [vmem:[#allocation4 + $0x60] sm:$0xff] %vm4528, %v4489
    %4542 = vst.msk [vmem:[#allocation4 + $0x68] sm:$0xff] %vm4528, %v4490
    %4543 = vst.msk [vmem:[#allocation4 + $0x70] sm:$0xff] %vm4528, %v4491
    %4544 = vst.msk [vmem:[#allocation4 + $0x78] sm:$0xff] %vm4528, %v4492
    %4545 = vst.msk [vmem:[#allocation4 + $0x80] sm:$0xff] %vm4528, %v4493
    %4546 = vst.msk [vmem:[#allocation4 + $0x88] sm:$0xff] %vm4528, %v4494
    %4547 = vst.msk [vmem:[#allocation4 + $0x90] sm:$0xff] %vm4528, %v4495
    %4548 = vst.msk [vmem:[#allocation4 + $0x98] sm:$0xff] %vm4528, %v4496
    %4549 = vst.msk [vmem:[#allocation4 + $0xa0] sm:$0xff] %vm4528, %v4497
    %4550 = vst.msk [vmem:[#allocation4 + $0xa8] sm:$0xff] %vm4528, %v4498
    %4551 = vst.msk [vmem:[#allocation4 + $0xb0] sm:$0xff] %vm4528, %v4499
    %4552 = vst.msk [vmem:[#allocation4 + $0xb8] sm:$0xff] %vm4528, %v4500
    %4553 = vst.msk [vmem:[#allocation4 + $0xc0] sm:$0xff] %vm4528, %v4501
    %4554 = vst.msk [vmem:[#allocation4 + $0xc8] sm:$0xff] %vm4528, %v4502
    %4555 = vst.msk [vmem:[#allocation4 + $0xd0] sm:$0xff] %vm4528, %v4503
    %4556 = vst.msk [vmem:[#allocation4 + $0xd8] sm:$0xff] %vm4528, %v4504
    %4557 = vst.msk [vmem:[#allocation4 + $0xe0] sm:$0xff] %vm4528, %v4505
    %4558 = vst.msk [vmem:[#allocation4 + $0xe8] sm:$0xff] %vm4528, %v4506
    %4559 = vst.msk [vmem:[#allocation4 + $0xf0] sm:$0xff] %vm4528, %v4507
    %4560 = vst.msk [vmem:[#allocation4 + $0xf8] sm:$0xff] %vm4528, %v4508
    %4561 = vst.msk [vmem:[#allocation4 + $0x100] sm:$0xff] %vm4528, %v4509
    %4562 = vst.msk [vmem:[#allocation4 + $0x108] sm:$0xff] %vm4528, %v4510
    %4563 = vst.msk [vmem:[#allocation4 + $0x110] sm:$0xff] %vm4528, %v4511
    %4564 = vst.msk [vmem:[#allocation4 + $0x118] sm:$0xff] %vm4528, %v4512
    %4565 = vst.msk [vmem:[#allocation4 + $0x120] sm:$0xff] %vm4528, %v4513
    %4566 = vst.msk [vmem:[#allocation4 + $0x128] sm:$0xff] %vm4528, %v4514
    %4567 = vst.msk [vmem:[#allocation4 + $0x130] sm:$0xff] %vm4528, %v4515
    %4568 = vst.msk [vmem:[#allocation4 + $0x138] sm:$0xff] %vm4528, %v4516
    %4569 = vst.msk [vmem:[#allocation4 + $0x140] sm:$0xff] %vm4528, %v4517
    %4570 = vst.msk [vmem:[#allocation4 + $0x148] sm:$0xff] %vm4528, %v4518
    %4571 = vst.msk [vmem:[#allocation4 + $0x150] sm:$0xff] %vm4528, %v4519
    %4572 = vst.msk [vmem:[#allocation4 + $0x158] sm:$0xff] %vm4528, %v4520
    %4573 = vst.msk [vmem:[#allocation4 + $0x160] sm:$0xff] %vm4528, %v4521
    %4574 = vst.msk [vmem:[#allocation4 + $0x168] sm:$0xff] %vm4528, %v4522
    %4575 = vst.msk [vmem:[#allocation4 + $0x170] sm:$0xff] %vm4528, %v4523
    %4576 = vst.msk [vmem:[#allocation4 + $0x178] sm:$0xff] %vm4528, %v4524
    %4577 = vst.msk [vmem:[#allocation4 + $0x180] sm:$0xff] %vm4528, %v4525
    %4578 = vst.msk [vmem:[#allocation4 + $0x188] sm:$0xff] %vm4528, %v4526
    %4579 = vst.msk [vmem:[#allocation4 + $0x190] sm:$0xff] %vm4528, %v4527
    %v4580 = vld [vmem:[#allocation4] sm:$0xff]
    %v4581 = vld [vmem:[#allocation4 + $0x8] sm:$0xff]
    %v4582 = vld [vmem:[#allocation4 + $0x10] sm:$0xff]
    %v4583 = vld [vmem:[#allocation4 + $0x18] sm:$0xff]
    %v4584 = vld [vmem:[#allocation4 + $0x20] sm:$0xff]
    %v4585 = vld [vmem:[#allocation4 + $0x28] sm:$0xff]
    %v4586 = vld [vmem:[#allocation4 + $0x30] sm:$0xff]
    %v4587 = vld [vmem:[#allocation4 + $0x38] sm:$0xff]
    %v4588 = vld [vmem:[#allocation4 + $0x40] sm:$0xff]
    %v4589 = vld [vmem:[#allocation4 + $0x48] sm:$0xff]
    %v4590 = vld [vmem:[#allocation4 + $0x50] sm:$0xff]
    %v4591 = vld [vmem:[#allocation4 + $0x58] sm:$0xff]
    %v4592 = vld [vmem:[#allocation4 + $0x60] sm:$0xff]
    %v4593 = vld [vmem:[#allocation4 + $0x68] sm:$0xff]
    %v4594 = vld [vmem:[#allocation4 + $0x70] sm:$0xff]
    %v4595 = vld [vmem:[#allocation4 + $0x78] sm:$0xff]
    %v4596 = vld [vmem:[#allocation4 + $0x80] sm:$0xff]
    %v4597 = vld [vmem:[#allocation4 + $0x88] sm:$0xff]
    %v4598 = vld [vmem:[#allocation4 + $0x90] sm:$0xff]
    %v4599 = vld [vmem:[#allocation4 + $0x98] sm:$0xff]
    %v4600 = vld [vmem:[#allocation4 + $0xa0] sm:$0xff]
    %v4601 = vld [vmem:[#allocation4 + $0xa8] sm:$0xff]
    %v4602 = vld [vmem:[#allocation4 + $0xb0] sm:$0xff]
    %v4603 = vld [vmem:[#allocation4 + $0xb8] sm:$0xff]
    %v4604 = vld [vmem:[#allocation4 + $0xc0] sm:$0xff]
    %v4605 = vld [vmem:[#allocation4 + $0xc8] sm:$0xff]
    %v4606 = vld [vmem:[#allocation4 + $0xd0] sm:$0xff]
    %v4607 = vld [vmem:[#allocation4 + $0xd8] sm:$0xff]
    %v4608 = vld [vmem:[#allocation4 + $0xe0] sm:$0xff]
    %v4609 = vld [vmem:[#allocation4 + $0xe8] sm:$0xff]
    %v4610 = vld [vmem:[#allocation4 + $0xf0] sm:$0xff]
    %v4611 = vld [vmem:[#allocation4 + $0xf8] sm:$0xff]
    %v4612 = vld [vmem:[#allocation4 + $0x100] sm:$0xff]
    %v4613 = vld [vmem:[#allocation4 + $0x108] sm:$0xff]
    %v4614 = vld [vmem:[#allocation4 + $0x110] sm:$0xff]
    %v4615 = vld [vmem:[#allocation4 + $0x118] sm:$0xff]
    %v4616 = vld [vmem:[#allocation4 + $0x120] sm:$0xff]
    %v4617 = vld [vmem:[#allocation4 + $0x128] sm:$0xff]
    %v4618 = vld [vmem:[#allocation4 + $0x130] sm:$0xff]
    %v4619 = vld [vmem:[#allocation4 + $0x138] sm:$0xff]
    %v4620 = vld [vmem:[#allocation4 + $0x140] sm:$0xff]
    %v4621 = vld [vmem:[#allocation4 + $0x148] sm:$0xff]
    %v4622 = vld [vmem:[#allocation4 + $0x150] sm:$0xff]
    %v4623 = vld [vmem:[#allocation4 + $0x158] sm:$0xff]
    %v4624 = vld [vmem:[#allocation4 + $0x160] sm:$0xff]
    %v4625 = vld [vmem:[#allocation4 + $0x168] sm:$0xff]
    %v4626 = vld [vmem:[#allocation4 + $0x170] sm:$0xff]
    %v4627 = vld [vmem:[#allocation4 + $0x178] sm:$0xff]
    %v4628 = vld [vmem:[#allocation4 + $0x180] sm:$0xff]
    %v4629 = vld [vmem:[#allocation4 + $0x1] sm:$0xff]
    %v4630 = vld [vmem:[#allocation4 + $0x9] sm:$0xff]
    %v4631 = vld [vmem:[#allocation4 + $0x11] sm:$0xff]
    %v4632 = vld [vmem:[#allocation4 + $0x19] sm:$0xff]
    %v4633 = vld [vmem:[#allocation4 + $0x21] sm:$0xff]
    %v4634 = vld [vmem:[#allocation4 + $0x29] sm:$0xff]
    %v4635 = vld [vmem:[#allocation4 + $0x31] sm:$0xff]
    %v4636 = vld [vmem:[#allocation4 + $0x39] sm:$0xff]
    %v4637 = vld [vmem:[#allocation4 + $0x41] sm:$0xff]
    %v4638 = vld [vmem:[#allocation4 + $0x49] sm:$0xff]
    %v4639 = vld [vmem:[#allocation4 + $0x51] sm:$0xff]
    %v4640 = vld [vmem:[#allocation4 + $0x59] sm:$0xff]
    %v4641 = vld [vmem:[#allocation4 + $0x61] sm:$0xff]
    %v4642 = vld [vmem:[#allocation4 + $0x69] sm:$0xff]
    %v4643 = vld [vmem:[#allocation4 + $0x71] sm:$0xff]
    %v4644 = vld [vmem:[#allocation4 + $0x79] sm:$0xff]
    %v4645 = vld [vmem:[#allocation4 + $0x81] sm:$0xff]
    %v4646 = vld [vmem:[#allocation4 + $0x89] sm:$0xff]
    %v4647 = vld [vmem:[#allocation4 + $0x91] sm:$0xff]
    %v4648 = vld [vmem:[#allocation4 + $0x99] sm:$0xff]
    %v4649 = vld [vmem:[#allocation4 + $0xa1] sm:$0xff]
    %v4650 = vld [vmem:[#allocation4 + $0xa9] sm:$0xff]
    %v4651 = vld [vmem:[#allocation4 + $0xb1] sm:$0xff]
    %v4652 = vld [vmem:[#allocation4 + $0xb9] sm:$0xff]
    %v4653 = vld [vmem:[#allocation4 + $0xc1] sm:$0xff]
    %v4654 = vld [vmem:[#allocation4 + $0xc9] sm:$0xff]
    %v4655 = vld [vmem:[#allocation4 + $0xd1] sm:$0xff]
    %v4656 = vld [vmem:[#allocation4 + $0xd9] sm:$0xff]
    %v4657 = vld [vmem:[#allocation4 + $0xe1] sm:$0xff]
    %v4658 = vld [vmem:[#allocation4 + $0xe9] sm:$0xff]
    %v4659 = vld [vmem:[#allocation4 + $0xf1] sm:$0xff]
    %v4660 = vld [vmem:[#allocation4 + $0xf9] sm:$0xff]
    %v4661 = vld [vmem:[#allocation4 + $0x101] sm:$0xff]
    %v4662 = vld [vmem:[#allocation4 + $0x109] sm:$0xff]
    %v4663 = vld [vmem:[#allocation4 + $0x111] sm:$0xff]
    %v4664 = vld [vmem:[#allocation4 + $0x119] sm:$0xff]
    %v4665 = vld [vmem:[#allocation4 + $0x121] sm:$0xff]
    %v4666 = vld [vmem:[#allocation4 + $0x129] sm:$0xff]
    %v4667 = vld [vmem:[#allocation4 + $0x131] sm:$0xff]
    %v4668 = vld [vmem:[#allocation4 + $0x139] sm:$0xff]
    %v4669 = vld [vmem:[#allocation4 + $0x141] sm:$0xff]
    %v4670 = vld [vmem:[#allocation4 + $0x149] sm:$0xff]
    %v4671 = vld [vmem:[#allocation4 + $0x151] sm:$0xff]
    %v4672 = vld [vmem:[#allocation4 + $0x159] sm:$0xff]
    %v4673 = vld [vmem:[#allocation4 + $0x161] sm:$0xff]
    %v4674 = vld [vmem:[#allocation4 + $0x169] sm:$0xff]
    %v4675 = vld [vmem:[#allocation4 + $0x171] sm:$0xff]
    %v4676 = vld [vmem:[#allocation4 + $0x179] sm:$0xff]
    %v4677 = vld [vmem:[#allocation4 + $0x181] sm:$0xff]
    %v4678 = vmax.f32 %v4580, %v4629
    %v4679 = vmax.f32 %v4581, %v4630
    %v4680 = vmax.f32 %v4582, %v4631
    %v4681 = vmax.f32 %v4583, %v4632
    %v4682 = vmax.f32 %v4584, %v4633
    %v4683 = vmax.f32 %v4585, %v4634
    %v4684 = vmax.f32 %v4586, %v4635
    %v4685 = vmax.f32 %v4587, %v4636
    %v4686 = vmax.f32 %v4588, %v4637
    %v4687 = vmax.f32 %v4589, %v4638
    %v4688 = vmax.f32 %v4590, %v4639
    %v4689 = vmax.f32 %v4591, %v4640
    %v4690 = vmax.f32 %v4592, %v4641
    %v4691 = vmax.f32 %v4593, %v4642
    %v4692 = vmax.f32 %v4594, %v4643
    %v4693 = vmax.f32 %v4595, %v4644
    %v4694 = vmax.f32 %v4596, %v4645
    %v4695 = vmax.f32 %v4597, %v4646
    %v4696 = vmax.f32 %v4598, %v4647
    %v4697 = vmax.f32 %v4599, %v4648
    %v4698 = vmax.f32 %v4600, %v4649
    %v4699 = vmax.f32 %v4601, %v4650
    %v4700 = vmax.f32 %v4602, %v4651
    %v4701 = vmax.f32 %v4603, %v4652
    %v4702 = vmax.f32 %v4604, %v4653
    %v4703 = vmax.f32 %v4605, %v4654
    %v4704 = vmax.f32 %v4606, %v4655
    %v4705 = vmax.f32 %v4607, %v4656
    %v4706 = vmax.f32 %v4608, %v4657
    %v4707 = vmax.f32 %v4609, %v4658
    %v4708 = vmax.f32 %v4610, %v4659
    %v4709 = vmax.f32 %v4611, %v4660
    %v4710 = vmax.f32 %v4612, %v4661
    %v4711 = vmax.f32 %v4613, %v4662
    %v4712 = vmax.f32 %v4614, %v4663
    %v4713 = vmax.f32 %v4615, %v4664
    %v4714 = vmax.f32 %v4616, %v4665
    %v4715 = vmax.f32 %v4617, %v4666
    %v4716 = vmax.f32 %v4618, %v4667
    %v4717 = vmax.f32 %v4619, %v4668
    %v4718 = vmax.f32 %v4620, %v4669
    %v4719 = vmax.f32 %v4621, %v4670
    %v4720 = vmax.f32 %v4622, %v4671
    %v4721 = vmax.f32 %v4623, %v4672
    %v4722 = vmax.f32 %v4624, %v4673
    %v4723 = vmax.f32 %v4625, %v4674
    %v4724 = vmax.f32 %v4626, %v4675
    %v4725 = vmax.f32 %v4627, %v4676
    %v4726 = vmax.f32 %v4628, %v4677
    %v4727 = vld [vmem:[#allocation4 + $0xf] sm:$0xff]
    %v4728 = vld [vmem:[#allocation4 + $0x17] sm:$0xff]
    %v4729 = vld [vmem:[#allocation4 + $0x1f] sm:$0xff]
    %v4730 = vld [vmem:[#allocation4 + $0x27] sm:$0xff]
    %v4731 = vld [vmem:[#allocation4 + $0x2f] sm:$0xff]
    %v4732 = vld [vmem:[#allocation4 + $0x37] sm:$0xff]
    %v4733 = vld [vmem:[#allocation4 + $0x3f] sm:$0xff]
    %v4734 = vld [vmem:[#allocation4 + $0x47] sm:$0xff]
    %v4735 = vld [vmem:[#allocation4 + $0x4f] sm:$0xff]
    %v4736 = vld [vmem:[#allocation4 + $0x57] sm:$0xff]
    %v4737 = vld [vmem:[#allocation4 + $0x5f] sm:$0xff]
    %v4738 = vld [vmem:[#allocation4 + $0x67] sm:$0xff]
    %v4739 = vld [vmem:[#allocation4 + $0x6f] sm:$0xff]
    %v4740 = vld [vmem:[#allocation4 + $0x77] sm:$0xff]
    %v4741 = vld [vmem:[#allocation4 + $0x7f] sm:$0xff]
    %v4742 = vld [vmem:[#allocation4 + $0x87] sm:$0xff]
    %v4743 = vld [vmem:[#allocation4 + $0x8f] sm:$0xff]
    %v4744 = vld [vmem:[#allocation4 + $0x97] sm:$0xff]
    %v4745 = vld [vmem:[#allocation4 + $0x9f] sm:$0xff]
    %v4746 = vld [vmem:[#allocation4 + $0xa7] sm:$0xff]
    %v4747 = vld [vmem:[#allocation4 + $0xaf] sm:$0xff]
    %v4748 = vld [vmem:[#allocation4 + $0xb7] sm:$0xff]
    %v4749 = vld [vmem:[#allocation4 + $0xbf] sm:$0xff]
    %v4750 = vld [vmem:[#allocation4 + $0xc7] sm:$0xff]
    %v4751 = vld [vmem:[#allocation4 + $0xcf] sm:$0xff]
    %v4752 = vld [vmem:[#allocation4 + $0xd7] sm:$0xff]
    %v4753 = vld [vmem:[#allocation4 + $0xdf] sm:$0xff]
    %v4754 = vld [vmem:[#allocation4 + $0xe7] sm:$0xff]
    %v4755 = vld [vmem:[#allocation4 + $0xef] sm:$0xff]
    %v4756 = vld [vmem:[#allocation4 + $0xf7] sm:$0xff]
    %v4757 = vld [vmem:[#allocation4 + $0xff] sm:$0xff]
    %v4758 = vld [vmem:[#allocation4 + $0x107] sm:$0xff]
    %v4759 = vld [vmem:[#allocation4 + $0x10f] sm:$0xff]
    %v4760 = vld [vmem:[#allocation4 + $0x117] sm:$0xff]
    %v4761 = vld [vmem:[#allocation4 + $0x11f] sm:$0xff]
    %v4762 = vld [vmem:[#allocation4 + $0x127] sm:$0xff]
    %v4763 = vld [vmem:[#allocation4 + $0x12f] sm:$0xff]
    %v4764 = vld [vmem:[#allocation4 + $0x137] sm:$0xff]
    %v4765 = vld [vmem:[#allocation4 + $0x13f] sm:$0xff]
    %v4766 = vld [vmem:[#allocation4 + $0x147] sm:$0xff]
    %v4767 = vld [vmem:[#allocation4 + $0x14f] sm:$0xff]
    %v4768 = vld [vmem:[#allocation4 + $0x157] sm:$0xff]
    %v4769 = vld [vmem:[#allocation4 + $0x15f] sm:$0xff]
    %v4770 = vld [vmem:[#allocation4 + $0x167] sm:$0xff]
    %v4771 = vld [vmem:[#allocation4 + $0x16f] sm:$0xff]
    %v4772 = vld [vmem:[#allocation4 + $0x177] sm:$0xff]
    %v4773 = vld [vmem:[#allocation4 + $0x17f] sm:$0xff]
    %v4774 = vld [vmem:[#allocation4 + $0x187] sm:$0xff]
    %v4775 = vld [vmem:[#allocation4 + $0x18f] sm:$0xff]
    %v4776 = vld [vmem:[#allocation4 + $0x188] sm:$0xff]
    %v4777 = vld [vmem:[#allocation4 + $0x190] sm:$0xff]
    %v4778 = vmax.f32 %v4727, %v4582
    %v4779 = vmax.f32 %v4728, %v4583
    %v4780 = vmax.f32 %v4729, %v4584
    %v4781 = vmax.f32 %v4730, %v4585
    %v4782 = vmax.f32 %v4731, %v4586
    %v4783 = vmax.f32 %v4732, %v4587
    %v4784 = vmax.f32 %v4733, %v4588
    %v4785 = vmax.f32 %v4734, %v4589
    %v4786 = vmax.f32 %v4735, %v4590
    %v4787 = vmax.f32 %v4736, %v4591
    %v4788 = vmax.f32 %v4737, %v4592
    %v4789 = vmax.f32 %v4738, %v4593
    %v4790 = vmax.f32 %v4739, %v4594
    %v4791 = vmax.f32 %v4740, %v4595
    %v4792 = vmax.f32 %v4741, %v4596
    %v4793 = vmax.f32 %v4742, %v4597
    %v4794 = vmax.f32 %v4743, %v4598
    %v4795 = vmax.f32 %v4744, %v4599
    %v4796 = vmax.f32 %v4745, %v4600
    %v4797 = vmax.f32 %v4746, %v4601
    %v4798 = vmax.f32 %v4747, %v4602
    %v4799 = vmax.f32 %v4748, %v4603
    %v4800 = vmax.f32 %v4749, %v4604
    %v4801 = vmax.f32 %v4750, %v4605
    %v4802 = vmax.f32 %v4751, %v4606
    %v4803 = vmax.f32 %v4752, %v4607
    %v4804 = vmax.f32 %v4753, %v4608
    %v4805 = vmax.f32 %v4754, %v4609
    %v4806 = vmax.f32 %v4755, %v4610
    %v4807 = vmax.f32 %v4756, %v4611
    %v4808 = vmax.f32 %v4757, %v4612
    %v4809 = vmax.f32 %v4758, %v4613
    %v4810 = vmax.f32 %v4759, %v4614
    %v4811 = vmax.f32 %v4760, %v4615
    %v4812 = vmax.f32 %v4761, %v4616
    %v4813 = vmax.f32 %v4762, %v4617
    %v4814 = vmax.f32 %v4763, %v4618
    %v4815 = vmax.f32 %v4764, %v4619
    %v4816 = vmax.f32 %v4765, %v4620
    %v4817 = vmax.f32 %v4766, %v4621
    %v4818 = vmax.f32 %v4767, %v4622
    %v4819 = vmax.f32 %v4768, %v4623
    %v4820 = vmax.f32 %v4769, %v4624
    %v4821 = vmax.f32 %v4770, %v4625
    %v4822 = vmax.f32 %v4771, %v4626
    %v4823 = vmax.f32 %v4772, %v4627
    %v4824 = vmax.f32 %v4773, %v4628
    %v4825 = vmax.f32 %v4774, %v4776
    %v4826 = vmax.f32 %v4775, %v4777
    %v4827 = vmax.f32 %v4678, %v4778
    %v4828 = vmax.f32 %v4679, %v4779
    %v4829 = vmax.f32 %v4680, %v4780
    %v4830 = vmax.f32 %v4681, %v4781
    %v4831 = vmax.f32 %v4682, %v4782
    %v4832 = vmax.f32 %v4683, %v4783
    %v4833 = vmax.f32 %v4684, %v4784
    %v4834 = vmax.f32 %v4685, %v4785
    %v4835 = vmax.f32 %v4686, %v4786
    %v4836 = vmax.f32 %v4687, %v4787
    %v4837 = vmax.f32 %v4688, %v4788
    %v4838 = vmax.f32 %v4689, %v4789
    %v4839 = vmax.f32 %v4690, %v4790
    %v4840 = vmax.f32 %v4691, %v4791
    %v4841 = vmax.f32 %v4692, %v4792
    %v4842 = vmax.f32 %v4693, %v4793
    %v4843 = vmax.f32 %v4694, %v4794
    %v4844 = vmax.f32 %v4695, %v4795
    %v4845 = vmax.f32 %v4696, %v4796
    %v4846 = vmax.f32 %v4697, %v4797
    %v4847 = vmax.f32 %v4698, %v4798
    %v4848 = vmax.f32 %v4699, %v4799
    %v4849 = vmax.f32 %v4700, %v4800
    %v4850 = vmax.f32 %v4701, %v4801
    %v4851 = vmax.f32 %v4702, %v4802
    %v4852 = vmax.f32 %v4703, %v4803
    %v4853 = vmax.f32 %v4704, %v4804
    %v4854 = vmax.f32 %v4705, %v4805
    %v4855 = vmax.f32 %v4706, %v4806
    %v4856 = vmax.f32 %v4707, %v4807
    %v4857 = vmax.f32 %v4708, %v4808
    %v4858 = vmax.f32 %v4709, %v4809
    %v4859 = vmax.f32 %v4710, %v4810
    %v4860 = vmax.f32 %v4711, %v4811
    %v4861 = vmax.f32 %v4712, %v4812
    %v4862 = vmax.f32 %v4713, %v4813
    %v4863 = vmax.f32 %v4714, %v4814
    %v4864 = vmax.f32 %v4715, %v4815
    %v4865 = vmax.f32 %v4716, %v4816
    %v4866 = vmax.f32 %v4717, %v4817
    %v4867 = vmax.f32 %v4718, %v4818
    %v4868 = vmax.f32 %v4719, %v4819
    %v4869 = vmax.f32 %v4720, %v4820
    %v4870 = vmax.f32 %v4721, %v4821
    %v4871 = vmax.f32 %v4722, %v4822
    %v4872 = vmax.f32 %v4723, %v4823
    %v4873 = vmax.f32 %v4724, %v4824
    %v4874 = vmax.f32 %v4725, %v4825
    %v4875 = vmax.f32 %v4726, %v4826
    %4876 = vst.msk [vmem:[#allocation5] sm:$0xff] %vm4528, %v4827
    %4877 = vst.msk [vmem:[#allocation5 + $0x8] sm:$0xff] %vm4528, %v4828
    %4878 = vst.msk [vmem:[#allocation5 + $0x10] sm:$0xff] %vm4528, %v4829
    %4879 = vst.msk [vmem:[#allocation5 + $0x18] sm:$0xff] %vm4528, %v4830
    %4880 = vst.msk [vmem:[#allocation5 + $0x20] sm:$0xff] %vm4528, %v4831
    %4881 = vst.msk [vmem:[#allocation5 + $0x28] sm:$0xff] %vm4528, %v4832
    %4882 = vst.msk [vmem:[#allocation5 + $0x30] sm:$0xff] %vm4528, %v4833
    %4883 = vst.msk [vmem:[#allocation5 + $0x38] sm:$0xff] %vm4528, %v4834
    %4884 = vst.msk [vmem:[#allocation5 + $0x40] sm:$0xff] %vm4528, %v4835
    %4885 = vst.msk [vmem:[#allocation5 + $0x48] sm:$0xff] %vm4528, %v4836
    %4886 = vst.msk [vmem:[#allocation5 + $0x50] sm:$0xff] %vm4528, %v4837
    %4887 = vst.msk [vmem:[#allocation5 + $0x58] sm:$0xff] %vm4528, %v4838
    %4888 = vst.msk [vmem:[#allocation5 + $0x60] sm:$0xff] %vm4528, %v4839
    %4889 = vst.msk [vmem:[#allocation5 + $0x68] sm:$0xff] %vm4528, %v4840
    %4890 = vst.msk [vmem:[#allocation5 + $0x70] sm:$0xff] %vm4528, %v4841
    %4891 = vst.msk [vmem:[#allocation5 + $0x78] sm:$0xff] %vm4528, %v4842
    %4892 = vst.msk [vmem:[#allocation5 + $0x80] sm:$0xff] %vm4528, %v4843
    %4893 = vst.msk [vmem:[#allocation5 + $0x88] sm:$0xff] %vm4528, %v4844
    %4894 = vst.msk [vmem:[#allocation5 + $0x90] sm:$0xff] %vm4528, %v4845
    %4895 = vst.msk [vmem:[#allocation5 + $0x98] sm:$0xff] %vm4528, %v4846
    %4896 = vst.msk [vmem:[#allocation5 + $0xa0] sm:$0xff] %vm4528, %v4847
    %4897 = vst.msk [vmem:[#allocation5 + $0xa8] sm:$0xff] %vm4528, %v4848
    %4898 = vst.msk [vmem:[#allocation5 + $0xb0] sm:$0xff] %vm4528, %v4849
    %4899 = vst.msk [vmem:[#allocation5 + $0xb8] sm:$0xff] %vm4528, %v4850
    %4900 = vst.msk [vmem:[#allocation5 + $0xc0] sm:$0xff] %vm4528, %v4851
    %4901 = vst.msk [vmem:[#allocation5 + $0xc8] sm:$0xff] %vm4528, %v4852
    %4902 = vst.msk [vmem:[#allocation5 + $0xd0] sm:$0xff] %vm4528, %v4853
    %4903 = vst.msk [vmem:[#allocation5 + $0xd8] sm:$0xff] %vm4528, %v4854
    %4904 = vst.msk [vmem:[#allocation5 + $0xe0] sm:$0xff] %vm4528, %v4855
    %4905 = vst.msk [vmem:[#allocation5 + $0xe8] sm:$0xff] %vm4528, %v4856
    %4906 = vst.msk [vmem:[#allocation5 + $0xf0] sm:$0xff] %vm4528, %v4857
    %4907 = vst.msk [vmem:[#allocation5 + $0xf8] sm:$0xff] %vm4528, %v4858
    %4908 = vst.msk [vmem:[#allocation5 + $0x100] sm:$0xff] %vm4528, %v4859
    %4909 = vst.msk [vmem:[#allocation5 + $0x108] sm:$0xff] %vm4528, %v4860
    %4910 = vst.msk [vmem:[#allocation5 + $0x110] sm:$0xff] %vm4528, %v4861
    %4911 = vst.msk [vmem:[#allocation5 + $0x118] sm:$0xff] %vm4528, %v4862
    %4912 = vst.msk [vmem:[#allocation5 + $0x120] sm:$0xff] %vm4528, %v4863
    %4913 = vst.msk [vmem:[#allocation5 + $0x128] sm:$0xff] %vm4528, %v4864
    %4914 = vst.msk [vmem:[#allocation5 + $0x130] sm:$0xff] %vm4528, %v4865
    %4915 = vst.msk [vmem:[#allocation5 + $0x138] sm:$0xff] %vm4528, %v4866
    %4916 = vst.msk [vmem:[#allocation5 + $0x140] sm:$0xff] %vm4528, %v4867
    %4917 = vst.msk [vmem:[#allocation5 + $0x148] sm:$0xff] %vm4528, %v4868
    %4918 = vst.msk [vmem:[#allocation5 + $0x150] sm:$0xff] %vm4528, %v4869
    %4919 = vst.msk [vmem:[#allocation5 + $0x158] sm:$0xff] %vm4528, %v4870
    %4920 = vst.msk [vmem:[#allocation5 + $0x160] sm:$0xff] %vm4528, %v4871
    %4921 = vst.msk [vmem:[#allocation5 + $0x168] sm:$0xff] %vm4528, %v4872
    %4922 = vst.msk [vmem:[#allocation5 + $0x170] sm:$0xff] %vm4528, %v4873
    %4923 = vst.msk [vmem:[#allocation5 + $0x178] sm:$0xff] %vm4528, %v4874
    %4924 = vst.msk [vmem:[#allocation5 + $0x180] sm:$0xff] %vm4528, %v4875
    %4925 = vst [vmem:[#allocation6] sm:$0xff] 0.0
    %4926 = vst [vmem:[#allocation6 + $0x8] sm:$0xff] 0.0
    %4927 = vst [vmem:[#allocation6 + $0x10] sm:$0xff] 0.0
    %4928 = vst [vmem:[#allocation6 + $0x18] sm:$0xff] 0.0
    %vm4929 = vcmask 523264
    %4930 = vst.msk [vmem:[#allocation6 + $0x20] sm:$0xff] %vm4929, 0.0
    %v4931 = vld [vmem:[#allocation5] sm:$0x1]
    %vm4932 = vcmask 122880
    %4933 = vst.msk [vmem:[#allocation6] sm:$0x1] %vm4932, %v4931
    %v4934 = vld [vmem:[#allocation5 + $0x2] sm:$0x1]
    %4936 = vrot.lane.b32.xlu0 %v4934, 16
    %v4937 = vpop.permute.xlu0 %4936
    %vm4939 = vcmask 254080
    %4940 = vst.msk [vmem:[#allocation6] sm:$0x1] %vm4939, %v4937
    %v4941 = vld [vmem:[#allocation5 + $0x4] sm:$0x1]
    %4943 = vrot.lane.b32.xlu0 %v4941, 32
    %v4944 = vpop.permute.xlu0 %4943
    %vm4946 = vcmask 385280
    %4947 = vst.msk [vmem:[#allocation6] sm:$0x1] %vm4946, %v4944
    %v4948 = vld [vmem:[#allocation5 + $0x6] sm:$0x1]
    %4950 = vrot.lane.b32.xlu0 %v4948, 48
    %v4951 = vpop.permute.xlu0 %4950
    %vm4953 = vcmask 516480
    %4954 = vst.msk [vmem:[#allocation6] sm:$0x1] %vm4953, %v4951
    %v4955 = vld [vmem:[#allocation5 + $0x8] sm:$0x1]
    %4957 = vrot.lane.b32.xlu0 %v4955, 64
    %v4958 = vpop.permute.xlu0 %4957
    %vm4960 = vcmask 647680
    %4961 = vst.msk [vmem:[#allocation6] sm:$0x1] %vm4960, %v4958
    %v4962 = vld [vmem:[#allocation5 + $0xa] sm:$0x1]
    %4964 = vrot.lane.b32.xlu0 %v4962, 80
    %v4965 = vpop.permute.xlu0 %4964
    %vm4967 = vcmask 778880
    %4968 = vst.msk [vmem:[#allocation6] sm:$0x1] %vm4967, %v4965
    %v4969 = vld [vmem:[#allocation5 + $0x1e] sm:$0x1]
    %4971 = vrot.lane.b32.xlu0 %v4969, 96
    %v4972 = vpop.permute.xlu0 %4971
    %vm4974 = vcmask 910080
    %4975 = vst.msk [vmem:[#allocation6] sm:$0x1] %vm4974, %v4972
    %v4976 = vld [vmem:[#allocation5 + $0x20] sm:$0x1]
    %4978 = vrot.lane.b32.xlu0 %v4976, 112
    %v4979 = vpop.permute.xlu0 %4978
    %vm4981 = vcmask 1041280
    %4982 = vst.msk [vmem:[#allocation6] sm:$0x1] %vm4981, %v4979
    %v4983 = vld [vmem:[#allocation5 + $0x22] sm:$0x1]
    %4984 = vst.msk [vmem:[#allocation6 + $0x8] sm:$0x1] %vm4932, %v4983
    %v4985 = vld [vmem:[#allocation5 + $0x24] sm:$0x1]
    %4987 = vrot.lane.b32.xlu0 %v4985, 16
    %v4988 = vpop.permute.xlu0 %4987
    %4990 = vst.msk [vmem:[#allocation6 + $0x8] sm:$0x1] %vm4939, %v4988
    %v4991 = vld [vmem:[#allocation5 + $0x26] sm:$0x1]
    %4993 = vrot.lane.b32.xlu0 %v4991, 32
    %v4994 = vpop.permute.xlu0 %4993
    %4996 = vst.msk [vmem:[#allocation6 + $0x8] sm:$0x1] %vm4946, %v4994
    %v4997 = vld [vmem:[#allocation5 + $0x28] sm:$0x1]
    %4999 = vrot.lane.b32.xlu0 %v4997, 48
    %v5000 = vpop.permute.xlu0 %4999
    %5002 = vst.msk [vmem:[#allocation6 + $0x8] sm:$0x1] %vm4953, %v5000
    %v5003 = vld [vmem:[#allocation5 + $0x3c] sm:$0x1]
    %5005 = vrot.lane.b32.xlu0 %v5003, 64
    %v5006 = vpop.permute.xlu0 %5005
    %5008 = vst.msk [vmem:[#allocation6 + $0x8] sm:$0x1] %vm4960, %v5006
    %v5009 = vld [vmem:[#allocation5 + $0x3e] sm:$0x1]
    %5011 = vrot.lane.b32.xlu0 %v5009, 80
    %v5012 = vpop.permute.xlu0 %5011
    %5014 = vst.msk [vmem:[#allocation6 + $0x8] sm:$0x1] %vm4967, %v5012
    %v5015 = vld [vmem:[#allocation5 + $0x40] sm:$0x1]
    %5017 = vrot.lane.b32.xlu0 %v5015, 96
    %v5018 = vpop.permute.xlu0 %5017
    %5020 = vst.msk [vmem:[#allocation6 + $0x8] sm:$0x1] %vm4974, %v5018
    %v5021 = vld [vmem:[#allocation5 + $0x42] sm:$0x1]
    %5023 = vrot.lane.b32.xlu0 %v5021, 112
    %v5024 = vpop.permute.xlu0 %5023
    %5026 = vst.msk [vmem:[#allocation6 + $0x8] sm:$0x1] %vm4981, %v5024
    %v5027 = vld [vmem:[#allocation5 + $0x44] sm:$0x1]
    %5028 = vst.msk [vmem:[#allocation6 + $0x10] sm:$0x1] %vm4932, %v5027
    %v5029 = vld [vmem:[#allocation5 + $0x46] sm:$0x1]
    %5031 = vrot.lane.b32.xlu0 %v5029, 16
    %v5032 = vpop.permute.xlu0 %5031
    %5034 = vst.msk [vmem:[#allocation6 + $0x10] sm:$0x1] %vm4939, %v5032
    %v5035 = vld [vmem:[#allocation5 + $0x5a] sm:$0x1]
    %5037 = vrot.lane.b32.xlu0 %v5035, 32
    %v5038 = vpop.permute.xlu0 %5037
    %5040 = vst.msk [vmem:[#allocation6 + $0x10] sm:$0x1] %vm4946, %v5038
    %v5041 = vld [vmem:[#allocation5 + $0x5c] sm:$0x1]
    %5043 = vrot.lane.b32.xlu0 %v5041, 48
    %v5044 = vpop.permute.xlu0 %5043
    %5046 = vst.msk [vmem:[#allocation6 + $0x10] sm:$0x1] %vm4953, %v5044
    %v5047 = vld [vmem:[#allocation5 + $0x5e] sm:$0x1]
    %5049 = vrot.lane.b32.xlu0 %v5047, 64
    %v5050 = vpop.permute.xlu0 %5049
    %5052 = vst.msk [vmem:[#allocation6 + $0x10] sm:$0x1] %vm4960, %v5050
    %v5053 = vld [vmem:[#allocation5 + $0x60] sm:$0x1]
    %5055 = vrot.lane.b32.xlu0 %v5053, 80
    %v5056 = vpop.permute.xlu0 %5055
    %5058 = vst.msk [vmem:[#allocation6 + $0x10] sm:$0x1] %vm4967, %v5056
    %v5059 = vld [vmem:[#allocation5 + $0x62] sm:$0x1]
    %5061 = vrot.lane.b32.xlu0 %v5059, 96
    %v5062 = vpop.permute.xlu0 %5061
    %5064 = vst.msk [vmem:[#allocation6 + $0x10] sm:$0x1] %vm4974, %v5062
    %v5065 = vld [vmem:[#allocation5 + $0x64] sm:$0x1]
    %5067 = vrot.lane.b32.xlu0 %v5065, 112
    %v5068 = vpop.permute.xlu0 %5067
    %5070 = vst.msk [vmem:[#allocation6 + $0x10] sm:$0x1] %vm4981, %v5068
    %v5071 = vld [vmem:[#allocation5 + $0x78] sm:$0x1]
    %5072 = vst.msk [vmem:[#allocation6 + $0x18] sm:$0x1] %vm4932, %v5071
    %v5073 = vld [vmem:[#allocation5 + $0x7a] sm:$0x1]
    %5075 = vrot.lane.b32.xlu0 %v5073, 16
    %v5076 = vpop.permute.xlu0 %5075
    %5078 = vst.msk [vmem:[#allocation6 + $0x18] sm:$0x1] %vm4939, %v5076
    %v5079 = vld [vmem:[#allocation5 + $0x7c] sm:$0x1]
    %5081 = vrot.lane.b32.xlu0 %v5079, 32
    %v5082 = vpop.permute.xlu0 %5081
    %5084 = vst.msk [vmem:[#allocation6 + $0x18] sm:$0x1] %vm4946, %v5082
    %v5085 = vld [vmem:[#allocation5 + $0x7e] sm:$0x1]
    %5087 = vrot.lane.b32.xlu0 %v5085, 48
    %v5088 = vpop.permute.xlu0 %5087
    %5090 = vst.msk [vmem:[#allocation6 + $0x18] sm:$0x1] %vm4953, %v5088
    %v5091 = vld [vmem:[#allocation5 + $0x80] sm:$0x1]
    %5093 = vrot.lane.b32.xlu0 %v5091, 64
    %v5094 = vpop.permute.xlu0 %5093
    %5096 = vst.msk [vmem:[#allocation6 + $0x18] sm:$0x1] %vm4960, %v5094
    %v5097 = vld [vmem:[#allocation5 + $0x82] sm:$0x1]
    %5099 = vrot.lane.b32.xlu0 %v5097, 80
    %v5100 = vpop.permute.xlu0 %5099
    %5102 = vst.msk [vmem:[#allocation6 + $0x18] sm:$0x1] %vm4967, %v5100
    %v5103 = vld [vmem:[#allocation5 + $0x96] sm:$0x1]
    %5105 = vrot.lane.b32.xlu0 %v5103, 96
    %v5106 = vpop.permute.xlu0 %5105
    %5108 = vst.msk [vmem:[#allocation6 + $0x18] sm:$0x1] %vm4974, %v5106
    %v5109 = vld [vmem:[#allocation5 + $0x98] sm:$0x1]
    %5111 = vrot.lane.b32.xlu0 %v5109, 112
    %v5112 = vpop.permute.xlu0 %5111
    %5114 = vst.msk [vmem:[#allocation6 + $0x18] sm:$0x1] %vm4981, %v5112
    %v5115 = vld [vmem:[#allocation5 + $0x9a] sm:$0x1]
    %5116 = vst.msk [vmem:[#allocation6 + $0x20] sm:$0x1] %vm4932, %v5115
    %v5117 = vld [vmem:[#allocation5 + $0x9c] sm:$0x1]
    %5119 = vrot.lane.b32.xlu0 %v5117, 16
    %v5120 = vpop.permute.xlu0 %5119
    %5122 = vst.msk [vmem:[#allocation6 + $0x20] sm:$0x1] %vm4939, %v5120
    %v5123 = vld [vmem:[#allocation5 + $0x9e] sm:$0x1]
    %5125 = vrot.lane.b32.xlu0 %v5123, 32
    %v5126 = vpop.permute.xlu0 %5125
    %5128 = vst.msk [vmem:[#allocation6 + $0x20] sm:$0x1] %vm4946, %v5126
    %v5129 = vld [vmem:[#allocation5 + $0xa0] sm:$0x1]
    %5131 = vrot.lane.b32.xlu0 %v5129, 48
    %v5132 = vpop.permute.xlu0 %5131
    %5134 = vst.msk [vmem:[#allocation6 + $0x20] sm:$0x1] %vm4953, %v5132
    %v5135 = vld [vmem:[#allocation5 + $0xe1] sm:$0x1]
    %5136 = vst.msk [vmem:[#allocation6 + $0x1] sm:$0x1] %vm4932, %v5135
    %v5137 = vld [vmem:[#allocation5 + $0xe3] sm:$0x1]
    %5139 = vrot.lane.b32.xlu0 %v5137, 16
    %v5140 = vpop.permute.xlu0 %5139
    %5142 = vst.msk [vmem:[#allocation6 + $0x1] sm:$0x1] %vm4939, %v5140
    %v5143 = vld [vmem:[#allocation5 + $0xe5] sm:$0x1]
    %5145 = vrot.lane.b32.xlu0 %v5143, 32
    %v5146 = vpop.permute.xlu0 %5145
    %5148 = vst.msk [vmem:[#allocation6 + $0x1] sm:$0x1] %vm4946, %v5146
    %v5149 = vld [vmem:[#allocation5 + $0xe7] sm:$0x1]
    %5151 = vrot.lane.b32.xlu0 %v5149, 48
    %v5152 = vpop.permute.xlu0 %5151
    %5154 = vst.msk [vmem:[#allocation6 + $0x1] sm:$0x1] %vm4953, %v5152
    %v5155 = vld [vmem:[#allocation5 + $0xe9] sm:$0x1]
    %5157 = vrot.lane.b32.xlu0 %v5155, 64
    %v5158 = vpop.permute.xlu0 %5157
    %5160 = vst.msk [vmem:[#allocation6 + $0x1] sm:$0x1] %vm4960, %v5158
    %v5161 = vld [vmem:[#allocation5 + $0xeb] sm:$0x1]
    %5163 = vrot.lane.b32.xlu0 %v5161, 80
    %v5164 = vpop.permute.xlu0 %5163
    %5166 = vst.msk [vmem:[#allocation6 + $0x1] sm:$0x1] %vm4967, %v5164
    %v5167 = vld [vmem:[#allocation5 + $0xff] sm:$0x1]
    %5169 = vrot.lane.b32.xlu0 %v5167, 96
    %v5170 = vpop.permute.xlu0 %5169
    %5172 = vst.msk [vmem:[#allocation6 + $0x1] sm:$0x1] %vm4974, %v5170
    %v5173 = vld [vmem:[#allocation5 + $0x101] sm:$0x1]
    %5175 = vrot.lane.b32.xlu0 %v5173, 112
    %v5176 = vpop.permute.xlu0 %5175
    %5178 = vst.msk [vmem:[#allocation6 + $0x1] sm:$0x1] %vm4981, %v5176
    %v5179 = vld [vmem:[#allocation5 + $0x103] sm:$0x1]
    %5180 = vst.msk [vmem:[#allocation6 + $0x9] sm:$0x1] %vm4932, %v5179
    %v5181 = vld [vmem:[#allocation5 + $0x105] sm:$0x1]
    %5183 = vrot.lane.b32.xlu0 %v5181, 16
    %v5184 = vpop.permute.xlu0 %5183
    %5186 = vst.msk [vmem:[#allocation6 + $0x9] sm:$0x1] %vm4939, %v5184
    %v5187 = vld [vmem:[#allocation5 + $0x107] sm:$0x1]
    %5189 = vrot.lane.b32.xlu0 %v5187, 32
    %v5190 = vpop.permute.xlu0 %5189
    %5192 = vst.msk [vmem:[#allocation6 + $0x9] sm:$0x1] %vm4946, %v5190
    %v5193 = vld [vmem:[#allocation5 + $0x109] sm:$0x1]
    %5195 = vrot.lane.b32.xlu0 %v5193, 48
    %v5196 = vpop.permute.xlu0 %5195
    %5198 = vst.msk [vmem:[#allocation6 + $0x9] sm:$0x1] %vm4953, %v5196
    %v5199 = vld [vmem:[#allocation5 + $0x11d] sm:$0x1]
    %5201 = vrot.lane.b32.xlu0 %v5199, 64
    %v5202 = vpop.permute.xlu0 %5201
    %5204 = vst.msk [vmem:[#allocation6 + $0x9] sm:$0x1] %vm4960, %v5202
    %v5205 = vld [vmem:[#allocation5 + $0x11f] sm:$0x1]
    %5207 = vrot.lane.b32.xlu0 %v5205, 80
    %v5208 = vpop.permute.xlu0 %5207
    %5210 = vst.msk [vmem:[#allocation6 + $0x9] sm:$0x1] %vm4967, %v5208
    %v5211 = vld [vmem:[#allocation5 + $0x121] sm:$0x1]
    %5213 = vrot.lane.b32.xlu0 %v5211, 96
    %v5214 = vpop.permute.xlu0 %5213
    %5216 = vst.msk [vmem:[#allocation6 + $0x9] sm:$0x1] %vm4974, %v5214
    %v5217 = vld [vmem:[#allocation5 + $0x123] sm:$0x1]
    %5219 = vrot.lane.b32.xlu0 %v5217, 112
    %v5220 = vpop.permute.xlu0 %5219
    %5222 = vst.msk [vmem:[#allocation6 + $0x9] sm:$0x1] %vm4981, %v5220
    %v5223 = vld [vmem:[#allocation5 + $0x125] sm:$0x1]
    %5224 = vst.msk [vmem:[#allocation6 + $0x11] sm:$0x1] %vm4932, %v5223
    %v5225 = vld [vmem:[#allocation5 + $0x127] sm:$0x1]
    %5227 = vrot.lane.b32.xlu0 %v5225, 16
    %v5228 = vpop.permute.xlu0 %5227
    %5230 = vst.msk [vmem:[#allocation6 + $0x11] sm:$0x1] %vm4939, %v5228
    %v5231 = vld [vmem:[#allocation5 + $0x13b] sm:$0x1]
    %5233 = vrot.lane.b32.xlu0 %v5231, 32
    %v5234 = vpop.permute.xlu0 %5233
    %5236 = vst.msk [vmem:[#allocation6 + $0x11] sm:$0x1] %vm4946, %v5234
    %v5237 = vld [vmem:[#allocation5 + $0x13d] sm:$0x1]
    %5239 = vrot.lane.b32.xlu0 %v5237, 48
    %v5240 = vpop.permute.xlu0 %5239
    %5242 = vst.msk [vmem:[#allocation6 + $0x11] sm:$0x1] %vm4953, %v5240
    %v5243 = vld [vmem:[#allocation5 + $0x13f] sm:$0x1]
    %5245 = vrot.lane.b32.xlu0 %v5243, 64
    %v5246 = vpop.permute.xlu0 %5245
    %5248 = vst.msk [vmem:[#allocation6 + $0x11] sm:$0x1] %vm4960, %v5246
    %v5249 = vld [vmem:[#allocation5 + $0x141] sm:$0x1]
    %5251 = vrot.lane.b32.xlu0 %v5249, 80
    %v5252 = vpop.permute.xlu0 %5251
    %5254 = vst.msk [vmem:[#allocation6 + $0x11] sm:$0x1] %vm4967, %v5252
    %v5255 = vld [vmem:[#allocation5 + $0x143] sm:$0x1]
    %5257 = vrot.lane.b32.xlu0 %v5255, 96
    %v5258 = vpop.permute.xlu0 %5257
    %5260 = vst.msk [vmem:[#allocation6 + $0x11] sm:$0x1] %vm4974, %v5258
    %v5261 = vld [vmem:[#allocation5 + $0x145] sm:$0x1]
    %5263 = vrot.lane.b32.xlu0 %v5261, 112
    %v5264 = vpop.permute.xlu0 %5263
    %5266 = vst.msk [vmem:[#allocation6 + $0x11] sm:$0x1] %vm4981, %v5264
    %v5267 = vld [vmem:[#allocation5 + $0x159] sm:$0x1]
    %5268 = vst.msk [vmem:[#allocation6 + $0x19] sm:$0x1] %vm4932, %v5267
    %v5269 = vld [vmem:[#allocation5 + $0x15b] sm:$0x1]
    %5271 = vrot.lane.b32.xlu0 %v5269, 16
    %v5272 = vpop.permute.xlu0 %5271
    %5274 = vst.msk [vmem:[#allocation6 + $0x19] sm:$0x1] %vm4939, %v5272
    %v5275 = vld [vmem:[#allocation5 + $0x15d] sm:$0x1]
    %5277 = vrot.lane.b32.xlu0 %v5275, 32
    %v5278 = vpop.permute.xlu0 %5277
    %5280 = vst.msk [vmem:[#allocation6 + $0x19] sm:$0x1] %vm4946, %v5278
    %v5281 = vld [vmem:[#allocation5 + $0x15f] sm:$0x1]
    %5283 = vrot.lane.b32.xlu0 %v5281, 48
    %v5284 = vpop.permute.xlu0 %5283
    %5286 = vst.msk [vmem:[#allocation6 + $0x19] sm:$0x1] %vm4953, %v5284
    %v5287 = vld [vmem:[#allocation5 + $0x161] sm:$0x1]
    %5289 = vrot.lane.b32.xlu0 %v5287, 64
    %v5290 = vpop.permute.xlu0 %5289
    %5292 = vst.msk [vmem:[#allocation6 + $0x19] sm:$0x1] %vm4960, %v5290
    %v5293 = vld [vmem:[#allocation5 + $0x163] sm:$0x1]
    %5295 = vrot.lane.b32.xlu0 %v5293, 80
    %v5296 = vpop.permute.xlu0 %5295
    %5298 = vst.msk [vmem:[#allocation6 + $0x19] sm:$0x1] %vm4967, %v5296
    %v5299 = vld [vmem:[#allocation5 + $0x177] sm:$0x1]
    %5301 = vrot.lane.b32.xlu0 %v5299, 96
    %v5302 = vpop.permute.xlu0 %5301
    %5304 = vst.msk [vmem:[#allocation6 + $0x19] sm:$0x1] %vm4974, %v5302
    %v5305 = vld [vmem:[#allocation5 + $0x179] sm:$0x1]
    %5307 = vrot.lane.b32.xlu0 %v5305, 112
    %v5308 = vpop.permute.xlu0 %5307
    %5310 = vst.msk [vmem:[#allocation6 + $0x19] sm:$0x1] %vm4981, %v5308
    %v5311 = vld [vmem:[#allocation5 + $0x17b] sm:$0x1]
    %5312 = vst.msk [vmem:[#allocation6 + $0x21] sm:$0x1] %vm4932, %v5311
    %v5313 = vld [vmem:[#allocation5 + $0x17d] sm:$0x1]
    %5315 = vrot.lane.b32.xlu0 %v5313, 16
    %v5316 = vpop.permute.xlu0 %5315
    %5318 = vst.msk [vmem:[#allocation6 + $0x21] sm:$0x1] %vm4939, %v5316
    %v5319 = vld [vmem:[#allocation5 + $0x17f] sm:$0x1]
    %5321 = vrot.lane.b32.xlu0 %v5319, 32
    %v5322 = vpop.permute.xlu0 %5321
    %5324 = vst.msk [vmem:[#allocation6 + $0x21] sm:$0x1] %vm4946, %v5322
    %v5325 = vld [vmem:[#allocation5 + $0x181] sm:$0x1]
    %5327 = vrot.lane.b32.xlu0 %v5325, 48
    %v5328 = vpop.permute.xlu0 %5327
    %5330 = vst.msk [vmem:[#allocation6 + $0x21] sm:$0x1] %vm4953, %v5328
    %v5331 = vld [vmem:[#allocation6] sm:$0xff]
    %v5332 = vld [vmem:[#allocation6 + $0x8] sm:$0xff]
    %v5333 = vld [vmem:[#allocation6 + $0x10] sm:$0xff]
    %v5334 = vld [vmem:[#allocation6 + $0x18] sm:$0xff]
    %v5335 = vld [vmem:[#allocation6 + $0x20] sm:$0xff]
    %v5336 = vld [vmem:[%s5] sm:$0xff]
    %v5337 = vld [vmem:[%s5 + $0x8] sm:$0xff]
    %v5338 = vld [vmem:[%s5 + $0x10] sm:$0xff]
    %v5339 = vld [vmem:[%s5 + $0x18] sm:$0xff]
    %v5340 = vld [vmem:[%s5 + $0x20] sm:$0xff]
    %v5341 = vld [vmem:[%s5 + $0x28] sm:$0xff]
    %v5342 = vld [vmem:[%s5 + $0x30] sm:$0xff]
    %v5343 = vld [vmem:[%s5 + $0x38] sm:$0xff]
    %v5344 = vld [vmem:[%s5 + $0x40] sm:$0xff]
    %v5345 = vld [vmem:[%s5 + $0x48] sm:$0xff]
    %v5346 = vld [vmem:[%s5 + $0x50] sm:$0xff]
    %v5347 = vld [vmem:[%s5 + $0x58] sm:$0xff]
    %v5348 = vld [vmem:[%s5 + $0x60] sm:$0xff]
    %v5349 = vld [vmem:[%s5 + $0x68] sm:$0xff]
    %v5350 = vld [vmem:[%s5 + $0x70] sm:$0xff]
    %v5351 = vld [vmem:[%s5 + $0x78] sm:$0xff]
    %v5352 = vld [vmem:[%s5 + $0x80] sm:$0xff]
    %v5353 = vld [vmem:[%s5 + $0x88] sm:$0xff]
    %v5354 = vld [vmem:[%s5 + $0x90] sm:$0xff]
    %v5355 = vld [vmem:[%s5 + $0x98] sm:$0xff]
    %v5356 = vld [vmem:[%s5 + $0xa0] sm:$0xff]
    %v5357 = vld [vmem:[%s5 + $0xa8] sm:$0xff]
    %v5358 = vld [vmem:[%s5 + $0xb0] sm:$0xff]
    %v5359 = vld [vmem:[%s5 + $0xb8] sm:$0xff]
    %v5360 = vld [vmem:[%s5 + $0xc0] sm:$0xff]
    %v5361 = vld [vmem:[%s5 + $0xc8] sm:$0xff]
    %v5362 = vld [vmem:[%s5 + $0xd0] sm:$0xff]
    %v5363 = vld [vmem:[%s5 + $0xd8] sm:$0xff]
    %v5364 = vld [vmem:[%s5 + $0xe0] sm:$0xff]
    %v5365 = vld [vmem:[%s5 + $0xe8] sm:$0xff]
    %v5366 = vld [vmem:[%s5 + $0xf0] sm:$0xff]
    %v5367 = vld [vmem:[%s5 + $0xf8] sm:$0xff]
    %v5368 = vld [vmem:[%s5 + $0x100] sm:$0xff]
    %v5369 = vld [vmem:[%s5 + $0x108] sm:$0xff]
    %v5370 = vld [vmem:[%s5 + $0x110] sm:$0xff]
    %v5371 = vld [vmem:[%s5 + $0x118] sm:$0xff]
    %v5372 = vld [vmem:[%s5 + $0x120] sm:$0xff]
    %v5373 = vld [vmem:[%s5 + $0x128] sm:$0xff]
    %v5374 = vld [vmem:[%s5 + $0x130] sm:$0xff]
    %v5375 = vld [vmem:[%s5 + $0x138] sm:$0xff]
    %v5376 = vld [vmem:[%s5 + $0x140] sm:$0xff]
    %v5377 = vld [vmem:[%s5 + $0x148] sm:$0xff]
    %v5378 = vld [vmem:[%s5 + $0x150] sm:$0xff]
    %v5379 = vld [vmem:[%s5 + $0x158] sm:$0xff]
    %v5380 = vld [vmem:[%s5 + $0x160] sm:$0xff]
    %v5381 = vld [vmem:[%s5 + $0x168] sm:$0xff]
    %v5382 = vld [vmem:[%s5 + $0x170] sm:$0xff]
    %v5383 = vld [vmem:[%s5 + $0x178] sm:$0xff]
    %v5384 = vld [vmem:[%s5 + $0x180] sm:$0xff]
    %v5385 = vld [vmem:[%s5 + $0x188] sm:$0xff]
    %v5386 = vld [vmem:[%s5 + $0x190] sm:$0xff]
    %v5387 = vld [vmem:[%s5 + $0x198] sm:$0xff]
    %v5388 = vld [vmem:[%s5 + $0x1a0] sm:$0xff]
    %v5389 = vld [vmem:[%s5 + $0x1a8] sm:$0xff]
    %v5390 = vld [vmem:[%s5 + $0x1b0] sm:$0xff]
    %v5391 = vld [vmem:[%s5 + $0x1b8] sm:$0xff]
    %v5392 = vld [vmem:[%s5 + $0x1c0] sm:$0xff]
    %v5393 = vld [vmem:[%s5 + $0x1c8] sm:$0xff]
    %v5394 = vld [vmem:[%s5 + $0x1d0] sm:$0xff]
    %v5395 = vld [vmem:[%s5 + $0x1d8] sm:$0xff]
    %v5396 = vld [vmem:[%s5 + $0x1e0] sm:$0xff]
    %v5397 = vld [vmem:[%s5 + $0x1e8] sm:$0xff]
    %v5398 = vld [vmem:[%s5 + $0x1f0] sm:$0xff]
    %v5399 = vld [vmem:[%s5 + $0x1f8] sm:$0xff]
    %v5400 = vld [vmem:[%s5 + $0x200] sm:$0xff]
    %v5401 = vld [vmem:[%s5 + $0x208] sm:$0xff]
    %v5402 = vld [vmem:[%s5 + $0x210] sm:$0xff]
    %v5403 = vld [vmem:[%s5 + $0x218] sm:$0xff]
    %v5404 = vld [vmem:[%s5 + $0x220] sm:$0xff]
    %v5405 = vld [vmem:[%s5 + $0x228] sm:$0xff]
    %v5406 = vld [vmem:[%s5 + $0x230] sm:$0xff]
    %v5407 = vld [vmem:[%s5 + $0x238] sm:$0xff]
    %v5408 = vld [vmem:[%s6] sm:$0x1]
    %v5410 = vlaneseq
    %v5411 = vshrl.u32 %v5410, 7
    %v5412 = vsub.s32 0, %v5411
    %v5413 = vrot.slane %v5408, %v5412
    %v5416 = vsel %vm4929, %v5335, 0
    %5418 = vmatprep.subr.mxu0 0.0
    %5419 = vmatpush1.msra.mxu0 %v5351
    %5420 = vmatprep.subr.mxu0 0.0
    %5421 = vmatpush1.msra.mxu0 %v5350
    %5422 = vmatprep.subr.mxu0 0.0
    %5423 = vmatpush1.msra.mxu0 %v5349
    %5424 = vmatprep.subr.mxu0 0.0
    %5425 = vmatpush1.msra.mxu0 %v5348
    %5426 = vmatprep.subr.mxu0 0.0
    %5427 = vmatpush1.msra.mxu0 %v5347
    %5428 = vmatprep.subr.mxu0 0.0
    %5429 = vmatpush1.msra.mxu0 %v5346
    %5430 = vmatprep.subr.mxu0 0.0
    %5431 = vmatpush1.msra.mxu0 %v5345
    %5432 = vmatprep.subr.mxu0 0.0
    %5433 = vmatpush1.msra.mxu0 %v5344
    %5434 = vmatprep.subr.mxu0 0.0
    %5435 = vmatpush1.msra.mxu0 %v5343
    %5436 = vmatprep.subr.mxu0 0.0
    %5437 = vmatpush1.msra.mxu0 %v5342
    %5438 = vmatprep.subr.mxu0 0.0
    %5439 = vmatpush1.msra.mxu0 %v5341
    %5440 = vmatprep.subr.mxu0 0.0
    %5441 = vmatpush1.msra.mxu0 %v5340
    %5442 = vmatprep.subr.mxu0 0.0
    %5443 = vmatpush1.msra.mxu0 %v5339
    %5444 = vmatprep.subr.mxu0 0.0
    %5445 = vmatpush1.msra.mxu0 %v5338
    %5446 = vmatprep.subr.mxu0 0.0
    %5447 = vmatpush1.msra.mxu0 %v5337
    %5448 = vmatprep.subr.mxu0 0.0
    %5449 = vmatpush1.msra.mxu0 %v5336
    %5450 = vmatprep.subr.mxu0 0.0
    %5451 = vmatpush2.msra.mxu0 %v5367
    %5452 = vmatprep.subr.mxu0 0.0
    %5453 = vmatpush2.msra.mxu0 %v5366
    %5454 = vmatprep.subr.mxu0 0.0
    %5455 = vmatpush2.msra.mxu0 %v5365
    %5456 = vmatprep.subr.mxu0 0.0
    %5457 = vmatpush2.msra.mxu0 %v5364
    %5458 = vmatprep.subr.mxu0 0.0
    %5459 = vmatpush2.msra.mxu0 %v5363
    %5460 = vmatprep.subr.mxu0 0.0
    %5461 = vmatpush2.msra.mxu0 %v5362
    %5462 = vmatprep.subr.mxu0 0.0
    %5463 = vmatpush2.msra.mxu0 %v5361
    %5464 = vmatprep.subr.mxu0 0.0
    %5465 = vmatpush2.msra.mxu0 %v5360
    %5466 = vmatprep.subr.mxu0 0.0
    %5467 = vmatpush2.msra.mxu0 %v5359
    %5468 = vmatprep.subr.mxu0 0.0
    %5469 = vmatpush2.msra.mxu0 %v5358
    %5470 = vmatprep.subr.mxu0 0.0
    %5471 = vmatpush2.msra.mxu0 %v5357
    %5472 = vmatprep.subr.mxu0 0.0
    %5473 = vmatpush2.msra.mxu0 %v5356
    %5474 = vmatprep.subr.mxu0 0.0
    %5475 = vmatpush2.msra.mxu0 %v5355
    %5476 = vmatprep.subr.mxu0 0.0
    %5477 = vmatpush2.msra.mxu0 %v5354
    %5478 = vmatprep.subr.mxu0 0.0
    %5479 = vmatpush2.msra.mxu0 %v5353
    %5480 = vmatprep.subr.mxu0 0.0
    %5481 = vmatpush2.msra.mxu0 %v5352
    %5482 = vmatprep.mubr.f32.mxu0 %v5332
    %5483 = vmatmul.mubr.f32.gmra.mxu0 %v5331
    %v5484 = vpop.f32.mrf.mxu0
    %v5485 = vadd.f32 %v5413, %v5484
    %v5486 = vpop.f32.mrf.mxu0
    %5487 = vdwg.mxu0
    %5488 = vmatprep.subr.mxu0 0.0
    %5489 = vmatpush1.msra.mxu0 %v5383
    %5490 = vmatprep.subr.mxu0 0.0
    %5491 = vmatpush1.msra.mxu0 %v5382
    %5492 = vmatprep.subr.mxu0 0.0
    %5493 = vmatpush1.msra.mxu0 %v5381
    %5494 = vmatprep.subr.mxu0 0.0
    %5495 = vmatpush1.msra.mxu0 %v5380
    %5496 = vmatprep.subr.mxu0 0.0
    %5497 = vmatpush1.msra.mxu0 %v5379
    %5498 = vmatprep.subr.mxu0 0.0
    %5499 = vmatpush1.msra.mxu0 %v5378
    %5500 = vmatprep.subr.mxu0 0.0
    %5501 = vmatpush1.msra.mxu0 %v5377
    %5502 = vmatprep.subr.mxu0 0.0
    %5503 = vmatpush1.msra.mxu0 %v5376
    %5504 = vmatprep.subr.mxu0 0.0
    %5505 = vmatpush1.msra.mxu0 %v5375
    %5506 = vmatprep.subr.mxu0 0.0
    %5507 = vmatpush1.msra.mxu0 %v5374
    %5508 = vmatprep.subr.mxu0 0.0
    %5509 = vmatpush1.msra.mxu0 %v5373
    %5510 = vmatprep.subr.mxu0 0.0
    %5511 = vmatpush1.msra.mxu0 %v5372
    %5512 = vmatprep.subr.mxu0 0.0
    %5513 = vmatpush1.msra.mxu0 %v5371
    %5514 = vmatprep.subr.mxu0 0.0
    %5515 = vmatpush1.msra.mxu0 %v5370
    %5516 = vmatprep.subr.mxu0 0.0
    %5517 = vmatpush1.msra.mxu0 %v5369
    %5518 = vmatprep.subr.mxu0 0.0
    %5519 = vmatpush1.msra.mxu0 %v5368
    %5520 = vmatprep.subr.mxu0 0.0
    %5521 = vmatpush2.msra.mxu0 %v5399
    %5522 = vmatprep.subr.mxu0 0.0
    %5523 = vmatpush2.msra.mxu0 %v5398
    %5524 = vmatprep.subr.mxu0 0.0
    %5525 = vmatpush2.msra.mxu0 %v5397
    %5526 = vmatprep.subr.mxu0 0.0
    %5527 = vmatpush2.msra.mxu0 %v5396
    %5528 = vmatprep.subr.mxu0 0.0
    %5529 = vmatpush2.msra.mxu0 %v5395
    %5530 = vmatprep.subr.mxu0 0.0
    %5531 = vmatpush2.msra.mxu0 %v5394
    %5532 = vmatprep.subr.mxu0 0.0
    %5533 = vmatpush2.msra.mxu0 %v5393
    %5534 = vmatprep.subr.mxu0 0.0
    %5535 = vmatpush2.msra.mxu0 %v5392
    %5536 = vmatprep.subr.mxu0 0.0
    %5537 = vmatpush2.msra.mxu0 %v5391
    %5538 = vmatprep.subr.mxu0 0.0
    %5539 = vmatpush2.msra.mxu0 %v5390
    %5540 = vmatprep.subr.mxu0 0.0
    %5541 = vmatpush2.msra.mxu0 %v5389
    %5542 = vmatprep.subr.mxu0 0.0
    %5543 = vmatpush2.msra.mxu0 %v5388
    %5544 = vmatprep.subr.mxu0 0.0
    %5545 = vmatpush2.msra.mxu0 %v5387
    %5546 = vmatprep.subr.mxu0 0.0
    %5547 = vmatpush2.msra.mxu0 %v5386
    %5548 = vmatprep.subr.mxu0 0.0
    %5549 = vmatpush2.msra.mxu0 %v5385
    %5550 = vmatprep.subr.mxu0 0.0
    %5551 = vmatpush2.msra.mxu0 %v5384
    %5552 = vmatprep.mubr.f32.mxu0 %v5334
    %5553 = vmatmul.mubr.f32.gmra.mxu0 %v5333
    %v5554 = vpop.f32.mrf.mxu0
    %v5555 = vadd.f32 %v5485, %v5554
    %v5556 = vpop.f32.mrf.mxu0
    %5557 = vdwg.mxu0
    %5558 = vmatprep.subr.mxu0 0.0
    %5559 = vmatpush1.msra.mxu0 0.0
    %5560 = vmatprep.subr.mxu0 0.0
    %5561 = vmatpush1.msra.mxu0 0.0
    %5562 = vmatprep.subr.mxu0 0.0
    %5563 = vmatpush1.msra.mxu0 0.0
    %5564 = vmatprep.subr.mxu0 0.0
    %5565 = vmatpush1.msra.mxu0 0.0
    %5566 = vmatprep.subr.mxu0 0.0
    %5567 = vmatpush1.msra.mxu0 0.0
    %5568 = vmatprep.subr.mxu0 0.0
    %5569 = vmatpush1.msra.mxu0 0.0
    %5570 = vmatprep.subr.mxu0 0.0
    %5571 = vmatpush1.msra.mxu0 0.0
    %5572 = vmatprep.subr.mxu0 0.0
    %5573 = vmatpush1.msra.mxu0 0.0
    %5574 = vmatprep.subr.mxu0 0.0
    %5575 = vmatpush1.msra.mxu0 %v5407
    %5576 = vmatprep.subr.mxu0 0.0
    %5577 = vmatpush1.msra.mxu0 %v5406
    %5578 = vmatprep.subr.mxu0 0.0
    %5579 = vmatpush1.msra.mxu0 %v5405
    %5580 = vmatprep.subr.mxu0 0.0
    %5581 = vmatpush1.msra.mxu0 %v5404
    %5582 = vmatprep.subr.mxu0 0.0
    %5583 = vmatpush1.msra.mxu0 %v5403
    %5584 = vmatprep.subr.mxu0 0.0
    %5585 = vmatpush1.msra.mxu0 %v5402
    %5586 = vmatprep.subr.mxu0 0.0
    %5587 = vmatpush1.msra.mxu0 %v5401
    %5588 = vmatprep.subr.mxu0 0.0
    %5589 = vmatpush1.msra.mxu0 %v5400
    %5590 = vmatprep.subr.mxu0 0.0
    %5591 = vmatpush2.msra.mxu0 0.0
    %5592 = vmatprep.subr.mxu0 0.0
    %5593 = vmatpush2.msra.mxu0 0.0
    %5594 = vmatprep.subr.mxu0 0.0
    %5595 = vmatpush2.msra.mxu0 0.0
    %5596 = vmatprep.subr.mxu0 0.0
    %5597 = vmatpush2.msra.mxu0 0.0
    %5598 = vmatprep.subr.mxu0 0.0
    %5599 = vmatpush2.msra.mxu0 0.0
    %5600 = vmatprep.subr.mxu0 0.0
    %5601 = vmatpush2.msra.mxu0 0.0
    %5602 = vmatprep.subr.mxu0 0.0
    %5603 = vmatpush2.msra.mxu0 0.0
    %5604 = vmatprep.subr.mxu0 0.0
    %5605 = vmatpush2.msra.mxu0 0.0
    %5606 = vmatprep.subr.mxu0 0.0
    %5607 = vmatpush2.msra.mxu0 0.0
    %5608 = vmatprep.subr.mxu0 0.0
    %5609 = vmatpush2.msra.mxu0 0.0
    %5610 = vmatprep.subr.mxu0 0.0
    %5611 = vmatpush2.msra.mxu0 0.0
    %5612 = vmatprep.subr.mxu0 0.0
    %5613 = vmatpush2.msra.mxu0 0.0
    %5614 = vmatprep.subr.mxu0 0.0
    %5615 = vmatpush2.msra.mxu0 0.0
    %5616 = vmatprep.subr.mxu0 0.0
    %5617 = vmatpush2.msra.mxu0 0.0
    %5618 = vmatprep.subr.mxu0 0.0
    %5619 = vmatpush2.msra.mxu0 0.0
    %5620 = vmatprep.subr.mxu0 0.0
    %5621 = vmatpush2.msra.mxu0 0.0
    %5622 = vmatprep.mubr.f32.mxu0 0.0
    %5623 = vmatmul.mubr.f32.gmra.mxu0 %v5416
    %v5624 = vpop.f32.mrf.mxu0
    %v5625 = vadd.f32 %v5555, %v5624
    %v5626 = vpop.f32.mrf.mxu0
    %5627 = vdwg.mxu0
    %v5628 = vmax.f32 %v5625, 0.0
    %v5629 = vld [vmem:[%s7] sm:$0xff]
    %v5630 = vld [vmem:[%s7 + $0x8] sm:$0xff]
    %v5631 = vld [vmem:[%s7 + $0x10] sm:$0xff]
    %v5632 = vld [vmem:[%s7 + $0x18] sm:$0xff]
    %v5633 = vld [vmem:[%s7 + $0x20] sm:$0xff]
    %v5634 = vld [vmem:[%s7 + $0x28] sm:$0xff]
    %v5635 = vld [vmem:[%s7 + $0x30] sm:$0xff]
    %v5636 = vld [vmem:[%s7 + $0x38] sm:$0xff]
    %v5637 = vld [vmem:[%s7 + $0x40] sm:$0xff]
    %v5638 = vld [vmem:[%s7 + $0x48] sm:$0xff]
    %v5639 = vld [vmem:[%s7 + $0x50] sm:$0xff]
    %v5640 = vld [vmem:[%s7 + $0x58] sm:$0xff]
    %v5641 = vld [vmem:[%s7 + $0x60] sm:$0xff]
    %v5642 = vld [vmem:[%s7 + $0x68] sm:$0xff]
    %v5643 = vld [vmem:[%s7 + $0x70] sm:$0xff]
    %v5644 = vld [vmem:[%s8] sm:$0x1]
    %v5646 = vlaneseq
    %v5647 = vshrl.u32 %v5646, 7
    %v5648 = vsub.s32 0, %v5647
    %v5649 = vrot.slane %v5644, %v5648
    %vm5651 = vcmask 982016
    %v5653 = vsel %vm5651, %v5628, 0
    %5655 = vmatprep.subr.mxu0 0.0
    %5656 = vmatpush1.msra.mxu0 0.0
    %5657 = vmatprep.subr.mxu0 0.0
    %5658 = vmatpush1.msra.mxu0 %v5643
    %5659 = vmatprep.subr.mxu0 0.0
    %5660 = vmatpush1.msra.mxu0 %v5642
    %5661 = vmatprep.subr.mxu0 0.0
    %5662 = vmatpush1.msra.mxu0 %v5641
    %5663 = vmatprep.subr.mxu0 0.0
    %5664 = vmatpush1.msra.mxu0 %v5640
    %5665 = vmatprep.subr.mxu0 0.0
    %5666 = vmatpush1.msra.mxu0 %v5639
    %5667 = vmatprep.subr.mxu0 0.0
    %5668 = vmatpush1.msra.mxu0 %v5638
    %5669 = vmatprep.subr.mxu0 0.0
    %5670 = vmatpush1.msra.mxu0 %v5637
    %5671 = vmatprep.subr.mxu0 0.0
    %5672 = vmatpush1.msra.mxu0 %v5636
    %5673 = vmatprep.subr.mxu0 0.0
    %5674 = vmatpush1.msra.mxu0 %v5635
    %5675 = vmatprep.subr.mxu0 0.0
    %5676 = vmatpush1.msra.mxu0 %v5634
    %5677 = vmatprep.subr.mxu0 0.0
    %5678 = vmatpush1.msra.mxu0 %v5633
    %5679 = vmatprep.subr.mxu0 0.0
    %5680 = vmatpush1.msra.mxu0 %v5632
    %5681 = vmatprep.subr.mxu0 0.0
    %5682 = vmatpush1.msra.mxu0 %v5631
    %5683 = vmatprep.subr.mxu0 0.0
    %5684 = vmatpush1.msra.mxu0 %v5630
    %5685 = vmatprep.subr.mxu0 0.0
    %5686 = vmatpush1.msra.mxu0 %v5629
    %5687 = vmatprep.subr.mxu0 0.0
    %5688 = vmatpush2.msra.mxu0 0.0
    %5689 = vmatprep.subr.mxu0 0.0
    %5690 = vmatpush2.msra.mxu0 0.0
    %5691 = vmatprep.subr.mxu0 0.0
    %5692 = vmatpush2.msra.mxu0 0.0
    %5693 = vmatprep.subr.mxu0 0.0
    %5694 = vmatpush2.msra.mxu0 0.0
    %5695 = vmatprep.subr.mxu0 0.0
    %5696 = vmatpush2.msra.mxu0 0.0
    %5697 = vmatprep.subr.mxu0 0.0
    %5698 = vmatpush2.msra.mxu0 0.0
    %5699 = vmatprep.subr.mxu0 0.0
    %5700 = vmatpush2.msra.mxu0 0.0
    %5701 = vmatprep.subr.mxu0 0.0
    %5702 = vmatpush2.msra.mxu0 0.0
    %5703 = vmatprep.subr.mxu0 0.0
    %5704 = vmatpush2.msra.mxu0 0.0
    %5705 = vmatprep.subr.mxu0 0.0
    %5706 = vmatpush2.msra.mxu0 0.0
    %5707 = vmatprep.subr.mxu0 0.0
    %5708 = vmatpush2.msra.mxu0 0.0
    %5709 = vmatprep.subr.mxu0 0.0
    %5710 = vmatpush2.msra.mxu0 0.0
    %5711 = vmatprep.subr.mxu0 0.0
    %5712 = vmatpush2.msra.mxu0 0.0
    %5713 = vmatprep.subr.mxu0 0.0
    %5714 = vmatpush2.msra.mxu0 0.0
    %5715 = vmatprep.subr.mxu0 0.0
    %5716 = vmatpush2.msra.mxu0 0.0
    %5717 = vmatprep.subr.mxu0 0.0
    %5718 = vmatpush2.msra.mxu0 0.0
    %5719 = vmatprep.mubr.f32.mxu0 0.0
    %5720 = vmatmul.mubr.f32.gmra.mxu0 %v5653
    %v5721 = vpop.f32.mrf.mxu0
    %v5722 = vadd.f32 %v5649, %v5721
    %v5723 = vpop.f32.mrf.mxu0
    %5724 = vdwg.mxu0
    %v5725 = vmax.f32 %v5722, 0.0
    %v5726 = vld [vmem:[%s9] sm:$0xff]
    %v5727 = vld [vmem:[%s9 + $0x8] sm:$0xff]
    %v5728 = vld [vmem:[%s9 + $0x10] sm:$0xff]
    %v5729 = vld [vmem:[%s9 + $0x18] sm:$0xff]
    %v5730 = vld [vmem:[%s9 + $0x20] sm:$0xff]
    %v5731 = vld [vmem:[%s9 + $0x28] sm:$0xff]
    %v5732 = vld [vmem:[%s9 + $0x30] sm:$0xff]
    %v5733 = vld [vmem:[%s9 + $0x38] sm:$0xff]
    %v5734 = vld [vmem:[%s9 + $0x40] sm:$0xff]
    %v5735 = vld [vmem:[%s9 + $0x48] sm:$0xff]
    %v5736 = vld [vmem:[%s9 + $0x50] sm:$0xf]
    %v5737 = vld [vmem:[%s10] sm:$0x1]
    %v5739 = vlaneseq
    %v5740 = vshrl.u32 %v5739, 7
    %v5741 = vsub.s32 0, %v5740
    %v5742 = vrot.slane %v5737, %v5741
    %vm5744 = vcmask 687104
    %v5746 = vsel %vm5744, %v5725, 0
    %v5749 = vsel %vm273, %v5736, 0
    %5751 = vmatprep.subr.mxu0 0.0
    %5752 = vmatpush1.msra.mxu0 0.0
    %5753 = vmatprep.subr.mxu0 0.0
    %5754 = vmatpush1.msra.mxu0 0.0
    %5755 = vmatprep.subr.mxu0 0.0
    %5756 = vmatpush1.msra.mxu0 0.0
    %5757 = vmatprep.subr.mxu0 0.0
    %5758 = vmatpush1.msra.mxu0 0.0
    %5759 = vmatprep.subr.mxu0 0.0
    %5760 = vmatpush1.msra.mxu0 0.0
    %5761 = vmatprep.subr.mxu0 0.0
    %5762 = vmatpush1.msra.mxu0 %v5749
    %5763 = vmatprep.subr.mxu0 0.0
    %5764 = vmatpush1.msra.mxu0 %v5735
    %5765 = vmatprep.subr.mxu0 0.0
    %5766 = vmatpush1.msra.mxu0 %v5734
    %5767 = vmatprep.subr.mxu0 0.0
    %5768 = vmatpush1.msra.mxu0 %v5733
    %5769 = vmatprep.subr.mxu0 0.0
    %5770 = vmatpush1.msra.mxu0 %v5732
    %5771 = vmatprep.subr.mxu0 0.0
    %5772 = vmatpush1.msra.mxu0 %v5731
    %5773 = vmatprep.subr.mxu0 0.0
    %5774 = vmatpush1.msra.mxu0 %v5730
    %5775 = vmatprep.subr.mxu0 0.0
    %5776 = vmatpush1.msra.mxu0 %v5729
    %5777 = vmatprep.subr.mxu0 0.0
    %5778 = vmatpush1.msra.mxu0 %v5728
    %5779 = vmatprep.subr.mxu0 0.0
    %5780 = vmatpush1.msra.mxu0 %v5727
    %5781 = vmatprep.subr.mxu0 0.0
    %5782 = vmatpush1.msra.mxu0 %v5726
    %5783 = vmatprep.subr.mxu0 0.0
    %5784 = vmatpush2.msra.mxu0 0.0
    %5785 = vmatprep.subr.mxu0 0.0
    %5786 = vmatpush2.msra.mxu0 0.0
    %5787 = vmatprep.subr.mxu0 0.0
    %5788 = vmatpush2.msra.mxu0 0.0
    %5789 = vmatprep.subr.mxu0 0.0
    %5790 = vmatpush2.msra.mxu0 0.0
    %5791 = vmatprep.subr.mxu0 0.0
    %5792 = vmatpush2.msra.mxu0 0.0
    %5793 = vmatprep.subr.mxu0 0.0
    %5794 = vmatpush2.msra.mxu0 0.0
    %5795 = vmatprep.subr.mxu0 0.0
    %5796 = vmatpush2.msra.mxu0 0.0
    %5797 = vmatprep.subr.mxu0 0.0
    %5798 = vmatpush2.msra.mxu0 0.0
    %5799 = vmatprep.subr.mxu0 0.0
    %5800 = vmatpush2.msra.mxu0 0.0
    %5801 = vmatprep.subr.mxu0 0.0
    %5802 = vmatpush2.msra.mxu0 0.0
    %5803 = vmatprep.subr.mxu0 0.0
    %5804 = vmatpush2.msra.mxu0 0.0
    %5805 = vmatprep.subr.mxu0 0.0
    %5806 = vmatpush2.msra.mxu0 0.0
    %5807 = vmatprep.subr.mxu0 0.0
    %5808 = vmatpush2.msra.mxu0 0.0
    %5809 = vmatprep.subr.mxu0 0.0
    %5810 = vmatpush2.msra.mxu0 0.0
    %5811 = vmatprep.subr.mxu0 0.0
    %5812 = vmatpush2.msra.mxu0 0.0
    %5813 = vmatprep.subr.mxu0 0.0
    %5814 = vmatpush2.msra.mxu0 0.0
    %5815 = vmatprep.mubr.f32.mxu0 0.0
    %5816 = vmatmul.mubr.f32.gmra.mxu0 %v5746
    %v5817 = vpop.f32.mrf.mxu0
    %v5818 = vadd.f32 %v5742, %v5817
    %v5819 = vpop.f32.mrf.mxu0
    %5820 = vdwg.mxu0
    %5821 = vst [vmem:[#allocation7] sm:$0xff] %v5818
    // Predicated region
    $region46: #{tpu_custom_call.1} parent=1 // pred_check
      _
    $region47: #{tpu_custom_call.1} parent=1 // pred_check_branch
      %5823 = sbr.rel (0) target = $region49
    $region48: #{tpu_custom_call.1} parent=1 // pred_region
      %s5825 = ssub.s32 128, 128
      %5826 = vsyncadd [#allocation8], %s5825
      %s5828 = sshll.u32 [#allocation7], 4
      %s5829 = int_to_ptr.vmem [resolvable:$true] %s5828
      %5831 = dma.vmem_to_hbm [thread:$0]  %s5829, 128, %s11, [#allocation8]
    $region49: #{tpu_custom_call.1} parent=1 // pred_fallthru
      _
    // Predicated region
    $region50: #{tpu_custom_call.1} parent=1 // pred_check
      _
    $region51: #{tpu_custom_call.1} parent=1 // pred_check_branch
      %5833 = sbr.rel (0) target = $region53
    $region52: #{tpu_custom_call.1} parent=1 // pred_region
      %5834 = dma.done [#allocation8], 128
    $region53: #{tpu_custom_call.1} parent=1 // pred_fallthru
      _
    %5835 = vsyncpa [#allocation8], 1

</llo_original>
